<compile_context>
chip_gen: v5e
topology: v5e:2x2
jax: 0.10.0
libtpu: 0.0.40
codegen_flags: <defaults>
</compile_context>

<pallas_src>
import jax
import jax.numpy as jnp
from jax.experimental import pallas as pl
from jax.experimental.pallas import tpu as pltpu

NEG_SLOPE = 0.01     # nn.LeakyReLU default
BN_EPS = 1e-5        # nn.BatchNorm2d default
COUT_PAD = 128       # pad conv output channels to a full lane width
C1_CIN_PAD = 8       # pad the 1-channel network input so layer-1 K is sublane aligned


# ----------------------------- Pallas kernels -------------------------------

def _conv_lrelu_bn_kernel(x_ref, w_ref, b_ref, scale_ref, shift_ref, o_ref):
    # x_ref:  (1, Ho+1, Wo+1, 4*Cin)  space-to-depth of the padded input, one batch element
    # w_ref:  (4, 4*Cin, Cout)        conv taps regrouped per 2x2 spatial shift (zero padded)
    # b/scale/shift: (1, Cout);  o_ref: (1, Ho*Wo, Cout)
    ho = x_ref.shape[1] - 1
    wo = x_ref.shape[2] - 1
    k = x_ref.shape[3]
    cout = o_ref.shape[-1]
    m = ho * wo

    acc = jnp.zeros((m, cout), jnp.float32)
    for di in range(2):
        for dj in range(2):
            blk = x_ref[0, pl.ds(di, ho), pl.ds(dj, wo), :]          # (ho, wo, 4*Cin)
            acc = acc + jnp.dot(blk.reshape(m, k), w_ref[2 * di + dj],
                                preferred_element_type=jnp.float32)
    y = acc + b_ref[...]
    y = jnp.where(y >= 0, y, NEG_SLOPE * y)          # LeakyReLU (before BN, as in the module)
    y = y * scale_ref[...] + shift_ref[...]          # BatchNorm2d inference affine
    o_ref[0] = y.astype(o_ref.dtype)


def _linear_lrelu_kernel(x_ref, w_ref, b_ref, o_ref, acc_ref):
    # grid = (O tiles [parallel], F tiles [arbitrary / reduction])
    f = pl.program_id(1)

    @pl.when(f == 0)
    def _():
        acc_ref[...] = jnp.zeros_like(acc_ref)

    acc_ref[...] += jnp.dot(x_ref[...], w_ref[...], preferred_element_type=jnp.float32)

    @pl.when(f == pl.num_programs(1) - 1)
    def _():
        y = acc_ref[...] + b_ref[...]
        o_ref[...] = jnp.where(y >= 0, y, NEG_SLOPE * y).astype(o_ref.dtype)


# ------------------------------- layer glue ---------------------------------

def _space_to_depth2(x):
    # (N, H, W, C), H/W even -> (N, H//2, W//2, 4C); out[n,i,j,(2a+b)*C+c] = x[n,2i+a,2j+b,c]
    n, h, w, c = x.shape
    x = x.reshape(n, h // 2, 2, w // 2, 2, c)
    x = jnp.transpose(x, (0, 1, 3, 2, 4, 5))
    return x.reshape(n, h // 2, w // 2, 4 * c)


def conv_lrelu_bn(x_nhwc, wblk, bias, scale, shift):
    """Fused Conv2d(k=3,s=2,p=1) + LeakyReLU + BatchNorm(inference) Pallas kernel."""
    n, h, w, cin = x_nhwc.shape
    assert h % 2 == 0 and w % 2 == 0
    cout = wblk.shape[-1]
    assert wblk.shape == (4, 4 * cin, cout)
    ho, wo = h // 2, w // 2

    xp = jnp.pad(x_nhwc, ((0, 0), (1, 1), (1, 1), (0, 0)))           # (n, h+2, w+2, cin)
    xs = _space_to_depth2(xp)                                        # (n, ho+1, wo+1, 4*cin)

    out = pl.pallas_call(
        _conv_lrelu_bn_kernel,
        out_shape=jax.ShapeDtypeStruct((n, ho * wo, cout), jnp.float32),
        grid=(n,),
        in_specs=[
            pl.BlockSpec((1, ho + 1, wo + 1, 4 * cin), lambda b: (b, 0, 0, 0)),
            pl.BlockSpec((4, 4 * cin, cout), lambda b: (0, 0, 0)),
            pl.BlockSpec((1, cout), lambda b: (0, 0)),
            pl.BlockSpec((1, cout), lambda b: (0, 0)),
            pl.BlockSpec((1, cout), lambda b: (0, 0)),
        ],
        out_specs=pl.BlockSpec((1, ho * wo, cout), lambda b: (b, 0, 0)),
        compiler_params=pltpu.CompilerParams(dimension_semantics=("parallel",)),
    )(xs, wblk, bias, scale, shift)
    return out.reshape(n, ho, wo, cout)              # row-major -> free reshape


def _pick_tile(total, target, align):
    """Largest divisor of `total` that is <= target and a multiple of `align` (else total)."""
    if total <= target:
        return total
    t = (min(target, total) // align) * align
    while t >= align:
        if total % t == 0:
            return t
        t -= align
    return total


def linear_lrelu(x, w_fo, b_1o, *, block_f=1024, block_o=128):
    """nn.Linear (weight pre-stored as (F, O)) + LeakyReLU, tiled over (O, F-reduction)."""
    n, f_dim = x.shape
    o_dim = w_fo.shape[1]
    bf = _pick_tile(f_dim, block_f, 128)
    bo = _pick_tile(o_dim, block_o, 128)
    grid = (o_dim // bo, f_dim // bf)
    return pl.pallas_call(
        _linear_lrelu_kernel,
        out_shape=jax.ShapeDtypeStruct((n, o_dim), jnp.float32),
        grid=grid,
        in_specs=[
            pl.BlockSpec((n, bf), lambda o, f: (0, f)),
            pl.BlockSpec((bf, bo), lambda o, f: (f, o)),
            pl.BlockSpec((1, bo), lambda o, f: (0, o)),
        ],
        out_specs=pl.BlockSpec((n, bo), lambda o, f: (0, o)),
        scratch_shapes=[pltpu.VMEM((n, bo), jnp.float32)],
        compiler_params=pltpu.CompilerParams(
            dimension_semantics=("parallel", "arbitrary")),
    )(x, w_fo, b_1o)


@jax.jit
def encoder_forward(x_nchw, prep):
    x = jnp.transpose(x_nchw, (0, 2, 3, 1))                          # NCHW -> NHWC (Cin=1: free)
    for name in ("c1", "c2", "c3"):
        wblk, bias, scale, shift = prep[name]
        cin_pad = wblk.shape[1] // 4
        if x.shape[-1] < cin_pad:                                    # zero channel padding
            x = jnp.pad(x, ((0, 0), (0, 0), (0, 0), (0, cin_pad - x.shape[-1])))
        x = conv_lrelu_bn(x, wblk, bias, scale, shift)
    x = x.reshape(x.shape[0], -1)                                    # NHWC flatten
    w_fc, b_fc = prep["fc"]                                          # FC weight already matches it
    return linear_lrelu(x, w_fc, b_fc)


# ----------------------- one-time host-side param repack ---------------------

def prepare_params(params):
    prep = {}
    cin_pads = {"c1": C1_CIN_PAD, "c2": COUT_PAD, "c3": COUT_PAD}
    for name in ("c1", "c2", "c3"):
        p = params[name]
        cout, cin = p["w"].shape[0], p["w"].shape[1]
        cin_pad, cout_pad = cin_pads[name], COUT_PAD
        # Regroup the 3x3 taps into 4 spatial-shift blocks matching the space-to-depth layout:
        #   wblk[2*di+dj, (2a+b)*cin_pad + c, co] = w[co, c, 2*di+a, 2*dj+b]
        wblk = jnp.zeros((4, 4 * cin_pad, cout_pad), jnp.float32)
        for dh in range(3):
            for dw in range(3):
                di, a = dh // 2, dh % 2
                dj, b = dw // 2, dw % 2
                r0 = (2 * a + b) * cin_pad
                wblk = wblk.at[2 * di + dj, r0:r0 + cin, :cout].set(
                    jnp.transpose(p["w"][:, :, dh, dw]))
        scale = p["gamma"] / jnp.sqrt(p["rvar"] + BN_EPS)
        shift = p["beta"] - p["rmean"] * scale

        def pad_row(v, fill):
            pad = jnp.full((cout_pad - cout,), fill, v.dtype)
            return jnp.concatenate([v, pad]).reshape(1, cout_pad)

        # padded channels: zero weight cols, bias 0, scale 1, shift 0 -> output exactly 0
        prep[name] = (wblk, pad_row(p["b"], 0.0), pad_row(scale, 1.0), pad_row(shift, 0.0))

    # FC: torch (O, F) over NCHW-flatten columns  ->  (F, O) over NHWC-flatten rows.
    w, b = params["fc"]["w"], params["fc"]["b"]
    o_dim, f_dim = w.shape
    c3 = params["c3"]["w"].shape[0]
    hw = f_dim // c3
    ho = wo = int(round(hw ** 0.5))
    w = w.reshape(o_dim, c3, ho, wo)
    w = jnp.transpose(w, (2, 3, 1, 0)).reshape(f_dim, o_dim)
    prep["fc"] = (w, b.reshape(1, o_dim))
    return prep


# --------------------------- deterministic params ---------------------------

def init_params(key, h, w):
    ks = jax.random.split(key, 20)

    def conv_p(i, cin, cout):
        k = ks[6 * i: 6 * i + 6]
        return dict(
            w=jax.random.normal(k[0], (cout, cin, 3, 3), jnp.float32) * 0.1,
            b=jax.random.normal(k[1], (cout,), jnp.float32) * 0.1,
            gamma=1.0 + 0.1 * jax.random.normal(k[2], (cout,), jnp.float32),
            beta=0.1 * jax.random.normal(k[3], (cout,), jnp.float32),
            rmean=0.05 * jax.random.normal(k[4], (cout,), jnp.float32),
            rvar=jnp.abs(1.0 + 0.1 * jax.random.normal(k[5], (cout,), jnp.float32)),
        )

    feat = 128 * (h // 8) * (w // 8)
    return dict(
        c1=conv_p(0, 1, 32),
        c2=conv_p(1, 32, 64),
        c3=conv_p(2, 64, 128),
        fc=dict(
            w=jax.random.normal(ks[18], (256, feat), jnp.float32) * 0.02,
            b=jax.random.normal(ks[19], (256,), jnp.float32) * 0.02,
        ),
    )


# --------------------------- plain-JAX reference -----------------------------

def _reference(x_nchw, params):
    x = jnp.transpose(x_nchw, (0, 2, 3, 1))
    for name in ("c1", "c2", "c3"):
        p = params[name]
        w_hwio = jnp.transpose(p["w"], (2, 3, 1, 0))
        y = jax.lax.conv_general_dilated(
            x, w_hwio, window_strides=(2, 2), padding=((1, 1), (1, 1)),
            dimension_numbers=("NHWC", "HWIO", "NHWC"))
        y = y + p["b"]
        y = jnp.where(y >= 0, y, NEG_SLOPE * y)
        scale = p["gamma"] / jnp.sqrt(p["rvar"] + BN_EPS)
        x = y * scale + (p["beta"] - p["rmean"] * scale)
    x = jnp.transpose(x, (0, 3, 1, 2)).reshape(x.shape[0], -1)       # torch NCHW flatten
    y = x @ params["fc"]["w"].T + params["fc"]["b"]
    return jnp.where(y >= 0, y, NEG_SLOPE * y)


# ----------------------------------- main ------------------------------------

if __name__ == "__main__":
    key = jax.random.PRNGKey(0)
    k_x, k_p = jax.random.split(key)
    N, H, W = 2, 32, 32
    x = jax.random.normal(k_x, (N, 1, H, W), jnp.float32)            # NCHW, like the PyTorch module
    params = init_params(k_p, H, W)
    prep = prepare_params(params)                                    # one-time repack (no per-call transposes)

    out = jax.block_until_ready(encoder_forward(x, prep))
    assert out.shape == (N, 256), out.shape

    ref = jax.block_until_ready(_reference(x, params))
    max_err = float(jnp.max(jnp.abs(out - ref)))
    assert jnp.allclose(out, ref, rtol=2e-3, atol=2e-3), max_err

    print("KERNEL_OK")
</pallas_src>

<mosaic_0001>
module attributes {stable_mosaic.version = 11 : i64} {
  func.func @_conv_lrelu_bn_kernel(%arg0: i32, %arg1: memref<1x17x17x32xf32, #tpu.memory_space<vmem>>, %arg2: memref<4x32x128xf32, #tpu.memory_space<vmem>>, %arg3: memref<1x128xf32, #tpu.memory_space<vmem>>, %arg4: memref<1x128xf32, #tpu.memory_space<vmem>>, %arg5: memref<1x128xf32, #tpu.memory_space<vmem>>, %arg6: memref<1x256x128xf32, #tpu.memory_space<vmem>>) attributes {dimension_semantics = [#tpu.dimension_semantics<parallel>], iteration_bounds = array<i64: 2>, scalar_prefetch = 0 : i64, scratch_operands = 0 : i64, tpu.core_type = #tpu.core_type<tc>, window_params = [{transform_indices = @transform_0, window_bounds = array<i64: 1, 17, 17, 32>}, {pipeline_mode = #tpu.pipeline_mode<synchronous>, transform_indices = @transform_1, window_bounds = array<i64: 4, 32, 128>}, {pipeline_mode = #tpu.pipeline_mode<synchronous>, transform_indices = @transform_2, window_bounds = array<i64: 1, 128>}, {pipeline_mode = #tpu.pipeline_mode<synchronous>, transform_indices = @transform_3, window_bounds = array<i64: 1, 128>}, {pipeline_mode = #tpu.pipeline_mode<synchronous>, transform_indices = @transform_4, window_bounds = array<i64: 1, 128>}, {transform_indices = @transform_5, window_bounds = array<i64: 1, 256, 128>}]} {
    %cst = arith.constant 0.000000e+00 : f32
    %0 = vector.broadcast %cst : f32 to vector<256x128xf32>
    %c0 = arith.constant 0 : index
    %c0_0 = arith.constant 0 : index
    %c0_1 = arith.constant 0 : index
    %c0_2 = arith.constant 0 : index
    %1 = vector.load %arg1[%c0, %c0_0, %c0_1, %c0_2] : memref<1x17x17x32xf32, #tpu.memory_space<vmem>>, vector<1x16x16x32xf32>
    %2 = vector.shape_cast %1 : vector<1x16x16x32xf32> to vector<16x16x32xf32>
    %3 = vector.shape_cast %2 : vector<16x16x32xf32> to vector<256x32xf32>
    %c0_3 = arith.constant 0 : index
    %c0_4 = arith.constant 0 : index
    %c0_5 = arith.constant 0 : index
    %4 = vector.load %arg2[%c0_3, %c0_4, %c0_5] : memref<4x32x128xf32, #tpu.memory_space<vmem>>, vector<1x32x128xf32>
    %5 = vector.shape_cast %4 : vector<1x32x128xf32> to vector<32x128xf32>
    %cst_6 = arith.constant dense<0.000000e+00> : vector<256x128xf32>
    %6 = tpu.matmul %3, %5, %cst_6 {dimension_numbers = #tpu.dot_dimension_numbers<[1], [0], [0], [1], [0, 0, 1, 1], [], []>} : vector<256x32xf32>, vector<32x128xf32>, vector<256x128xf32> -> vector<256x128xf32>
    %7 = arith.addf %0, %6 : vector<256x128xf32>
    %c0_7 = arith.constant 0 : index
    %c0_8 = arith.constant 0 : index
    %c1 = arith.constant 1 : index
    %c0_9 = arith.constant 0 : index
    %8 = vector.load %arg1[%c0_7, %c0_8, %c1, %c0_9] : memref<1x17x17x32xf32, #tpu.memory_space<vmem>>, vector<1x16x16x32xf32>
    %9 = vector.shape_cast %8 : vector<1x16x16x32xf32> to vector<16x16x32xf32>
    %10 = vector.shape_cast %9 : vector<16x16x32xf32> to vector<256x32xf32>
    %c1_10 = arith.constant 1 : index
    %c0_11 = arith.constant 0 : index
    %c0_12 = arith.constant 0 : index
    %11 = vector.load %arg2[%c1_10, %c0_11, %c0_12] : memref<4x32x128xf32, #tpu.memory_space<vmem>>, vector<1x32x128xf32>
    %12 = vector.shape_cast %11 : vector<1x32x128xf32> to vector<32x128xf32>
    %cst_13 = arith.constant dense<0.000000e+00> : vector<256x128xf32>
    %13 = tpu.matmul %10, %12, %cst_13 {dimension_numbers = #tpu.dot_dimension_numbers<[1], [0], [0], [1], [0, 0, 1, 1], [], []>} : vector<256x32xf32>, vector<32x128xf32>, vector<256x128xf32> -> vector<256x128xf32>
    %14 = arith.addf %7, %13 : vector<256x128xf32>
    %c0_14 = arith.constant 0 : index
    %c1_15 = arith.constant 1 : index
    %c0_16 = arith.constant 0 : index
    %c0_17 = arith.constant 0 : index
    %15 = vector.load %arg1[%c0_14, %c1_15, %c0_16, %c0_17] : memref<1x17x17x32xf32, #tpu.memory_space<vmem>>, vector<1x16x16x32xf32>
    %16 = vector.shape_cast %15 : vector<1x16x16x32xf32> to vector<16x16x32xf32>
    %17 = vector.shape_cast %16 : vector<16x16x32xf32> to vector<256x32xf32>
    %c2 = arith.constant 2 : index
    %c0_18 = arith.constant 0 : index
    %c0_19 = arith.constant 0 : index
    %18 = vector.load %arg2[%c2, %c0_18, %c0_19] : memref<4x32x128xf32, #tpu.memory_space<vmem>>, vector<1x32x128xf32>
    %19 = vector.shape_cast %18 : vector<1x32x128xf32> to vector<32x128xf32>
    %cst_20 = arith.constant dense<0.000000e+00> : vector<256x128xf32>
    %20 = tpu.matmul %17, %19, %cst_20 {dimension_numbers = #tpu.dot_dimension_numbers<[1], [0], [0], [1], [0, 0, 1, 1], [], []>} : vector<256x32xf32>, vector<32x128xf32>, vector<256x128xf32> -> vector<256x128xf32>
    %21 = arith.addf %14, %20 : vector<256x128xf32>
    %c0_21 = arith.constant 0 : index
    %c1_22 = arith.constant 1 : index
    %c1_23 = arith.constant 1 : index
    %c0_24 = arith.constant 0 : index
    %22 = vector.load %arg1[%c0_21, %c1_22, %c1_23, %c0_24] : memref<1x17x17x32xf32, #tpu.memory_space<vmem>>, vector<1x16x16x32xf32>
    %23 = vector.shape_cast %22 : vector<1x16x16x32xf32> to vector<16x16x32xf32>
    %24 = vector.shape_cast %23 : vector<16x16x32xf32> to vector<256x32xf32>
    %c3 = arith.constant 3 : index
    %c0_25 = arith.constant 0 : index
    %c0_26 = arith.constant 0 : index
    %25 = vector.load %arg2[%c3, %c0_25, %c0_26] : memref<4x32x128xf32, #tpu.memory_space<vmem>>, vector<1x32x128xf32>
    %26 = vector.shape_cast %25 : vector<1x32x128xf32> to vector<32x128xf32>
    %cst_27 = arith.constant dense<0.000000e+00> : vector<256x128xf32>
    %27 = tpu.matmul %24, %26, %cst_27 {dimension_numbers = #tpu.dot_dimension_numbers<[1], [0], [0], [1], [0, 0, 1, 1], [], []>} : vector<256x32xf32>, vector<32x128xf32>, vector<256x128xf32> -> vector<256x128xf32>
    %28 = arith.addf %21, %27 : vector<256x128xf32>
    %c0_28 = arith.constant 0 : index
    %c0_29 = arith.constant 0 : index
    %29 = vector.load %arg3[%c0_28, %c0_29] : memref<1x128xf32, #tpu.memory_space<vmem>>, vector<1x128xf32>
    %30 = vector.broadcast %29 : vector<1x128xf32> to vector<256x128xf32>
    %31 = arith.addf %28, %30 : vector<256x128xf32>
    %cst_30 = arith.constant 0.000000e+00 : f32
    %32 = vector.broadcast %cst_30 : f32 to vector<256x128xf32>
    %33 = arith.cmpf oge, %31, %32 : vector<256x128xf32>
    %cst_31 = arith.constant 0.00999999977 : f32
    %34 = vector.broadcast %cst_31 : f32 to vector<256x128xf32>
    %35 = arith.mulf %34, %31 : vector<256x128xf32>
    %36 = arith.select %33, %31, %35 : vector<256x128xi1>, vector<256x128xf32>
    %c0_32 = arith.constant 0 : index
    %c0_33 = arith.constant 0 : index
    %37 = vector.load %arg4[%c0_32, %c0_33] : memref<1x128xf32, #tpu.memory_space<vmem>>, vector<1x128xf32>
    %38 = vector.broadcast %37 : vector<1x128xf32> to vector<256x128xf32>
    %39 = arith.mulf %36, %38 : vector<256x128xf32>
    %c0_34 = arith.constant 0 : index
    %c0_35 = arith.constant 0 : index
    %40 = vector.load %arg5[%c0_34, %c0_35] : memref<1x128xf32, #tpu.memory_space<vmem>>, vector<1x128xf32>
    %41 = vector.broadcast %40 : vector<1x128xf32> to vector<256x128xf32>
    %42 = arith.addf %39, %41 : vector<256x128xf32>
    %c0_36 = arith.constant 0 : index
    %c0_37 = arith.constant 0 : index
    %c0_38 = arith.constant 0 : index
    %43 = vector.load %arg6[%c0_36, %c0_37, %c0_38] : memref<1x256x128xf32, #tpu.memory_space<vmem>>, vector<1x256x128xf32>
    %44 = vector.shape_cast %43 : vector<1x256x128xf32> to vector<256x128xf32>
    %45 = vector.shape_cast %42 : vector<256x128xf32> to vector<1x256x128xf32>
    tpu.vector_store %arg6[%c0_36, %c0_37, %c0_38], %45 {strides = array<i32>} : memref<1x256x128xf32, #tpu.memory_space<vmem>>, vector<1x256x128xf32>,
    return
  }
  func.func @transform_0(%arg0: i32) -> (i32, i32, i32, i32) {
    %c0_i32 = arith.constant 0 : i32
    %c0_i32_0 = arith.constant 0 : i32
    %c0_i32_1 = arith.constant 0 : i32
    %c0_i32_2 = arith.constant 0 : i32
    return %arg0, %c0_i32, %c0_i32_0, %c0_i32_1 : i32, i32, i32, i32
  }
  func.func @transform_1(%arg0: i32) -> (i32, i32, i32) {
    %c0_i32 = arith.constant 0 : i32
    %c0_i32_0 = arith.constant 0 : i32
    %c0_i32_1 = arith.constant 0 : i32
    %c0_i32_2 = arith.constant 0 : i32
    return %c0_i32, %c0_i32_0, %c0_i32_1 : i32, i32, i32
  }
  func.func @transform_2(%arg0: i32) -> (i32, i32) {
    %c0_i32 = arith.constant 0 : i32
    %c0_i32_0 = arith.constant 0 : i32
    %c0_i32_1 = arith.constant 0 : i32
    return %c0_i32, %c0_i32_0 : i32, i32
  }
  func.func @transform_3(%arg0: i32) -> (i32, i32) {
    %c0_i32 = arith.constant 0 : i32
    %c0_i32_0 = arith.constant 0 : i32
    %c0_i32_1 = arith.constant 0 : i32
    return %c0_i32, %c0_i32_0 : i32, i32
  }
  func.func @transform_4(%arg0: i32) -> (i32, i32) {
    %c0_i32 = arith.constant 0 : i32
    %c0_i32_0 = arith.constant 0 : i32
    %c0_i32_1 = arith.constant 0 : i32
    return %c0_i32, %c0_i32_0 : i32, i32
  }
  func.func @transform_5(%arg0: i32) -> (i32, i32, i32) {
    %c0_i32 = arith.constant 0 : i32
    %c0_i32_0 = arith.constant 0 : i32
    %c0_i32_1 = arith.constant 0 : i32
    return %arg0, %c0_i32, %c0_i32_0 : i32, i32, i32
  }
}

module attributes {stable_mosaic.version = 11 : i64} {
  func.func @_conv_lrelu_bn_kernel(%arg0: i32, %arg1: memref<1x9x9x512xf32, #tpu.memory_space<vmem>>, %arg2: memref<4x512x128xf32, #tpu.memory_space<vmem>>, %arg3: memref<1x128xf32, #tpu.memory_space<vmem>>, %arg4: memref<1x128xf32, #tpu.memory_space<vmem>>, %arg5: memref<1x128xf32, #tpu.memory_space<vmem>>, %arg6: memref<1x64x128xf32, #tpu.memory_space<vmem>>) attributes {dimension_semantics = [#tpu.dimension_semantics<parallel>], iteration_bounds = array<i64: 2>, scalar_prefetch = 0 : i64, scratch_operands = 0 : i64, tpu.core_type = #tpu.core_type<tc>, window_params = [{transform_indices = @transform_0, window_bounds = array<i64: 1, 9, 9, 512>}, {pipeline_mode = #tpu.pipeline_mode<synchronous>, transform_indices = @transform_1, window_bounds = array<i64: 4, 512, 128>}, {pipeline_mode = #tpu.pipeline_mode<synchronous>, transform_indices = @transform_2, window_bounds = array<i64: 1, 128>}, {pipeline_mode = #tpu.pipeline_mode<synchronous>, transform_indices = @transform_3, window_bounds = array<i64: 1, 128>}, {pipeline_mode = #tpu.pipeline_mode<synchronous>, transform_indices = @transform_4, window_bounds = array<i64: 1, 128>}, {transform_indices = @transform_5, window_bounds = array<i64: 1, 64, 128>}]} {
    %cst = arith.constant 0.000000e+00 : f32
    %0 = vector.broadcast %cst : f32 to vector<64x128xf32>
    %c0 = arith.constant 0 : index
    %c0_0 = arith.constant 0 : index
    %c0_1 = arith.constant 0 : index
    %c0_2 = arith.constant 0 : index
    %1 = vector.load %arg1[%c0, %c0_0, %c0_1, %c0_2] : memref<1x9x9x512xf32, #tpu.memory_space<vmem>>, vector<1x8x8x512xf32>
    %2 = vector.shape_cast %1 : vector<1x8x8x512xf32> to vector<8x8x512xf32>
    %3 = vector.shape_cast %2 : vector<8x8x512xf32> to vector<64x512xf32>
    %c0_3 = arith.constant 0 : index
    %c0_4 = arith.constant 0 : index
    %c0_5 = arith.constant 0 : index
    %4 = vector.load %arg2[%c0_3, %c0_4, %c0_5] : memref<4x512x128xf32, #tpu.memory_space<vmem>>, vector<1x512x128xf32>
    %5 = vector.shape_cast %4 : vector<1x512x128xf32> to vector<512x128xf32>
    %cst_6 = arith.constant dense<0.000000e+00> : vector<64x128xf32>
    %6 = tpu.matmul %3, %5, %cst_6 {dimension_numbers = #tpu.dot_dimension_numbers<[1], [0], [0], [1], [0, 0, 1, 1], [], []>} : vector<64x512xf32>, vector<512x128xf32>, vector<64x128xf32> -> vector<64x128xf32>
    %7 = arith.addf %0, %6 : vector<64x128xf32>
    %c0_7 = arith.constant 0 : index
    %c0_8 = arith.constant 0 : index
    %c1 = arith.constant 1 : index
    %c0_9 = arith.constant 0 : index
    %8 = vector.load %arg1[%c0_7, %c0_8, %c1, %c0_9] : memref<1x9x9x512xf32, #tpu.memory_space<vmem>>, vector<1x8x8x512xf32>
    %9 = vector.shape_cast %8 : vector<1x8x8x512xf32> to vector<8x8x512xf32>
    %10 = vector.shape_cast %9 : vector<8x8x512xf32> to vector<64x512xf32>
    %c1_10 = arith.constant 1 : index
    %c0_11 = arith.constant 0 : index
    %c0_12 = arith.constant 0 : index
    %11 = vector.load %arg2[%c1_10, %c0_11, %c0_12] : memref<4x512x128xf32, #tpu.memory_space<vmem>>, vector<1x512x128xf32>
    %12 = vector.shape_cast %11 : vector<1x512x128xf32> to vector<512x128xf32>
    %cst_13 = arith.constant dense<0.000000e+00> : vector<64x128xf32>
    %13 = tpu.matmul %10, %12, %cst_13 {dimension_numbers = #tpu.dot_dimension_numbers<[1], [0], [0], [1], [0, 0, 1, 1], [], []>} : vector<64x512xf32>, vector<512x128xf32>, vector<64x128xf32> -> vector<64x128xf32>
    %14 = arith.addf %7, %13 : vector<64x128xf32>
    %c0_14 = arith.constant 0 : index
    %c1_15 = arith.constant 1 : index
    %c0_16 = arith.constant 0 : index
    %c0_17 = arith.constant 0 : index
    %15 = vector.load %arg1[%c0_14, %c1_15, %c0_16, %c0_17] : memref<1x9x9x512xf32, #tpu.memory_space<vmem>>, vector<1x8x8x512xf32>
    %16 = vector.shape_cast %15 : vector<1x8x8x512xf32> to vector<8x8x512xf32>
    %17 = vector.shape_cast %16 : vector<8x8x512xf32> to vector<64x512xf32>
    %c2 = arith.constant 2 : index
    %c0_18 = arith.constant 0 : index
    %c0_19 = arith.constant 0 : index
    %18 = vector.load %arg2[%c2, %c0_18, %c0_19] : memref<4x512x128xf32, #tpu.memory_space<vmem>>, vector<1x512x128xf32>
    %19 = vector.shape_cast %18 : vector<1x512x128xf32> to vector<512x128xf32>
    %cst_20 = arith.constant dense<0.000000e+00> : vector<64x128xf32>
    %20 = tpu.matmul %17, %19, %cst_20 {dimension_numbers = #tpu.dot_dimension_numbers<[1], [0], [0], [1], [0, 0, 1, 1], [], []>} : vector<64x512xf32>, vector<512x128xf32>, vector<64x128xf32> -> vector<64x128xf32>
    %21 = arith.addf %14, %20 : vector<64x128xf32>
    %c0_21 = arith.constant 0 : index
    %c1_22 = arith.constant 1 : index
    %c1_23 = arith.constant 1 : index
    %c0_24 = arith.constant 0 : index
    %22 = vector.load %arg1[%c0_21, %c1_22, %c1_23, %c0_24] : memref<1x9x9x512xf32, #tpu.memory_space<vmem>>, vector<1x8x8x512xf32>
    %23 = vector.shape_cast %22 : vector<1x8x8x512xf32> to vector<8x8x512xf32>
    %24 = vector.shape_cast %23 : vector<8x8x512xf32> to vector<64x512xf32>
    %c3 = arith.constant 3 : index
    %c0_25 = arith.constant 0 : index
    %c0_26 = arith.constant 0 : index
    %25 = vector.load %arg2[%c3, %c0_25, %c0_26] : memref<4x512x128xf32, #tpu.memory_space<vmem>>, vector<1x512x128xf32>
    %26 = vector.shape_cast %25 : vector<1x512x128xf32> to vector<512x128xf32>
    %cst_27 = arith.constant dense<0.000000e+00> : vector<64x128xf32>
    %27 = tpu.matmul %24, %26, %cst_27 {dimension_numbers = #tpu.dot_dimension_numbers<[1], [0], [0], [1], [0, 0, 1, 1], [], []>} : vector<64x512xf32>, vector<512x128xf32>, vector<64x128xf32> -> vector<64x128xf32>
    %28 = arith.addf %21, %27 : vector<64x128xf32>
    %c0_28 = arith.constant 0 : index
    %c0_29 = arith.constant 0 : index
    %29 = vector.load %arg3[%c0_28, %c0_29] : memref<1x128xf32, #tpu.memory_space<vmem>>, vector<1x128xf32>
    %30 = vector.broadcast %29 : vector<1x128xf32> to vector<64x128xf32>
    %31 = arith.addf %28, %30 : vector<64x128xf32>
    %cst_30 = arith.constant 0.000000e+00 : f32
    %32 = vector.broadcast %cst_30 : f32 to vector<64x128xf32>
    %33 = arith.cmpf oge, %31, %32 : vector<64x128xf32>
    %cst_31 = arith.constant 0.00999999977 : f32
    %34 = vector.broadcast %cst_31 : f32 to vector<64x128xf32>
    %35 = arith.mulf %34, %31 : vector<64x128xf32>
    %36 = arith.select %33, %31, %35 : vector<64x128xi1>, vector<64x128xf32>
    %c0_32 = arith.constant 0 : index
    %c0_33 = arith.constant 0 : index
    %37 = vector.load %arg4[%c0_32, %c0_33] : memref<1x128xf32, #tpu.memory_space<vmem>>, vector<1x128xf32>
    %38 = vector.broadcast %37 : vector<1x128xf32> to vector<64x128xf32>
    %39 = arith.mulf %36, %38 : vector<64x128xf32>
    %c0_34 = arith.constant 0 : index
    %c0_35 = arith.constant 0 : index
    %40 = vector.load %arg5[%c0_34, %c0_35] : memref<1x128xf32, #tpu.memory_space<vmem>>, vector<1x128xf32>
    %41 = vector.broadcast %40 : vector<1x128xf32> to vector<64x128xf32>
    %42 = arith.addf %39, %41 : vector<64x128xf32>
    %c0_36 = arith.constant 0 : index
    %c0_37 = arith.constant 0 : index
    %c0_38 = arith.constant 0 : index
    %43 = vector.load %arg6[%c0_36, %c0_37, %c0_38] : memref<1x64x128xf32, #tpu.memory_space<vmem>>, vector<1x64x128xf32>
    %44 = vector.shape_cast %43 : vector<1x64x128xf32> to vector<64x128xf32>
    %45 = vector.shape_cast %42 : vector<64x128xf32> to vector<1x64x128xf32>
    tpu.vector_store %arg6[%c0_36, %c0_37, %c0_38], %45 {strides = array<i32>} : memref<1x64x128xf32, #tpu.memory_space<vmem>>, vector<1x64x128xf32>,
    return
  }
  func.func @transform_0(%arg0: i32) -> (i32, i32, i32, i32) {
    %c0_i32 = arith.constant 0 : i32
    %c0_i32_0 = arith.constant 0 : i32
    %c0_i32_1 = arith.constant 0 : i32
    %c0_i32_2 = arith.constant 0 : i32
    return %arg0, %c0_i32, %c0_i32_0, %c0_i32_1 : i32, i32, i32, i32
  }
  func.func @transform_1(%arg0: i32) -> (i32, i32, i32) {
    %c0_i32 = arith.constant 0 : i32
    %c0_i32_0 = arith.constant 0 : i32
    %c0_i32_1 = arith.constant 0 : i32
    %c0_i32_2 = arith.constant 0 : i32
    return %c0_i32, %c0_i32_0, %c0_i32_1 : i32, i32, i32
  }
  func.func @transform_2(%arg0: i32) -> (i32, i32) {
    %c0_i32 = arith.constant 0 : i32
    %c0_i32_0 = arith.constant 0 : i32
    %c0_i32_1 = arith.constant 0 : i32
    return %c0_i32, %c0_i32_0 : i32, i32
  }
  func.func @transform_3(%arg0: i32) -> (i32, i32) {
    %c0_i32 = arith.constant 0 : i32
    %c0_i32_0 = arith.constant 0 : i32
    %c0_i32_1 = arith.constant 0 : i32
    return %c0_i32, %c0_i32_0 : i32, i32
  }
  func.func @transform_4(%arg0: i32) -> (i32, i32) {
    %c0_i32 = arith.constant 0 : i32
    %c0_i32_0 = arith.constant 0 : i32
    %c0_i32_1 = arith.constant 0 : i32
    return %c0_i32, %c0_i32_0 : i32, i32
  }
  func.func @transform_5(%arg0: i32) -> (i32, i32, i32) {
    %c0_i32 = arith.constant 0 : i32
    %c0_i32_0 = arith.constant 0 : i32
    %c0_i32_1 = arith.constant 0 : i32
    return %arg0, %c0_i32, %c0_i32_0 : i32, i32, i32
  }
}

module attributes {stable_mosaic.version = 11 : i64} {
  func.func @_linear_lrelu_kernel(%arg0: i32, %arg1: i32, %arg2: memref<2x1024xf32, #tpu.memory_space<vmem>>, %arg3: memref<1024x128xf32, #tpu.memory_space<vmem>>, %arg4: memref<1x128xf32, #tpu.memory_space<vmem>>, %arg5: memref<2x128xf32, #tpu.memory_space<vmem>>, %arg6: memref<2x128xf32, #tpu.memory_space<vmem>>) attributes {dimension_semantics = [#tpu.dimension_semantics<parallel>, #tpu.dimension_semantics<arbitrary>], iteration_bounds = array<i64: 2, 2>, scalar_prefetch = 0 : i64, scratch_operands = 1 : i64, tpu.core_type = #tpu.core_type<tc>, window_params = [{transform_indices = @transform_0, window_bounds = array<i64: 2, 1024>}, {transform_indices = @transform_1, window_bounds = array<i64: 1024, 128>}, {transform_indices = @transform_2, window_bounds = array<i64: 1, 128>}, {transform_indices = @transform_3, window_bounds = array<i64: 2, 128>}]} {
    %c0_i32 = arith.constant 0 : i32
    %0 = arith.cmpi eq, %arg1, %c0_i32 : i32
    %1 = arith.extui %0 : i1 to i32
    %c0_i32_0 = arith.constant 0 : i32
    %2 = arith.cmpi ne, %1, %c0_i32_0 : i32
    scf.if %2 {
      %cst_9 = arith.constant 0.000000e+00 : f32
      %12 = vector.broadcast %cst_9 : f32 to vector<2x128xf32>
      %c0_10 = arith.constant 0 : index
      %c0_11 = arith.constant 0 : index
      %13 = vector.load %arg6[%c0_10, %c0_11] : memref<2x128xf32, #tpu.memory_space<vmem>>, vector<2x128xf32>
      tpu.vector_store %arg6[%c0_10, %c0_11], %12 {strides = array<i32>} : memref<2x128xf32, #tpu.memory_space<vmem>>, vector<2x128xf32>,
    } else {
    }
    %c0 = arith.constant 0 : index
    %c0_1 = arith.constant 0 : index
    %3 = vector.load %arg6[%c0, %c0_1] : memref<2x128xf32, #tpu.memory_space<vmem>>, vector<2x128xf32>
    %c0_2 = arith.constant 0 : index
    %c0_3 = arith.constant 0 : index
    %4 = vector.load %arg2[%c0_2, %c0_3] : memref<2x1024xf32, #tpu.memory_space<vmem>>, vector<2x1024xf32>
    %c0_4 = arith.constant 0 : index
    %c0_5 = arith.constant 0 : index
    %5 = vector.load %arg3[%c0_4, %c0_5] : memref<1024x128xf32, #tpu.memory_space<vmem>>, vector<1024x128xf32>
    %cst = arith.constant dense<0.000000e+00> : vector<2x128xf32>
    %6 = tpu.matmul %4, %5, %cst {dimension_numbers = #tpu.dot_dimension_numbers<[1], [0], [0], [1], [0, 0, 1, 1], [], []>} : vector<2x1024xf32>, vector<1024x128xf32>, vector<2x128xf32> -> vector<2x128xf32>
    %7 = arith.addf %3, %6 : vector<2x128xf32>
    %c0_6 = arith.constant 0 : index
    %c0_7 = arith.constant 0 : index
    %8 = vector.load %arg6[%c0_6, %c0_7] : memref<2x128xf32, #tpu.memory_space<vmem>>, vector<2x128xf32>
    tpu.vector_store %arg6[%c0_6, %c0_7], %7 {strides = array<i32>} : memref<2x128xf32, #tpu.memory_space<vmem>>, vector<2x128xf32>,
    %c1_i32 = arith.constant 1 : i32
    %9 = arith.cmpi eq, %arg1, %c1_i32 : i32
    %10 = arith.extui %9 : i1 to i32
    %c0_i32_8 = arith.constant 0 : i32
    %11 = arith.cmpi ne, %10, %c0_i32_8 : i32
    scf.if %11 {
      %c0_9 = arith.constant 0 : index
      %c0_10 = arith.constant 0 : index
      %12 = vector.load %arg6[%c0_9, %c0_10] : memref<2x128xf32, #tpu.memory_space<vmem>>, vector<2x128xf32>
      %c0_11 = arith.constant 0 : index
      %c0_12 = arith.constant 0 : index
      %13 = vector.load %arg4[%c0_11, %c0_12] : memref<1x128xf32, #tpu.memory_space<vmem>>, vector<1x128xf32>
      %14 = vector.broadcast %13 : vector<1x128xf32> to vector<2x128xf32>
      %15 = arith.addf %12, %14 : vector<2x128xf32>
      %cst_13 = arith.constant 0.000000e+00 : f32
      %16 = vector.broadcast %cst_13 : f32 to vector<2x128xf32>
      %17 = arith.cmpf oge, %15, %16 : vector<2x128xf32>
      %cst_14 = arith.constant 0.00999999977 : f32
      %18 = vector.broadcast %cst_14 : f32 to vector<2x128xf32>
      %19 = arith.mulf %18, %15 : vector<2x128xf32>
      %20 = arith.select %17, %15, %19 : vector<2x128xi1>, vector<2x128xf32>
      %c0_15 = arith.constant 0 : index
      %c0_16 = arith.constant 0 : index
      %21 = vector.load %arg5[%c0_15, %c0_16] : memref<2x128xf32, #tpu.memory_space<vmem>>, vector<2x128xf32>
      tpu.vector_store %arg5[%c0_15, %c0_16], %20 {strides = array<i32>} : memref<2x128xf32, #tpu.memory_space<vmem>>, vector<2x128xf32>,
    } else {
    }
    return
  }
  func.func @transform_0(%arg0: i32, %arg1: i32) -> (i32, i32) {
    %c0_i32 = arith.constant 0 : i32
    %c0_i32_0 = arith.constant 0 : i32
    return %c0_i32, %arg1 : i32, i32
  }
  func.func @transform_1(%arg0: i32, %arg1: i32) -> (i32, i32) {
    %c0_i32 = arith.constant 0 : i32
    return %arg1, %arg0 : i32, i32
  }
  func.func @transform_2(%arg0: i32, %arg1: i32) -> (i32, i32) {
    %c0_i32 = arith.constant 0 : i32
    %c0_i32_0 = arith.constant 0 : i32
    return %c0_i32, %arg0 : i32, i32
  }
  func.func @transform_3(%arg0: i32, %arg1: i32) -> (i32, i32) {
    %c0_i32 = arith.constant 0 : i32
    %c0_i32_0 = arith.constant 0 : i32
    return %c0_i32, %arg0 : i32, i32
  }
}

module attributes {stable_mosaic.version = 11 : i64} {
  func.func @_conv_lrelu_bn_kernel(%arg0: i32, %arg1: memref<1x5x5x512xf32, #tpu.memory_space<vmem>>, %arg2: memref<4x512x128xf32, #tpu.memory_space<vmem>>, %arg3: memref<1x128xf32, #tpu.memory_space<vmem>>, %arg4: memref<1x128xf32, #tpu.memory_space<vmem>>, %arg5: memref<1x128xf32, #tpu.memory_space<vmem>>, %arg6: memref<1x16x128xf32, #tpu.memory_space<vmem>>) attributes {dimension_semantics = [#tpu.dimension_semantics<parallel>], iteration_bounds = array<i64: 2>, scalar_prefetch = 0 : i64, scratch_operands = 0 : i64, tpu.core_type = #tpu.core_type<tc>, window_params = [{transform_indices = @transform_0, window_bounds = array<i64: 1, 5, 5, 512>}, {pipeline_mode = #tpu.pipeline_mode<synchronous>, transform_indices = @transform_1, window_bounds = array<i64: 4, 512, 128>}, {pipeline_mode = #tpu.pipeline_mode<synchronous>, transform_indices = @transform_2, window_bounds = array<i64: 1, 128>}, {pipeline_mode = #tpu.pipeline_mode<synchronous>, transform_indices = @transform_3, window_bounds = array<i64: 1, 128>}, {pipeline_mode = #tpu.pipeline_mode<synchronous>, transform_indices = @transform_4, window_bounds = array<i64: 1, 128>}, {transform_indices = @transform_5, window_bounds = array<i64: 1, 16, 128>}]} {
    %cst = arith.constant 0.000000e+00 : f32
    %0 = vector.broadcast %cst : f32 to vector<16x128xf32>
    %c0 = arith.constant 0 : index
    %c0_0 = arith.constant 0 : index
    %c0_1 = arith.constant 0 : index
    %c0_2 = arith.constant 0 : index
    %1 = vector.load %arg1[%c0, %c0_0, %c0_1, %c0_2] : memref<1x5x5x512xf32, #tpu.memory_space<vmem>>, vector<1x4x4x512xf32>
    %2 = vector.shape_cast %1 : vector<1x4x4x512xf32> to vector<4x4x512xf32>
    %3 = vector.shape_cast %2 : vector<4x4x512xf32> to vector<16x512xf32>
    %c0_3 = arith.constant 0 : index
    %c0_4 = arith.constant 0 : index
    %c0_5 = arith.constant 0 : index
    %4 = vector.load %arg2[%c0_3, %c0_4, %c0_5] : memref<4x512x128xf32, #tpu.memory_space<vmem>>, vector<1x512x128xf32>
    %5 = vector.shape_cast %4 : vector<1x512x128xf32> to vector<512x128xf32>
    %cst_6 = arith.constant dense<0.000000e+00> : vector<16x128xf32>
    %6 = tpu.matmul %3, %5, %cst_6 {dimension_numbers = #tpu.dot_dimension_numbers<[1], [0], [0], [1], [0, 0, 1, 1], [], []>} : vector<16x512xf32>, vector<512x128xf32>, vector<16x128xf32> -> vector<16x128xf32>
    %7 = arith.addf %0, %6 : vector<16x128xf32>
    %c0_7 = arith.constant 0 : index
    %c0_8 = arith.constant 0 : index
    %c1 = arith.constant 1 : index
    %c0_9 = arith.constant 0 : index
    %8 = vector.load %arg1[%c0_7, %c0_8, %c1, %c0_9] : memref<1x5x5x512xf32, #tpu.memory_space<vmem>>, vector<1x4x4x512xf32>
    %9 = vector.shape_cast %8 : vector<1x4x4x512xf32> to vector<4x4x512xf32>
    %10 = vector.shape_cast %9 : vector<4x4x512xf32> to vector<16x512xf32>
    %c1_10 = arith.constant 1 : index
    %c0_11 = arith.constant 0 : index
    %c0_12 = arith.constant 0 : index
    %11 = vector.load %arg2[%c1_10, %c0_11, %c0_12] : memref<4x512x128xf32, #tpu.memory_space<vmem>>, vector<1x512x128xf32>
    %12 = vector.shape_cast %11 : vector<1x512x128xf32> to vector<512x128xf32>
    %cst_13 = arith.constant dense<0.000000e+00> : vector<16x128xf32>
    %13 = tpu.matmul %10, %12, %cst_13 {dimension_numbers = #tpu.dot_dimension_numbers<[1], [0], [0], [1], [0, 0, 1, 1], [], []>} : vector<16x512xf32>, vector<512x128xf32>, vector<16x128xf32> -> vector<16x128xf32>
    %14 = arith.addf %7, %13 : vector<16x128xf32>
    %c0_14 = arith.constant 0 : index
    %c1_15 = arith.constant 1 : index
    %c0_16 = arith.constant 0 : index
    %c0_17 = arith.constant 0 : index
    %15 = vector.load %arg1[%c0_14, %c1_15, %c0_16, %c0_17] : memref<1x5x5x512xf32, #tpu.memory_space<vmem>>, vector<1x4x4x512xf32>
    %16 = vector.shape_cast %15 : vector<1x4x4x512xf32> to vector<4x4x512xf32>
    %17 = vector.shape_cast %16 : vector<4x4x512xf32> to vector<16x512xf32>
    %c2 = arith.constant 2 : index
    %c0_18 = arith.constant 0 : index
    %c0_19 = arith.constant 0 : index
    %18 = vector.load %arg2[%c2, %c0_18, %c0_19] : memref<4x512x128xf32, #tpu.memory_space<vmem>>, vector<1x512x128xf32>
    %19 = vector.shape_cast %18 : vector<1x512x128xf32> to vector<512x128xf32>
    %cst_20 = arith.constant dense<0.000000e+00> : vector<16x128xf32>
    %20 = tpu.matmul %17, %19, %cst_20 {dimension_numbers = #tpu.dot_dimension_numbers<[1], [0], [0], [1], [0, 0, 1, 1], [], []>} : vector<16x512xf32>, vector<512x128xf32>, vector<16x128xf32> -> vector<16x128xf32>
    %21 = arith.addf %14, %20 : vector<16x128xf32>
    %c0_21 = arith.constant 0 : index
    %c1_22 = arith.constant 1 : index
    %c1_23 = arith.constant 1 : index
    %c0_24 = arith.constant 0 : index
    %22 = vector.load %arg1[%c0_21, %c1_22, %c1_23, %c0_24] : memref<1x5x5x512xf32, #tpu.memory_space<vmem>>, vector<1x4x4x512xf32>
    %23 = vector.shape_cast %22 : vector<1x4x4x512xf32> to vector<4x4x512xf32>
    %24 = vector.shape_cast %23 : vector<4x4x512xf32> to vector<16x512xf32>
    %c3 = arith.constant 3 : index
    %c0_25 = arith.constant 0 : index
    %c0_26 = arith.constant 0 : index
    %25 = vector.load %arg2[%c3, %c0_25, %c0_26] : memref<4x512x128xf32, #tpu.memory_space<vmem>>, vector<1x512x128xf32>
    %26 = vector.shape_cast %25 : vector<1x512x128xf32> to vector<512x128xf32>
    %cst_27 = arith.constant dense<0.000000e+00> : vector<16x128xf32>
    %27 = tpu.matmul %24, %26, %cst_27 {dimension_numbers = #tpu.dot_dimension_numbers<[1], [0], [0], [1], [0, 0, 1, 1], [], []>} : vector<16x512xf32>, vector<512x128xf32>, vector<16x128xf32> -> vector<16x128xf32>
    %28 = arith.addf %21, %27 : vector<16x128xf32>
    %c0_28 = arith.constant 0 : index
    %c0_29 = arith.constant 0 : index
    %29 = vector.load %arg3[%c0_28, %c0_29] : memref<1x128xf32, #tpu.memory_space<vmem>>, vector<1x128xf32>
    %30 = vector.broadcast %29 : vector<1x128xf32> to vector<16x128xf32>
    %31 = arith.addf %28, %30 : vector<16x128xf32>
    %cst_30 = arith.constant 0.000000e+00 : f32
    %32 = vector.broadcast %cst_30 : f32 to vector<16x128xf32>
    %33 = arith.cmpf oge, %31, %32 : vector<16x128xf32>
    %cst_31 = arith.constant 0.00999999977 : f32
    %34 = vector.broadcast %cst_31 : f32 to vector<16x128xf32>
    %35 = arith.mulf %34, %31 : vector<16x128xf32>
    %36 = arith.select %33, %31, %35 : vector<16x128xi1>, vector<16x128xf32>
    %c0_32 = arith.constant 0 : index
    %c0_33 = arith.constant 0 : index
    %37 = vector.load %arg4[%c0_32, %c0_33] : memref<1x128xf32, #tpu.memory_space<vmem>>, vector<1x128xf32>
    %38 = vector.broadcast %37 : vector<1x128xf32> to vector<16x128xf32>
    %39 = arith.mulf %36, %38 : vector<16x128xf32>
    %c0_34 = arith.constant 0 : index
    %c0_35 = arith.constant 0 : index
    %40 = vector.load %arg5[%c0_34, %c0_35] : memref<1x128xf32, #tpu.memory_space<vmem>>, vector<1x128xf32>
    %41 = vector.broadcast %40 : vector<1x128xf32> to vector<16x128xf32>
    %42 = arith.addf %39, %41 : vector<16x128xf32>
    %c0_36 = arith.constant 0 : index
    %c0_37 = arith.constant 0 : index
    %c0_38 = arith.constant 0 : index
    %43 = vector.load %arg6[%c0_36, %c0_37, %c0_38] : memref<1x16x128xf32, #tpu.memory_space<vmem>>, vector<1x16x128xf32>
    %44 = vector.shape_cast %43 : vector<1x16x128xf32> to vector<16x128xf32>
    %45 = vector.shape_cast %42 : vector<16x128xf32> to vector<1x16x128xf32>
    tpu.vector_store %arg6[%c0_36, %c0_37, %c0_38], %45 {strides = array<i32>} : memref<1x16x128xf32, #tpu.memory_space<vmem>>, vector<1x16x128xf32>,
    return
  }
  func.func @transform_0(%arg0: i32) -> (i32, i32, i32, i32) {
    %c0_i32 = arith.constant 0 : i32
    %c0_i32_0 = arith.constant 0 : i32
    %c0_i32_1 = arith.constant 0 : i32
    %c0_i32_2 = arith.constant 0 : i32
    return %arg0, %c0_i32, %c0_i32_0, %c0_i32_1 : i32, i32, i32, i32
  }
  func.func @transform_1(%arg0: i32) -> (i32, i32, i32) {
    %c0_i32 = arith.constant 0 : i32
    %c0_i32_0 = arith.constant 0 : i32
    %c0_i32_1 = arith.constant 0 : i32
    %c0_i32_2 = arith.constant 0 : i32
    return %c0_i32, %c0_i32_0, %c0_i32_1 : i32, i32, i32
  }
  func.func @transform_2(%arg0: i32) -> (i32, i32) {
    %c0_i32 = arith.constant 0 : i32
    %c0_i32_0 = arith.constant 0 : i32
    %c0_i32_1 = arith.constant 0 : i32
    return %c0_i32, %c0_i32_0 : i32, i32
  }
  func.func @transform_3(%arg0: i32) -> (i32, i32) {
    %c0_i32 = arith.constant 0 : i32
    %c0_i32_0 = arith.constant 0 : i32
    %c0_i32_1 = arith.constant 0 : i32
    return %c0_i32, %c0_i32_0 : i32, i32
  }
  func.func @transform_4(%arg0: i32) -> (i32, i32) {
    %c0_i32 = arith.constant 0 : i32
    %c0_i32_0 = arith.constant 0 : i32
    %c0_i32_1 = arith.constant 0 : i32
    return %c0_i32, %c0_i32_0 : i32, i32
  }
  func.func @transform_5(%arg0: i32) -> (i32, i32, i32) {
    %c0_i32 = arith.constant 0 : i32
    %c0_i32_0 = arith.constant 0 : i32
    %c0_i32_1 = arith.constant 0 : i32
    return %arg0, %c0_i32, %c0_i32_0 : i32, i32, i32
  }
}

</mosaic_0001>

<llo_original>
// kernel: encoder_forward.4
$region0: #{encoder_forward.4}
  #allocation0 [shape = 'u32[]', space=smem, size = 0x4, offset = 0x4, fixed_abs, tag = 'smem constant byte address 0x4 - core index']
  #allocation1 [shape = 'u32[72,128]{1,0:T(1,128)}', space=vmem, size = 0x9000, scoped, tag = 'internal scratch']
  %s0 = inlined_call_operand.vmem [shape: f32[2,17,17,32], index: 0, kind: input, shape index: {}]
  %s1 = inlined_call_operand.vmem [shape: f32[4,32,128], index: 1, kind: input, shape index: {}]
  %s2 = inlined_call_operand.vmem [shape: f32[1,128], index: 2, kind: input, shape index: {}]
  %s3 = inlined_call_operand.vmem [shape: f32[1,128], index: 3, kind: input, shape index: {}]
  %s4 = inlined_call_operand.vmem [shape: f32[1,128], index: 4, kind: input, shape index: {}]
  %s5 = inlined_call_operand.vmem [shape: f32[2,256,128], index: 5, kind: output, shape index: {}]
  %s6 = sld [smem:[#allocation0]]
  $region53: #{encoder_forward.4} parent=0
    _
  %s8 = ssub.s32 1, %s6
  %s9 = scalar_select 0, %s8, %s6
  loop: start=0, step=1, limit=4
  $region2: #{encoder_forward.4} parent=0 // loop_pre_header
    _
  $region3: #{encoder_forward.4} parent=0 // loop_header
    %s11 = sphi 0, %s15
    %p12 = scmp.ge.s32.totalorder %s11, 4
    %s21 = sphi 0, %s23
    %s24 = sphi 0, %s21
    %s25 = sphi 0, %s24
    %s41 = sphi 0, %s25
    %s45 = sphi 0, %s45
    %s47 = sphi 0, %s45
    %s48 = sphi 0, %s47
    %s62 = sphi 0, %s48
    %s66 = sphi 0, %s66
    %s68 = sphi 0, %s66
    %s69 = sphi 0, %s68
    %s83 = sphi 0, %s69
    %s87 = sphi 0, %s87
    %s89 = sphi 0, %s87
    %s90 = sphi 0, %s89
    %s104 = sphi 0, %s90
    %s108 = sphi 0, %s108
    %s110 = sphi 0, %s108
    %s111 = sphi 0, %s110
    %s125 = sphi 0, %s111
    %s131 = sphi 0, %s133
    %s134 = sphi 0, %s131
    %s135 = sphi 0, %s134
    %s151 = sphi 0, %s135
  $region4: #{encoder_forward.4} parent=0 // loop_header_branch
    %14 = sbr.rel (%p12) target = $region8
  $region5: #{encoder_forward.4} parent=0 // loop_body
    %s16 = ssub.s32 %s11, 1
    %s17 = ssub.s32 %s11, 2
    %s18 = sadd.s32 %s11, 1
    %s19 = ssub.s32 %s11, %s18
    %p20 = scmp.eq.s32.totalorder %s19, 0
    %s22 = sadd.s32 %s21, 1
    %s23 = scalar_select %p20, %s21, %s22
    %p26 = pneg %p20
    %p27 = scmp.eq.s32.totalorder %s11, 1
    %p28 = por %p26, %p27
    %p29 = scmp.ne.s32.totalorder %s21, %s24
    %p30 = scmp.eq.s32.totalorder %s11, 0
    %p31 = por %p29, %p30
    %p32 = scmp.ne.s32.totalorder %s21, %s24
    %p33 = scmp.eq.s32.totalorder %s16, 1
    %p34 = por %p32, %p33
    %p35 = scmp.ne.s32.totalorder %s24, %s25
    %p36 = scmp.eq.s32.totalorder %s16, 0
    %p37 = por %p35, %p36
    %p38 = scmp.ne.s32.totalorder %s24, %s25
    %p39 = scmp.eq.s32.totalorder %s17, 1
    %p40 = por %p38, %p39
    %p42 = scmp.ne.s32.totalorder %s25, %s41
    %p43 = scmp.eq.s32.totalorder %s17, 0
    %p44 = por %p42, %p43
    %s46 = sadd.s32 %s45, 1
    %p49 = scmp.eq.s32.totalorder %s11, 1
    %p50 = scmp.ne.s32.totalorder %s45, %s47
    %p51 = scmp.eq.s32.totalorder %s11, 0
    %p52 = por %p50, %p51
    %p53 = scmp.ne.s32.totalorder %s45, %s47
    %p54 = scmp.eq.s32.totalorder %s16, 1
    %p55 = por %p53, %p54
    %p56 = scmp.ne.s32.totalorder %s47, %s48
    %p57 = scmp.eq.s32.totalorder %s16, 0
    %p58 = por %p56, %p57
    %p59 = scmp.ne.s32.totalorder %s47, %s48
    %p60 = scmp.eq.s32.totalorder %s17, 1
    %p61 = por %p59, %p60
    %p63 = scmp.ne.s32.totalorder %s48, %s62
    %p64 = scmp.eq.s32.totalorder %s17, 0
    %p65 = por %p63, %p64
    %s67 = sadd.s32 %s66, 1
    %p70 = scmp.eq.s32.totalorder %s11, 1
    %p71 = scmp.ne.s32.totalorder %s66, %s68
    %p72 = scmp.eq.s32.totalorder %s11, 0
    %p73 = por %p71, %p72
    %p74 = scmp.ne.s32.totalorder %s66, %s68
    %p75 = scmp.eq.s32.totalorder %s16, 1
    %p76 = por %p74, %p75
    %p77 = scmp.ne.s32.totalorder %s68, %s69
    %p78 = scmp.eq.s32.totalorder %s16, 0
    %p79 = por %p77, %p78
    %p80 = scmp.ne.s32.totalorder %s68, %s69
    %p81 = scmp.eq.s32.totalorder %s17, 1
    %p82 = por %p80, %p81
    %p84 = scmp.ne.s32.totalorder %s69, %s83
    %p85 = scmp.eq.s32.totalorder %s17, 0
    %p86 = por %p84, %p85
    %s88 = sadd.s32 %s87, 1
    %p91 = scmp.eq.s32.totalorder %s11, 1
    %p92 = scmp.ne.s32.totalorder %s87, %s89
    %p93 = scmp.eq.s32.totalorder %s11, 0
    %p94 = por %p92, %p93
    %p95 = scmp.ne.s32.totalorder %s87, %s89
    %p96 = scmp.eq.s32.totalorder %s16, 1
    %p97 = por %p95, %p96
    %p98 = scmp.ne.s32.totalorder %s89, %s90
    %p99 = scmp.eq.s32.totalorder %s16, 0
    %p100 = por %p98, %p99
    %p101 = scmp.ne.s32.totalorder %s89, %s90
    %p102 = scmp.eq.s32.totalorder %s17, 1
    %p103 = por %p101, %p102
    %p105 = scmp.ne.s32.totalorder %s90, %s104
    %p106 = scmp.eq.s32.totalorder %s17, 0
    %p107 = por %p105, %p106
    %s109 = sadd.s32 %s108, 1
    %p112 = scmp.eq.s32.totalorder %s11, 1
    %p113 = scmp.ne.s32.totalorder %s108, %s110
    %p114 = scmp.eq.s32.totalorder %s11, 0
    %p115 = por %p113, %p114
    %p116 = scmp.ne.s32.totalorder %s108, %s110
    %p117 = scmp.eq.s32.totalorder %s16, 1
    %p118 = por %p116, %p117
    %p119 = scmp.ne.s32.totalorder %s110, %s111
    %p120 = scmp.eq.s32.totalorder %s16, 0
    %p121 = por %p119, %p120
    %p122 = scmp.ne.s32.totalorder %s110, %s111
    %p123 = scmp.eq.s32.totalorder %s17, 1
    %p124 = por %p122, %p123
    %p126 = scmp.ne.s32.totalorder %s111, %s125
    %p127 = scmp.eq.s32.totalorder %s17, 0
    %p128 = por %p126, %p127
    %s129 = ssub.s32 %s11, %s18
    %p130 = scmp.eq.s32.totalorder %s129, 0
    %s132 = sadd.s32 %s131, 1
    %s133 = scalar_select %p130, %s131, %s132
    %p136 = pneg %p130
    %p137 = scmp.eq.s32.totalorder %s11, 1
    %p138 = por %p136, %p137
    %p139 = scmp.ne.s32.totalorder %s131, %s134
    %p140 = scmp.eq.s32.totalorder %s11, 0
    %p141 = por %p139, %p140
    %p142 = scmp.ne.s32.totalorder %s131, %s134
    %p143 = scmp.eq.s32.totalorder %s16, 1
    %p144 = por %p142, %p143
    %p145 = scmp.ne.s32.totalorder %s134, %s135
    %p146 = scmp.eq.s32.totalorder %s16, 0
    %p147 = por %p145, %p146
    %p148 = scmp.ne.s32.totalorder %s134, %s135
    %p149 = scmp.eq.s32.totalorder %s17, 1
    %p150 = por %p148, %p149
    %p152 = scmp.ne.s32.totalorder %s135, %s151
    %p153 = scmp.eq.s32.totalorder %s17, 0
    %p154 = por %p152, %p153
    %p155 = scmp.le.s32.totalorder 1, %s11
    %p156 = scmp.lt.s32.totalorder %s11, 3
    %p157 = pnand %p155, %p156
    %p158 = pneg %p157
    // Predicated region
    $region9: #{encoder_forward.4} parent=5 // pred_check
      _
    $region10: #{encoder_forward.4} parent=5 // pred_check_branch
      %160 = sbr.rel (%p157) target = $region12
    $region11: #{encoder_forward.4} parent=5 // pred_region
      %s161 = ssub.s32 %s11, 1
      // Predicated region
      $region13: #{encoder_forward.4} parent=11 // pred_check
        %p162 = pneg %p58
      $region14: #{encoder_forward.4} parent=11 // pred_check_branch
        %164 = sbr.rel (%p162) target = $region16
      $region15: #{encoder_forward.4} parent=11 // pred_region
        _
      $region16: #{encoder_forward.4} parent=11 // pred_fallthru
        _
      // Predicated region
      $region17: #{encoder_forward.4} parent=11 // pred_check
        %p165 = pneg %p79
      $region18: #{encoder_forward.4} parent=11 // pred_check_branch
        %167 = sbr.rel (%p165) target = $region20
      $region19: #{encoder_forward.4} parent=11 // pred_region
        _
      $region20: #{encoder_forward.4} parent=11 // pred_fallthru
        _
      // Predicated region
      $region21: #{encoder_forward.4} parent=11 // pred_check
        %p168 = pneg %p100
      $region22: #{encoder_forward.4} parent=11 // pred_check_branch
        %170 = sbr.rel (%p168) target = $region24
      $region23: #{encoder_forward.4} parent=11 // pred_region
        _
      $region24: #{encoder_forward.4} parent=11 // pred_fallthru
        _
      // Predicated region
      $region25: #{encoder_forward.4} parent=11 // pred_check
        %p171 = pneg %p121
      $region26: #{encoder_forward.4} parent=11 // pred_check_branch
        %173 = sbr.rel (%p171) target = $region28
      $region27: #{encoder_forward.4} parent=11 // pred_region
        _
      $region28: #{encoder_forward.4} parent=11 // pred_fallthru
        _
    $region12: #{encoder_forward.4} parent=5 // pred_fallthru
      _
    %p174 = scmp.lt.s32.totalorder %s11, 2
    // Predicated region
    $region29: #{encoder_forward.4} parent=5 // pred_check
      %p175 = pneg %p174
    $region30: #{encoder_forward.4} parent=5 // pred_check_branch
      %177 = sbr.rel (%p175) target = $region32
    $region31: #{encoder_forward.4} parent=5 // pred_region
      // Predicated region
      $region33: #{encoder_forward.4} parent=31 // pred_check
        %p178 = pneg %p31
      $region34: #{encoder_forward.4} parent=31 // pred_check_branch
        %180 = sbr.rel (%p178) target = $region36
      $region35: #{encoder_forward.4} parent=31 // pred_region
        %p181 = scmp.lt.s32.totalorder %s11, 1
        %s182 = scalar_select %p181, %s11, 1
        %s183 = smul.addr %s182, 51
        %s184 = smul.addr %s183, 8
        %s185 = scalar_lea.vmem %s0, %s184
      $region36: #{encoder_forward.4} parent=31 // pred_fallthru
        _
    $region32: #{encoder_forward.4} parent=5 // pred_fallthru
      _
    %p186 = scmp.le.s32.totalorder 1, %s11
    %p187 = scmp.lt.s32.totalorder %s11, 3
    %p188 = pnand %p186, %p187
    %p189 = pneg %p188
    // Predicated region
    $region37: #{encoder_forward.4} parent=5 // pred_check
      _
    $region38: #{encoder_forward.4} parent=5 // pred_check_branch
      %191 = sbr.rel (%p188) target = $region40
    $region39: #{encoder_forward.4} parent=5 // pred_region
      %s192 = ssub.s32 %s11, 1
      %p193 = scmp.lt.s32.totalorder %s16, 1
      %s194 = scalar_select %p193, %s16, 1
      %s195 = smul.addr %s194, 51
      %s196 = smul.addr %s195, 8
      %s197 = scalar_lea.vmem %s0, %s196
      %p198 = pneg %p37
      %p199 = pneg %p34
      %p200 = pneg %p58
      %p201 = pneg %p55
      %p202 = pneg %p79
      %p203 = pneg %p76
      %p204 = pneg %p100
      %p205 = pneg %p97
      %p206 = pneg %p121
      %p207 = pneg %p118
      %p208 = pneg %p147
      %p209 = pneg %p144
      %p210 = scmp.lt.s32.totalorder %s16, 1
      %s211 = scalar_select %p210, %s16, 1
      %s212 = smul.addr %s211, 32
      %s213 = smul.addr %s212, 8
      %s214 = scalar_lea.vmem %s5, %s213
      %p215 = scmp.lt.s32.totalorder %s16, 1
      %s216 = scalar_select %p215, %s16, 1
      %s217 = smul.addr %s216, 51
      %s218 = smul.addr %s217, 8
      %s219 = scalar_lea.vmem %s0, %s218
      %p220 = scmp.lt.s32.totalorder %s16, 1
      %s221 = scalar_select %p220, %s16, 1
      %s222 = smul.addr %s221, 32
      %s223 = smul.addr %s222, 8
      %s224 = scalar_lea.vmem %s5, %s223
      %v225 = vld [vmem:[%s219] sm:$0xff]
      %v226 = vld [vmem:[%s219 + $0x8] sm:$0xff]
      %v227 = vld [vmem:[%s219 + $0x18] sm:$0xff]
      %v228 = vld [vmem:[%s219 + $0x20] sm:$0xff]
      %v229 = vld [vmem:[%s219 + $0x30] sm:$0xff]
      %v230 = vld [vmem:[%s219 + $0x38] sm:$0xff]
      %v231 = vld [vmem:[%s219 + $0x48] sm:$0xff]
      %v232 = vld [vmem:[%s219 + $0x50] sm:$0xff]
      %v233 = vld [vmem:[%s219 + $0x60] sm:$0xff]
      %v234 = vld [vmem:[%s219 + $0x68] sm:$0xff]
      %v235 = vld [vmem:[%s219 + $0x78] sm:$0xff]
      %v236 = vld [vmem:[%s219 + $0x80] sm:$0xff]
      %v237 = vld [vmem:[%s219 + $0x90] sm:$0xff]
      %v238 = vld [vmem:[%s219 + $0x98] sm:$0xff]
      %v239 = vld [vmem:[%s219 + $0xa8] sm:$0xff]
      %v240 = vld [vmem:[%s219 + $0xb0] sm:$0xff]
      %v241 = vld [vmem:[%s219 + $0xc0] sm:$0xff]
      %v242 = vld [vmem:[%s219 + $0xc8] sm:$0xff]
      %v243 = vld [vmem:[%s219 + $0xd8] sm:$0xff]
      %v244 = vld [vmem:[%s219 + $0xe0] sm:$0xff]
      %v245 = vld [vmem:[%s219 + $0xf0] sm:$0xff]
      %v246 = vld [vmem:[%s219 + $0xf8] sm:$0xff]
      %v247 = vld [vmem:[%s219 + $0x108] sm:$0xff]
      %v248 = vld [vmem:[%s219 + $0x110] sm:$0xff]
      %v249 = vld [vmem:[%s219 + $0x120] sm:$0xff]
      %v250 = vld [vmem:[%s219 + $0x128] sm:$0xff]
      %v251 = vld [vmem:[%s219 + $0x138] sm:$0xff]
      %v252 = vld [vmem:[%s219 + $0x140] sm:$0xff]
      %v253 = vld [vmem:[%s219 + $0x150] sm:$0xff]
      %v254 = vld [vmem:[%s219 + $0x158] sm:$0xff]
      %v255 = vld [vmem:[%s219 + $0x168] sm:$0xff]
      %v256 = vld [vmem:[%s219 + $0x170] sm:$0xff]
      %v257 = vld [vmem:[%s1] sm:$0xff]
      %v258 = vld [vmem:[%s1 + $0x8] sm:$0xff]
      %v259 = vld [vmem:[%s1 + $0x10] sm:$0xff]
      %v260 = vld [vmem:[%s1 + $0x18] sm:$0xff]
      %v261 = vld [vmem:[%s219 + $0x1] sm:$0xff]
      %v262 = vld [vmem:[%s219 + $0x9] sm:$0xff]
      %v263 = vld [vmem:[%s219 + $0x19] sm:$0xff]
      %v264 = vld [vmem:[%s219 + $0x21] sm:$0xff]
      %v265 = vld [vmem:[%s219 + $0x31] sm:$0xff]
      %v266 = vld [vmem:[%s219 + $0x39] sm:$0xff]
      %v267 = vld [vmem:[%s219 + $0x49] sm:$0xff]
      %v268 = vld [vmem:[%s219 + $0x51] sm:$0xff]
      %v269 = vld [vmem:[%s219 + $0x61] sm:$0xff]
      %v270 = vld [vmem:[%s219 + $0x69] sm:$0xff]
      %v271 = vld [vmem:[%s219 + $0x79] sm:$0xff]
      %v272 = vld [vmem:[%s219 + $0x81] sm:$0xff]
      %v273 = vld [vmem:[%s219 + $0x91] sm:$0xff]
      %v274 = vld [vmem:[%s219 + $0x99] sm:$0xff]
      %v275 = vld [vmem:[%s219 + $0xa9] sm:$0xff]
      %v276 = vld [vmem:[%s219 + $0xb1] sm:$0xff]
      %v277 = vld [vmem:[%s219 + $0xc1] sm:$0xff]
      %v278 = vld [vmem:[%s219 + $0xc9] sm:$0xff]
      %v279 = vld [vmem:[%s219 + $0xd9] sm:$0xff]
      %v280 = vld [vmem:[%s219 + $0xe1] sm:$0xff]
      %v281 = vld [vmem:[%s219 + $0xf1] sm:$0xff]
      %v282 = vld [vmem:[%s219 + $0xf9] sm:$0xff]
      %v283 = vld [vmem:[%s219 + $0x109] sm:$0xff]
      %v284 = vld [vmem:[%s219 + $0x111] sm:$0xff]
      %v285 = vld [vmem:[%s219 + $0x121] sm:$0xff]
      %v286 = vld [vmem:[%s219 + $0x129] sm:$0xff]
      %v287 = vld [vmem:[%s219 + $0x139] sm:$0xff]
      %v288 = vld [vmem:[%s219 + $0x141] sm:$0xff]
      %v289 = vld [vmem:[%s219 + $0x151] sm:$0xff]
      %v290 = vld [vmem:[%s219 + $0x159] sm:$0xff]
      %v291 = vld [vmem:[%s219 + $0x169] sm:$0xff]
      %v292 = vld [vmem:[%s219 + $0x171] sm:$0xff]
      %s293 = scalar_lea.vmem %s1, 32
      %v294 = vld [vmem:[%s293] sm:$0xff]
      %v295 = vld [vmem:[%s293 + $0x8] sm:$0xff]
      %v296 = vld [vmem:[%s293 + $0x10] sm:$0xff]
      %v297 = vld [vmem:[%s293 + $0x18] sm:$0xff]
      %vm298 = vcmask 261120
      %v300 = vsel %vm298, %v261, 0
      %v303 = vsel %vm298, %v262, 0
      %v306 = vsel %vm298, %v263, 0
      %v309 = vsel %vm298, %v264, 0
      %v312 = vsel %vm298, %v265, 0
      %v315 = vsel %vm298, %v266, 0
      %v318 = vsel %vm298, %v267, 0
      %v321 = vsel %vm298, %v268, 0
      %v324 = vsel %vm298, %v269, 0
      %v327 = vsel %vm298, %v270, 0
      %v330 = vsel %vm298, %v271, 0
      %v333 = vsel %vm298, %v272, 0
      %v336 = vsel %vm298, %v273, 0
      %v339 = vsel %vm298, %v274, 0
      %v342 = vsel %vm298, %v275, 0
      %v345 = vsel %vm298, %v276, 0
      %v348 = vsel %vm298, %v277, 0
      %v351 = vsel %vm298, %v278, 0
      %v354 = vsel %vm298, %v279, 0
      %v357 = vsel %vm298, %v280, 0
      %v360 = vsel %vm298, %v281, 0
      %v363 = vsel %vm298, %v282, 0
      %v366 = vsel %vm298, %v283, 0
      %v369 = vsel %vm298, %v284, 0
      %v372 = vsel %vm298, %v285, 0
      %v375 = vsel %vm298, %v286, 0
      %v378 = vsel %vm298, %v287, 0
      %v381 = vsel %vm298, %v288, 0
      %v384 = vsel %vm298, %v289, 0
      %v387 = vsel %vm298, %v290, 0
      %v390 = vsel %vm298, %v291, 0
      %v393 = vsel %vm298, %v292, 0
      %395 = vmatpush.msra.mxu0 0.0
      %396 = vmatpush.msra.mxu0 0.0
      %397 = vmatpush.msra.mxu0 0.0
      %398 = vmatpush.msra.mxu0 0.0
      %399 = vmatpush.msra.mxu0 0.0
      %400 = vmatpush.msra.mxu0 0.0
      %401 = vmatpush.msra.mxu0 0.0
      %402 = vmatpush.msra.mxu0 0.0
      %403 = vmatpush.msra.mxu0 0.0
      %404 = vmatpush.msra.mxu0 0.0
      %405 = vmatpush.msra.mxu0 0.0
      %406 = vmatpush.msra.mxu0 0.0
      %407 = vmatpush.msra.mxu0 %v297
      %408 = vmatpush.msra.mxu0 %v296
      %409 = vmatpush.msra.mxu0 %v295
      %410 = vmatpush.msra.mxu0 %v294
      %411 = vmatmul.f32.gmra.mxu0 %v300
      %v412 = vpop.f32.mrf.mxu0
      %v413 = vadd.f32 0.0, %v412
      %414 = vmatmul.f32.gmra.mxu0 %v303
      %v415 = vpop.f32.mrf.mxu0
      %v416 = vadd.f32 0.0, %v415
      %417 = vmatmul.f32.gmra.mxu0 %v306
      %v418 = vpop.f32.mrf.mxu0
      %v419 = vadd.f32 0.0, %v418
      %420 = vmatmul.f32.gmra.mxu0 %v309
      %v421 = vpop.f32.mrf.mxu0
      %v422 = vadd.f32 0.0, %v421
      %423 = vmatmul.f32.gmra.mxu0 %v312
      %v424 = vpop.f32.mrf.mxu0
      %v425 = vadd.f32 0.0, %v424
      %426 = vmatmul.f32.gmra.mxu0 %v315
      %v427 = vpop.f32.mrf.mxu0
      %v428 = vadd.f32 0.0, %v427
      %429 = vmatmul.f32.gmra.mxu0 %v318
      %v430 = vpop.f32.mrf.mxu0
      %v431 = vadd.f32 0.0, %v430
      %432 = vmatmul.f32.gmra.mxu0 %v321
      %v433 = vpop.f32.mrf.mxu0
      %v434 = vadd.f32 0.0, %v433
      %435 = vmatmul.f32.gmra.mxu0 %v324
      %v436 = vpop.f32.mrf.mxu0
      %v437 = vadd.f32 0.0, %v436
      %438 = vmatmul.f32.gmra.mxu0 %v327
      %v439 = vpop.f32.mrf.mxu0
      %v440 = vadd.f32 0.0, %v439
      %441 = vmatmul.f32.gmra.mxu0 %v330
      %v442 = vpop.f32.mrf.mxu0
      %v443 = vadd.f32 0.0, %v442
      %444 = vmatmul.f32.gmra.mxu0 %v333
      %v445 = vpop.f32.mrf.mxu0
      %v446 = vadd.f32 0.0, %v445
      %447 = vmatmul.f32.gmra.mxu0 %v336
      %v448 = vpop.f32.mrf.mxu0
      %v449 = vadd.f32 0.0, %v448
      %450 = vmatmul.f32.gmra.mxu0 %v339
      %v451 = vpop.f32.mrf.mxu0
      %v452 = vadd.f32 0.0, %v451
      %453 = vmatmul.f32.gmra.mxu0 %v342
      %v454 = vpop.f32.mrf.mxu0
      %v455 = vadd.f32 0.0, %v454
      %456 = vmatmul.f32.gmra.mxu0 %v345
      %v457 = vpop.f32.mrf.mxu0
      %v458 = vadd.f32 0.0, %v457
      %459 = vmatmul.f32.gmra.mxu0 %v348
      %v460 = vpop.f32.mrf.mxu0
      %v461 = vadd.f32 0.0, %v460
      %462 = vmatmul.f32.gmra.mxu0 %v351
      %v463 = vpop.f32.mrf.mxu0
      %v464 = vadd.f32 0.0, %v463
      %465 = vmatmul.f32.gmra.mxu0 %v354
      %v466 = vpop.f32.mrf.mxu0
      %v467 = vadd.f32 0.0, %v466
      %468 = vmatmul.f32.gmra.mxu0 %v357
      %v469 = vpop.f32.mrf.mxu0
      %v470 = vadd.f32 0.0, %v469
      %471 = vmatmul.f32.gmra.mxu0 %v360
      %v472 = vpop.f32.mrf.mxu0
      %v473 = vadd.f32 0.0, %v472
      %474 = vmatmul.f32.gmra.mxu0 %v363
      %v475 = vpop.f32.mrf.mxu0
      %v476 = vadd.f32 0.0, %v475
      %477 = vmatmul.f32.gmra.mxu0 %v366
      %v478 = vpop.f32.mrf.mxu0
      %v479 = vadd.f32 0.0, %v478
      %480 = vmatmul.f32.gmra.mxu0 %v369
      %v481 = vpop.f32.mrf.mxu0
      %v482 = vadd.f32 0.0, %v481
      %483 = vmatmul.f32.gmra.mxu0 %v372
      %v484 = vpop.f32.mrf.mxu0
      %v485 = vadd.f32 0.0, %v484
      %486 = vmatmul.f32.gmra.mxu0 %v375
      %v487 = vpop.f32.mrf.mxu0
      %v488 = vadd.f32 0.0, %v487
      %489 = vmatmul.f32.gmra.mxu0 %v378
      %v490 = vpop.f32.mrf.mxu0
      %v491 = vadd.f32 0.0, %v490
      %492 = vmatmul.f32.gmra.mxu0 %v381
      %v493 = vpop.f32.mrf.mxu0
      %v494 = vadd.f32 0.0, %v493
      %495 = vmatmul.f32.gmra.mxu0 %v384
      %v496 = vpop.f32.mrf.mxu0
      %v497 = vadd.f32 0.0, %v496
      %498 = vmatmul.f32.gmra.mxu0 %v387
      %v499 = vpop.f32.mrf.mxu0
      %v500 = vadd.f32 0.0, %v499
      %501 = vmatmul.f32.gmra.mxu0 %v390
      %v502 = vpop.f32.mrf.mxu0
      %v503 = vadd.f32 0.0, %v502
      %504 = vmatmul.f32.gmra.mxu0 %v393
      %v505 = vpop.f32.mrf.mxu0
      %v506 = vadd.f32 0.0, %v505
      %507 = vdwg.mxu0
      %v509 = vsel %vm298, %v225, 0
      %v512 = vsel %vm298, %v226, 0
      %v515 = vsel %vm298, %v227, 0
      %v518 = vsel %vm298, %v228, 0
      %v521 = vsel %vm298, %v229, 0
      %v524 = vsel %vm298, %v230, 0
      %v527 = vsel %vm298, %v231, 0
      %v530 = vsel %vm298, %v232, 0
      %v533 = vsel %vm298, %v233, 0
      %v536 = vsel %vm298, %v234, 0
      %v539 = vsel %vm298, %v235, 0
      %v542 = vsel %vm298, %v236, 0
      %v545 = vsel %vm298, %v237, 0
      %v548 = vsel %vm298, %v238, 0
      %v551 = vsel %vm298, %v239, 0
      %v554 = vsel %vm298, %v240, 0
      %v557 = vsel %vm298, %v241, 0
      %v560 = vsel %vm298, %v242, 0
      %v563 = vsel %vm298, %v243, 0
      %v566 = vsel %vm298, %v244, 0
      %v569 = vsel %vm298, %v245, 0
      %v572 = vsel %vm298, %v246, 0
      %v575 = vsel %vm298, %v247, 0
      %v578 = vsel %vm298, %v248, 0
      %v581 = vsel %vm298, %v249, 0
      %v584 = vsel %vm298, %v250, 0
      %v587 = vsel %vm298, %v251, 0
      %v590 = vsel %vm298, %v252, 0
      %v593 = vsel %vm298, %v253, 0
      %v596 = vsel %vm298, %v254, 0
      %v599 = vsel %vm298, %v255, 0
      %v602 = vsel %vm298, %v256, 0
      %604 = vmatpush.msra.mxu0 0.0
      %605 = vmatpush.msra.mxu0 0.0
      %606 = vmatpush.msra.mxu0 0.0
      %607 = vmatpush.msra.mxu0 0.0
      %608 = vmatpush.msra.mxu0 0.0
      %609 = vmatpush.msra.mxu0 0.0
      %610 = vmatpush.msra.mxu0 0.0
      %611 = vmatpush.msra.mxu0 0.0
      %612 = vmatpush.msra.mxu0 0.0
      %613 = vmatpush.msra.mxu0 0.0
      %614 = vmatpush.msra.mxu0 0.0
      %615 = vmatpush.msra.mxu0 0.0
      %616 = vmatpush.msra.mxu0 %v260
      %617 = vmatpush.msra.mxu0 %v259
      %618 = vmatpush.msra.mxu0 %v258
      %619 = vmatpush.msra.mxu0 %v257
      %620 = vmatmul.f32.gmra.mxu0 %v509
      %v621 = vpop.f32.mrf.mxu0
      %v622 = vadd.f32 %v413, %v621
      %623 = vmatmul.f32.gmra.mxu0 %v512
      %v624 = vpop.f32.mrf.mxu0
      %v625 = vadd.f32 %v416, %v624
      %626 = vmatmul.f32.gmra.mxu0 %v515
      %v627 = vpop.f32.mrf.mxu0
      %v628 = vadd.f32 %v419, %v627
      %629 = vmatmul.f32.gmra.mxu0 %v518
      %v630 = vpop.f32.mrf.mxu0
      %v631 = vadd.f32 %v422, %v630
      %632 = vmatmul.f32.gmra.mxu0 %v521
      %v633 = vpop.f32.mrf.mxu0
      %v634 = vadd.f32 %v425, %v633
      %635 = vmatmul.f32.gmra.mxu0 %v524
      %v636 = vpop.f32.mrf.mxu0
      %v637 = vadd.f32 %v428, %v636
      %638 = vmatmul.f32.gmra.mxu0 %v527
      %v639 = vpop.f32.mrf.mxu0
      %v640 = vadd.f32 %v431, %v639
      %641 = vmatmul.f32.gmra.mxu0 %v530
      %v642 = vpop.f32.mrf.mxu0
      %v643 = vadd.f32 %v434, %v642
      %644 = vmatmul.f32.gmra.mxu0 %v533
      %v645 = vpop.f32.mrf.mxu0
      %v646 = vadd.f32 %v437, %v645
      %647 = vmatmul.f32.gmra.mxu0 %v536
      %v648 = vpop.f32.mrf.mxu0
      %v649 = vadd.f32 %v440, %v648
      %650 = vmatmul.f32.gmra.mxu0 %v539
      %v651 = vpop.f32.mrf.mxu0
      %v652 = vadd.f32 %v443, %v651
      %653 = vmatmul.f32.gmra.mxu0 %v542
      %v654 = vpop.f32.mrf.mxu0
      %v655 = vadd.f32 %v446, %v654
      %656 = vmatmul.f32.gmra.mxu0 %v545
      %v657 = vpop.f32.mrf.mxu0
      %v658 = vadd.f32 %v449, %v657
      %659 = vmatmul.f32.gmra.mxu0 %v548
      %v660 = vpop.f32.mrf.mxu0
      %v661 = vadd.f32 %v452, %v660
      %662 = vmatmul.f32.gmra.mxu0 %v551
      %v663 = vpop.f32.mrf.mxu0
      %v664 = vadd.f32 %v455, %v663
      %665 = vmatmul.f32.gmra.mxu0 %v554
      %v666 = vpop.f32.mrf.mxu0
      %v667 = vadd.f32 %v458, %v666
      %668 = vmatmul.f32.gmra.mxu0 %v557
      %v669 = vpop.f32.mrf.mxu0
      %v670 = vadd.f32 %v461, %v669
      %671 = vmatmul.f32.gmra.mxu0 %v560
      %v672 = vpop.f32.mrf.mxu0
      %v673 = vadd.f32 %v464, %v672
      %674 = vmatmul.f32.gmra.mxu0 %v563
      %v675 = vpop.f32.mrf.mxu0
      %v676 = vadd.f32 %v467, %v675
      %677 = vmatmul.f32.gmra.mxu0 %v566
      %v678 = vpop.f32.mrf.mxu0
      %v679 = vadd.f32 %v470, %v678
      %680 = vmatmul.f32.gmra.mxu0 %v569
      %v681 = vpop.f32.mrf.mxu0
      %v682 = vadd.f32 %v473, %v681
      %683 = vmatmul.f32.gmra.mxu0 %v572
      %v684 = vpop.f32.mrf.mxu0
      %v685 = vadd.f32 %v476, %v684
      %686 = vmatmul.f32.gmra.mxu0 %v575
      %v687 = vpop.f32.mrf.mxu0
      %v688 = vadd.f32 %v479, %v687
      %689 = vmatmul.f32.gmra.mxu0 %v578
      %v690 = vpop.f32.mrf.mxu0
      %v691 = vadd.f32 %v482, %v690
      %692 = vmatmul.f32.gmra.mxu0 %v581
      %v693 = vpop.f32.mrf.mxu0
      %v694 = vadd.f32 %v485, %v693
      %695 = vmatmul.f32.gmra.mxu0 %v584
      %v696 = vpop.f32.mrf.mxu0
      %v697 = vadd.f32 %v488, %v696
      %698 = vmatmul.f32.gmra.mxu0 %v587
      %v699 = vpop.f32.mrf.mxu0
      %v700 = vadd.f32 %v491, %v699
      %701 = vmatmul.f32.gmra.mxu0 %v590
      %v702 = vpop.f32.mrf.mxu0
      %v703 = vadd.f32 %v494, %v702
      %704 = vmatmul.f32.gmra.mxu0 %v593
      %v705 = vpop.f32.mrf.mxu0
      %v706 = vadd.f32 %v497, %v705
      %707 = vmatmul.f32.gmra.mxu0 %v596
      %v708 = vpop.f32.mrf.mxu0
      %v709 = vadd.f32 %v500, %v708
      %710 = vmatmul.f32.gmra.mxu0 %v599
      %v711 = vpop.f32.mrf.mxu0
      %v712 = vadd.f32 %v503, %v711
      %713 = vmatmul.f32.gmra.mxu0 %v602
      %v714 = vpop.f32.mrf.mxu0
      %v715 = vadd.f32 %v506, %v714
      %716 = vdwg.mxu0
      %s717 = scalar_lea.vmem %s219, 24
      %v718 = vld [vmem:[%s717] sm:$0xff]
      %v719 = vld [vmem:[%s717 + $0x8] sm:$0xff]
      %v720 = vld [vmem:[%s717 + $0x18] sm:$0xff]
      %v721 = vld [vmem:[%s717 + $0x20] sm:$0xff]
      %v722 = vld [vmem:[%s717 + $0x30] sm:$0xff]
      %v723 = vld [vmem:[%s717 + $0x38] sm:$0xff]
      %v724 = vld [vmem:[%s717 + $0x48] sm:$0xff]
      %v725 = vld [vmem:[%s717 + $0x50] sm:$0xff]
      %v726 = vld [vmem:[%s717 + $0x60] sm:$0xff]
      %v727 = vld [vmem:[%s717 + $0x68] sm:$0xff]
      %v728 = vld [vmem:[%s717 + $0x78] sm:$0xff]
      %v729 = vld [vmem:[%s717 + $0x80] sm:$0xff]
      %v730 = vld [vmem:[%s717 + $0x90] sm:$0xff]
      %v731 = vld [vmem:[%s717 + $0x98] sm:$0xff]
      %v732 = vld [vmem:[%s717 + $0xa8] sm:$0xff]
      %v733 = vld [vmem:[%s717 + $0xb0] sm:$0xff]
      %v734 = vld [vmem:[%s717 + $0xc0] sm:$0xff]
      %v735 = vld [vmem:[%s717 + $0xc8] sm:$0xff]
      %v736 = vld [vmem:[%s717 + $0xd8] sm:$0xff]
      %v737 = vld [vmem:[%s717 + $0xe0] sm:$0xff]
      %v738 = vld [vmem:[%s717 + $0xf0] sm:$0xff]
      %v739 = vld [vmem:[%s717 + $0xf8] sm:$0xff]
      %v740 = vld [vmem:[%s717 + $0x108] sm:$0xff]
      %v741 = vld [vmem:[%s717 + $0x110] sm:$0xff]
      %v742 = vld [vmem:[%s717 + $0x120] sm:$0xff]
      %v743 = vld [vmem:[%s717 + $0x128] sm:$0xff]
      %v744 = vld [vmem:[%s717 + $0x138] sm:$0xff]
      %v745 = vld [vmem:[%s717 + $0x140] sm:$0xff]
      %v746 = vld [vmem:[%s717 + $0x150] sm:$0xff]
      %v747 = vld [vmem:[%s717 + $0x158] sm:$0xff]
      %v748 = vld [vmem:[%s717 + $0x168] sm:$0xff]
      %v749 = vld [vmem:[%s717 + $0x170] sm:$0xff]
      %s750 = scalar_lea.vmem %s1, 64
      %v751 = vld [vmem:[%s750] sm:$0xff]
      %v752 = vld [vmem:[%s750 + $0x8] sm:$0xff]
      %v753 = vld [vmem:[%s750 + $0x10] sm:$0xff]
      %v754 = vld [vmem:[%s750 + $0x18] sm:$0xff]
      %v756 = vsel %vm298, %v718, 0
      %v759 = vsel %vm298, %v719, 0
      %v762 = vsel %vm298, %v720, 0
      %v765 = vsel %vm298, %v721, 0
      %v768 = vsel %vm298, %v722, 0
      %v771 = vsel %vm298, %v723, 0
      %v774 = vsel %vm298, %v724, 0
      %v777 = vsel %vm298, %v725, 0
      %v780 = vsel %vm298, %v726, 0
      %v783 = vsel %vm298, %v727, 0
      %v786 = vsel %vm298, %v728, 0
      %v789 = vsel %vm298, %v729, 0
      %v792 = vsel %vm298, %v730, 0
      %v795 = vsel %vm298, %v731, 0
      %v798 = vsel %vm298, %v732, 0
      %v801 = vsel %vm298, %v733, 0
      %v804 = vsel %vm298, %v734, 0
      %v807 = vsel %vm298, %v735, 0
      %v810 = vsel %vm298, %v736, 0
      %v813 = vsel %vm298, %v737, 0
      %v816 = vsel %vm298, %v738, 0
      %v819 = vsel %vm298, %v739, 0
      %v822 = vsel %vm298, %v740, 0
      %v825 = vsel %vm298, %v741, 0
      %v828 = vsel %vm298, %v742, 0
      %v831 = vsel %vm298, %v743, 0
      %v834 = vsel %vm298, %v744, 0
      %v837 = vsel %vm298, %v745, 0
      %v840 = vsel %vm298, %v746, 0
      %v843 = vsel %vm298, %v747, 0
      %v846 = vsel %vm298, %v748, 0
      %v849 = vsel %vm298, %v749, 0
      %851 = vmatpush.msra.mxu0 0.0
      %852 = vmatpush.msra.mxu0 0.0
      %853 = vmatpush.msra.mxu0 0.0
      %854 = vmatpush.msra.mxu0 0.0
      %855 = vmatpush.msra.mxu0 0.0
      %856 = vmatpush.msra.mxu0 0.0
      %857 = vmatpush.msra.mxu0 0.0
      %858 = vmatpush.msra.mxu0 0.0
      %859 = vmatpush.msra.mxu0 0.0
      %860 = vmatpush.msra.mxu0 0.0
      %861 = vmatpush.msra.mxu0 0.0
      %862 = vmatpush.msra.mxu0 0.0
      %863 = vmatpush.msra.mxu0 %v754
      %864 = vmatpush.msra.mxu0 %v753
      %865 = vmatpush.msra.mxu0 %v752
      %866 = vmatpush.msra.mxu0 %v751
      %867 = vmatmul.f32.gmra.mxu0 %v756
      %v868 = vpop.f32.mrf.mxu0
      %v869 = vadd.f32 0.0, %v868
      %870 = vmatmul.f32.gmra.mxu0 %v759
      %v871 = vpop.f32.mrf.mxu0
      %v872 = vadd.f32 0.0, %v871
      %873 = vmatmul.f32.gmra.mxu0 %v762
      %v874 = vpop.f32.mrf.mxu0
      %v875 = vadd.f32 0.0, %v874
      %876 = vmatmul.f32.gmra.mxu0 %v765
      %v877 = vpop.f32.mrf.mxu0
      %v878 = vadd.f32 0.0, %v877
      %879 = vmatmul.f32.gmra.mxu0 %v768
      %v880 = vpop.f32.mrf.mxu0
      %v881 = vadd.f32 0.0, %v880
      %882 = vmatmul.f32.gmra.mxu0 %v771
      %v883 = vpop.f32.mrf.mxu0
      %v884 = vadd.f32 0.0, %v883
      %885 = vmatmul.f32.gmra.mxu0 %v774
      %v886 = vpop.f32.mrf.mxu0
      %v887 = vadd.f32 0.0, %v886
      %888 = vmatmul.f32.gmra.mxu0 %v777
      %v889 = vpop.f32.mrf.mxu0
      %v890 = vadd.f32 0.0, %v889
      %891 = vmatmul.f32.gmra.mxu0 %v780
      %v892 = vpop.f32.mrf.mxu0
      %v893 = vadd.f32 0.0, %v892
      %894 = vmatmul.f32.gmra.mxu0 %v783
      %v895 = vpop.f32.mrf.mxu0
      %v896 = vadd.f32 0.0, %v895
      %897 = vmatmul.f32.gmra.mxu0 %v786
      %v898 = vpop.f32.mrf.mxu0
      %v899 = vadd.f32 0.0, %v898
      %900 = vmatmul.f32.gmra.mxu0 %v789
      %v901 = vpop.f32.mrf.mxu0
      %v902 = vadd.f32 0.0, %v901
      %903 = vmatmul.f32.gmra.mxu0 %v792
      %v904 = vpop.f32.mrf.mxu0
      %v905 = vadd.f32 0.0, %v904
      %906 = vmatmul.f32.gmra.mxu0 %v795
      %v907 = vpop.f32.mrf.mxu0
      %v908 = vadd.f32 0.0, %v907
      %909 = vmatmul.f32.gmra.mxu0 %v798
      %v910 = vpop.f32.mrf.mxu0
      %v911 = vadd.f32 0.0, %v910
      %912 = vmatmul.f32.gmra.mxu0 %v801
      %v913 = vpop.f32.mrf.mxu0
      %v914 = vadd.f32 0.0, %v913
      %915 = vmatmul.f32.gmra.mxu0 %v804
      %v916 = vpop.f32.mrf.mxu0
      %v917 = vadd.f32 0.0, %v916
      %918 = vmatmul.f32.gmra.mxu0 %v807
      %v919 = vpop.f32.mrf.mxu0
      %v920 = vadd.f32 0.0, %v919
      %921 = vmatmul.f32.gmra.mxu0 %v810
      %v922 = vpop.f32.mrf.mxu0
      %v923 = vadd.f32 0.0, %v922
      %924 = vmatmul.f32.gmra.mxu0 %v813
      %v925 = vpop.f32.mrf.mxu0
      %v926 = vadd.f32 0.0, %v925
      %927 = vmatmul.f32.gmra.mxu0 %v816
      %v928 = vpop.f32.mrf.mxu0
      %v929 = vadd.f32 0.0, %v928
      %930 = vmatmul.f32.gmra.mxu0 %v819
      %v931 = vpop.f32.mrf.mxu0
      %v932 = vadd.f32 0.0, %v931
      %933 = vmatmul.f32.gmra.mxu0 %v822
      %v934 = vpop.f32.mrf.mxu0
      %v935 = vadd.f32 0.0, %v934
      %936 = vmatmul.f32.gmra.mxu0 %v825
      %v937 = vpop.f32.mrf.mxu0
      %v938 = vadd.f32 0.0, %v937
      %939 = vmatmul.f32.gmra.mxu0 %v828
      %v940 = vpop.f32.mrf.mxu0
      %v941 = vadd.f32 0.0, %v940
      %942 = vmatmul.f32.gmra.mxu0 %v831
      %v943 = vpop.f32.mrf.mxu0
      %v944 = vadd.f32 0.0, %v943
      %945 = vmatmul.f32.gmra.mxu0 %v834
      %v946 = vpop.f32.mrf.mxu0
      %v947 = vadd.f32 0.0, %v946
      %948 = vmatmul.f32.gmra.mxu0 %v837
      %v949 = vpop.f32.mrf.mxu0
      %v950 = vadd.f32 0.0, %v949
      %951 = vmatmul.f32.gmra.mxu0 %v840
      %v952 = vpop.f32.mrf.mxu0
      %v953 = vadd.f32 0.0, %v952
      %954 = vmatmul.f32.gmra.mxu0 %v843
      %v955 = vpop.f32.mrf.mxu0
      %v956 = vadd.f32 0.0, %v955
      %957 = vmatmul.f32.gmra.mxu0 %v846
      %v958 = vpop.f32.mrf.mxu0
      %v959 = vadd.f32 0.0, %v958
      %960 = vmatmul.f32.gmra.mxu0 %v849
      %v961 = vpop.f32.mrf.mxu0
      %v962 = vadd.f32 0.0, %v961
      %963 = vdwg.mxu0
      %v964 = vadd.f32 %v622, %v869
      %v965 = vadd.f32 %v625, %v872
      %v966 = vadd.f32 %v628, %v875
      %v967 = vadd.f32 %v631, %v878
      %v968 = vadd.f32 %v634, %v881
      %v969 = vadd.f32 %v637, %v884
      %v970 = vadd.f32 %v640, %v887
      %v971 = vadd.f32 %v643, %v890
      %v972 = vadd.f32 %v646, %v893
      %v973 = vadd.f32 %v649, %v896
      %v974 = vadd.f32 %v652, %v899
      %v975 = vadd.f32 %v655, %v902
      %v976 = vadd.f32 %v658, %v905
      %v977 = vadd.f32 %v661, %v908
      %v978 = vadd.f32 %v664, %v911
      %v979 = vadd.f32 %v667, %v914
      %v980 = vadd.f32 %v670, %v917
      %v981 = vadd.f32 %v673, %v920
      %v982 = vadd.f32 %v676, %v923
      %v983 = vadd.f32 %v679, %v926
      %v984 = vadd.f32 %v682, %v929
      %v985 = vadd.f32 %v685, %v932
      %v986 = vadd.f32 %v688, %v935
      %v987 = vadd.f32 %v691, %v938
      %v988 = vadd.f32 %v694, %v941
      %v989 = vadd.f32 %v697, %v944
      %v990 = vadd.f32 %v700, %v947
      %v991 = vadd.f32 %v703, %v950
      %v992 = vadd.f32 %v706, %v953
      %v993 = vadd.f32 %v709, %v956
      %v994 = vadd.f32 %v712, %v959
      %v995 = vadd.f32 %v715, %v962
      %v996 = vld [vmem:[%s717 + $0x1] sm:$0xff]
      %v997 = vld [vmem:[%s717 + $0x9] sm:$0xff]
      %v998 = vld [vmem:[%s717 + $0x19] sm:$0xff]
      %v999 = vld [vmem:[%s717 + $0x21] sm:$0xff]
      %v1000 = vld [vmem:[%s717 + $0x31] sm:$0xff]
      %v1001 = vld [vmem:[%s717 + $0x39] sm:$0xff]
      %v1002 = vld [vmem:[%s717 + $0x49] sm:$0xff]
      %v1003 = vld [vmem:[%s717 + $0x51] sm:$0xff]
      %v1004 = vld [vmem:[%s717 + $0x61] sm:$0xff]
      %v1005 = vld [vmem:[%s717 + $0x69] sm:$0xff]
      %v1006 = vld [vmem:[%s717 + $0x79] sm:$0xff]
      %v1007 = vld [vmem:[%s717 + $0x81] sm:$0xff]
      %v1008 = vld [vmem:[%s717 + $0x91] sm:$0xff]
      %v1009 = vld [vmem:[%s717 + $0x99] sm:$0xff]
      %v1010 = vld [vmem:[%s717 + $0xa9] sm:$0xff]
      %v1011 = vld [vmem:[%s717 + $0xb1] sm:$0xff]
      %v1012 = vld [vmem:[%s717 + $0xc1] sm:$0xff]
      %v1013 = vld [vmem:[%s717 + $0xc9] sm:$0xff]
      %v1014 = vld [vmem:[%s717 + $0xd9] sm:$0xff]
      %v1015 = vld [vmem:[%s717 + $0xe1] sm:$0xff]
      %v1016 = vld [vmem:[%s717 + $0xf1] sm:$0xff]
      %v1017 = vld [vmem:[%s717 + $0xf9] sm:$0xff]
      %v1018 = vld [vmem:[%s717 + $0x109] sm:$0xff]
      %v1019 = vld [vmem:[%s717 + $0x111] sm:$0xff]
      %v1020 = vld [vmem:[%s717 + $0x121] sm:$0xff]
      %v1021 = vld [vmem:[%s717 + $0x129] sm:$0xff]
      %v1022 = vld [vmem:[%s717 + $0x139] sm:$0xff]
      %v1023 = vld [vmem:[%s717 + $0x141] sm:$0xff]
      %v1024 = vld [vmem:[%s717 + $0x151] sm:$0xff]
      %v1025 = vld [vmem:[%s717 + $0x159] sm:$0xff]
      %v1026 = vld [vmem:[%s717 + $0x169] sm:$0xff]
      %v1027 = vld [vmem:[%s717 + $0x171] sm:$0xff]
      %s1028 = scalar_lea.vmem %s1, 96
      %v1029 = vld [vmem:[%s1028] sm:$0xff]
      %v1030 = vld [vmem:[%s1028 + $0x8] sm:$0xff]
      %v1031 = vld [vmem:[%s1028 + $0x10] sm:$0xff]
      %v1032 = vld [vmem:[%s1028 + $0x18] sm:$0xff]
      %v1034 = vsel %vm298, %v996, 0
      %v1037 = vsel %vm298, %v997, 0
      %v1040 = vsel %vm298, %v998, 0
      %v1043 = vsel %vm298, %v999, 0
      %v1046 = vsel %vm298, %v1000, 0
      %v1049 = vsel %vm298, %v1001, 0
      %v1052 = vsel %vm298, %v1002, 0
      %v1055 = vsel %vm298, %v1003, 0
      %v1058 = vsel %vm298, %v1004, 0
      %v1061 = vsel %vm298, %v1005, 0
      %v1064 = vsel %vm298, %v1006, 0
      %v1067 = vsel %vm298, %v1007, 0
      %v1070 = vsel %vm298, %v1008, 0
      %v1073 = vsel %vm298, %v1009, 0
      %v1076 = vsel %vm298, %v1010, 0
      %v1079 = vsel %vm298, %v1011, 0
      %v1082 = vsel %vm298, %v1012, 0
      %v1085 = vsel %vm298, %v1013, 0
      %v1088 = vsel %vm298, %v1014, 0
      %v1091 = vsel %vm298, %v1015, 0
      %v1094 = vsel %vm298, %v1016, 0
      %v1097 = vsel %vm298, %v1017, 0
      %v1100 = vsel %vm298, %v1018, 0
      %v1103 = vsel %vm298, %v1019, 0
      %v1106 = vsel %vm298, %v1020, 0
      %v1109 = vsel %vm298, %v1021, 0
      %v1112 = vsel %vm298, %v1022, 0
      %v1115 = vsel %vm298, %v1023, 0
      %v1118 = vsel %vm298, %v1024, 0
      %v1121 = vsel %vm298, %v1025, 0
      %v1124 = vsel %vm298, %v1026, 0
      %v1127 = vsel %vm298, %v1027, 0
      %1129 = vmatpush.msra.mxu0 0.0
      %1130 = vmatpush.msra.mxu0 0.0
      %1131 = vmatpush.msra.mxu0 0.0
      %1132 = vmatpush.msra.mxu0 0.0
      %1133 = vmatpush.msra.mxu0 0.0
      %1134 = vmatpush.msra.mxu0 0.0
      %1135 = vmatpush.msra.mxu0 0.0
      %1136 = vmatpush.msra.mxu0 0.0
      %1137 = vmatpush.msra.mxu0 0.0
      %1138 = vmatpush.msra.mxu0 0.0
      %1139 = vmatpush.msra.mxu0 0.0
      %1140 = vmatpush.msra.mxu0 0.0
      %1141 = vmatpush.msra.mxu0 %v1032
      %1142 = vmatpush.msra.mxu0 %v1031
      %1143 = vmatpush.msra.mxu0 %v1030
      %1144 = vmatpush.msra.mxu0 %v1029
      %1145 = vmatmul.f32.gmra.mxu0 %v1034
      %v1146 = vpop.f32.mrf.mxu0
      %v1147 = vadd.f32 0.0, %v1146
      %1148 = vmatmul.f32.gmra.mxu0 %v1037
      %v1149 = vpop.f32.mrf.mxu0
      %v1150 = vadd.f32 0.0, %v1149
      %1151 = vmatmul.f32.gmra.mxu0 %v1040
      %v1152 = vpop.f32.mrf.mxu0
      %v1153 = vadd.f32 0.0, %v1152
      %1154 = vmatmul.f32.gmra.mxu0 %v1043
      %v1155 = vpop.f32.mrf.mxu0
      %v1156 = vadd.f32 0.0, %v1155
      %1157 = vmatmul.f32.gmra.mxu0 %v1046
      %v1158 = vpop.f32.mrf.mxu0
      %v1159 = vadd.f32 0.0, %v1158
      %1160 = vmatmul.f32.gmra.mxu0 %v1049
      %v1161 = vpop.f32.mrf.mxu0
      %v1162 = vadd.f32 0.0, %v1161
      %1163 = vmatmul.f32.gmra.mxu0 %v1052
      %v1164 = vpop.f32.mrf.mxu0
      %v1165 = vadd.f32 0.0, %v1164
      %1166 = vmatmul.f32.gmra.mxu0 %v1055
      %v1167 = vpop.f32.mrf.mxu0
      %v1168 = vadd.f32 0.0, %v1167
      %1169 = vmatmul.f32.gmra.mxu0 %v1058
      %v1170 = vpop.f32.mrf.mxu0
      %v1171 = vadd.f32 0.0, %v1170
      %1172 = vmatmul.f32.gmra.mxu0 %v1061
      %v1173 = vpop.f32.mrf.mxu0
      %v1174 = vadd.f32 0.0, %v1173
      %1175 = vmatmul.f32.gmra.mxu0 %v1064
      %v1176 = vpop.f32.mrf.mxu0
      %v1177 = vadd.f32 0.0, %v1176
      %1178 = vmatmul.f32.gmra.mxu0 %v1067
      %v1179 = vpop.f32.mrf.mxu0
      %v1180 = vadd.f32 0.0, %v1179
      %1181 = vmatmul.f32.gmra.mxu0 %v1070
      %v1182 = vpop.f32.mrf.mxu0
      %v1183 = vadd.f32 0.0, %v1182
      %1184 = vmatmul.f32.gmra.mxu0 %v1073
      %v1185 = vpop.f32.mrf.mxu0
      %v1186 = vadd.f32 0.0, %v1185
      %1187 = vmatmul.f32.gmra.mxu0 %v1076
      %v1188 = vpop.f32.mrf.mxu0
      %v1189 = vadd.f32 0.0, %v1188
      %1190 = vmatmul.f32.gmra.mxu0 %v1079
      %v1191 = vpop.f32.mrf.mxu0
      %v1192 = vadd.f32 0.0, %v1191
      %1193 = vmatmul.f32.gmra.mxu0 %v1082
      %v1194 = vpop.f32.mrf.mxu0
      %v1195 = vadd.f32 0.0, %v1194
      %1196 = vmatmul.f32.gmra.mxu0 %v1085
      %v1197 = vpop.f32.mrf.mxu0
      %v1198 = vadd.f32 0.0, %v1197
      %1199 = vmatmul.f32.gmra.mxu0 %v1088
      %v1200 = vpop.f32.mrf.mxu0
      %v1201 = vadd.f32 0.0, %v1200
      %1202 = vmatmul.f32.gmra.mxu0 %v1091
      %v1203 = vpop.f32.mrf.mxu0
      %v1204 = vadd.f32 0.0, %v1203
      %1205 = vmatmul.f32.gmra.mxu0 %v1094
      %v1206 = vpop.f32.mrf.mxu0
      %v1207 = vadd.f32 0.0, %v1206
      %1208 = vmatmul.f32.gmra.mxu0 %v1097
      %v1209 = vpop.f32.mrf.mxu0
      %v1210 = vadd.f32 0.0, %v1209
      %1211 = vmatmul.f32.gmra.mxu0 %v1100
      %v1212 = vpop.f32.mrf.mxu0
      %v1213 = vadd.f32 0.0, %v1212
      %1214 = vmatmul.f32.gmra.mxu0 %v1103
      %v1215 = vpop.f32.mrf.mxu0
      %v1216 = vadd.f32 0.0, %v1215
      %1217 = vmatmul.f32.gmra.mxu0 %v1106
      %v1218 = vpop.f32.mrf.mxu0
      %v1219 = vadd.f32 0.0, %v1218
      %1220 = vmatmul.f32.gmra.mxu0 %v1109
      %v1221 = vpop.f32.mrf.mxu0
      %v1222 = vadd.f32 0.0, %v1221
      %1223 = vmatmul.f32.gmra.mxu0 %v1112
      %v1224 = vpop.f32.mrf.mxu0
      %v1225 = vadd.f32 0.0, %v1224
      %1226 = vmatmul.f32.gmra.mxu0 %v1115
      %v1227 = vpop.f32.mrf.mxu0
      %v1228 = vadd.f32 0.0, %v1227
      %1229 = vmatmul.f32.gmra.mxu0 %v1118
      %v1230 = vpop.f32.mrf.mxu0
      %v1231 = vadd.f32 0.0, %v1230
      %1232 = vmatmul.f32.gmra.mxu0 %v1121
      %v1233 = vpop.f32.mrf.mxu0
      %v1234 = vadd.f32 0.0, %v1233
      %1235 = vmatmul.f32.gmra.mxu0 %v1124
      %v1236 = vpop.f32.mrf.mxu0
      %v1237 = vadd.f32 0.0, %v1236
      %1238 = vmatmul.f32.gmra.mxu0 %v1127
      %v1239 = vpop.f32.mrf.mxu0
      %v1240 = vadd.f32 0.0, %v1239
      %1241 = vdwg.mxu0
      %v1242 = vadd.f32 %v964, %v1147
      %v1243 = vadd.f32 %v965, %v1150
      %v1244 = vadd.f32 %v966, %v1153
      %v1245 = vadd.f32 %v967, %v1156
      %v1246 = vadd.f32 %v968, %v1159
      %v1247 = vadd.f32 %v969, %v1162
      %v1248 = vadd.f32 %v970, %v1165
      %v1249 = vadd.f32 %v971, %v1168
      %v1250 = vadd.f32 %v972, %v1171
      %v1251 = vadd.f32 %v973, %v1174
      %v1252 = vadd.f32 %v974, %v1177
      %v1253 = vadd.f32 %v975, %v1180
      %v1254 = vadd.f32 %v976, %v1183
      %v1255 = vadd.f32 %v977, %v1186
      %v1256 = vadd.f32 %v978, %v1189
      %v1257 = vadd.f32 %v979, %v1192
      %v1258 = vadd.f32 %v980, %v1195
      %v1259 = vadd.f32 %v981, %v1198
      %v1260 = vadd.f32 %v982, %v1201
      %v1261 = vadd.f32 %v983, %v1204
      %v1262 = vadd.f32 %v984, %v1207
      %v1263 = vadd.f32 %v985, %v1210
      %v1264 = vadd.f32 %v986, %v1213
      %v1265 = vadd.f32 %v987, %v1216
      %v1266 = vadd.f32 %v988, %v1219
      %v1267 = vadd.f32 %v989, %v1222
      %v1268 = vadd.f32 %v990, %v1225
      %v1269 = vadd.f32 %v991, %v1228
      %v1270 = vadd.f32 %v992, %v1231
      %v1271 = vadd.f32 %v993, %v1234
      %v1272 = vadd.f32 %v994, %v1237
      %v1273 = vadd.f32 %v995, %v1240
      %v1274 = vld [vmem:[%s2] sm:$0x1]
      %v1276 = vperm.slane %v1274, 0
      %v1278 = vadd.f32 %v1242, %v1276
      %v1279 = vadd.f32 %v1243, %v1276
      %v1280 = vadd.f32 %v1244, %v1276
      %v1281 = vadd.f32 %v1245, %v1276
      %v1282 = vadd.f32 %v1246, %v1276
      %v1283 = vadd.f32 %v1247, %v1276
      %v1284 = vadd.f32 %v1248, %v1276
      %v1285 = vadd.f32 %v1249, %v1276
      %v1286 = vadd.f32 %v1250, %v1276
      %v1287 = vadd.f32 %v1251, %v1276
      %v1288 = vadd.f32 %v1252, %v1276
      %v1289 = vadd.f32 %v1253, %v1276
      %v1290 = vadd.f32 %v1254, %v1276
      %v1291 = vadd.f32 %v1255, %v1276
      %v1292 = vadd.f32 %v1256, %v1276
      %v1293 = vadd.f32 %v1257, %v1276
      %v1294 = vadd.f32 %v1258, %v1276
      %v1295 = vadd.f32 %v1259, %v1276
      %v1296 = vadd.f32 %v1260, %v1276
      %v1297 = vadd.f32 %v1261, %v1276
      %v1298 = vadd.f32 %v1262, %v1276
      %v1299 = vadd.f32 %v1263, %v1276
      %v1300 = vadd.f32 %v1264, %v1276
      %v1301 = vadd.f32 %v1265, %v1276
      %v1302 = vadd.f32 %v1266, %v1276
      %v1303 = vadd.f32 %v1267, %v1276
      %v1304 = vadd.f32 %v1268, %v1276
      %v1305 = vadd.f32 %v1269, %v1276
      %v1306 = vadd.f32 %v1270, %v1276
      %v1307 = vadd.f32 %v1271, %v1276
      %v1308 = vadd.f32 %v1272, %v1276
      %v1309 = vadd.f32 %v1273, %v1276
      %vm1310 = vcmp.ge.f32.partialorder %v1278, 0.0
      %vm1311 = vcmp.ge.f32.partialorder %v1279, 0.0
      %vm1312 = vcmp.ge.f32.partialorder %v1280, 0.0
      %vm1313 = vcmp.ge.f32.partialorder %v1281, 0.0
      %vm1314 = vcmp.ge.f32.partialorder %v1282, 0.0
      %vm1315 = vcmp.ge.f32.partialorder %v1283, 0.0
      %vm1316 = vcmp.ge.f32.partialorder %v1284, 0.0
      %vm1317 = vcmp.ge.f32.partialorder %v1285, 0.0
      %vm1318 = vcmp.ge.f32.partialorder %v1286, 0.0
      %vm1319 = vcmp.ge.f32.partialorder %v1287, 0.0
      %vm1320 = vcmp.ge.f32.partialorder %v1288, 0.0
      %vm1321 = vcmp.ge.f32.partialorder %v1289, 0.0
      %vm1322 = vcmp.ge.f32.partialorder %v1290, 0.0
      %vm1323 = vcmp.ge.f32.partialorder %v1291, 0.0
      %vm1324 = vcmp.ge.f32.partialorder %v1292, 0.0
      %vm1325 = vcmp.ge.f32.partialorder %v1293, 0.0
      %vm1326 = vcmp.ge.f32.partialorder %v1294, 0.0
      %vm1327 = vcmp.ge.f32.partialorder %v1295, 0.0
      %vm1328 = vcmp.ge.f32.partialorder %v1296, 0.0
      %vm1329 = vcmp.ge.f32.partialorder %v1297, 0.0
      %vm1330 = vcmp.ge.f32.partialorder %v1298, 0.0
      %vm1331 = vcmp.ge.f32.partialorder %v1299, 0.0
      %vm1332 = vcmp.ge.f32.partialorder %v1300, 0.0
      %vm1333 = vcmp.ge.f32.partialorder %v1301, 0.0
      %vm1334 = vcmp.ge.f32.partialorder %v1302, 0.0
      %vm1335 = vcmp.ge.f32.partialorder %v1303, 0.0
      %vm1336 = vcmp.ge.f32.partialorder %v1304, 0.0
      %vm1337 = vcmp.ge.f32.partialorder %v1305, 0.0
      %vm1338 = vcmp.ge.f32.partialorder %v1306, 0.0
      %vm1339 = vcmp.ge.f32.partialorder %v1307, 0.0
      %vm1340 = vcmp.ge.f32.partialorder %v1308, 0.0
      %vm1341 = vcmp.ge.f32.partialorder %v1309, 0.0
      %v1342 = vmul.f32 %v1278, 0.01
      %v1343 = vmul.f32 %v1279, 0.01
      %v1344 = vmul.f32 %v1280, 0.01
      %v1345 = vmul.f32 %v1281, 0.01
      %v1346 = vmul.f32 %v1282, 0.01
      %v1347 = vmul.f32 %v1283, 0.01
      %v1348 = vmul.f32 %v1284, 0.01
      %v1349 = vmul.f32 %v1285, 0.01
      %v1350 = vmul.f32 %v1286, 0.01
      %v1351 = vmul.f32 %v1287, 0.01
      %v1352 = vmul.f32 %v1288, 0.01
      %v1353 = vmul.f32 %v1289, 0.01
      %v1354 = vmul.f32 %v1290, 0.01
      %v1355 = vmul.f32 %v1291, 0.01
      %v1356 = vmul.f32 %v1292, 0.01
      %v1357 = vmul.f32 %v1293, 0.01
      %v1358 = vmul.f32 %v1294, 0.01
      %v1359 = vmul.f32 %v1295, 0.01
      %v1360 = vmul.f32 %v1296, 0.01
      %v1361 = vmul.f32 %v1297, 0.01
      %v1362 = vmul.f32 %v1298, 0.01
      %v1363 = vmul.f32 %v1299, 0.01
      %v1364 = vmul.f32 %v1300, 0.01
      %v1365 = vmul.f32 %v1301, 0.01
      %v1366 = vmul.f32 %v1302, 0.01
      %v1367 = vmul.f32 %v1303, 0.01
      %v1368 = vmul.f32 %v1304, 0.01
      %v1369 = vmul.f32 %v1305, 0.01
      %v1370 = vmul.f32 %v1306, 0.01
      %v1371 = vmul.f32 %v1307, 0.01
      %v1372 = vmul.f32 %v1308, 0.01
      %v1373 = vmul.f32 %v1309, 0.01
      %v1374 = vsel %vm1310, %v1278, %v1342
      %v1375 = vsel %vm1311, %v1279, %v1343
      %v1376 = vsel %vm1312, %v1280, %v1344
      %v1377 = vsel %vm1313, %v1281, %v1345
      %v1378 = vsel %vm1314, %v1282, %v1346
      %v1379 = vsel %vm1315, %v1283, %v1347
      %v1380 = vsel %vm1316, %v1284, %v1348
      %v1381 = vsel %vm1317, %v1285, %v1349
      %v1382 = vsel %vm1318, %v1286, %v1350
      %v1383 = vsel %vm1319, %v1287, %v1351
      %v1384 = vsel %vm1320, %v1288, %v1352
      %v1385 = vsel %vm1321, %v1289, %v1353
      %v1386 = vsel %vm1322, %v1290, %v1354
      %v1387 = vsel %vm1323, %v1291, %v1355
      %v1388 = vsel %vm1324, %v1292, %v1356
      %v1389 = vsel %vm1325, %v1293, %v1357
      %v1390 = vsel %vm1326, %v1294, %v1358
      %v1391 = vsel %vm1327, %v1295, %v1359
      %v1392 = vsel %vm1328, %v1296, %v1360
      %v1393 = vsel %vm1329, %v1297, %v1361
      %v1394 = vsel %vm1330, %v1298, %v1362
      %v1395 = vsel %vm1331, %v1299, %v1363
      %v1396 = vsel %vm1332, %v1300, %v1364
      %v1397 = vsel %vm1333, %v1301, %v1365
      %v1398 = vsel %vm1334, %v1302, %v1366
      %v1399 = vsel %vm1335, %v1303, %v1367
      %v1400 = vsel %vm1336, %v1304, %v1368
      %v1401 = vsel %vm1337, %v1305, %v1369
      %v1402 = vsel %vm1338, %v1306, %v1370
      %v1403 = vsel %vm1339, %v1307, %v1371
      %v1404 = vsel %vm1340, %v1308, %v1372
      %v1405 = vsel %vm1341, %v1309, %v1373
      %v1406 = vld [vmem:[%s3] sm:$0x1]
      %v1408 = vperm.slane %v1406, 0
      %v1410 = vmul.f32 %v1374, %v1408
      %v1411 = vmul.f32 %v1375, %v1408
      %v1412 = vmul.f32 %v1376, %v1408
      %v1413 = vmul.f32 %v1377, %v1408
      %v1414 = vmul.f32 %v1378, %v1408
      %v1415 = vmul.f32 %v1379, %v1408
      %v1416 = vmul.f32 %v1380, %v1408
      %v1417 = vmul.f32 %v1381, %v1408
      %v1418 = vmul.f32 %v1382, %v1408
      %v1419 = vmul.f32 %v1383, %v1408
      %v1420 = vmul.f32 %v1384, %v1408
      %v1421 = vmul.f32 %v1385, %v1408
      %v1422 = vmul.f32 %v1386, %v1408
      %v1423 = vmul.f32 %v1387, %v1408
      %v1424 = vmul.f32 %v1388, %v1408
      %v1425 = vmul.f32 %v1389, %v1408
      %v1426 = vmul.f32 %v1390, %v1408
      %v1427 = vmul.f32 %v1391, %v1408
      %v1428 = vmul.f32 %v1392, %v1408
      %v1429 = vmul.f32 %v1393, %v1408
      %v1430 = vmul.f32 %v1394, %v1408
      %v1431 = vmul.f32 %v1395, %v1408
      %v1432 = vmul.f32 %v1396, %v1408
      %v1433 = vmul.f32 %v1397, %v1408
      %v1434 = vmul.f32 %v1398, %v1408
      %v1435 = vmul.f32 %v1399, %v1408
      %v1436 = vmul.f32 %v1400, %v1408
      %v1437 = vmul.f32 %v1401, %v1408
      %v1438 = vmul.f32 %v1402, %v1408
      %v1439 = vmul.f32 %v1403, %v1408
      %v1440 = vmul.f32 %v1404, %v1408
      %v1441 = vmul.f32 %v1405, %v1408
      %v1442 = vld [vmem:[%s4] sm:$0x1]
      %v1444 = vperm.slane %v1442, 0
      %v1446 = vadd.f32 %v1410, %v1444
      %v1447 = vadd.f32 %v1411, %v1444
      %v1448 = vadd.f32 %v1412, %v1444
      %v1449 = vadd.f32 %v1413, %v1444
      %v1450 = vadd.f32 %v1414, %v1444
      %v1451 = vadd.f32 %v1415, %v1444
      %v1452 = vadd.f32 %v1416, %v1444
      %v1453 = vadd.f32 %v1417, %v1444
      %v1454 = vadd.f32 %v1418, %v1444
      %v1455 = vadd.f32 %v1419, %v1444
      %v1456 = vadd.f32 %v1420, %v1444
      %v1457 = vadd.f32 %v1421, %v1444
      %v1458 = vadd.f32 %v1422, %v1444
      %v1459 = vadd.f32 %v1423, %v1444
      %v1460 = vadd.f32 %v1424, %v1444
      %v1461 = vadd.f32 %v1425, %v1444
      %v1462 = vadd.f32 %v1426, %v1444
      %v1463 = vadd.f32 %v1427, %v1444
      %v1464 = vadd.f32 %v1428, %v1444
      %v1465 = vadd.f32 %v1429, %v1444
      %v1466 = vadd.f32 %v1430, %v1444
      %v1467 = vadd.f32 %v1431, %v1444
      %v1468 = vadd.f32 %v1432, %v1444
      %v1469 = vadd.f32 %v1433, %v1444
      %v1470 = vadd.f32 %v1434, %v1444
      %v1471 = vadd.f32 %v1435, %v1444
      %v1472 = vadd.f32 %v1436, %v1444
      %v1473 = vadd.f32 %v1437, %v1444
      %v1474 = vadd.f32 %v1438, %v1444
      %v1475 = vadd.f32 %v1439, %v1444
      %v1476 = vadd.f32 %v1440, %v1444
      %v1477 = vadd.f32 %v1441, %v1444
      %1478 = vst [vmem:[%s224] sm:$0xff] %v1446
      %1479 = vst [vmem:[%s224 + $0x8] sm:$0xff] %v1447
      %1480 = vst [vmem:[%s224 + $0x10] sm:$0xff] %v1448
      %1481 = vst [vmem:[%s224 + $0x18] sm:$0xff] %v1449
      %1482 = vst [vmem:[%s224 + $0x20] sm:$0xff] %v1450
      %1483 = vst [vmem:[%s224 + $0x28] sm:$0xff] %v1451
      %1484 = vst [vmem:[%s224 + $0x30] sm:$0xff] %v1452
      %1485 = vst [vmem:[%s224 + $0x38] sm:$0xff] %v1453
      %1486 = vst [vmem:[%s224 + $0x40] sm:$0xff] %v1454
      %1487 = vst [vmem:[%s224 + $0x48] sm:$0xff] %v1455
      %1488 = vst [vmem:[%s224 + $0x50] sm:$0xff] %v1456
      %1489 = vst [vmem:[%s224 + $0x58] sm:$0xff] %v1457
      %1490 = vst [vmem:[%s224 + $0x60] sm:$0xff] %v1458
      %1491 = vst [vmem:[%s224 + $0x68] sm:$0xff] %v1459
      %1492 = vst [vmem:[%s224 + $0x70] sm:$0xff] %v1460
      %1493 = vst [vmem:[%s224 + $0x78] sm:$0xff] %v1461
      %1494 = vst [vmem:[%s224 + $0x80] sm:$0xff] %v1462
      %1495 = vst [vmem:[%s224 + $0x88] sm:$0xff] %v1463
      %1496 = vst [vmem:[%s224 + $0x90] sm:$0xff] %v1464
      %1497 = vst [vmem:[%s224 + $0x98] sm:$0xff] %v1465
      %1498 = vst [vmem:[%s224 + $0xa0] sm:$0xff] %v1466
      %1499 = vst [vmem:[%s224 + $0xa8] sm:$0xff] %v1467
      %1500 = vst [vmem:[%s224 + $0xb0] sm:$0xff] %v1468
      %1501 = vst [vmem:[%s224 + $0xb8] sm:$0xff] %v1469
      %1502 = vst [vmem:[%s224 + $0xc0] sm:$0xff] %v1470
      %1503 = vst [vmem:[%s224 + $0xc8] sm:$0xff] %v1471
      %1504 = vst [vmem:[%s224 + $0xd0] sm:$0xff] %v1472
      %1505 = vst [vmem:[%s224 + $0xd8] sm:$0xff] %v1473
      %1506 = vst [vmem:[%s224 + $0xe0] sm:$0xff] %v1474
      %1507 = vst [vmem:[%s224 + $0xe8] sm:$0xff] %v1475
      %1508 = vst [vmem:[%s224 + $0xf0] sm:$0xff] %v1476
      %1509 = vst [vmem:[%s224 + $0xf8] sm:$0xff] %v1477
      %p1510 = scmp.lt.s32.totalorder %s16, 1
      %s1511 = scalar_select %p1510, %s16, 1
      %s1512 = smul.addr %s1511, 32
      %s1513 = smul.addr %s1512, 8
      %s1514 = scalar_lea.vmem %s5, %s1513
      // Predicated region
      $region41: #{encoder_forward.4} parent=39 // pred_check
        %p1515 = pneg %p144
      $region42: #{encoder_forward.4} parent=39 // pred_check_branch
        %1517 = sbr.rel (%p1515) target = $region44
      $region43: #{encoder_forward.4} parent=39 // pred_region
        _
      $region44: #{encoder_forward.4} parent=39 // pred_fallthru
        _
    $region40: #{encoder_forward.4} parent=5 // pred_fallthru
      _
    %p1518 = scmp.le.s32.totalorder 2, %s11
    // Predicated region
    $region45: #{encoder_forward.4} parent=5 // pred_check
      %p1519 = pneg %p1518
    $region46: #{encoder_forward.4} parent=5 // pred_check_branch
      %1521 = sbr.rel (%p1519) target = $region48
    $region47: #{encoder_forward.4} parent=5 // pred_region
      %s1522 = ssub.s32 %s11, 2
      // Predicated region
      $region49: #{encoder_forward.4} parent=47 // pred_check
        %p1523 = pneg %p150
      $region50: #{encoder_forward.4} parent=47 // pred_check_branch
        %1525 = sbr.rel (%p1523) target = $region52
      $region51: #{encoder_forward.4} parent=47 // pred_region
        %p1526 = scmp.lt.s32.totalorder %s17, 1
        %s1527 = scalar_select %p1526, %s17, 1
        %s1528 = smul.addr %s1527, 32
        %s1529 = smul.addr %s1528, 8
        %s1530 = scalar_lea.vmem %s5, %s1529
      $region52: #{encoder_forward.4} parent=47 // pred_fallthru
        _
    $region48: #{encoder_forward.4} parent=5 // pred_fallthru
      _
  $region6: #{encoder_forward.4} parent=0 // loop_footer
    %s15 = sadd.s32 1, %s11
  $region7: #{encoder_forward.4} parent=0 // loop_footer_branch
    %10 = sbr.rel target = $region3
  $region8: #{encoder_forward.4} parent=0 // loop_exit
    _

// kernel: encoder_forward.7
$region0: #{encoder_forward.7}
  #allocation0 [shape = 'u32[]', space=smem, size = 0x4, offset = 0x4, fixed_abs, tag = 'smem constant byte address 0x4 - core index']
  #allocation1 [shape = 'u32[72,128]{1,0:T(1,128)}', space=vmem, size = 0x9000, scoped, tag = 'internal scratch']
  #allocation2 [shape = 'f32[2,128]{1,0:T(2,128)}', space=vmem, size = 0x400, scoped, tag = 'scratch operand']
  %s0 = inlined_call_operand.vmem [shape: f32[2,2048], index: 0, kind: input, shape index: {}]
  %s1 = inlined_call_operand.vmem [shape: f32[2048,256], index: 1, kind: input, shape index: {}]
  %s2 = inlined_call_operand.vmem [shape: f32[1,256], index: 2, kind: input, shape index: {}]
  %s3 = inlined_call_operand.hbm [shape: f32[2,256], index: 3, kind: output, shape index: {}]
  %s4 = sld [smem:[#allocation0]]
  $region91: #{encoder_forward.7} parent=0
    _
  %s6 = ssub.s32 1, %s4
  %s7 = scalar_select 0, %s6, %s4
  $region1: #{encoder_forward.7} parent=0
    #allocation3 [shape = 'u8[1048576]{0}', space=vmem, size = 0x100000, scoped, tag = 'input window, operand 1']
    #allocation4 [shape = 'u8[2048]{0}', space=vmem, size = 0x800, scoped, tag = 'output window, operand 0']
    #allocation5 [shape = 's32[2]{0}', space=sflag, size = 0x8, scoped, tag = 'scoped memory for encoder_forward.7']
    %8 = vsyncpa [#allocation5], 0
    %s9 = scalar_lea.sflag [#allocation5], 1
    %10 = vsyncpa %s9, 0
    loop: start=0, step=1, limit=6
    $region2: #{encoder_forward.7} parent=1 // loop_pre_header
      _
    $region3: #{encoder_forward.7} parent=1 // loop_header
      %s12 = sphi 0, %s16
      %p13 = scmp.ge.s32.totalorder %s12, 6
      %s19 = sphi 0, %s31
      %s20 = sphi 0, %s27
      %s21 = sphi 0, %s19
      %s22 = sphi 0, %s20
      %s23 = sphi 0, %s21
      %s24 = sphi 0, %s22
      %s34 = sphi 0, %s36
      %s37 = sphi 0, %s34
      %s38 = sphi 0, %s37
      %s54 = sphi 0, %s38
      %s62 = sphi 0, %s64
      %s65 = sphi 0, %s62
      %s66 = sphi 0, %s65
      %s82 = sphi 0, %s66
      %s88 = sphi 0, %s90
      %s91 = sphi 0, %s88
      %s92 = sphi 0, %s91
      %s108 = sphi 0, %s92
      %s114 = sphi 0, %s116
      %s117 = sphi 0, %s114
      %s118 = sphi 0, %s117
      %s134 = sphi 0, %s118
    $region4: #{encoder_forward.7} parent=1 // loop_header_branch
      %15 = sbr.rel (%p13) target = $region8
    $region5: #{encoder_forward.7} parent=1 // loop_body
      %s17 = ssub.s32 %s12, 1
      %s18 = ssub.s32 %s12, 2
      %s25 = sadd.s32 1, %s20
      %p26 = scmp.ge.s32.totalorder %s25, 2
      %s27 = scalar_select %p26, 0, %s25
      %s28 = sadd.s32 1, %s19
      %s29 = scalar_select %p26, %s28, %s19
      %p30 = scmp.ge.s32.totalorder %s29, 2
      %s31 = scalar_select %p30, 0, %s29
      %s32 = ssub.s32 %s20, %s27
      %p33 = scmp.eq.s32.totalorder %s32, 0
      %s35 = sadd.s32 %s34, 1
      %s36 = scalar_select %p33, %s34, %s35
      %p39 = pneg %p33
      %p40 = scmp.eq.s32.totalorder %s12, 3
      %p41 = por %p39, %p40
      %p42 = scmp.ne.s32.totalorder %s34, %s37
      %p43 = scmp.eq.s32.totalorder %s12, 0
      %p44 = por %p42, %p43
      %p45 = scmp.ne.s32.totalorder %s34, %s37
      %p46 = scmp.eq.s32.totalorder %s17, 3
      %p47 = por %p45, %p46
      %p48 = scmp.ne.s32.totalorder %s37, %s38
      %p49 = scmp.eq.s32.totalorder %s17, 0
      %p50 = por %p48, %p49
      %p51 = scmp.ne.s32.totalorder %s37, %s38
      %p52 = scmp.eq.s32.totalorder %s18, 3
      %p53 = por %p51, %p52
      %p55 = scmp.ne.s32.totalorder %s38, %s54
      %p56 = scmp.eq.s32.totalorder %s18, 0
      %p57 = por %p55, %p56
      %s58 = ssub.s32 %s20, %s27
      %s59 = ssub.s32 %s19, %s31
      %s60 = sor.u32 %s58, %s59
      %p61 = scmp.eq.s32.totalorder %s60, 0
      %s63 = sadd.s32 %s62, 1
      %s64 = scalar_select %p61, %s62, %s63
      %p67 = pneg %p61
      %p68 = scmp.eq.s32.totalorder %s12, 3
      %p69 = por %p67, %p68
      %p70 = scmp.ne.s32.totalorder %s62, %s65
      %p71 = scmp.eq.s32.totalorder %s12, 0
      %p72 = por %p70, %p71
      %p73 = scmp.ne.s32.totalorder %s62, %s65
      %p74 = scmp.eq.s32.totalorder %s17, 3
      %p75 = por %p73, %p74
      %p76 = scmp.ne.s32.totalorder %s65, %s66
      %p77 = scmp.eq.s32.totalorder %s17, 0
      %p78 = por %p76, %p77
      %p79 = scmp.ne.s32.totalorder %s65, %s66
      %p80 = scmp.eq.s32.totalorder %s18, 3
      %p81 = por %p79, %p80
      %p83 = scmp.ne.s32.totalorder %s66, %s82
      %p84 = scmp.eq.s32.totalorder %s18, 0
      %p85 = por %p83, %p84
      %s86 = ssub.s32 %s19, %s31
      %p87 = scmp.eq.s32.totalorder %s86, 0
      %s89 = sadd.s32 %s88, 1
      %s90 = scalar_select %p87, %s88, %s89
      %p93 = pneg %p87
      %p94 = scmp.eq.s32.totalorder %s12, 3
      %p95 = por %p93, %p94
      %p96 = scmp.ne.s32.totalorder %s88, %s91
      %p97 = scmp.eq.s32.totalorder %s12, 0
      %p98 = por %p96, %p97
      %p99 = scmp.ne.s32.totalorder %s88, %s91
      %p100 = scmp.eq.s32.totalorder %s17, 3
      %p101 = por %p99, %p100
      %p102 = scmp.ne.s32.totalorder %s91, %s92
      %p103 = scmp.eq.s32.totalorder %s17, 0
      %p104 = por %p102, %p103
      %p105 = scmp.ne.s32.totalorder %s91, %s92
      %p106 = scmp.eq.s32.totalorder %s18, 3
      %p107 = por %p105, %p106
      %p109 = scmp.ne.s32.totalorder %s92, %s108
      %p110 = scmp.eq.s32.totalorder %s18, 0
      %p111 = por %p109, %p110
      %s112 = ssub.s32 %s19, %s31
      %p113 = scmp.eq.s32.totalorder %s112, 0
      %s115 = sadd.s32 %s114, 1
      %s116 = scalar_select %p113, %s114, %s115
      %p119 = pneg %p113
      %p120 = scmp.eq.s32.totalorder %s12, 3
      %p121 = por %p119, %p120
      %p122 = scmp.ne.s32.totalorder %s114, %s117
      %p123 = scmp.eq.s32.totalorder %s12, 0
      %p124 = por %p122, %p123
      %p125 = scmp.ne.s32.totalorder %s114, %s117
      %p126 = scmp.eq.s32.totalorder %s17, 3
      %p127 = por %p125, %p126
      %p128 = scmp.ne.s32.totalorder %s117, %s118
      %p129 = scmp.eq.s32.totalorder %s17, 0
      %p130 = por %p128, %p129
      %p131 = scmp.ne.s32.totalorder %s117, %s118
      %p132 = scmp.eq.s32.totalorder %s18, 3
      %p133 = por %p131, %p132
      %p135 = scmp.ne.s32.totalorder %s118, %s134
      %p136 = scmp.eq.s32.totalorder %s18, 0
      %p137 = por %p135, %p136
      %p138 = scmp.le.s32.totalorder 1, %s12
      %p139 = scmp.lt.s32.totalorder %s12, 5
      %p140 = pnand %p138, %p139
      %p141 = pneg %p140
      // Predicated region
      $region9: #{encoder_forward.7} parent=5 // pred_check
        _
      $region10: #{encoder_forward.7} parent=5 // pred_check_branch
        %143 = sbr.rel (%p140) target = $region12
      $region11: #{encoder_forward.7} parent=5 // pred_region
        %s144 = ssub.s32 %s12, 1
      $region12: #{encoder_forward.7} parent=5 // pred_fallthru
        _
      %p145 = scmp.lt.s32.totalorder %s12, 4
      // Predicated region
      $region13: #{encoder_forward.7} parent=5 // pred_check
        %p146 = pneg %p145
      $region14: #{encoder_forward.7} parent=5 // pred_check_branch
        %148 = sbr.rel (%p146) target = $region16
      $region15: #{encoder_forward.7} parent=5 // pred_region
        // Predicated region
        $region17: #{encoder_forward.7} parent=15 // pred_check
          %p149 = pneg %p44
        $region18: #{encoder_forward.7} parent=15 // pred_check_branch
          %151 = sbr.rel (%p149) target = $region20
        $region19: #{encoder_forward.7} parent=15 // pred_region
          %s152 = smul.u32 8, %s20
          %p153 = scmp.lt.s32.totalorder %s152, 15
          %s154 = scalar_select %p153, %s152, 15
          %s155 = smul.addr %s154, 2
          %s156 = scalar_lea.vmem %s0, %s155
          %s157 = smul.u32 8, %s20
        $region20: #{encoder_forward.7} parent=15 // pred_fallthru
          _
        // Predicated region
        $region21: #{encoder_forward.7} parent=15 // pred_check
          %p158 = pneg %p72
        $region22: #{encoder_forward.7} parent=15 // pred_check_branch
          %160 = sbr.rel (%p158) target = $region24
        $region23: #{encoder_forward.7} parent=15 // pred_region
          %s161 = sand.u32 %s62, 1
          %s162 = sand.u32 %s62, 1
          %s163 = smul.addr %s162, 1024
          %s164 = scalar_lea.vmem [#allocation3], %s163
          %s165 = smul.u32 128, %s20
          %s166 = smul.addr %s165, 2
          %s167 = sadd.s32 %s19, %s166
          %s168 = smul.addr %s167, 8
          %s169 = scalar_lea.vmem %s1, %s168
          // Predicated region
          $region25: #{encoder_forward.7} parent=23 // pred_check
            _
          $region26: #{encoder_forward.7} parent=23 // pred_check_branch
            %171 = sbr.rel (0) target = $region28
          $region27: #{encoder_forward.7} parent=23 // pred_region
            // Predicated region
            $region29: #{encoder_forward.7} parent=27 // pred_check
              _
            $region30: #{encoder_forward.7} parent=27 // pred_check_branch
              %173 = sbr.rel (0) target = $region32
            $region31: #{encoder_forward.7} parent=27 // pred_region
              // Predicated region
              $region44: #{encoder_forward.7} parent=31 // pred_check
                _
              $region45: #{encoder_forward.7} parent=31 // pred_check_branch
                %443 = sbr.rel (0) target = $region47
              $region46: #{encoder_forward.7} parent=31 // pred_region
                loop: start=0, step=1, limit=1
                $region48: #{encoder_forward.7} parent=46 // loop_pre_header
                  _
                $region49: #{encoder_forward.7} parent=46 // loop_header
                  %s445 = sphi 0, %s449
                  %p446 = scmp.ge.s32.totalorder %s445, 1
                  %s450 = sphi %s169, %s169
                  %s451 = sphi %s164, %s164
                $region50: #{encoder_forward.7} parent=46 // loop_header_branch
                  %448 = sbr.rel (%p446) target = $region54
                $region51: #{encoder_forward.7} parent=46 // loop_body
                  %v452 = vld [vmem:[%s450] sm:$0xff]
                  %453 = vst [vmem:[%s451] sm:$0xff] %v452
                  %v454 = vld [vmem:[%s450 + $0x10] sm:$0xff]
                  %455 = vst [vmem:[%s451 + $0x8] sm:$0xff] %v454
                  %v456 = vld [vmem:[%s450 + $0x20] sm:$0xff]
                  %457 = vst [vmem:[%s451 + $0x10] sm:$0xff] %v456
                  %v458 = vld [vmem:[%s450 + $0x30] sm:$0xff]
                  %459 = vst [vmem:[%s451 + $0x18] sm:$0xff] %v458
                  %v460 = vld [vmem:[%s450 + $0x40] sm:$0xff]
                  %461 = vst [vmem:[%s451 + $0x20] sm:$0xff] %v460
                  %v462 = vld [vmem:[%s450 + $0x50] sm:$0xff]
                  %463 = vst [vmem:[%s451 + $0x28] sm:$0xff] %v462
                  %v464 = vld [vmem:[%s450 + $0x60] sm:$0xff]
                  %465 = vst [vmem:[%s451 + $0x30] sm:$0xff] %v464
                  %v466 = vld [vmem:[%s450 + $0x70] sm:$0xff]
                  %467 = vst [vmem:[%s451 + $0x38] sm:$0xff] %v466
                  %v468 = vld [vmem:[%s450 + $0x80] sm:$0xff]
                  %469 = vst [vmem:[%s451 + $0x40] sm:$0xff] %v468
                  %v470 = vld [vmem:[%s450 + $0x90] sm:$0xff]
                  %471 = vst [vmem:[%s451 + $0x48] sm:$0xff] %v470
                  %v472 = vld [vmem:[%s450 + $0xa0] sm:$0xff]
                  %473 = vst [vmem:[%s451 + $0x50] sm:$0xff] %v472
                  %v474 = vld [vmem:[%s450 + $0xb0] sm:$0xff]
                  %475 = vst [vmem:[%s451 + $0x58] sm:$0xff] %v474
                  %v476 = vld [vmem:[%s450 + $0xc0] sm:$0xff]
                  %477 = vst [vmem:[%s451 + $0x60] sm:$0xff] %v476
                  %v478 = vld [vmem:[%s450 + $0xd0] sm:$0xff]
                  %479 = vst [vmem:[%s451 + $0x68] sm:$0xff] %v478
                  %v480 = vld [vmem:[%s450 + $0xe0] sm:$0xff]
                  %481 = vst [vmem:[%s451 + $0x70] sm:$0xff] %v480
                  %v482 = vld [vmem:[%s450 + $0xf0] sm:$0xff]
                  %483 = vst [vmem:[%s451 + $0x78] sm:$0xff] %v482
                  %v484 = vld [vmem:[%s450 + $0x100] sm:$0xff]
                  %485 = vst [vmem:[%s451 + $0x80] sm:$0xff] %v484
                  %v486 = vld [vmem:[%s450 + $0x110] sm:$0xff]
                  %487 = vst [vmem:[%s451 + $0x88] sm:$0xff] %v486
                  %v488 = vld [vmem:[%s450 + $0x120] sm:$0xff]
                  %489 = vst [vmem:[%s451 + $0x90] sm:$0xff] %v488
                  %v490 = vld [vmem:[%s450 + $0x130] sm:$0xff]
                  %491 = vst [vmem:[%s451 + $0x98] sm:$0xff] %v490
                  %v492 = vld [vmem:[%s450 + $0x140] sm:$0xff]
                  %493 = vst [vmem:[%s451 + $0xa0] sm:$0xff] %v492
                  %v494 = vld [vmem:[%s450 + $0x150] sm:$0xff]
                  %495 = vst [vmem:[%s451 + $0xa8] sm:$0xff] %v494
                  %v496 = vld [vmem:[%s450 + $0x160] sm:$0xff]
                  %497 = vst [vmem:[%s451 + $0xb0] sm:$0xff] %v496
                  %v498 = vld [vmem:[%s450 + $0x170] sm:$0xff]
                  %499 = vst [vmem:[%s451 + $0xb8] sm:$0xff] %v498
                  %v500 = vld [vmem:[%s450 + $0x180] sm:$0xff]
                  %501 = vst [vmem:[%s451 + $0xc0] sm:$0xff] %v500
                  %v502 = vld [vmem:[%s450 + $0x190] sm:$0xff]
                  %503 = vst [vmem:[%s451 + $0xc8] sm:$0xff] %v502
                  %v504 = vld [vmem:[%s450 + $0x1a0] sm:$0xff]
                  %505 = vst [vmem:[%s451 + $0xd0] sm:$0xff] %v504
                  %v506 = vld [vmem:[%s450 + $0x1b0] sm:$0xff]
                  %507 = vst [vmem:[%s451 + $0xd8] sm:$0xff] %v506
                  %v508 = vld [vmem:[%s450 + $0x1c0] sm:$0xff]
                  %509 = vst [vmem:[%s451 + $0xe0] sm:$0xff] %v508
                  %v510 = vld [vmem:[%s450 + $0x1d0] sm:$0xff]
                  %511 = vst [vmem:[%s451 + $0xe8] sm:$0xff] %v510
                  %v512 = vld [vmem:[%s450 + $0x1e0] sm:$0xff]
                  %513 = vst [vmem:[%s451 + $0xf0] sm:$0xff] %v512
                  %v514 = vld [vmem:[%s450 + $0x1f0] sm:$0xff]
                  %515 = vst [vmem:[%s451 + $0xf8] sm:$0xff] %v514
                  %v516 = vld [vmem:[%s450 + $0x200] sm:$0xff]
                  %517 = vst [vmem:[%s451 + $0x100] sm:$0xff] %v516
                  %v518 = vld [vmem:[%s450 + $0x210] sm:$0xff]
                  %519 = vst [vmem:[%s451 + $0x108] sm:$0xff] %v518
                  %v520 = vld [vmem:[%s450 + $0x220] sm:$0xff]
                  %521 = vst [vmem:[%s451 + $0x110] sm:$0xff] %v520
                  %v522 = vld [vmem:[%s450 + $0x230] sm:$0xff]
                  %523 = vst [vmem:[%s451 + $0x118] sm:$0xff] %v522
                  %v524 = vld [vmem:[%s450 + $0x240] sm:$0xff]
                  %525 = vst [vmem:[%s451 + $0x120] sm:$0xff] %v524
                  %v526 = vld [vmem:[%s450 + $0x250] sm:$0xff]
                  %527 = vst [vmem:[%s451 + $0x128] sm:$0xff] %v526
                  %v528 = vld [vmem:[%s450 + $0x260] sm:$0xff]
                  %529 = vst [vmem:[%s451 + $0x130] sm:$0xff] %v528
                  %v530 = vld [vmem:[%s450 + $0x270] sm:$0xff]
                  %531 = vst [vmem:[%s451 + $0x138] sm:$0xff] %v530
                  %v532 = vld [vmem:[%s450 + $0x280] sm:$0xff]
                  %533 = vst [vmem:[%s451 + $0x140] sm:$0xff] %v532
                  %v534 = vld [vmem:[%s450 + $0x290] sm:$0xff]
                  %535 = vst [vmem:[%s451 + $0x148] sm:$0xff] %v534
                  %v536 = vld [vmem:[%s450 + $0x2a0] sm:$0xff]
                  %537 = vst [vmem:[%s451 + $0x150] sm:$0xff] %v536
                  %v538 = vld [vmem:[%s450 + $0x2b0] sm:$0xff]
                  %539 = vst [vmem:[%s451 + $0x158] sm:$0xff] %v538
                  %v540 = vld [vmem:[%s450 + $0x2c0] sm:$0xff]
                  %541 = vst [vmem:[%s451 + $0x160] sm:$0xff] %v540
                  %v542 = vld [vmem:[%s450 + $0x2d0] sm:$0xff]
                  %543 = vst [vmem:[%s451 + $0x168] sm:$0xff] %v542
                  %v544 = vld [vmem:[%s450 + $0x2e0] sm:$0xff]
                  %545 = vst [vmem:[%s451 + $0x170] sm:$0xff] %v544
                  %v546 = vld [vmem:[%s450 + $0x2f0] sm:$0xff]
                  %547 = vst [vmem:[%s451 + $0x178] sm:$0xff] %v546
                  %v548 = vld [vmem:[%s450 + $0x300] sm:$0xff]
                  %549 = vst [vmem:[%s451 + $0x180] sm:$0xff] %v548
                  %v550 = vld [vmem:[%s450 + $0x310] sm:$0xff]
                  %551 = vst [vmem:[%s451 + $0x188] sm:$0xff] %v550
                  %v552 = vld [vmem:[%s450 + $0x320] sm:$0xff]
                  %553 = vst [vmem:[%s451 + $0x190] sm:$0xff] %v552
                  %v554 = vld [vmem:[%s450 + $0x330] sm:$0xff]
                  %555 = vst [vmem:[%s451 + $0x198] sm:$0xff] %v554
                  %v556 = vld [vmem:[%s450 + $0x340] sm:$0xff]
                  %557 = vst [vmem:[%s451 + $0x1a0] sm:$0xff] %v556
                  %v558 = vld [vmem:[%s450 + $0x350] sm:$0xff]
                  %559 = vst [vmem:[%s451 + $0x1a8] sm:$0xff] %v558
                  %v560 = vld [vmem:[%s450 + $0x360] sm:$0xff]
                  %561 = vst [vmem:[%s451 + $0x1b0] sm:$0xff] %v560
                  %v562 = vld [vmem:[%s450 + $0x370] sm:$0xff]
                  %563 = vst [vmem:[%s451 + $0x1b8] sm:$0xff] %v562
                  %v564 = vld [vmem:[%s450 + $0x380] sm:$0xff]
                  %565 = vst [vmem:[%s451 + $0x1c0] sm:$0xff] %v564
                  %v566 = vld [vmem:[%s450 + $0x390] sm:$0xff]
                  %567 = vst [vmem:[%s451 + $0x1c8] sm:$0xff] %v566
                  %v568 = vld [vmem:[%s450 + $0x3a0] sm:$0xff]
                  %569 = vst [vmem:[%s451 + $0x1d0] sm:$0xff] %v568
                  %v570 = vld [vmem:[%s450 + $0x3b0] sm:$0xff]
                  %571 = vst [vmem:[%s451 + $0x1d8] sm:$0xff] %v570
                  %v572 = vld [vmem:[%s450 + $0x3c0] sm:$0xff]
                  %573 = vst [vmem:[%s451 + $0x1e0] sm:$0xff] %v572
                  %v574 = vld [vmem:[%s450 + $0x3d0] sm:$0xff]
                  %575 = vst [vmem:[%s451 + $0x1e8] sm:$0xff] %v574
                  %v576 = vld [vmem:[%s450 + $0x3e0] sm:$0xff]
                  %577 = vst [vmem:[%s451 + $0x1f0] sm:$0xff] %v576
                  %v578 = vld [vmem:[%s450 + $0x3f0] sm:$0xff]
                  %579 = vst [vmem:[%s451 + $0x1f8] sm:$0xff] %v578
                  %v580 = vld [vmem:[%s450 + $0x400] sm:$0xff]
                  %581 = vst [vmem:[%s451 + $0x200] sm:$0xff] %v580
                  %v582 = vld [vmem:[%s450 + $0x410] sm:$0xff]
                  %583 = vst [vmem:[%s451 + $0x208] sm:$0xff] %v582
                  %v584 = vld [vmem:[%s450 + $0x420] sm:$0xff]
                  %585 = vst [vmem:[%s451 + $0x210] sm:$0xff] %v584
                  %v586 = vld [vmem:[%s450 + $0x430] sm:$0xff]
                  %587 = vst [vmem:[%s451 + $0x218] sm:$0xff] %v586
                  %v588 = vld [vmem:[%s450 + $0x440] sm:$0xff]
                  %589 = vst [vmem:[%s451 + $0x220] sm:$0xff] %v588
                  %v590 = vld [vmem:[%s450 + $0x450] sm:$0xff]
                  %591 = vst [vmem:[%s451 + $0x228] sm:$0xff] %v590
                  %v592 = vld [vmem:[%s450 + $0x460] sm:$0xff]
                  %593 = vst [vmem:[%s451 + $0x230] sm:$0xff] %v592
                  %v594 = vld [vmem:[%s450 + $0x470] sm:$0xff]
                  %595 = vst [vmem:[%s451 + $0x238] sm:$0xff] %v594
                  %v596 = vld [vmem:[%s450 + $0x480] sm:$0xff]
                  %597 = vst [vmem:[%s451 + $0x240] sm:$0xff] %v596
                  %v598 = vld [vmem:[%s450 + $0x490] sm:$0xff]
                  %599 = vst [vmem:[%s451 + $0x248] sm:$0xff] %v598
                  %v600 = vld [vmem:[%s450 + $0x4a0] sm:$0xff]
                  %601 = vst [vmem:[%s451 + $0x250] sm:$0xff] %v600
                  %v602 = vld [vmem:[%s450 + $0x4b0] sm:$0xff]
                  %603 = vst [vmem:[%s451 + $0x258] sm:$0xff] %v602
                  %v604 = vld [vmem:[%s450 + $0x4c0] sm:$0xff]
                  %605 = vst [vmem:[%s451 + $0x260] sm:$0xff] %v604
                  %v606 = vld [vmem:[%s450 + $0x4d0] sm:$0xff]
                  %607 = vst [vmem:[%s451 + $0x268] sm:$0xff] %v606
                  %v608 = vld [vmem:[%s450 + $0x4e0] sm:$0xff]
                  %609 = vst [vmem:[%s451 + $0x270] sm:$0xff] %v608
                  %v610 = vld [vmem:[%s450 + $0x4f0] sm:$0xff]
                  %611 = vst [vmem:[%s451 + $0x278] sm:$0xff] %v610
                  %v612 = vld [vmem:[%s450 + $0x500] sm:$0xff]
                  %613 = vst [vmem:[%s451 + $0x280] sm:$0xff] %v612
                  %v614 = vld [vmem:[%s450 + $0x510] sm:$0xff]
                  %615 = vst [vmem:[%s451 + $0x288] sm:$0xff] %v614
                  %v616 = vld [vmem:[%s450 + $0x520] sm:$0xff]
                  %617 = vst [vmem:[%s451 + $0x290] sm:$0xff] %v616
                  %v618 = vld [vmem:[%s450 + $0x530] sm:$0xff]
                  %619 = vst [vmem:[%s451 + $0x298] sm:$0xff] %v618
                  %v620 = vld [vmem:[%s450 + $0x540] sm:$0xff]
                  %621 = vst [vmem:[%s451 + $0x2a0] sm:$0xff] %v620
                  %v622 = vld [vmem:[%s450 + $0x550] sm:$0xff]
                  %623 = vst [vmem:[%s451 + $0x2a8] sm:$0xff] %v622
                  %v624 = vld [vmem:[%s450 + $0x560] sm:$0xff]
                  %625 = vst [vmem:[%s451 + $0x2b0] sm:$0xff] %v624
                  %v626 = vld [vmem:[%s450 + $0x570] sm:$0xff]
                  %627 = vst [vmem:[%s451 + $0x2b8] sm:$0xff] %v626
                  %v628 = vld [vmem:[%s450 + $0x580] sm:$0xff]
                  %629 = vst [vmem:[%s451 + $0x2c0] sm:$0xff] %v628
                  %v630 = vld [vmem:[%s450 + $0x590] sm:$0xff]
                  %631 = vst [vmem:[%s451 + $0x2c8] sm:$0xff] %v630
                  %v632 = vld [vmem:[%s450 + $0x5a0] sm:$0xff]
                  %633 = vst [vmem:[%s451 + $0x2d0] sm:$0xff] %v632
                  %v634 = vld [vmem:[%s450 + $0x5b0] sm:$0xff]
                  %635 = vst [vmem:[%s451 + $0x2d8] sm:$0xff] %v634
                  %v636 = vld [vmem:[%s450 + $0x5c0] sm:$0xff]
                  %637 = vst [vmem:[%s451 + $0x2e0] sm:$0xff] %v636
                  %v638 = vld [vmem:[%s450 + $0x5d0] sm:$0xff]
                  %639 = vst [vmem:[%s451 + $0x2e8] sm:$0xff] %v638
                  %v640 = vld [vmem:[%s450 + $0x5e0] sm:$0xff]
                  %641 = vst [vmem:[%s451 + $0x2f0] sm:$0xff] %v640
                  %v642 = vld [vmem:[%s450 + $0x5f0] sm:$0xff]
                  %643 = vst [vmem:[%s451 + $0x2f8] sm:$0xff] %v642
                  %v644 = vld [vmem:[%s450 + $0x600] sm:$0xff]
                  %645 = vst [vmem:[%s451 + $0x300] sm:$0xff] %v644
                  %v646 = vld [vmem:[%s450 + $0x610] sm:$0xff]
                  %647 = vst [vmem:[%s451 + $0x308] sm:$0xff] %v646
                  %v648 = vld [vmem:[%s450 + $0x620] sm:$0xff]
                  %649 = vst [vmem:[%s451 + $0x310] sm:$0xff] %v648
                  %v650 = vld [vmem:[%s450 + $0x630] sm:$0xff]
                  %651 = vst [vmem:[%s451 + $0x318] sm:$0xff] %v650
                  %v652 = vld [vmem:[%s450 + $0x640] sm:$0xff]
                  %653 = vst [vmem:[%s451 + $0x320] sm:$0xff] %v652
                  %v654 = vld [vmem:[%s450 + $0x650] sm:$0xff]
                  %655 = vst [vmem:[%s451 + $0x328] sm:$0xff] %v654
                  %v656 = vld [vmem:[%s450 + $0x660] sm:$0xff]
                  %657 = vst [vmem:[%s451 + $0x330] sm:$0xff] %v656
                  %v658 = vld [vmem:[%s450 + $0x670] sm:$0xff]
                  %659 = vst [vmem:[%s451 + $0x338] sm:$0xff] %v658
                  %v660 = vld [vmem:[%s450 + $0x680] sm:$0xff]
                  %661 = vst [vmem:[%s451 + $0x340] sm:$0xff] %v660
                  %v662 = vld [vmem:[%s450 + $0x690] sm:$0xff]
                  %663 = vst [vmem:[%s451 + $0x348] sm:$0xff] %v662
                  %v664 = vld [vmem:[%s450 + $0x6a0] sm:$0xff]
                  %665 = vst [vmem:[%s451 + $0x350] sm:$0xff] %v664
                  %v666 = vld [vmem:[%s450 + $0x6b0] sm:$0xff]
                  %667 = vst [vmem:[%s451 + $0x358] sm:$0xff] %v666
                  %v668 = vld [vmem:[%s450 + $0x6c0] sm:$0xff]
                  %669 = vst [vmem:[%s451 + $0x360] sm:$0xff] %v668
                  %v670 = vld [vmem:[%s450 + $0x6d0] sm:$0xff]
                  %671 = vst [vmem:[%s451 + $0x368] sm:$0xff] %v670
                  %v672 = vld [vmem:[%s450 + $0x6e0] sm:$0xff]
                  %673 = vst [vmem:[%s451 + $0x370] sm:$0xff] %v672
                  %v674 = vld [vmem:[%s450 + $0x6f0] sm:$0xff]
                  %675 = vst [vmem:[%s451 + $0x378] sm:$0xff] %v674
                  %v676 = vld [vmem:[%s450 + $0x700] sm:$0xff]
                  %677 = vst [vmem:[%s451 + $0x380] sm:$0xff] %v676
                  %v678 = vld [vmem:[%s450 + $0x710] sm:$0xff]
                  %679 = vst [vmem:[%s451 + $0x388] sm:$0xff] %v678
                  %v680 = vld [vmem:[%s450 + $0x720] sm:$0xff]
                  %681 = vst [vmem:[%s451 + $0x390] sm:$0xff] %v680
                  %v682 = vld [vmem:[%s450 + $0x730] sm:$0xff]
                  %683 = vst [vmem:[%s451 + $0x398] sm:$0xff] %v682
                  %v684 = vld [vmem:[%s450 + $0x740] sm:$0xff]
                  %685 = vst [vmem:[%s451 + $0x3a0] sm:$0xff] %v684
                  %v686 = vld [vmem:[%s450 + $0x750] sm:$0xff]
                  %687 = vst [vmem:[%s451 + $0x3a8] sm:$0xff] %v686
                  %v688 = vld [vmem:[%s450 + $0x760] sm:$0xff]
                  %689 = vst [vmem:[%s451 + $0x3b0] sm:$0xff] %v688
                  %v690 = vld [vmem:[%s450 + $0x770] sm:$0xff]
                  %691 = vst [vmem:[%s451 + $0x3b8] sm:$0xff] %v690
                  %v692 = vld [vmem:[%s450 + $0x780] sm:$0xff]
                  %693 = vst [vmem:[%s451 + $0x3c0] sm:$0xff] %v692
                  %v694 = vld [vmem:[%s450 + $0x790] sm:$0xff]
                  %695 = vst [vmem:[%s451 + $0x3c8] sm:$0xff] %v694
                  %v696 = vld [vmem:[%s450 + $0x7a0] sm:$0xff]
                  %697 = vst [vmem:[%s451 + $0x3d0] sm:$0xff] %v696
                  %v698 = vld [vmem:[%s450 + $0x7b0] sm:$0xff]
                  %699 = vst [vmem:[%s451 + $0x3d8] sm:$0xff] %v698
                  %v700 = vld [vmem:[%s450 + $0x7c0] sm:$0xff]
                  %701 = vst [vmem:[%s451 + $0x3e0] sm:$0xff] %v700
                  %v702 = vld [vmem:[%s450 + $0x7d0] sm:$0xff]
                  %703 = vst [vmem:[%s451 + $0x3e8] sm:$0xff] %v702
                  %v704 = vld [vmem:[%s450 + $0x7e0] sm:$0xff]
                  %705 = vst [vmem:[%s451 + $0x3f0] sm:$0xff] %v704
                  %v706 = vld [vmem:[%s450 + $0x7f0] sm:$0xff]
                  %707 = vst [vmem:[%s451 + $0x3f8] sm:$0xff] %v706
                $region52: #{encoder_forward.7} parent=46 // loop_footer
                  %s449 = sadd.s32 1, %s445
                $region53: #{encoder_forward.7} parent=46 // loop_footer_branch
                  %444 = sbr.rel target = $region49
                $region54: #{encoder_forward.7} parent=46 // loop_exit
                  _
              $region47: #{encoder_forward.7} parent=31 // pred_fallthru
                _
              // Predicated region
              $region55: #{encoder_forward.7} parent=31 // pred_check
                _
              $region56: #{encoder_forward.7} parent=31 // pred_check_branch
                %709 = sbr.rel target = $region58
              $region57: #{encoder_forward.7} parent=31 // pred_region
                _
              $region58: #{encoder_forward.7} parent=31 // pred_fallthru
                _
            $region32: #{encoder_forward.7} parent=27 // pred_fallthru
              _
            // Predicated region
            $region33: #{encoder_forward.7} parent=27 // pred_check
              _
            $region34: #{encoder_forward.7} parent=27 // pred_check_branch
              %175 = sbr.rel target = $region36
            $region35: #{encoder_forward.7} parent=27 // pred_region
              %s177 = ssub.s32 256, 1
              loop: start=0, step=1, limit=1
              $region37: #{encoder_forward.7} parent=35 // loop_pre_header
                _
              $region38: #{encoder_forward.7} parent=35 // loop_header
                %s179 = sphi 0, %s183
                %p180 = scmp.ge.s32.totalorder %s179, 1
                %s184 = sphi %s169, %s169
                %s185 = sphi %s164, %s164
              $region39: #{encoder_forward.7} parent=35 // loop_header_branch
                %182 = sbr.rel (%p180) target = $region43
              $region40: #{encoder_forward.7} parent=35 // loop_body
                %v186 = vld [vmem:[%s184] sm:%s177]
                %187 = vst [vmem:[%s185] sm:%s177] %v186
                %v188 = vld [vmem:[%s184 + $0x10] sm:%s177]
                %189 = vst [vmem:[%s185 + $0x8] sm:%s177] %v188
                %v190 = vld [vmem:[%s184 + $0x20] sm:%s177]
                %191 = vst [vmem:[%s185 + $0x10] sm:%s177] %v190
                %v192 = vld [vmem:[%s184 + $0x30] sm:%s177]
                %193 = vst [vmem:[%s185 + $0x18] sm:%s177] %v192
                %v194 = vld [vmem:[%s184 + $0x40] sm:%s177]
                %195 = vst [vmem:[%s185 + $0x20] sm:%s177] %v194
                %v196 = vld [vmem:[%s184 + $0x50] sm:%s177]
                %197 = vst [vmem:[%s185 + $0x28] sm:%s177] %v196
                %v198 = vld [vmem:[%s184 + $0x60] sm:%s177]
                %199 = vst [vmem:[%s185 + $0x30] sm:%s177] %v198
                %v200 = vld [vmem:[%s184 + $0x70] sm:%s177]
                %201 = vst [vmem:[%s185 + $0x38] sm:%s177] %v200
                %v202 = vld [vmem:[%s184 + $0x80] sm:%s177]
                %203 = vst [vmem:[%s185 + $0x40] sm:%s177] %v202
                %v204 = vld [vmem:[%s184 + $0x90] sm:%s177]
                %205 = vst [vmem:[%s185 + $0x48] sm:%s177] %v204
                %v206 = vld [vmem:[%s184 + $0xa0] sm:%s177]
                %207 = vst [vmem:[%s185 + $0x50] sm:%s177] %v206
                %v208 = vld [vmem:[%s184 + $0xb0] sm:%s177]
                %209 = vst [vmem:[%s185 + $0x58] sm:%s177] %v208
                %v210 = vld [vmem:[%s184 + $0xc0] sm:%s177]
                %211 = vst [vmem:[%s185 + $0x60] sm:%s177] %v210
                %v212 = vld [vmem:[%s184 + $0xd0] sm:%s177]
                %213 = vst [vmem:[%s185 + $0x68] sm:%s177] %v212
                %v214 = vld [vmem:[%s184 + $0xe0] sm:%s177]
                %215 = vst [vmem:[%s185 + $0x70] sm:%s177] %v214
                %v216 = vld [vmem:[%s184 + $0xf0] sm:%s177]
                %217 = vst [vmem:[%s185 + $0x78] sm:%s177] %v216
                %v218 = vld [vmem:[%s184 + $0x100] sm:%s177]
                %219 = vst [vmem:[%s185 + $0x80] sm:%s177] %v218
                %v220 = vld [vmem:[%s184 + $0x110] sm:%s177]
                %221 = vst [vmem:[%s185 + $0x88] sm:%s177] %v220
                %v222 = vld [vmem:[%s184 + $0x120] sm:%s177]
                %223 = vst [vmem:[%s185 + $0x90] sm:%s177] %v222
                %v224 = vld [vmem:[%s184 + $0x130] sm:%s177]
                %225 = vst [vmem:[%s185 + $0x98] sm:%s177] %v224
                %v226 = vld [vmem:[%s184 + $0x140] sm:%s177]
                %227 = vst [vmem:[%s185 + $0xa0] sm:%s177] %v226
                %v228 = vld [vmem:[%s184 + $0x150] sm:%s177]
                %229 = vst [vmem:[%s185 + $0xa8] sm:%s177] %v228
                %v230 = vld [vmem:[%s184 + $0x160] sm:%s177]
                %231 = vst [vmem:[%s185 + $0xb0] sm:%s177] %v230
                %v232 = vld [vmem:[%s184 + $0x170] sm:%s177]
                %233 = vst [vmem:[%s185 + $0xb8] sm:%s177] %v232
                %v234 = vld [vmem:[%s184 + $0x180] sm:%s177]
                %235 = vst [vmem:[%s185 + $0xc0] sm:%s177] %v234
                %v236 = vld [vmem:[%s184 + $0x190] sm:%s177]
                %237 = vst [vmem:[%s185 + $0xc8] sm:%s177] %v236
                %v238 = vld [vmem:[%s184 + $0x1a0] sm:%s177]
                %239 = vst [vmem:[%s185 + $0xd0] sm:%s177] %v238
                %v240 = vld [vmem:[%s184 + $0x1b0] sm:%s177]
                %241 = vst [vmem:[%s185 + $0xd8] sm:%s177] %v240
                %v242 = vld [vmem:[%s184 + $0x1c0] sm:%s177]
                %243 = vst [vmem:[%s185 + $0xe0] sm:%s177] %v242
                %v244 = vld [vmem:[%s184 + $0x1d0] sm:%s177]
                %245 = vst [vmem:[%s185 + $0xe8] sm:%s177] %v244
                %v246 = vld [vmem:[%s184 + $0x1e0] sm:%s177]
                %247 = vst [vmem:[%s185 + $0xf0] sm:%s177] %v246
                %v248 = vld [vmem:[%s184 + $0x1f0] sm:%s177]
                %249 = vst [vmem:[%s185 + $0xf8] sm:%s177] %v248
                %v250 = vld [vmem:[%s184 + $0x200] sm:%s177]
                %251 = vst [vmem:[%s185 + $0x100] sm:%s177] %v250
                %v252 = vld [vmem:[%s184 + $0x210] sm:%s177]
                %253 = vst [vmem:[%s185 + $0x108] sm:%s177] %v252
                %v254 = vld [vmem:[%s184 + $0x220] sm:%s177]
                %255 = vst [vmem:[%s185 + $0x110] sm:%s177] %v254
                %v256 = vld [vmem:[%s184 + $0x230] sm:%s177]
                %257 = vst [vmem:[%s185 + $0x118] sm:%s177] %v256
                %v258 = vld [vmem:[%s184 + $0x240] sm:%s177]
                %259 = vst [vmem:[%s185 + $0x120] sm:%s177] %v258
                %v260 = vld [vmem:[%s184 + $0x250] sm:%s177]
                %261 = vst [vmem:[%s185 + $0x128] sm:%s177] %v260
                %v262 = vld [vmem:[%s184 + $0x260] sm:%s177]
                %263 = vst [vmem:[%s185 + $0x130] sm:%s177] %v262
                %v264 = vld [vmem:[%s184 + $0x270] sm:%s177]
                %265 = vst [vmem:[%s185 + $0x138] sm:%s177] %v264
                %v266 = vld [vmem:[%s184 + $0x280] sm:%s177]
                %267 = vst [vmem:[%s185 + $0x140] sm:%s177] %v266
                %v268 = vld [vmem:[%s184 + $0x290] sm:%s177]
                %269 = vst [vmem:[%s185 + $0x148] sm:%s177] %v268
                %v270 = vld [vmem:[%s184 + $0x2a0] sm:%s177]
                %271 = vst [vmem:[%s185 + $0x150] sm:%s177] %v270
                %v272 = vld [vmem:[%s184 + $0x2b0] sm:%s177]
                %273 = vst [vmem:[%s185 + $0x158] sm:%s177] %v272
                %v274 = vld [vmem:[%s184 + $0x2c0] sm:%s177]
                %275 = vst [vmem:[%s185 + $0x160] sm:%s177] %v274
                %v276 = vld [vmem:[%s184 + $0x2d0] sm:%s177]
                %277 = vst [vmem:[%s185 + $0x168] sm:%s177] %v276
                %v278 = vld [vmem:[%s184 + $0x2e0] sm:%s177]
                %279 = vst [vmem:[%s185 + $0x170] sm:%s177] %v278
                %v280 = vld [vmem:[%s184 + $0x2f0] sm:%s177]
                %281 = vst [vmem:[%s185 + $0x178] sm:%s177] %v280
                %v282 = vld [vmem:[%s184 + $0x300] sm:%s177]
                %283 = vst [vmem:[%s185 + $0x180] sm:%s177] %v282
                %v284 = vld [vmem:[%s184 + $0x310] sm:%s177]
                %285 = vst [vmem:[%s185 + $0x188] sm:%s177] %v284
                %v286 = vld [vmem:[%s184 + $0x320] sm:%s177]
                %287 = vst [vmem:[%s185 + $0x190] sm:%s177] %v286
                %v288 = vld [vmem:[%s184 + $0x330] sm:%s177]
                %289 = vst [vmem:[%s185 + $0x198] sm:%s177] %v288
                %v290 = vld [vmem:[%s184 + $0x340] sm:%s177]
                %291 = vst [vmem:[%s185 + $0x1a0] sm:%s177] %v290
                %v292 = vld [vmem:[%s184 + $0x350] sm:%s177]
                %293 = vst [vmem:[%s185 + $0x1a8] sm:%s177] %v292
                %v294 = vld [vmem:[%s184 + $0x360] sm:%s177]
                %295 = vst [vmem:[%s185 + $0x1b0] sm:%s177] %v294
                %v296 = vld [vmem:[%s184 + $0x370] sm:%s177]
                %297 = vst [vmem:[%s185 + $0x1b8] sm:%s177] %v296
                %v298 = vld [vmem:[%s184 + $0x380] sm:%s177]
                %299 = vst [vmem:[%s185 + $0x1c0] sm:%s177] %v298
                %v300 = vld [vmem:[%s184 + $0x390] sm:%s177]
                %301 = vst [vmem:[%s185 + $0x1c8] sm:%s177] %v300
                %v302 = vld [vmem:[%s184 + $0x3a0] sm:%s177]
                %303 = vst [vmem:[%s185 + $0x1d0] sm:%s177] %v302
                %v304 = vld [vmem:[%s184 + $0x3b0] sm:%s177]
                %305 = vst [vmem:[%s185 + $0x1d8] sm:%s177] %v304
                %v306 = vld [vmem:[%s184 + $0x3c0] sm:%s177]
                %307 = vst [vmem:[%s185 + $0x1e0] sm:%s177] %v306
                %v308 = vld [vmem:[%s184 + $0x3d0] sm:%s177]
                %309 = vst [vmem:[%s185 + $0x1e8] sm:%s177] %v308
                %v310 = vld [vmem:[%s184 + $0x3e0] sm:%s177]
                %311 = vst [vmem:[%s185 + $0x1f0] sm:%s177] %v310
                %v312 = vld [vmem:[%s184 + $0x3f0] sm:%s177]
                %313 = vst [vmem:[%s185 + $0x1f8] sm:%s177] %v312
                %v314 = vld [vmem:[%s184 + $0x400] sm:%s177]
                %315 = vst [vmem:[%s185 + $0x200] sm:%s177] %v314
                %v316 = vld [vmem:[%s184 + $0x410] sm:%s177]
                %317 = vst [vmem:[%s185 + $0x208] sm:%s177] %v316
                %v318 = vld [vmem:[%s184 + $0x420] sm:%s177]
                %319 = vst [vmem:[%s185 + $0x210] sm:%s177] %v318
                %v320 = vld [vmem:[%s184 + $0x430] sm:%s177]
                %321 = vst [vmem:[%s185 + $0x218] sm:%s177] %v320
                %v322 = vld [vmem:[%s184 + $0x440] sm:%s177]
                %323 = vst [vmem:[%s185 + $0x220] sm:%s177] %v322
                %v324 = vld [vmem:[%s184 + $0x450] sm:%s177]
                %325 = vst [vmem:[%s185 + $0x228] sm:%s177] %v324
                %v326 = vld [vmem:[%s184 + $0x460] sm:%s177]
                %327 = vst [vmem:[%s185 + $0x230] sm:%s177] %v326
                %v328 = vld [vmem:[%s184 + $0x470] sm:%s177]
                %329 = vst [vmem:[%s185 + $0x238] sm:%s177] %v328
                %v330 = vld [vmem:[%s184 + $0x480] sm:%s177]
                %331 = vst [vmem:[%s185 + $0x240] sm:%s177] %v330
                %v332 = vld [vmem:[%s184 + $0x490] sm:%s177]
                %333 = vst [vmem:[%s185 + $0x248] sm:%s177] %v332
                %v334 = vld [vmem:[%s184 + $0x4a0] sm:%s177]
                %335 = vst [vmem:[%s185 + $0x250] sm:%s177] %v334
                %v336 = vld [vmem:[%s184 + $0x4b0] sm:%s177]
                %337 = vst [vmem:[%s185 + $0x258] sm:%s177] %v336
                %v338 = vld [vmem:[%s184 + $0x4c0] sm:%s177]
                %339 = vst [vmem:[%s185 + $0x260] sm:%s177] %v338
                %v340 = vld [vmem:[%s184 + $0x4d0] sm:%s177]
                %341 = vst [vmem:[%s185 + $0x268] sm:%s177] %v340
                %v342 = vld [vmem:[%s184 + $0x4e0] sm:%s177]
                %343 = vst [vmem:[%s185 + $0x270] sm:%s177] %v342
                %v344 = vld [vmem:[%s184 + $0x4f0] sm:%s177]
                %345 = vst [vmem:[%s185 + $0x278] sm:%s177] %v344
                %v346 = vld [vmem:[%s184 + $0x500] sm:%s177]
                %347 = vst [vmem:[%s185 + $0x280] sm:%s177] %v346
                %v348 = vld [vmem:[%s184 + $0x510] sm:%s177]
                %349 = vst [vmem:[%s185 + $0x288] sm:%s177] %v348
                %v350 = vld [vmem:[%s184 + $0x520] sm:%s177]
                %351 = vst [vmem:[%s185 + $0x290] sm:%s177] %v350
                %v352 = vld [vmem:[%s184 + $0x530] sm:%s177]
                %353 = vst [vmem:[%s185 + $0x298] sm:%s177] %v352
                %v354 = vld [vmem:[%s184 + $0x540] sm:%s177]
                %355 = vst [vmem:[%s185 + $0x2a0] sm:%s177] %v354
                %v356 = vld [vmem:[%s184 + $0x550] sm:%s177]
                %357 = vst [vmem:[%s185 + $0x2a8] sm:%s177] %v356
                %v358 = vld [vmem:[%s184 + $0x560] sm:%s177]
                %359 = vst [vmem:[%s185 + $0x2b0] sm:%s177] %v358
                %v360 = vld [vmem:[%s184 + $0x570] sm:%s177]
                %361 = vst [vmem:[%s185 + $0x2b8] sm:%s177] %v360
                %v362 = vld [vmem:[%s184 + $0x580] sm:%s177]
                %363 = vst [vmem:[%s185 + $0x2c0] sm:%s177] %v362
                %v364 = vld [vmem:[%s184 + $0x590] sm:%s177]
                %365 = vst [vmem:[%s185 + $0x2c8] sm:%s177] %v364
                %v366 = vld [vmem:[%s184 + $0x5a0] sm:%s177]
                %367 = vst [vmem:[%s185 + $0x2d0] sm:%s177] %v366
                %v368 = vld [vmem:[%s184 + $0x5b0] sm:%s177]
                %369 = vst [vmem:[%s185 + $0x2d8] sm:%s177] %v368
                %v370 = vld [vmem:[%s184 + $0x5c0] sm:%s177]
                %371 = vst [vmem:[%s185 + $0x2e0] sm:%s177] %v370
                %v372 = vld [vmem:[%s184 + $0x5d0] sm:%s177]
                %373 = vst [vmem:[%s185 + $0x2e8] sm:%s177] %v372
                %v374 = vld [vmem:[%s184 + $0x5e0] sm:%s177]
                %375 = vst [vmem:[%s185 + $0x2f0] sm:%s177] %v374
                %v376 = vld [vmem:[%s184 + $0x5f0] sm:%s177]
                %377 = vst [vmem:[%s185 + $0x2f8] sm:%s177] %v376
                %v378 = vld [vmem:[%s184 + $0x600] sm:%s177]
                %379 = vst [vmem:[%s185 + $0x300] sm:%s177] %v378
                %v380 = vld [vmem:[%s184 + $0x610] sm:%s177]
                %381 = vst [vmem:[%s185 + $0x308] sm:%s177] %v380
                %v382 = vld [vmem:[%s184 + $0x620] sm:%s177]
                %383 = vst [vmem:[%s185 + $0x310] sm:%s177] %v382
                %v384 = vld [vmem:[%s184 + $0x630] sm:%s177]
                %385 = vst [vmem:[%s185 + $0x318] sm:%s177] %v384
                %v386 = vld [vmem:[%s184 + $0x640] sm:%s177]
                %387 = vst [vmem:[%s185 + $0x320] sm:%s177] %v386
                %v388 = vld [vmem:[%s184 + $0x650] sm:%s177]
                %389 = vst [vmem:[%s185 + $0x328] sm:%s177] %v388
                %v390 = vld [vmem:[%s184 + $0x660] sm:%s177]
                %391 = vst [vmem:[%s185 + $0x330] sm:%s177] %v390
                %v392 = vld [vmem:[%s184 + $0x670] sm:%s177]
                %393 = vst [vmem:[%s185 + $0x338] sm:%s177] %v392
                %v394 = vld [vmem:[%s184 + $0x680] sm:%s177]
                %395 = vst [vmem:[%s185 + $0x340] sm:%s177] %v394
                %v396 = vld [vmem:[%s184 + $0x690] sm:%s177]
                %397 = vst [vmem:[%s185 + $0x348] sm:%s177] %v396
                %v398 = vld [vmem:[%s184 + $0x6a0] sm:%s177]
                %399 = vst [vmem:[%s185 + $0x350] sm:%s177] %v398
                %v400 = vld [vmem:[%s184 + $0x6b0] sm:%s177]
                %401 = vst [vmem:[%s185 + $0x358] sm:%s177] %v400
                %v402 = vld [vmem:[%s184 + $0x6c0] sm:%s177]
                %403 = vst [vmem:[%s185 + $0x360] sm:%s177] %v402
                %v404 = vld [vmem:[%s184 + $0x6d0] sm:%s177]
                %405 = vst [vmem:[%s185 + $0x368] sm:%s177] %v404
                %v406 = vld [vmem:[%s184 + $0x6e0] sm:%s177]
                %407 = vst [vmem:[%s185 + $0x370] sm:%s177] %v406
                %v408 = vld [vmem:[%s184 + $0x6f0] sm:%s177]
                %409 = vst [vmem:[%s185 + $0x378] sm:%s177] %v408
                %v410 = vld [vmem:[%s184 + $0x700] sm:%s177]
                %411 = vst [vmem:[%s185 + $0x380] sm:%s177] %v410
                %v412 = vld [vmem:[%s184 + $0x710] sm:%s177]
                %413 = vst [vmem:[%s185 + $0x388] sm:%s177] %v412
                %v414 = vld [vmem:[%s184 + $0x720] sm:%s177]
                %415 = vst [vmem:[%s185 + $0x390] sm:%s177] %v414
                %v416 = vld [vmem:[%s184 + $0x730] sm:%s177]
                %417 = vst [vmem:[%s185 + $0x398] sm:%s177] %v416
                %v418 = vld [vmem:[%s184 + $0x740] sm:%s177]
                %419 = vst [vmem:[%s185 + $0x3a0] sm:%s177] %v418
                %v420 = vld [vmem:[%s184 + $0x750] sm:%s177]
                %421 = vst [vmem:[%s185 + $0x3a8] sm:%s177] %v420
                %v422 = vld [vmem:[%s184 + $0x760] sm:%s177]
                %423 = vst [vmem:[%s185 + $0x3b0] sm:%s177] %v422
                %v424 = vld [vmem:[%s184 + $0x770] sm:%s177]
                %425 = vst [vmem:[%s185 + $0x3b8] sm:%s177] %v424
                %v426 = vld [vmem:[%s184 + $0x780] sm:%s177]
                %427 = vst [vmem:[%s185 + $0x3c0] sm:%s177] %v426
                %v428 = vld [vmem:[%s184 + $0x790] sm:%s177]
                %429 = vst [vmem:[%s185 + $0x3c8] sm:%s177] %v428
                %v430 = vld [vmem:[%s184 + $0x7a0] sm:%s177]
                %431 = vst [vmem:[%s185 + $0x3d0] sm:%s177] %v430
                %v432 = vld [vmem:[%s184 + $0x7b0] sm:%s177]
                %433 = vst [vmem:[%s185 + $0x3d8] sm:%s177] %v432
                %v434 = vld [vmem:[%s184 + $0x7c0] sm:%s177]
                %435 = vst [vmem:[%s185 + $0x3e0] sm:%s177] %v434
                %v436 = vld [vmem:[%s184 + $0x7d0] sm:%s177]
                %437 = vst [vmem:[%s185 + $0x3e8] sm:%s177] %v436
                %v438 = vld [vmem:[%s184 + $0x7e0] sm:%s177]
                %439 = vst [vmem:[%s185 + $0x3f0] sm:%s177] %v438
                %v440 = vld [vmem:[%s184 + $0x7f0] sm:%s177]
                %441 = vst [vmem:[%s185 + $0x3f8] sm:%s177] %v440
              $region41: #{encoder_forward.7} parent=35 // loop_footer
                %s183 = sadd.s32 1, %s179
              $region42: #{encoder_forward.7} parent=35 // loop_footer_branch
                %178 = sbr.rel target = $region38
              $region43: #{encoder_forward.7} parent=35 // loop_exit
                _
            $region36: #{encoder_forward.7} parent=27 // pred_fallthru
              _
          $region28: #{encoder_forward.7} parent=23 // pred_fallthru
            _
          %710 = vnop
        $region24: #{encoder_forward.7} parent=15 // pred_fallthru
          _
        // Predicated region
        $region59: #{encoder_forward.7} parent=15 // pred_check
          %p711 = pneg %p98
        $region60: #{encoder_forward.7} parent=15 // pred_check_branch
          %713 = sbr.rel (%p711) target = $region62
        $region61: #{encoder_forward.7} parent=15 // pred_region
          %p714 = scmp.lt.s32.totalorder %s19, 1
          %s715 = scalar_select %p714, %s19, 1
          %s716 = scalar_lea.vmem %s2, %s715
        $region62: #{encoder_forward.7} parent=15 // pred_fallthru
          _
      $region16: #{encoder_forward.7} parent=5 // pred_fallthru
        _
      %p717 = scmp.le.s32.totalorder 1, %s12
      %p718 = scmp.lt.s32.totalorder %s12, 5
      %p719 = pnand %p717, %p718
      %p720 = pneg %p719
      // Predicated region
      $region63: #{encoder_forward.7} parent=5 // pred_check
        _
      $region64: #{encoder_forward.7} parent=5 // pred_check_branch
        %722 = sbr.rel (%p719) target = $region66
      $region65: #{encoder_forward.7} parent=5 // pred_region
        %s723 = ssub.s32 %s12, 1
        %s724 = sand.u32 %s65, 1
        %s725 = sand.u32 %s65, 1
        %s726 = smul.addr %s725, 1024
        %s727 = scalar_lea.vmem [#allocation3], %s726
        // Predicated region
        $region67: #{encoder_forward.7} parent=65 // pred_check
          %p728 = pneg %p78
        $region68: #{encoder_forward.7} parent=65 // pred_check_branch
          %730 = sbr.rel (%p728) target = $region70
        $region69: #{encoder_forward.7} parent=65 // pred_region
          _
        $region70: #{encoder_forward.7} parent=65 // pred_fallthru
          _
        %s731 = smul.u32 8, %s22
        %p732 = scmp.lt.s32.totalorder %s731, 15
        %s733 = scalar_select %p732, %s731, 15
        %s734 = smul.addr %s733, 2
        %s735 = scalar_lea.vmem %s0, %s734
        %p736 = pneg %p50
        %p737 = pneg %p47
        %s738 = sand.u32 %s65, 1
        %s739 = sand.u32 %s65, 1
        %s740 = smul.addr %s739, 1024
        %s741 = scalar_lea.vmem [#allocation3], %s740
        %p742 = pneg %p78
        %p743 = pneg %p75
        %p744 = scmp.lt.s32.totalorder %s21, 1
        %s745 = scalar_select %p744, %s21, 1
        %s746 = scalar_lea.vmem %s2, %s745
        %p747 = pneg %p104
        %p748 = pneg %p101
        %p749 = pneg %p130
        %p750 = pneg %p127
        %s751 = sand.u32 %s117, 1
        %s752 = scalar_lea.sflag [#allocation5], %s751
        %s753 = sand.u32 %s117, 1
        %s754 = smul.addr %s753, 2
        %s755 = scalar_lea.vmem [#allocation4], %s754
        %s756 = smul.u32 8, %s22
        %p757 = scmp.lt.s32.totalorder %s756, 15
        %s758 = scalar_select %p757, %s756, 15
        %s759 = smul.addr %s758, 2
        %s760 = scalar_lea.vmem %s0, %s759
        %s761 = smul.u32 8, %s22
        %s762 = smul.u32 128, %s22
        %p763 = scmp.lt.s32.totalorder %s21, 1
        %s764 = scalar_select %p763, %s21, 1
        %s765 = scalar_lea.vmem %s2, %s764
        %p766 = scmp.eq.s32.totalorder %s22, 0
        // Predicated region
        $region71: #{encoder_forward.7} parent=65 // pred_check
          %p767 = pneg %p766
        $region72: #{encoder_forward.7} parent=65 // pred_check_branch
          %769 = sbr.rel (%p767) target = $region74
        $region73: #{encoder_forward.7} parent=65 // pred_region
          %770 = vst [vmem:[#allocation2] sm:$0x3] 0.0
        $region74: #{encoder_forward.7} parent=65 // pred_fallthru
          _
        %v771 = vld [vmem:[#allocation2] sm:$0x3]
        %v772 = vld [vmem:[%s760] sm:$0xff]
        %v773 = vld [vmem:[%s760 + $0x8] sm:$0xff]
        %v774 = vld [vmem:[%s727] sm:$0xff]
        %v775 = vld [vmem:[%s727 + $0x8] sm:$0xff]
        %v776 = vld [vmem:[%s727 + $0x10] sm:$0xff]
        %v777 = vld [vmem:[%s727 + $0x18] sm:$0xff]
        %v778 = vld [vmem:[%s727 + $0x20] sm:$0xff]
        %v779 = vld [vmem:[%s727 + $0x28] sm:$0xff]
        %v780 = vld [vmem:[%s727 + $0x30] sm:$0xff]
        %v781 = vld [vmem:[%s727 + $0x38] sm:$0xff]
        %v782 = vld [vmem:[%s727 + $0x40] sm:$0xff]
        %v783 = vld [vmem:[%s727 + $0x48] sm:$0xff]
        %v784 = vld [vmem:[%s727 + $0x50] sm:$0xff]
        %v785 = vld [vmem:[%s727 + $0x58] sm:$0xff]
        %v786 = vld [vmem:[%s727 + $0x60] sm:$0xff]
        %v787 = vld [vmem:[%s727 + $0x68] sm:$0xff]
        %v788 = vld [vmem:[%s727 + $0x70] sm:$0xff]
        %v789 = vld [vmem:[%s727 + $0x78] sm:$0xff]
        %v790 = vld [vmem:[%s727 + $0x80] sm:$0xff]
        %v791 = vld [vmem:[%s727 + $0x88] sm:$0xff]
        %v792 = vld [vmem:[%s727 + $0x90] sm:$0xff]
        %v793 = vld [vmem:[%s727 + $0x98] sm:$0xff]
        %v794 = vld [vmem:[%s727 + $0xa0] sm:$0xff]
        %v795 = vld [vmem:[%s727 + $0xa8] sm:$0xff]
        %v796 = vld [vmem:[%s727 + $0xb0] sm:$0xff]
        %v797 = vld [vmem:[%s727 + $0xb8] sm:$0xff]
        %v798 = vld [vmem:[%s727 + $0xc0] sm:$0xff]
        %v799 = vld [vmem:[%s727 + $0xc8] sm:$0xff]
        %v800 = vld [vmem:[%s727 + $0xd0] sm:$0xff]
        %v801 = vld [vmem:[%s727 + $0xd8] sm:$0xff]
        %v802 = vld [vmem:[%s727 + $0xe0] sm:$0xff]
        %v803 = vld [vmem:[%s727 + $0xe8] sm:$0xff]
        %v804 = vld [vmem:[%s727 + $0xf0] sm:$0xff]
        %v805 = vld [vmem:[%s727 + $0xf8] sm:$0xff]
        %v806 = vld [vmem:[%s727 + $0x100] sm:$0xff]
        %v807 = vld [vmem:[%s727 + $0x108] sm:$0xff]
        %v808 = vld [vmem:[%s727 + $0x110] sm:$0xff]
        %v809 = vld [vmem:[%s727 + $0x118] sm:$0xff]
        %v810 = vld [vmem:[%s727 + $0x120] sm:$0xff]
        %v811 = vld [vmem:[%s727 + $0x128] sm:$0xff]
        %v812 = vld [vmem:[%s727 + $0x130] sm:$0xff]
        %v813 = vld [vmem:[%s727 + $0x138] sm:$0xff]
        %v814 = vld [vmem:[%s727 + $0x140] sm:$0xff]
        %v815 = vld [vmem:[%s727 + $0x148] sm:$0xff]
        %v816 = vld [vmem:[%s727 + $0x150] sm:$0xff]
        %v817 = vld [vmem:[%s727 + $0x158] sm:$0xff]
        %v818 = vld [vmem:[%s727 + $0x160] sm:$0xff]
        %v819 = vld [vmem:[%s727 + $0x168] sm:$0xff]
        %v820 = vld [vmem:[%s727 + $0x170] sm:$0xff]
        %v821 = vld [vmem:[%s727 + $0x178] sm:$0xff]
        %v822 = vld [vmem:[%s727 + $0x180] sm:$0xff]
        %v823 = vld [vmem:[%s727 + $0x188] sm:$0xff]
        %v824 = vld [vmem:[%s727 + $0x190] sm:$0xff]
        %v825 = vld [vmem:[%s727 + $0x198] sm:$0xff]
        %v826 = vld [vmem:[%s727 + $0x1a0] sm:$0xff]
        %v827 = vld [vmem:[%s727 + $0x1a8] sm:$0xff]
        %v828 = vld [vmem:[%s727 + $0x1b0] sm:$0xff]
        %v829 = vld [vmem:[%s727 + $0x1b8] sm:$0xff]
        %v830 = vld [vmem:[%s727 + $0x1c0] sm:$0xff]
        %v831 = vld [vmem:[%s727 + $0x1c8] sm:$0xff]
        %v832 = vld [vmem:[%s727 + $0x1d0] sm:$0xff]
        %v833 = vld [vmem:[%s727 + $0x1d8] sm:$0xff]
        %v834 = vld [vmem:[%s727 + $0x1e0] sm:$0xff]
        %v835 = vld [vmem:[%s727 + $0x1e8] sm:$0xff]
        %v836 = vld [vmem:[%s727 + $0x1f0] sm:$0xff]
        %v837 = vld [vmem:[%s727 + $0x1f8] sm:$0xff]
        %v838 = vld [vmem:[%s727 + $0x200] sm:$0xff]
        %v839 = vld [vmem:[%s727 + $0x208] sm:$0xff]
        %v840 = vld [vmem:[%s727 + $0x210] sm:$0xff]
        %v841 = vld [vmem:[%s727 + $0x218] sm:$0xff]
        %v842 = vld [vmem:[%s727 + $0x220] sm:$0xff]
        %v843 = vld [vmem:[%s727 + $0x228] sm:$0xff]
        %v844 = vld [vmem:[%s727 + $0x230] sm:$0xff]
        %v845 = vld [vmem:[%s727 + $0x238] sm:$0xff]
        %v846 = vld [vmem:[%s727 + $0x240] sm:$0xff]
        %v847 = vld [vmem:[%s727 + $0x248] sm:$0xff]
        %v848 = vld [vmem:[%s727 + $0x250] sm:$0xff]
        %v849 = vld [vmem:[%s727 + $0x258] sm:$0xff]
        %v850 = vld [vmem:[%s727 + $0x260] sm:$0xff]
        %v851 = vld [vmem:[%s727 + $0x268] sm:$0xff]
        %v852 = vld [vmem:[%s727 + $0x270] sm:$0xff]
        %v853 = vld [vmem:[%s727 + $0x278] sm:$0xff]
        %v854 = vld [vmem:[%s727 + $0x280] sm:$0xff]
        %v855 = vld [vmem:[%s727 + $0x288] sm:$0xff]
        %v856 = vld [vmem:[%s727 + $0x290] sm:$0xff]
        %v857 = vld [vmem:[%s727 + $0x298] sm:$0xff]
        %v858 = vld [vmem:[%s727 + $0x2a0] sm:$0xff]
        %v859 = vld [vmem:[%s727 + $0x2a8] sm:$0xff]
        %v860 = vld [vmem:[%s727 + $0x2b0] sm:$0xff]
        %v861 = vld [vmem:[%s727 + $0x2b8] sm:$0xff]
        %v862 = vld [vmem:[%s727 + $0x2c0] sm:$0xff]
        %v863 = vld [vmem:[%s727 + $0x2c8] sm:$0xff]
        %v864 = vld [vmem:[%s727 + $0x2d0] sm:$0xff]
        %v865 = vld [vmem:[%s727 + $0x2d8] sm:$0xff]
        %v866 = vld [vmem:[%s727 + $0x2e0] sm:$0xff]
        %v867 = vld [vmem:[%s727 + $0x2e8] sm:$0xff]
        %v868 = vld [vmem:[%s727 + $0x2f0] sm:$0xff]
        %v869 = vld [vmem:[%s727 + $0x2f8] sm:$0xff]
        %v870 = vld [vmem:[%s727 + $0x300] sm:$0xff]
        %v871 = vld [vmem:[%s727 + $0x308] sm:$0xff]
        %v872 = vld [vmem:[%s727 + $0x310] sm:$0xff]
        %v873 = vld [vmem:[%s727 + $0x318] sm:$0xff]
        %v874 = vld [vmem:[%s727 + $0x320] sm:$0xff]
        %v875 = vld [vmem:[%s727 + $0x328] sm:$0xff]
        %v876 = vld [vmem:[%s727 + $0x330] sm:$0xff]
        %v877 = vld [vmem:[%s727 + $0x338] sm:$0xff]
        %v878 = vld [vmem:[%s727 + $0x340] sm:$0xff]
        %v879 = vld [vmem:[%s727 + $0x348] sm:$0xff]
        %v880 = vld [vmem:[%s727 + $0x350] sm:$0xff]
        %v881 = vld [vmem:[%s727 + $0x358] sm:$0xff]
        %v882 = vld [vmem:[%s727 + $0x360] sm:$0xff]
        %v883 = vld [vmem:[%s727 + $0x368] sm:$0xff]
        %v884 = vld [vmem:[%s727 + $0x370] sm:$0xff]
        %v885 = vld [vmem:[%s727 + $0x378] sm:$0xff]
        %v886 = vld [vmem:[%s727 + $0x380] sm:$0xff]
        %v887 = vld [vmem:[%s727 + $0x388] sm:$0xff]
        %v888 = vld [vmem:[%s727 + $0x390] sm:$0xff]
        %v889 = vld [vmem:[%s727 + $0x398] sm:$0xff]
        %v890 = vld [vmem:[%s727 + $0x3a0] sm:$0xff]
        %v891 = vld [vmem:[%s727 + $0x3a8] sm:$0xff]
        %v892 = vld [vmem:[%s727 + $0x3b0] sm:$0xff]
        %v893 = vld [vmem:[%s727 + $0x3b8] sm:$0xff]
        %v894 = vld [vmem:[%s727 + $0x3c0] sm:$0xff]
        %v895 = vld [vmem:[%s727 + $0x3c8] sm:$0xff]
        %v896 = vld [vmem:[%s727 + $0x3d0] sm:$0xff]
        %v897 = vld [vmem:[%s727 + $0x3d8] sm:$0xff]
        %v898 = vld [vmem:[%s727 + $0x3e0] sm:$0xff]
        %v899 = vld [vmem:[%s727 + $0x3e8] sm:$0xff]
        %v900 = vld [vmem:[%s727 + $0x3f0] sm:$0xff]
        %v901 = vld [vmem:[%s727 + $0x3f8] sm:$0xff]
        %904 = vst [vmem:[#allocation1] ss:$4 sm:$0xff] %v772
        %s905 = scalar_lea.vmem [#allocation1], 32
        %906 = vst [vmem:[%s905] ss:$4 sm:$0xff] %v773
        %v907 = vld.sshfl [vmem:[#allocation1] sm:$0xff pattern:$0x73625140]
        %v908 = vld.sshfl [vmem:[#allocation1 + $0x8] sm:$0xff pattern:$0x73625140]
        %v909 = vld.sshfl [vmem:[#allocation1 + $0x10] sm:$0xff pattern:$0x73625140]
        %v910 = vld.sshfl [vmem:[#allocation1 + $0x18] sm:$0xff pattern:$0x73625140]
        %v911 = vld.sshfl [vmem:[#allocation1 + $0x20] sm:$0xff pattern:$0x73625140]
        %v912 = vld.sshfl [vmem:[#allocation1 + $0x28] sm:$0xff pattern:$0x73625140]
        %v913 = vld.sshfl [vmem:[#allocation1 + $0x30] sm:$0xff pattern:$0x73625140]
        %v914 = vld.sshfl [vmem:[#allocation1 + $0x38] sm:$0xff pattern:$0x73625140]
        %923 = vmatpush.msra.mxu0 %v789
        %924 = vmatpush.msra.mxu0 %v788
        %925 = vmatpush.msra.mxu0 %v787
        %926 = vmatpush.msra.mxu0 %v786
        %927 = vmatpush.msra.mxu0 %v785
        %928 = vmatpush.msra.mxu0 %v784
        %929 = vmatpush.msra.mxu0 %v783
        %930 = vmatpush.msra.mxu0 %v782
        %931 = vmatpush.msra.mxu0 %v781
        %932 = vmatpush.msra.mxu0 %v780
        %933 = vmatpush.msra.mxu0 %v779
        %934 = vmatpush.msra.mxu0 %v778
        %935 = vmatpush.msra.mxu0 %v777
        %936 = vmatpush.msra.mxu0 %v776
        %937 = vmatpush.msra.mxu0 %v775
        %938 = vmatpush.msra.mxu0 %v774
        %939 = vmatmul.f32.gmra.mxu0 %v907
        %v940 = vpop.f32.mrf.mxu0
        %v941 = vadd.f32 0.0, %v940
        %942 = vdwg.mxu0
        %943 = vmatpush.msra.mxu0 %v805
        %944 = vmatpush.msra.mxu0 %v804
        %945 = vmatpush.msra.mxu0 %v803
        %946 = vmatpush.msra.mxu0 %v802
        %947 = vmatpush.msra.mxu0 %v801
        %948 = vmatpush.msra.mxu0 %v800
        %949 = vmatpush.msra.mxu0 %v799
        %950 = vmatpush.msra.mxu0 %v798
        %951 = vmatpush.msra.mxu0 %v797
        %952 = vmatpush.msra.mxu0 %v796
        %953 = vmatpush.msra.mxu0 %v795
        %954 = vmatpush.msra.mxu0 %v794
        %955 = vmatpush.msra.mxu0 %v793
        %956 = vmatpush.msra.mxu0 %v792
        %957 = vmatpush.msra.mxu0 %v791
        %958 = vmatpush.msra.mxu0 %v790
        %959 = vmatmul.f32.gmra.mxu0 %v908
        %v960 = vpop.f32.mrf.mxu0
        %v961 = vadd.f32 %v941, %v960
        %962 = vdwg.mxu0
        %963 = vmatpush.msra.mxu0 %v821
        %964 = vmatpush.msra.mxu0 %v820
        %965 = vmatpush.msra.mxu0 %v819
        %966 = vmatpush.msra.mxu0 %v818
        %967 = vmatpush.msra.mxu0 %v817
        %968 = vmatpush.msra.mxu0 %v816
        %969 = vmatpush.msra.mxu0 %v815
        %970 = vmatpush.msra.mxu0 %v814
        %971 = vmatpush.msra.mxu0 %v813
        %972 = vmatpush.msra.mxu0 %v812
        %973 = vmatpush.msra.mxu0 %v811
        %974 = vmatpush.msra.mxu0 %v810
        %975 = vmatpush.msra.mxu0 %v809
        %976 = vmatpush.msra.mxu0 %v808
        %977 = vmatpush.msra.mxu0 %v807
        %978 = vmatpush.msra.mxu0 %v806
        %979 = vmatmul.f32.gmra.mxu0 %v909
        %v980 = vpop.f32.mrf.mxu0
        %v981 = vadd.f32 %v961, %v980
        %982 = vdwg.mxu0
        %983 = vmatpush.msra.mxu0 %v837
        %984 = vmatpush.msra.mxu0 %v836
        %985 = vmatpush.msra.mxu0 %v835
        %986 = vmatpush.msra.mxu0 %v834
        %987 = vmatpush.msra.mxu0 %v833
        %988 = vmatpush.msra.mxu0 %v832
        %989 = vmatpush.msra.mxu0 %v831
        %990 = vmatpush.msra.mxu0 %v830
        %991 = vmatpush.msra.mxu0 %v829
        %992 = vmatpush.msra.mxu0 %v828
        %993 = vmatpush.msra.mxu0 %v827
        %994 = vmatpush.msra.mxu0 %v826
        %995 = vmatpush.msra.mxu0 %v825
        %996 = vmatpush.msra.mxu0 %v824
        %997 = vmatpush.msra.mxu0 %v823
        %998 = vmatpush.msra.mxu0 %v822
        %999 = vmatmul.f32.gmra.mxu0 %v910
        %v1000 = vpop.f32.mrf.mxu0
        %v1001 = vadd.f32 %v981, %v1000
        %1002 = vdwg.mxu0
        %1003 = vmatpush.msra.mxu0 %v853
        %1004 = vmatpush.msra.mxu0 %v852
        %1005 = vmatpush.msra.mxu0 %v851
        %1006 = vmatpush.msra.mxu0 %v850
        %1007 = vmatpush.msra.mxu0 %v849
        %1008 = vmatpush.msra.mxu0 %v848
        %1009 = vmatpush.msra.mxu0 %v847
        %1010 = vmatpush.msra.mxu0 %v846
        %1011 = vmatpush.msra.mxu0 %v845
        %1012 = vmatpush.msra.mxu0 %v844
        %1013 = vmatpush.msra.mxu0 %v843
        %1014 = vmatpush.msra.mxu0 %v842
        %1015 = vmatpush.msra.mxu0 %v841
        %1016 = vmatpush.msra.mxu0 %v840
        %1017 = vmatpush.msra.mxu0 %v839
        %1018 = vmatpush.msra.mxu0 %v838
        %1019 = vmatmul.f32.gmra.mxu0 %v911
        %v1020 = vpop.f32.mrf.mxu0
        %v1021 = vadd.f32 %v1001, %v1020
        %1022 = vdwg.mxu0
        %1023 = vmatpush.msra.mxu0 %v869
        %1024 = vmatpush.msra.mxu0 %v868
        %1025 = vmatpush.msra.mxu0 %v867
        %1026 = vmatpush.msra.mxu0 %v866
        %1027 = vmatpush.msra.mxu0 %v865
        %1028 = vmatpush.msra.mxu0 %v864
        %1029 = vmatpush.msra.mxu0 %v863
        %1030 = vmatpush.msra.mxu0 %v862
        %1031 = vmatpush.msra.mxu0 %v861
        %1032 = vmatpush.msra.mxu0 %v860
        %1033 = vmatpush.msra.mxu0 %v859
        %1034 = vmatpush.msra.mxu0 %v858
        %1035 = vmatpush.msra.mxu0 %v857
        %1036 = vmatpush.msra.mxu0 %v856
        %1037 = vmatpush.msra.mxu0 %v855
        %1038 = vmatpush.msra.mxu0 %v854
        %1039 = vmatmul.f32.gmra.mxu0 %v912
        %v1040 = vpop.f32.mrf.mxu0
        %v1041 = vadd.f32 %v1021, %v1040
        %1042 = vdwg.mxu0
        %1043 = vmatpush.msra.mxu0 %v885
        %1044 = vmatpush.msra.mxu0 %v884
        %1045 = vmatpush.msra.mxu0 %v883
        %1046 = vmatpush.msra.mxu0 %v882
        %1047 = vmatpush.msra.mxu0 %v881
        %1048 = vmatpush.msra.mxu0 %v880
        %1049 = vmatpush.msra.mxu0 %v879
        %1050 = vmatpush.msra.mxu0 %v878
        %1051 = vmatpush.msra.mxu0 %v877
        %1052 = vmatpush.msra.mxu0 %v876
        %1053 = vmatpush.msra.mxu0 %v875
        %1054 = vmatpush.msra.mxu0 %v874
        %1055 = vmatpush.msra.mxu0 %v873
        %1056 = vmatpush.msra.mxu0 %v872
        %1057 = vmatpush.msra.mxu0 %v871
        %1058 = vmatpush.msra.mxu0 %v870
        %1059 = vmatmul.f32.gmra.mxu0 %v913
        %v1060 = vpop.f32.mrf.mxu0
        %v1061 = vadd.f32 %v1041, %v1060
        %1062 = vdwg.mxu0
        %1063 = vmatpush.msra.mxu0 %v901
        %1064 = vmatpush.msra.mxu0 %v900
        %1065 = vmatpush.msra.mxu0 %v899
        %1066 = vmatpush.msra.mxu0 %v898
        %1067 = vmatpush.msra.mxu0 %v897
        %1068 = vmatpush.msra.mxu0 %v896
        %1069 = vmatpush.msra.mxu0 %v895
        %1070 = vmatpush.msra.mxu0 %v894
        %1071 = vmatpush.msra.mxu0 %v893
        %1072 = vmatpush.msra.mxu0 %v892
        %1073 = vmatpush.msra.mxu0 %v891
        %1074 = vmatpush.msra.mxu0 %v890
        %1075 = vmatpush.msra.mxu0 %v889
        %1076 = vmatpush.msra.mxu0 %v888
        %1077 = vmatpush.msra.mxu0 %v887
        %1078 = vmatpush.msra.mxu0 %v886
        %1079 = vmatmul.f32.gmra.mxu0 %v914
        %v1080 = vpop.f32.mrf.mxu0
        %v1081 = vadd.f32 %v1061, %v1080
        %1082 = vdwg.mxu0
        %v1083 = vadd.f32 %v771, %v1081
        %1084 = vst [vmem:[#allocation2] sm:$0x3] %v1083
        %p1085 = scmp.eq.s32.totalorder %s22, 1
        // Predicated region
        $region75: #{encoder_forward.7} parent=65 // pred_check
          %p1086 = pneg %p1085
        $region76: #{encoder_forward.7} parent=65 // pred_check_branch
          %1088 = sbr.rel (%p1086) target = $region78
        $region77: #{encoder_forward.7} parent=65 // pred_region
          %v1089 = vld [vmem:[#allocation2] sm:$0x3]
          %v1090 = vld [vmem:[%s765] sm:$0x1]
          %v1092 = vperm.slane %v1090, 0
          %v1094 = vadd.f32 %v1089, %v1092
          %vm1095 = vcmp.ge.f32.partialorder %v1094, 0.0
          %v1096 = vmul.f32 %v1094, 0.01
          %v1097 = vsel %vm1095, %v1094, %v1096
          %1098 = vst [vmem:[%s755] sm:$0x3] %v1097
        $region78: #{encoder_forward.7} parent=65 // pred_fallthru
          _
        %s1099 = sand.u32 %s117, 1
        %s1100 = scalar_lea.sflag [#allocation5], %s1099
        %s1101 = sand.u32 %s117, 1
        %s1102 = smul.addr %s1101, 2
        %s1103 = scalar_lea.vmem [#allocation4], %s1102
        // Predicated region
        $region79: #{encoder_forward.7} parent=65 // pred_check
          %p1104 = pneg %p127
        $region80: #{encoder_forward.7} parent=65 // pred_check_branch
          %1106 = sbr.rel (%p1104) target = $region82
        $region81: #{encoder_forward.7} parent=65 // pred_region
          %1108 = vsyncadd %s1100, 0
          %s1109 = smul.addr %s21, 2
          %s1110 = scalar_lea.hbm %s3, %s1109
          %s1112 = sshll.u32 %s1103, 4
          %s1113 = int_to_ptr.vmem [resolvable:$true] %s1112
          %s1114 = sshll.u32 %s1110, 4
          %s1115 = int_to_ptr.hbm [resolvable:$true] %s1114
          %1117 = dma.vmem_to_hbm [thread:$0]  %s1113, 32, %s1115, %s1100
        $region82: #{encoder_forward.7} parent=65 // pred_fallthru
          _
      $region66: #{encoder_forward.7} parent=5 // pred_fallthru
        _
      %p1118 = scmp.le.s32.totalorder 2, %s12
      // Predicated region
      $region83: #{encoder_forward.7} parent=5 // pred_check
        %p1119 = pneg %p1118
      $region84: #{encoder_forward.7} parent=5 // pred_check_branch
        %1121 = sbr.rel (%p1119) target = $region86
      $region85: #{encoder_forward.7} parent=5 // pred_region
        %s1122 = ssub.s32 %s12, 2
        // Predicated region
        $region87: #{encoder_forward.7} parent=85 // pred_check
          %p1123 = pneg %p133
        $region88: #{encoder_forward.7} parent=85 // pred_check_branch
          %1125 = sbr.rel (%p1123) target = $region90
        $region89: #{encoder_forward.7} parent=85 // pred_region
          %s1126 = sand.u32 %s118, 1
          %s1127 = scalar_lea.sflag [#allocation5], %s1126
          %s1128 = sand.u32 %s118, 1
          %s1129 = smul.addr %s1128, 2
          %s1130 = scalar_lea.vmem [#allocation4], %s1129
          %1132 = dma.done %s1127, 32
        $region90: #{encoder_forward.7} parent=85 // pred_fallthru
          _
      $region86: #{encoder_forward.7} parent=5 // pred_fallthru
        _
    $region6: #{encoder_forward.7} parent=1 // loop_footer
      %s16 = sadd.s32 1, %s12
    $region7: #{encoder_forward.7} parent=1 // loop_footer_branch
      %11 = sbr.rel target = $region3
    $region8: #{encoder_forward.7} parent=1 // loop_exit
      _
    %1133 = vsyncpa [#allocation5], 1
    %s1134 = scalar_lea.sflag [#allocation5], 1
    %1135 = vsyncpa %s1134, 1

// kernel: encoder_forward.5
$region0: #{encoder_forward.5}
  #allocation0 [shape = 'u32[]', space=smem, size = 0x4, offset = 0x4, fixed_abs, tag = 'smem constant byte address 0x4 - core index']
  #allocation1 [shape = 'u32[72,128]{1,0:T(1,128)}', space=vmem, size = 0x9000, scoped, tag = 'internal scratch']
  %s0 = inlined_call_operand.vmem [shape: f32[2,9,9,512], index: 0, kind: input, shape index: {}]
  %s1 = inlined_call_operand.vmem [shape: f32[4,512,128], index: 1, kind: input, shape index: {}]
  %s2 = inlined_call_operand.vmem [shape: f32[1,128], index: 2, kind: input, shape index: {}]
  %s3 = inlined_call_operand.vmem [shape: f32[1,128], index: 3, kind: input, shape index: {}]
  %s4 = inlined_call_operand.vmem [shape: f32[1,128], index: 4, kind: input, shape index: {}]
  %s5 = inlined_call_operand.vmem [shape: f32[2,64,128], index: 5, kind: output, shape index: {}]
  %s6 = sld [smem:[#allocation0]]
  $region53: #{encoder_forward.5} parent=0
    _
  %s8 = ssub.s32 1, %s6
  %s9 = scalar_select 0, %s8, %s6
  loop: start=0, step=1, limit=4
  $region2: #{encoder_forward.5} parent=0 // loop_pre_header
    _
  $region3: #{encoder_forward.5} parent=0 // loop_header
    %s11 = sphi 0, %s15
    %p12 = scmp.ge.s32.totalorder %s11, 4
    %s21 = sphi 0, %s23
    %s24 = sphi 0, %s21
    %s25 = sphi 0, %s24
    %s41 = sphi 0, %s25
    %s45 = sphi 0, %s45
    %s47 = sphi 0, %s45
    %s48 = sphi 0, %s47
    %s62 = sphi 0, %s48
    %s66 = sphi 0, %s66
    %s68 = sphi 0, %s66
    %s69 = sphi 0, %s68
    %s83 = sphi 0, %s69
    %s87 = sphi 0, %s87
    %s89 = sphi 0, %s87
    %s90 = sphi 0, %s89
    %s104 = sphi 0, %s90
    %s108 = sphi 0, %s108
    %s110 = sphi 0, %s108
    %s111 = sphi 0, %s110
    %s125 = sphi 0, %s111
    %s131 = sphi 0, %s133
    %s134 = sphi 0, %s131
    %s135 = sphi 0, %s134
    %s151 = sphi 0, %s135
  $region4: #{encoder_forward.5} parent=0 // loop_header_branch
    %14 = sbr.rel (%p12) target = $region8
  $region5: #{encoder_forward.5} parent=0 // loop_body
    %s16 = ssub.s32 %s11, 1
    %s17 = ssub.s32 %s11, 2
    %s18 = sadd.s32 %s11, 1
    %s19 = ssub.s32 %s11, %s18
    %p20 = scmp.eq.s32.totalorder %s19, 0
    %s22 = sadd.s32 %s21, 1
    %s23 = scalar_select %p20, %s21, %s22
    %p26 = pneg %p20
    %p27 = scmp.eq.s32.totalorder %s11, 1
    %p28 = por %p26, %p27
    %p29 = scmp.ne.s32.totalorder %s21, %s24
    %p30 = scmp.eq.s32.totalorder %s11, 0
    %p31 = por %p29, %p30
    %p32 = scmp.ne.s32.totalorder %s21, %s24
    %p33 = scmp.eq.s32.totalorder %s16, 1
    %p34 = por %p32, %p33
    %p35 = scmp.ne.s32.totalorder %s24, %s25
    %p36 = scmp.eq.s32.totalorder %s16, 0
    %p37 = por %p35, %p36
    %p38 = scmp.ne.s32.totalorder %s24, %s25
    %p39 = scmp.eq.s32.totalorder %s17, 1
    %p40 = por %p38, %p39
    %p42 = scmp.ne.s32.totalorder %s25, %s41
    %p43 = scmp.eq.s32.totalorder %s17, 0
    %p44 = por %p42, %p43
    %s46 = sadd.s32 %s45, 1
    %p49 = scmp.eq.s32.totalorder %s11, 1
    %p50 = scmp.ne.s32.totalorder %s45, %s47
    %p51 = scmp.eq.s32.totalorder %s11, 0
    %p52 = por %p50, %p51
    %p53 = scmp.ne.s32.totalorder %s45, %s47
    %p54 = scmp.eq.s32.totalorder %s16, 1
    %p55 = por %p53, %p54
    %p56 = scmp.ne.s32.totalorder %s47, %s48
    %p57 = scmp.eq.s32.totalorder %s16, 0
    %p58 = por %p56, %p57
    %p59 = scmp.ne.s32.totalorder %s47, %s48
    %p60 = scmp.eq.s32.totalorder %s17, 1
    %p61 = por %p59, %p60
    %p63 = scmp.ne.s32.totalorder %s48, %s62
    %p64 = scmp.eq.s32.totalorder %s17, 0
    %p65 = por %p63, %p64
    %s67 = sadd.s32 %s66, 1
    %p70 = scmp.eq.s32.totalorder %s11, 1
    %p71 = scmp.ne.s32.totalorder %s66, %s68
    %p72 = scmp.eq.s32.totalorder %s11, 0
    %p73 = por %p71, %p72
    %p74 = scmp.ne.s32.totalorder %s66, %s68
    %p75 = scmp.eq.s32.totalorder %s16, 1
    %p76 = por %p74, %p75
    %p77 = scmp.ne.s32.totalorder %s68, %s69
    %p78 = scmp.eq.s32.totalorder %s16, 0
    %p79 = por %p77, %p78
    %p80 = scmp.ne.s32.totalorder %s68, %s69
    %p81 = scmp.eq.s32.totalorder %s17, 1
    %p82 = por %p80, %p81
    %p84 = scmp.ne.s32.totalorder %s69, %s83
    %p85 = scmp.eq.s32.totalorder %s17, 0
    %p86 = por %p84, %p85
    %s88 = sadd.s32 %s87, 1
    %p91 = scmp.eq.s32.totalorder %s11, 1
    %p92 = scmp.ne.s32.totalorder %s87, %s89
    %p93 = scmp.eq.s32.totalorder %s11, 0
    %p94 = por %p92, %p93
    %p95 = scmp.ne.s32.totalorder %s87, %s89
    %p96 = scmp.eq.s32.totalorder %s16, 1
    %p97 = por %p95, %p96
    %p98 = scmp.ne.s32.totalorder %s89, %s90
    %p99 = scmp.eq.s32.totalorder %s16, 0
    %p100 = por %p98, %p99
    %p101 = scmp.ne.s32.totalorder %s89, %s90
    %p102 = scmp.eq.s32.totalorder %s17, 1
    %p103 = por %p101, %p102
    %p105 = scmp.ne.s32.totalorder %s90, %s104
    %p106 = scmp.eq.s32.totalorder %s17, 0
    %p107 = por %p105, %p106
    %s109 = sadd.s32 %s108, 1
    %p112 = scmp.eq.s32.totalorder %s11, 1
    %p113 = scmp.ne.s32.totalorder %s108, %s110
    %p114 = scmp.eq.s32.totalorder %s11, 0
    %p115 = por %p113, %p114
    %p116 = scmp.ne.s32.totalorder %s108, %s110
    %p117 = scmp.eq.s32.totalorder %s16, 1
    %p118 = por %p116, %p117
    %p119 = scmp.ne.s32.totalorder %s110, %s111
    %p120 = scmp.eq.s32.totalorder %s16, 0
    %p121 = por %p119, %p120
    %p122 = scmp.ne.s32.totalorder %s110, %s111
    %p123 = scmp.eq.s32.totalorder %s17, 1
    %p124 = por %p122, %p123
    %p126 = scmp.ne.s32.totalorder %s111, %s125
    %p127 = scmp.eq.s32.totalorder %s17, 0
    %p128 = por %p126, %p127
    %s129 = ssub.s32 %s11, %s18
    %p130 = scmp.eq.s32.totalorder %s129, 0
    %s132 = sadd.s32 %s131, 1
    %s133 = scalar_select %p130, %s131, %s132
    %p136 = pneg %p130
    %p137 = scmp.eq.s32.totalorder %s11, 1
    %p138 = por %p136, %p137
    %p139 = scmp.ne.s32.totalorder %s131, %s134
    %p140 = scmp.eq.s32.totalorder %s11, 0
    %p141 = por %p139, %p140
    %p142 = scmp.ne.s32.totalorder %s131, %s134
    %p143 = scmp.eq.s32.totalorder %s16, 1
    %p144 = por %p142, %p143
    %p145 = scmp.ne.s32.totalorder %s134, %s135
    %p146 = scmp.eq.s32.totalorder %s16, 0
    %p147 = por %p145, %p146
    %p148 = scmp.ne.s32.totalorder %s134, %s135
    %p149 = scmp.eq.s32.totalorder %s17, 1
    %p150 = por %p148, %p149
    %p152 = scmp.ne.s32.totalorder %s135, %s151
    %p153 = scmp.eq.s32.totalorder %s17, 0
    %p154 = por %p152, %p153
    %p155 = scmp.le.s32.totalorder 1, %s11
    %p156 = scmp.lt.s32.totalorder %s11, 3
    %p157 = pnand %p155, %p156
    %p158 = pneg %p157
    // Predicated region
    $region9: #{encoder_forward.5} parent=5 // pred_check
      _
    $region10: #{encoder_forward.5} parent=5 // pred_check_branch
      %160 = sbr.rel (%p157) target = $region12
    $region11: #{encoder_forward.5} parent=5 // pred_region
      %s161 = ssub.s32 %s11, 1
      // Predicated region
      $region13: #{encoder_forward.5} parent=11 // pred_check
        %p162 = pneg %p58
      $region14: #{encoder_forward.5} parent=11 // pred_check_branch
        %164 = sbr.rel (%p162) target = $region16
      $region15: #{encoder_forward.5} parent=11 // pred_region
        _
      $region16: #{encoder_forward.5} parent=11 // pred_fallthru
        _
      // Predicated region
      $region17: #{encoder_forward.5} parent=11 // pred_check
        %p165 = pneg %p79
      $region18: #{encoder_forward.5} parent=11 // pred_check_branch
        %167 = sbr.rel (%p165) target = $region20
      $region19: #{encoder_forward.5} parent=11 // pred_region
        _
      $region20: #{encoder_forward.5} parent=11 // pred_fallthru
        _
      // Predicated region
      $region21: #{encoder_forward.5} parent=11 // pred_check
        %p168 = pneg %p100
      $region22: #{encoder_forward.5} parent=11 // pred_check_branch
        %170 = sbr.rel (%p168) target = $region24
      $region23: #{encoder_forward.5} parent=11 // pred_region
        _
      $region24: #{encoder_forward.5} parent=11 // pred_fallthru
        _
      // Predicated region
      $region25: #{encoder_forward.5} parent=11 // pred_check
        %p171 = pneg %p121
      $region26: #{encoder_forward.5} parent=11 // pred_check_branch
        %173 = sbr.rel (%p171) target = $region28
      $region27: #{encoder_forward.5} parent=11 // pred_region
        _
      $region28: #{encoder_forward.5} parent=11 // pred_fallthru
        _
    $region12: #{encoder_forward.5} parent=5 // pred_fallthru
      _
    %p174 = scmp.lt.s32.totalorder %s11, 2
    // Predicated region
    $region29: #{encoder_forward.5} parent=5 // pred_check
      %p175 = pneg %p174
    $region30: #{encoder_forward.5} parent=5 // pred_check_branch
      %177 = sbr.rel (%p175) target = $region32
    $region31: #{encoder_forward.5} parent=5 // pred_region
      // Predicated region
      $region33: #{encoder_forward.5} parent=31 // pred_check
        %p178 = pneg %p31
      $region34: #{encoder_forward.5} parent=31 // pred_check_branch
        %180 = sbr.rel (%p178) target = $region36
      $region35: #{encoder_forward.5} parent=31 // pred_region
        %p181 = scmp.lt.s32.totalorder %s11, 1
        %s182 = scalar_select %p181, %s11, 1
        %s183 = smul.addr %s182, 72
        %s184 = smul.addr %s183, 8
        %s185 = scalar_lea.vmem %s0, %s184
      $region36: #{encoder_forward.5} parent=31 // pred_fallthru
        _
    $region32: #{encoder_forward.5} parent=5 // pred_fallthru
      _
    %p186 = scmp.le.s32.totalorder 1, %s11
    %p187 = scmp.lt.s32.totalorder %s11, 3
    %p188 = pnand %p186, %p187
    %p189 = pneg %p188
    // Predicated region
    $region37: #{encoder_forward.5} parent=5 // pred_check
      _
    $region38: #{encoder_forward.5} parent=5 // pred_check_branch
      %191 = sbr.rel (%p188) target = $region40
    $region39: #{encoder_forward.5} parent=5 // pred_region
      %s192 = ssub.s32 %s11, 1
      %p193 = scmp.lt.s32.totalorder %s16, 1
      %s194 = scalar_select %p193, %s16, 1
      %s195 = smul.addr %s194, 72
      %s196 = smul.addr %s195, 8
      %s197 = scalar_lea.vmem %s0, %s196
      %p198 = pneg %p37
      %p199 = pneg %p34
      %p200 = pneg %p58
      %p201 = pneg %p55
      %p202 = pneg %p79
      %p203 = pneg %p76
      %p204 = pneg %p100
      %p205 = pneg %p97
      %p206 = pneg %p121
      %p207 = pneg %p118
      %p208 = pneg %p147
      %p209 = pneg %p144
      %p210 = scmp.lt.s32.totalorder %s16, 1
      %s211 = scalar_select %p210, %s16, 1
      %s212 = smul.addr %s211, 8
      %s213 = smul.addr %s212, 8
      %s214 = scalar_lea.vmem %s5, %s213
      %p215 = scmp.lt.s32.totalorder %s16, 1
      %s216 = scalar_select %p215, %s16, 1
      %s217 = smul.addr %s216, 72
      %s218 = smul.addr %s217, 8
      %s219 = scalar_lea.vmem %s0, %s218
      %p220 = scmp.lt.s32.totalorder %s16, 1
      %s221 = scalar_select %p220, %s16, 1
      %s222 = smul.addr %s221, 8
      %s223 = smul.addr %s222, 8
      %s224 = scalar_lea.vmem %s5, %s223
      %v225 = vld [vmem:[%s219] sm:$0xff]
      %v226 = vld [vmem:[%s219 + $0x8] sm:$0xff]
      %v227 = vld [vmem:[%s219 + $0x10] sm:$0xff]
      %v228 = vld [vmem:[%s219 + $0x18] sm:$0xff]
      %v229 = vld [vmem:[%s219 + $0x40] sm:$0xff]
      %v230 = vld [vmem:[%s219 + $0x48] sm:$0xff]
      %v231 = vld [vmem:[%s219 + $0x50] sm:$0xff]
      %v232 = vld [vmem:[%s219 + $0x58] sm:$0xff]
      %v233 = vld [vmem:[%s219 + $0x80] sm:$0xff]
      %v234 = vld [vmem:[%s219 + $0x88] sm:$0xff]
      %v235 = vld [vmem:[%s219 + $0x90] sm:$0xff]
      %v236 = vld [vmem:[%s219 + $0x98] sm:$0xff]
      %v237 = vld [vmem:[%s219 + $0xc0] sm:$0xff]
      %v238 = vld [vmem:[%s219 + $0xc8] sm:$0xff]
      %v239 = vld [vmem:[%s219 + $0xd0] sm:$0xff]
      %v240 = vld [vmem:[%s219 + $0xd8] sm:$0xff]
      %v241 = vld [vmem:[%s219 + $0x100] sm:$0xff]
      %v242 = vld [vmem:[%s219 + $0x108] sm:$0xff]
      %v243 = vld [vmem:[%s219 + $0x110] sm:$0xff]
      %v244 = vld [vmem:[%s219 + $0x118] sm:$0xff]
      %v245 = vld [vmem:[%s219 + $0x140] sm:$0xff]
      %v246 = vld [vmem:[%s219 + $0x148] sm:$0xff]
      %v247 = vld [vmem:[%s219 + $0x150] sm:$0xff]
      %v248 = vld [vmem:[%s219 + $0x158] sm:$0xff]
      %v249 = vld [vmem:[%s219 + $0x180] sm:$0xff]
      %v250 = vld [vmem:[%s219 + $0x188] sm:$0xff]
      %v251 = vld [vmem:[%s219 + $0x190] sm:$0xff]
      %v252 = vld [vmem:[%s219 + $0x198] sm:$0xff]
      %v253 = vld [vmem:[%s219 + $0x1c0] sm:$0xff]
      %v254 = vld [vmem:[%s219 + $0x1c8] sm:$0xff]
      %v255 = vld [vmem:[%s219 + $0x1d0] sm:$0xff]
      %v256 = vld [vmem:[%s219 + $0x1d8] sm:$0xff]
      %v257 = vld [vmem:[%s1] sm:$0xff]
      %v258 = vld [vmem:[%s1 + $0x8] sm:$0xff]
      %v259 = vld [vmem:[%s1 + $0x10] sm:$0xff]
      %v260 = vld [vmem:[%s1 + $0x18] sm:$0xff]
      %v261 = vld [vmem:[%s1 + $0x20] sm:$0xff]
      %v262 = vld [vmem:[%s1 + $0x28] sm:$0xff]
      %v263 = vld [vmem:[%s1 + $0x30] sm:$0xff]
      %v264 = vld [vmem:[%s1 + $0x38] sm:$0xff]
      %v265 = vld [vmem:[%s1 + $0x40] sm:$0xff]
      %v266 = vld [vmem:[%s1 + $0x48] sm:$0xff]
      %v267 = vld [vmem:[%s1 + $0x50] sm:$0xff]
      %v268 = vld [vmem:[%s1 + $0x58] sm:$0xff]
      %v269 = vld [vmem:[%s1 + $0x60] sm:$0xff]
      %v270 = vld [vmem:[%s1 + $0x68] sm:$0xff]
      %v271 = vld [vmem:[%s1 + $0x70] sm:$0xff]
      %v272 = vld [vmem:[%s1 + $0x78] sm:$0xff]
      %v273 = vld [vmem:[%s1 + $0x80] sm:$0xff]
      %v274 = vld [vmem:[%s1 + $0x88] sm:$0xff]
      %v275 = vld [vmem:[%s1 + $0x90] sm:$0xff]
      %v276 = vld [vmem:[%s1 + $0x98] sm:$0xff]
      %v277 = vld [vmem:[%s1 + $0xa0] sm:$0xff]
      %v278 = vld [vmem:[%s1 + $0xa8] sm:$0xff]
      %v279 = vld [vmem:[%s1 + $0xb0] sm:$0xff]
      %v280 = vld [vmem:[%s1 + $0xb8] sm:$0xff]
      %v281 = vld [vmem:[%s1 + $0xc0] sm:$0xff]
      %v282 = vld [vmem:[%s1 + $0xc8] sm:$0xff]
      %v283 = vld [vmem:[%s1 + $0xd0] sm:$0xff]
      %v284 = vld [vmem:[%s1 + $0xd8] sm:$0xff]
      %v285 = vld [vmem:[%s1 + $0xe0] sm:$0xff]
      %v286 = vld [vmem:[%s1 + $0xe8] sm:$0xff]
      %v287 = vld [vmem:[%s1 + $0xf0] sm:$0xff]
      %v288 = vld [vmem:[%s1 + $0xf8] sm:$0xff]
      %v289 = vld [vmem:[%s1 + $0x100] sm:$0xff]
      %v290 = vld [vmem:[%s1 + $0x108] sm:$0xff]
      %v291 = vld [vmem:[%s1 + $0x110] sm:$0xff]
      %v292 = vld [vmem:[%s1 + $0x118] sm:$0xff]
      %v293 = vld [vmem:[%s1 + $0x120] sm:$0xff]
      %v294 = vld [vmem:[%s1 + $0x128] sm:$0xff]
      %v295 = vld [vmem:[%s1 + $0x130] sm:$0xff]
      %v296 = vld [vmem:[%s1 + $0x138] sm:$0xff]
      %v297 = vld [vmem:[%s1 + $0x140] sm:$0xff]
      %v298 = vld [vmem:[%s1 + $0x148] sm:$0xff]
      %v299 = vld [vmem:[%s1 + $0x150] sm:$0xff]
      %v300 = vld [vmem:[%s1 + $0x158] sm:$0xff]
      %v301 = vld [vmem:[%s1 + $0x160] sm:$0xff]
      %v302 = vld [vmem:[%s1 + $0x168] sm:$0xff]
      %v303 = vld [vmem:[%s1 + $0x170] sm:$0xff]
      %v304 = vld [vmem:[%s1 + $0x178] sm:$0xff]
      %v305 = vld [vmem:[%s1 + $0x180] sm:$0xff]
      %v306 = vld [vmem:[%s1 + $0x188] sm:$0xff]
      %v307 = vld [vmem:[%s1 + $0x190] sm:$0xff]
      %v308 = vld [vmem:[%s1 + $0x198] sm:$0xff]
      %v309 = vld [vmem:[%s1 + $0x1a0] sm:$0xff]
      %v310 = vld [vmem:[%s1 + $0x1a8] sm:$0xff]
      %v311 = vld [vmem:[%s1 + $0x1b0] sm:$0xff]
      %v312 = vld [vmem:[%s1 + $0x1b8] sm:$0xff]
      %v313 = vld [vmem:[%s1 + $0x1c0] sm:$0xff]
      %v314 = vld [vmem:[%s1 + $0x1c8] sm:$0xff]
      %v315 = vld [vmem:[%s1 + $0x1d0] sm:$0xff]
      %v316 = vld [vmem:[%s1 + $0x1d8] sm:$0xff]
      %v317 = vld [vmem:[%s1 + $0x1e0] sm:$0xff]
      %v318 = vld [vmem:[%s1 + $0x1e8] sm:$0xff]
      %v319 = vld [vmem:[%s1 + $0x1f0] sm:$0xff]
      %v320 = vld [vmem:[%s1 + $0x1f8] sm:$0xff]
      %v321 = vld [vmem:[%s219] sm:$0xfe]
      %v322 = vld [vmem:[%s219 + $0x8] sm:$0xfe]
      %v323 = vld [vmem:[%s219 + $0x10] sm:$0xfe]
      %v324 = vld [vmem:[%s219 + $0x18] sm:$0xfe]
      %v325 = vld [vmem:[%s219 + $0x20] sm:$0x1]
      %v326 = vld [vmem:[%s219 + $0x28] sm:$0x1]
      %v327 = vld [vmem:[%s219 + $0x30] sm:$0x1]
      %v328 = vld [vmem:[%s219 + $0x38] sm:$0x1]
      %v329 = vld [vmem:[%s219 + $0x40] sm:$0xfe]
      %v330 = vld [vmem:[%s219 + $0x48] sm:$0xfe]
      %v331 = vld [vmem:[%s219 + $0x50] sm:$0xfe]
      %v332 = vld [vmem:[%s219 + $0x58] sm:$0xfe]
      %v333 = vld [vmem:[%s219 + $0x60] sm:$0x1]
      %v334 = vld [vmem:[%s219 + $0x68] sm:$0x1]
      %v335 = vld [vmem:[%s219 + $0x70] sm:$0x1]
      %v336 = vld [vmem:[%s219 + $0x78] sm:$0x1]
      %v337 = vld [vmem:[%s219 + $0x80] sm:$0xfe]
      %v338 = vld [vmem:[%s219 + $0x88] sm:$0xfe]
      %v339 = vld [vmem:[%s219 + $0x90] sm:$0xfe]
      %v340 = vld [vmem:[%s219 + $0x98] sm:$0xfe]
      %v341 = vld [vmem:[%s219 + $0xa0] sm:$0x1]
      %v342 = vld [vmem:[%s219 + $0xa8] sm:$0x1]
      %v343 = vld [vmem:[%s219 + $0xb0] sm:$0x1]
      %v344 = vld [vmem:[%s219 + $0xb8] sm:$0x1]
      %v345 = vld [vmem:[%s219 + $0xc0] sm:$0xfe]
      %v346 = vld [vmem:[%s219 + $0xc8] sm:$0xfe]
      %v347 = vld [vmem:[%s219 + $0xd0] sm:$0xfe]
      %v348 = vld [vmem:[%s219 + $0xd8] sm:$0xfe]
      %v349 = vld [vmem:[%s219 + $0xe0] sm:$0x1]
      %v350 = vld [vmem:[%s219 + $0xe8] sm:$0x1]
      %v351 = vld [vmem:[%s219 + $0xf0] sm:$0x1]
      %v352 = vld [vmem:[%s219 + $0xf8] sm:$0x1]
      %v353 = vld [vmem:[%s219 + $0x100] sm:$0xfe]
      %v354 = vld [vmem:[%s219 + $0x108] sm:$0xfe]
      %v355 = vld [vmem:[%s219 + $0x110] sm:$0xfe]
      %v356 = vld [vmem:[%s219 + $0x118] sm:$0xfe]
      %v357 = vld [vmem:[%s219 + $0x120] sm:$0x1]
      %v358 = vld [vmem:[%s219 + $0x128] sm:$0x1]
      %v359 = vld [vmem:[%s219 + $0x130] sm:$0x1]
      %v360 = vld [vmem:[%s219 + $0x138] sm:$0x1]
      %v361 = vld [vmem:[%s219 + $0x140] sm:$0xfe]
      %v362 = vld [vmem:[%s219 + $0x148] sm:$0xfe]
      %v363 = vld [vmem:[%s219 + $0x150] sm:$0xfe]
      %v364 = vld [vmem:[%s219 + $0x158] sm:$0xfe]
      %v365 = vld [vmem:[%s219 + $0x160] sm:$0x1]
      %v366 = vld [vmem:[%s219 + $0x168] sm:$0x1]
      %v367 = vld [vmem:[%s219 + $0x170] sm:$0x1]
      %v368 = vld [vmem:[%s219 + $0x178] sm:$0x1]
      %v369 = vld [vmem:[%s219 + $0x180] sm:$0xfe]
      %v370 = vld [vmem:[%s219 + $0x188] sm:$0xfe]
      %v371 = vld [vmem:[%s219 + $0x190] sm:$0xfe]
      %v372 = vld [vmem:[%s219 + $0x198] sm:$0xfe]
      %v373 = vld [vmem:[%s219 + $0x1a0] sm:$0x1]
      %v374 = vld [vmem:[%s219 + $0x1a8] sm:$0x1]
      %v375 = vld [vmem:[%s219 + $0x1b0] sm:$0x1]
      %v376 = vld [vmem:[%s219 + $0x1b8] sm:$0x1]
      %v377 = vld [vmem:[%s219 + $0x1c0] sm:$0xfe]
      %v378 = vld [vmem:[%s219 + $0x1c8] sm:$0xfe]
      %v379 = vld [vmem:[%s219 + $0x1d0] sm:$0xfe]
      %v380 = vld [vmem:[%s219 + $0x1d8] sm:$0xfe]
      %v381 = vld [vmem:[%s219 + $0x1e0] sm:$0x1]
      %v382 = vld [vmem:[%s219 + $0x1e8] sm:$0x1]
      %v383 = vld [vmem:[%s219 + $0x1f0] sm:$0x1]
      %v384 = vld [vmem:[%s219 + $0x1f8] sm:$0x1]
      %vm449 = vcmask 1046528
      %v450 = vrot.slane %v321, 1
      %v451 = vrot.slane %v325, 1
      %v452 = vsel %vm449, %v450, %v451
      %v453 = vrot.slane %v322, 1
      %v454 = vrot.slane %v326, 1
      %v455 = vsel %vm449, %v453, %v454
      %v456 = vrot.slane %v323, 1
      %v457 = vrot.slane %v327, 1
      %v458 = vsel %vm449, %v456, %v457
      %v459 = vrot.slane %v324, 1
      %v460 = vrot.slane %v328, 1
      %v461 = vsel %vm449, %v459, %v460
      %v462 = vrot.slane %v329, 1
      %v463 = vrot.slane %v333, 1
      %v464 = vsel %vm449, %v462, %v463
      %v465 = vrot.slane %v330, 1
      %v466 = vrot.slane %v334, 1
      %v467 = vsel %vm449, %v465, %v466
      %v468 = vrot.slane %v331, 1
      %v469 = vrot.slane %v335, 1
      %v470 = vsel %vm449, %v468, %v469
      %v471 = vrot.slane %v332, 1
      %v472 = vrot.slane %v336, 1
      %v473 = vsel %vm449, %v471, %v472
      %v474 = vrot.slane %v337, 1
      %v475 = vrot.slane %v341, 1
      %v476 = vsel %vm449, %v474, %v475
      %v477 = vrot.slane %v338, 1
      %v478 = vrot.slane %v342, 1
      %v479 = vsel %vm449, %v477, %v478
      %v480 = vrot.slane %v339, 1
      %v481 = vrot.slane %v343, 1
      %v482 = vsel %vm449, %v480, %v481
      %v483 = vrot.slane %v340, 1
      %v484 = vrot.slane %v344, 1
      %v485 = vsel %vm449, %v483, %v484
      %v486 = vrot.slane %v345, 1
      %v487 = vrot.slane %v349, 1
      %v488 = vsel %vm449, %v486, %v487
      %v489 = vrot.slane %v346, 1
      %v490 = vrot.slane %v350, 1
      %v491 = vsel %vm449, %v489, %v490
      %v492 = vrot.slane %v347, 1
      %v493 = vrot.slane %v351, 1
      %v494 = vsel %vm449, %v492, %v493
      %v495 = vrot.slane %v348, 1
      %v496 = vrot.slane %v352, 1
      %v497 = vsel %vm449, %v495, %v496
      %v498 = vrot.slane %v353, 1
      %v499 = vrot.slane %v357, 1
      %v500 = vsel %vm449, %v498, %v499
      %v501 = vrot.slane %v354, 1
      %v502 = vrot.slane %v358, 1
      %v503 = vsel %vm449, %v501, %v502
      %v504 = vrot.slane %v355, 1
      %v505 = vrot.slane %v359, 1
      %v506 = vsel %vm449, %v504, %v505
      %v507 = vrot.slane %v356, 1
      %v508 = vrot.slane %v360, 1
      %v509 = vsel %vm449, %v507, %v508
      %v510 = vrot.slane %v361, 1
      %v511 = vrot.slane %v365, 1
      %v512 = vsel %vm449, %v510, %v511
      %v513 = vrot.slane %v362, 1
      %v514 = vrot.slane %v366, 1
      %v515 = vsel %vm449, %v513, %v514
      %v516 = vrot.slane %v363, 1
      %v517 = vrot.slane %v367, 1
      %v518 = vsel %vm449, %v516, %v517
      %v519 = vrot.slane %v364, 1
      %v520 = vrot.slane %v368, 1
      %v521 = vsel %vm449, %v519, %v520
      %v522 = vrot.slane %v369, 1
      %v523 = vrot.slane %v373, 1
      %v524 = vsel %vm449, %v522, %v523
      %v525 = vrot.slane %v370, 1
      %v526 = vrot.slane %v374, 1
      %v527 = vsel %vm449, %v525, %v526
      %v528 = vrot.slane %v371, 1
      %v529 = vrot.slane %v375, 1
      %v530 = vsel %vm449, %v528, %v529
      %v531 = vrot.slane %v372, 1
      %v532 = vrot.slane %v376, 1
      %v533 = vsel %vm449, %v531, %v532
      %v534 = vrot.slane %v377, 1
      %v535 = vrot.slane %v381, 1
      %v536 = vsel %vm449, %v534, %v535
      %v537 = vrot.slane %v378, 1
      %v538 = vrot.slane %v382, 1
      %v539 = vsel %vm449, %v537, %v538
      %v540 = vrot.slane %v379, 1
      %v541 = vrot.slane %v383, 1
      %v542 = vsel %vm449, %v540, %v541
      %v543 = vrot.slane %v380, 1
      %v544 = vrot.slane %v384, 1
      %v545 = vsel %vm449, %v543, %v544
      %s578 = scalar_lea.vmem %s1, 512
      %v579 = vld [vmem:[%s578] sm:$0xff]
      %v580 = vld [vmem:[%s578 + $0x8] sm:$0xff]
      %v581 = vld [vmem:[%s578 + $0x10] sm:$0xff]
      %v582 = vld [vmem:[%s578 + $0x18] sm:$0xff]
      %v583 = vld [vmem:[%s578 + $0x20] sm:$0xff]
      %v584 = vld [vmem:[%s578 + $0x28] sm:$0xff]
      %v585 = vld [vmem:[%s578 + $0x30] sm:$0xff]
      %v586 = vld [vmem:[%s578 + $0x38] sm:$0xff]
      %v587 = vld [vmem:[%s578 + $0x40] sm:$0xff]
      %v588 = vld [vmem:[%s578 + $0x48] sm:$0xff]
      %v589 = vld [vmem:[%s578 + $0x50] sm:$0xff]
      %v590 = vld [vmem:[%s578 + $0x58] sm:$0xff]
      %v591 = vld [vmem:[%s578 + $0x60] sm:$0xff]
      %v592 = vld [vmem:[%s578 + $0x68] sm:$0xff]
      %v593 = vld [vmem:[%s578 + $0x70] sm:$0xff]
      %v594 = vld [vmem:[%s578 + $0x78] sm:$0xff]
      %v595 = vld [vmem:[%s578 + $0x80] sm:$0xff]
      %v596 = vld [vmem:[%s578 + $0x88] sm:$0xff]
      %v597 = vld [vmem:[%s578 + $0x90] sm:$0xff]
      %v598 = vld [vmem:[%s578 + $0x98] sm:$0xff]
      %v599 = vld [vmem:[%s578 + $0xa0] sm:$0xff]
      %v600 = vld [vmem:[%s578 + $0xa8] sm:$0xff]
      %v601 = vld [vmem:[%s578 + $0xb0] sm:$0xff]
      %v602 = vld [vmem:[%s578 + $0xb8] sm:$0xff]
      %v603 = vld [vmem:[%s578 + $0xc0] sm:$0xff]
      %v604 = vld [vmem:[%s578 + $0xc8] sm:$0xff]
      %v605 = vld [vmem:[%s578 + $0xd0] sm:$0xff]
      %v606 = vld [vmem:[%s578 + $0xd8] sm:$0xff]
      %v607 = vld [vmem:[%s578 + $0xe0] sm:$0xff]
      %v608 = vld [vmem:[%s578 + $0xe8] sm:$0xff]
      %v609 = vld [vmem:[%s578 + $0xf0] sm:$0xff]
      %v610 = vld [vmem:[%s578 + $0xf8] sm:$0xff]
      %v611 = vld [vmem:[%s578 + $0x100] sm:$0xff]
      %v612 = vld [vmem:[%s578 + $0x108] sm:$0xff]
      %v613 = vld [vmem:[%s578 + $0x110] sm:$0xff]
      %v614 = vld [vmem:[%s578 + $0x118] sm:$0xff]
      %v615 = vld [vmem:[%s578 + $0x120] sm:$0xff]
      %v616 = vld [vmem:[%s578 + $0x128] sm:$0xff]
      %v617 = vld [vmem:[%s578 + $0x130] sm:$0xff]
      %v618 = vld [vmem:[%s578 + $0x138] sm:$0xff]
      %v619 = vld [vmem:[%s578 + $0x140] sm:$0xff]
      %v620 = vld [vmem:[%s578 + $0x148] sm:$0xff]
      %v621 = vld [vmem:[%s578 + $0x150] sm:$0xff]
      %v622 = vld [vmem:[%s578 + $0x158] sm:$0xff]
      %v623 = vld [vmem:[%s578 + $0x160] sm:$0xff]
      %v624 = vld [vmem:[%s578 + $0x168] sm:$0xff]
      %v625 = vld [vmem:[%s578 + $0x170] sm:$0xff]
      %v626 = vld [vmem:[%s578 + $0x178] sm:$0xff]
      %v627 = vld [vmem:[%s578 + $0x180] sm:$0xff]
      %v628 = vld [vmem:[%s578 + $0x188] sm:$0xff]
      %v629 = vld [vmem:[%s578 + $0x190] sm:$0xff]
      %v630 = vld [vmem:[%s578 + $0x198] sm:$0xff]
      %v631 = vld [vmem:[%s578 + $0x1a0] sm:$0xff]
      %v632 = vld [vmem:[%s578 + $0x1a8] sm:$0xff]
      %v633 = vld [vmem:[%s578 + $0x1b0] sm:$0xff]
      %v634 = vld [vmem:[%s578 + $0x1b8] sm:$0xff]
      %v635 = vld [vmem:[%s578 + $0x1c0] sm:$0xff]
      %v636 = vld [vmem:[%s578 + $0x1c8] sm:$0xff]
      %v637 = vld [vmem:[%s578 + $0x1d0] sm:$0xff]
      %v638 = vld [vmem:[%s578 + $0x1d8] sm:$0xff]
      %v639 = vld [vmem:[%s578 + $0x1e0] sm:$0xff]
      %v640 = vld [vmem:[%s578 + $0x1e8] sm:$0xff]
      %v641 = vld [vmem:[%s578 + $0x1f0] sm:$0xff]
      %v642 = vld [vmem:[%s578 + $0x1f8] sm:$0xff]
      %643 = vmatpush.msra.mxu0 %v594
      %644 = vmatpush.msra.mxu0 %v593
      %645 = vmatpush.msra.mxu0 %v592
      %646 = vmatpush.msra.mxu0 %v591
      %647 = vmatpush.msra.mxu0 %v590
      %648 = vmatpush.msra.mxu0 %v589
      %649 = vmatpush.msra.mxu0 %v588
      %650 = vmatpush.msra.mxu0 %v587
      %651 = vmatpush.msra.mxu0 %v586
      %652 = vmatpush.msra.mxu0 %v585
      %653 = vmatpush.msra.mxu0 %v584
      %654 = vmatpush.msra.mxu0 %v583
      %655 = vmatpush.msra.mxu0 %v582
      %656 = vmatpush.msra.mxu0 %v581
      %657 = vmatpush.msra.mxu0 %v580
      %658 = vmatpush.msra.mxu0 %v579
      %659 = vmatmul.f32.gmra.mxu0 %v452
      %v660 = vpop.f32.mrf.mxu0
      %v661 = vadd.f32 0.0, %v660
      %662 = vmatmul.f32.gmra.mxu0 %v464
      %v663 = vpop.f32.mrf.mxu0
      %v664 = vadd.f32 0.0, %v663
      %665 = vmatmul.f32.gmra.mxu0 %v476
      %v666 = vpop.f32.mrf.mxu0
      %v667 = vadd.f32 0.0, %v666
      %668 = vmatmul.f32.gmra.mxu0 %v488
      %v669 = vpop.f32.mrf.mxu0
      %v670 = vadd.f32 0.0, %v669
      %671 = vmatmul.f32.gmra.mxu0 %v500
      %v672 = vpop.f32.mrf.mxu0
      %v673 = vadd.f32 0.0, %v672
      %674 = vmatmul.f32.gmra.mxu0 %v512
      %v675 = vpop.f32.mrf.mxu0
      %v676 = vadd.f32 0.0, %v675
      %677 = vmatmul.f32.gmra.mxu0 %v524
      %v678 = vpop.f32.mrf.mxu0
      %v679 = vadd.f32 0.0, %v678
      %680 = vmatmul.f32.gmra.mxu0 %v536
      %v681 = vpop.f32.mrf.mxu0
      %v682 = vadd.f32 0.0, %v681
      %683 = vdwg.mxu0
      %684 = vmatpush.msra.mxu0 %v610
      %685 = vmatpush.msra.mxu0 %v609
      %686 = vmatpush.msra.mxu0 %v608
      %687 = vmatpush.msra.mxu0 %v607
      %688 = vmatpush.msra.mxu0 %v606
      %689 = vmatpush.msra.mxu0 %v605
      %690 = vmatpush.msra.mxu0 %v604
      %691 = vmatpush.msra.mxu0 %v603
      %692 = vmatpush.msra.mxu0 %v602
      %693 = vmatpush.msra.mxu0 %v601
      %694 = vmatpush.msra.mxu0 %v600
      %695 = vmatpush.msra.mxu0 %v599
      %696 = vmatpush.msra.mxu0 %v598
      %697 = vmatpush.msra.mxu0 %v597
      %698 = vmatpush.msra.mxu0 %v596
      %699 = vmatpush.msra.mxu0 %v595
      %700 = vmatmul.f32.gmra.mxu0 %v455
      %v701 = vpop.f32.mrf.mxu0
      %v702 = vadd.f32 %v661, %v701
      %703 = vmatmul.f32.gmra.mxu0 %v467
      %v704 = vpop.f32.mrf.mxu0
      %v705 = vadd.f32 %v664, %v704
      %706 = vmatmul.f32.gmra.mxu0 %v479
      %v707 = vpop.f32.mrf.mxu0
      %v708 = vadd.f32 %v667, %v707
      %709 = vmatmul.f32.gmra.mxu0 %v491
      %v710 = vpop.f32.mrf.mxu0
      %v711 = vadd.f32 %v670, %v710
      %712 = vmatmul.f32.gmra.mxu0 %v503
      %v713 = vpop.f32.mrf.mxu0
      %v714 = vadd.f32 %v673, %v713
      %715 = vmatmul.f32.gmra.mxu0 %v515
      %v716 = vpop.f32.mrf.mxu0
      %v717 = vadd.f32 %v676, %v716
      %718 = vmatmul.f32.gmra.mxu0 %v527
      %v719 = vpop.f32.mrf.mxu0
      %v720 = vadd.f32 %v679, %v719
      %721 = vmatmul.f32.gmra.mxu0 %v539
      %v722 = vpop.f32.mrf.mxu0
      %v723 = vadd.f32 %v682, %v722
      %724 = vdwg.mxu0
      %725 = vmatpush.msra.mxu0 %v626
      %726 = vmatpush.msra.mxu0 %v625
      %727 = vmatpush.msra.mxu0 %v624
      %728 = vmatpush.msra.mxu0 %v623
      %729 = vmatpush.msra.mxu0 %v622
      %730 = vmatpush.msra.mxu0 %v621
      %731 = vmatpush.msra.mxu0 %v620
      %732 = vmatpush.msra.mxu0 %v619
      %733 = vmatpush.msra.mxu0 %v618
      %734 = vmatpush.msra.mxu0 %v617
      %735 = vmatpush.msra.mxu0 %v616
      %736 = vmatpush.msra.mxu0 %v615
      %737 = vmatpush.msra.mxu0 %v614
      %738 = vmatpush.msra.mxu0 %v613
      %739 = vmatpush.msra.mxu0 %v612
      %740 = vmatpush.msra.mxu0 %v611
      %741 = vmatmul.f32.gmra.mxu0 %v458
      %v742 = vpop.f32.mrf.mxu0
      %v743 = vadd.f32 %v702, %v742
      %744 = vmatmul.f32.gmra.mxu0 %v470
      %v745 = vpop.f32.mrf.mxu0
      %v746 = vadd.f32 %v705, %v745
      %747 = vmatmul.f32.gmra.mxu0 %v482
      %v748 = vpop.f32.mrf.mxu0
      %v749 = vadd.f32 %v708, %v748
      %750 = vmatmul.f32.gmra.mxu0 %v494
      %v751 = vpop.f32.mrf.mxu0
      %v752 = vadd.f32 %v711, %v751
      %753 = vmatmul.f32.gmra.mxu0 %v506
      %v754 = vpop.f32.mrf.mxu0
      %v755 = vadd.f32 %v714, %v754
      %756 = vmatmul.f32.gmra.mxu0 %v518
      %v757 = vpop.f32.mrf.mxu0
      %v758 = vadd.f32 %v717, %v757
      %759 = vmatmul.f32.gmra.mxu0 %v530
      %v760 = vpop.f32.mrf.mxu0
      %v761 = vadd.f32 %v720, %v760
      %762 = vmatmul.f32.gmra.mxu0 %v542
      %v763 = vpop.f32.mrf.mxu0
      %v764 = vadd.f32 %v723, %v763
      %765 = vdwg.mxu0
      %766 = vmatpush.msra.mxu0 %v642
      %767 = vmatpush.msra.mxu0 %v641
      %768 = vmatpush.msra.mxu0 %v640
      %769 = vmatpush.msra.mxu0 %v639
      %770 = vmatpush.msra.mxu0 %v638
      %771 = vmatpush.msra.mxu0 %v637
      %772 = vmatpush.msra.mxu0 %v636
      %773 = vmatpush.msra.mxu0 %v635
      %774 = vmatpush.msra.mxu0 %v634
      %775 = vmatpush.msra.mxu0 %v633
      %776 = vmatpush.msra.mxu0 %v632
      %777 = vmatpush.msra.mxu0 %v631
      %778 = vmatpush.msra.mxu0 %v630
      %779 = vmatpush.msra.mxu0 %v629
      %780 = vmatpush.msra.mxu0 %v628
      %781 = vmatpush.msra.mxu0 %v627
      %782 = vmatmul.f32.gmra.mxu0 %v461
      %v783 = vpop.f32.mrf.mxu0
      %v784 = vadd.f32 %v743, %v783
      %785 = vmatmul.f32.gmra.mxu0 %v473
      %v786 = vpop.f32.mrf.mxu0
      %v787 = vadd.f32 %v746, %v786
      %788 = vmatmul.f32.gmra.mxu0 %v485
      %v789 = vpop.f32.mrf.mxu0
      %v790 = vadd.f32 %v749, %v789
      %791 = vmatmul.f32.gmra.mxu0 %v497
      %v792 = vpop.f32.mrf.mxu0
      %v793 = vadd.f32 %v752, %v792
      %794 = vmatmul.f32.gmra.mxu0 %v509
      %v795 = vpop.f32.mrf.mxu0
      %v796 = vadd.f32 %v755, %v795
      %797 = vmatmul.f32.gmra.mxu0 %v521
      %v798 = vpop.f32.mrf.mxu0
      %v799 = vadd.f32 %v758, %v798
      %800 = vmatmul.f32.gmra.mxu0 %v533
      %v801 = vpop.f32.mrf.mxu0
      %v802 = vadd.f32 %v761, %v801
      %803 = vmatmul.f32.gmra.mxu0 %v545
      %v804 = vpop.f32.mrf.mxu0
      %v805 = vadd.f32 %v764, %v804
      %806 = vdwg.mxu0
      %807 = vmatpush.msra.mxu0 %v272
      %808 = vmatpush.msra.mxu0 %v271
      %809 = vmatpush.msra.mxu0 %v270
      %810 = vmatpush.msra.mxu0 %v269
      %811 = vmatpush.msra.mxu0 %v268
      %812 = vmatpush.msra.mxu0 %v267
      %813 = vmatpush.msra.mxu0 %v266
      %814 = vmatpush.msra.mxu0 %v265
      %815 = vmatpush.msra.mxu0 %v264
      %816 = vmatpush.msra.mxu0 %v263
      %817 = vmatpush.msra.mxu0 %v262
      %818 = vmatpush.msra.mxu0 %v261
      %819 = vmatpush.msra.mxu0 %v260
      %820 = vmatpush.msra.mxu0 %v259
      %821 = vmatpush.msra.mxu0 %v258
      %822 = vmatpush.msra.mxu0 %v257
      %823 = vmatmul.f32.gmra.mxu0 %v225
      %v824 = vpop.f32.mrf.mxu0
      %v825 = vadd.f32 %v784, %v824
      %826 = vmatmul.f32.gmra.mxu0 %v229
      %v827 = vpop.f32.mrf.mxu0
      %v828 = vadd.f32 %v787, %v827
      %829 = vmatmul.f32.gmra.mxu0 %v233
      %v830 = vpop.f32.mrf.mxu0
      %v831 = vadd.f32 %v790, %v830
      %832 = vmatmul.f32.gmra.mxu0 %v237
      %v833 = vpop.f32.mrf.mxu0
      %v834 = vadd.f32 %v793, %v833
      %835 = vmatmul.f32.gmra.mxu0 %v241
      %v836 = vpop.f32.mrf.mxu0
      %v837 = vadd.f32 %v796, %v836
      %838 = vmatmul.f32.gmra.mxu0 %v245
      %v839 = vpop.f32.mrf.mxu0
      %v840 = vadd.f32 %v799, %v839
      %841 = vmatmul.f32.gmra.mxu0 %v249
      %v842 = vpop.f32.mrf.mxu0
      %v843 = vadd.f32 %v802, %v842
      %844 = vmatmul.f32.gmra.mxu0 %v253
      %v845 = vpop.f32.mrf.mxu0
      %v846 = vadd.f32 %v805, %v845
      %847 = vdwg.mxu0
      %848 = vmatpush.msra.mxu0 %v288
      %849 = vmatpush.msra.mxu0 %v287
      %850 = vmatpush.msra.mxu0 %v286
      %851 = vmatpush.msra.mxu0 %v285
      %852 = vmatpush.msra.mxu0 %v284
      %853 = vmatpush.msra.mxu0 %v283
      %854 = vmatpush.msra.mxu0 %v282
      %855 = vmatpush.msra.mxu0 %v281
      %856 = vmatpush.msra.mxu0 %v280
      %857 = vmatpush.msra.mxu0 %v279
      %858 = vmatpush.msra.mxu0 %v278
      %859 = vmatpush.msra.mxu0 %v277
      %860 = vmatpush.msra.mxu0 %v276
      %861 = vmatpush.msra.mxu0 %v275
      %862 = vmatpush.msra.mxu0 %v274
      %863 = vmatpush.msra.mxu0 %v273
      %864 = vmatmul.f32.gmra.mxu0 %v226
      %v865 = vpop.f32.mrf.mxu0
      %v866 = vadd.f32 %v825, %v865
      %867 = vmatmul.f32.gmra.mxu0 %v230
      %v868 = vpop.f32.mrf.mxu0
      %v869 = vadd.f32 %v828, %v868
      %870 = vmatmul.f32.gmra.mxu0 %v234
      %v871 = vpop.f32.mrf.mxu0
      %v872 = vadd.f32 %v831, %v871
      %873 = vmatmul.f32.gmra.mxu0 %v238
      %v874 = vpop.f32.mrf.mxu0
      %v875 = vadd.f32 %v834, %v874
      %876 = vmatmul.f32.gmra.mxu0 %v242
      %v877 = vpop.f32.mrf.mxu0
      %v878 = vadd.f32 %v837, %v877
      %879 = vmatmul.f32.gmra.mxu0 %v246
      %v880 = vpop.f32.mrf.mxu0
      %v881 = vadd.f32 %v840, %v880
      %882 = vmatmul.f32.gmra.mxu0 %v250
      %v883 = vpop.f32.mrf.mxu0
      %v884 = vadd.f32 %v843, %v883
      %885 = vmatmul.f32.gmra.mxu0 %v254
      %v886 = vpop.f32.mrf.mxu0
      %v887 = vadd.f32 %v846, %v886
      %888 = vdwg.mxu0
      %889 = vmatpush.msra.mxu0 %v304
      %890 = vmatpush.msra.mxu0 %v303
      %891 = vmatpush.msra.mxu0 %v302
      %892 = vmatpush.msra.mxu0 %v301
      %893 = vmatpush.msra.mxu0 %v300
      %894 = vmatpush.msra.mxu0 %v299
      %895 = vmatpush.msra.mxu0 %v298
      %896 = vmatpush.msra.mxu0 %v297
      %897 = vmatpush.msra.mxu0 %v296
      %898 = vmatpush.msra.mxu0 %v295
      %899 = vmatpush.msra.mxu0 %v294
      %900 = vmatpush.msra.mxu0 %v293
      %901 = vmatpush.msra.mxu0 %v292
      %902 = vmatpush.msra.mxu0 %v291
      %903 = vmatpush.msra.mxu0 %v290
      %904 = vmatpush.msra.mxu0 %v289
      %905 = vmatmul.f32.gmra.mxu0 %v227
      %v906 = vpop.f32.mrf.mxu0
      %v907 = vadd.f32 %v866, %v906
      %908 = vmatmul.f32.gmra.mxu0 %v231
      %v909 = vpop.f32.mrf.mxu0
      %v910 = vadd.f32 %v869, %v909
      %911 = vmatmul.f32.gmra.mxu0 %v235
      %v912 = vpop.f32.mrf.mxu0
      %v913 = vadd.f32 %v872, %v912
      %914 = vmatmul.f32.gmra.mxu0 %v239
      %v915 = vpop.f32.mrf.mxu0
      %v916 = vadd.f32 %v875, %v915
      %917 = vmatmul.f32.gmra.mxu0 %v243
      %v918 = vpop.f32.mrf.mxu0
      %v919 = vadd.f32 %v878, %v918
      %920 = vmatmul.f32.gmra.mxu0 %v247
      %v921 = vpop.f32.mrf.mxu0
      %v922 = vadd.f32 %v881, %v921
      %923 = vmatmul.f32.gmra.mxu0 %v251
      %v924 = vpop.f32.mrf.mxu0
      %v925 = vadd.f32 %v884, %v924
      %926 = vmatmul.f32.gmra.mxu0 %v255
      %v927 = vpop.f32.mrf.mxu0
      %v928 = vadd.f32 %v887, %v927
      %929 = vdwg.mxu0
      %930 = vmatpush.msra.mxu0 %v320
      %931 = vmatpush.msra.mxu0 %v319
      %932 = vmatpush.msra.mxu0 %v318
      %933 = vmatpush.msra.mxu0 %v317
      %934 = vmatpush.msra.mxu0 %v316
      %935 = vmatpush.msra.mxu0 %v315
      %936 = vmatpush.msra.mxu0 %v314
      %937 = vmatpush.msra.mxu0 %v313
      %938 = vmatpush.msra.mxu0 %v312
      %939 = vmatpush.msra.mxu0 %v311
      %940 = vmatpush.msra.mxu0 %v310
      %941 = vmatpush.msra.mxu0 %v309
      %942 = vmatpush.msra.mxu0 %v308
      %943 = vmatpush.msra.mxu0 %v307
      %944 = vmatpush.msra.mxu0 %v306
      %945 = vmatpush.msra.mxu0 %v305
      %946 = vmatmul.f32.gmra.mxu0 %v228
      %v947 = vpop.f32.mrf.mxu0
      %v948 = vadd.f32 %v907, %v947
      %949 = vmatmul.f32.gmra.mxu0 %v232
      %v950 = vpop.f32.mrf.mxu0
      %v951 = vadd.f32 %v910, %v950
      %952 = vmatmul.f32.gmra.mxu0 %v236
      %v953 = vpop.f32.mrf.mxu0
      %v954 = vadd.f32 %v913, %v953
      %955 = vmatmul.f32.gmra.mxu0 %v240
      %v956 = vpop.f32.mrf.mxu0
      %v957 = vadd.f32 %v916, %v956
      %958 = vmatmul.f32.gmra.mxu0 %v244
      %v959 = vpop.f32.mrf.mxu0
      %v960 = vadd.f32 %v919, %v959
      %961 = vmatmul.f32.gmra.mxu0 %v248
      %v962 = vpop.f32.mrf.mxu0
      %v963 = vadd.f32 %v922, %v962
      %964 = vmatmul.f32.gmra.mxu0 %v252
      %v965 = vpop.f32.mrf.mxu0
      %v966 = vadd.f32 %v925, %v965
      %967 = vmatmul.f32.gmra.mxu0 %v256
      %v968 = vpop.f32.mrf.mxu0
      %v969 = vadd.f32 %v928, %v968
      %970 = vdwg.mxu0
      %s971 = scalar_lea.vmem %s219, 64
      %v972 = vld [vmem:[%s971] sm:$0xff]
      %v973 = vld [vmem:[%s971 + $0x8] sm:$0xff]
      %v974 = vld [vmem:[%s971 + $0x10] sm:$0xff]
      %v975 = vld [vmem:[%s971 + $0x18] sm:$0xff]
      %v976 = vld [vmem:[%s971 + $0x40] sm:$0xff]
      %v977 = vld [vmem:[%s971 + $0x48] sm:$0xff]
      %v978 = vld [vmem:[%s971 + $0x50] sm:$0xff]
      %v979 = vld [vmem:[%s971 + $0x58] sm:$0xff]
      %v980 = vld [vmem:[%s971 + $0x80] sm:$0xff]
      %v981 = vld [vmem:[%s971 + $0x88] sm:$0xff]
      %v982 = vld [vmem:[%s971 + $0x90] sm:$0xff]
      %v983 = vld [vmem:[%s971 + $0x98] sm:$0xff]
      %v984 = vld [vmem:[%s971 + $0xc0] sm:$0xff]
      %v985 = vld [vmem:[%s971 + $0xc8] sm:$0xff]
      %v986 = vld [vmem:[%s971 + $0xd0] sm:$0xff]
      %v987 = vld [vmem:[%s971 + $0xd8] sm:$0xff]
      %v988 = vld [vmem:[%s971 + $0x100] sm:$0xff]
      %v989 = vld [vmem:[%s971 + $0x108] sm:$0xff]
      %v990 = vld [vmem:[%s971 + $0x110] sm:$0xff]
      %v991 = vld [vmem:[%s971 + $0x118] sm:$0xff]
      %v992 = vld [vmem:[%s971 + $0x140] sm:$0xff]
      %v993 = vld [vmem:[%s971 + $0x148] sm:$0xff]
      %v994 = vld [vmem:[%s971 + $0x150] sm:$0xff]
      %v995 = vld [vmem:[%s971 + $0x158] sm:$0xff]
      %v996 = vld [vmem:[%s971 + $0x180] sm:$0xff]
      %v997 = vld [vmem:[%s971 + $0x188] sm:$0xff]
      %v998 = vld [vmem:[%s971 + $0x190] sm:$0xff]
      %v999 = vld [vmem:[%s971 + $0x198] sm:$0xff]
      %v1000 = vld [vmem:[%s971 + $0x1c0] sm:$0xff]
      %v1001 = vld [vmem:[%s971 + $0x1c8] sm:$0xff]
      %v1002 = vld [vmem:[%s971 + $0x1d0] sm:$0xff]
      %v1003 = vld [vmem:[%s971 + $0x1d8] sm:$0xff]
      %s1004 = scalar_lea.vmem %s1, 1024
      %v1005 = vld [vmem:[%s1004] sm:$0xff]
      %v1006 = vld [vmem:[%s1004 + $0x8] sm:$0xff]
      %v1007 = vld [vmem:[%s1004 + $0x10] sm:$0xff]
      %v1008 = vld [vmem:[%s1004 + $0x18] sm:$0xff]
      %v1009 = vld [vmem:[%s1004 + $0x20] sm:$0xff]
      %v1010 = vld [vmem:[%s1004 + $0x28] sm:$0xff]
      %v1011 = vld [vmem:[%s1004 + $0x30] sm:$0xff]
      %v1012 = vld [vmem:[%s1004 + $0x38] sm:$0xff]
      %v1013 = vld [vmem:[%s1004 + $0x40] sm:$0xff]
      %v1014 = vld [vmem:[%s1004 + $0x48] sm:$0xff]
      %v1015 = vld [vmem:[%s1004 + $0x50] sm:$0xff]
      %v1016 = vld [vmem:[%s1004 + $0x58] sm:$0xff]
      %v1017 = vld [vmem:[%s1004 + $0x60] sm:$0xff]
      %v1018 = vld [vmem:[%s1004 + $0x68] sm:$0xff]
      %v1019 = vld [vmem:[%s1004 + $0x70] sm:$0xff]
      %v1020 = vld [vmem:[%s1004 + $0x78] sm:$0xff]
      %v1021 = vld [vmem:[%s1004 + $0x80] sm:$0xff]
      %v1022 = vld [vmem:[%s1004 + $0x88] sm:$0xff]
      %v1023 = vld [vmem:[%s1004 + $0x90] sm:$0xff]
      %v1024 = vld [vmem:[%s1004 + $0x98] sm:$0xff]
      %v1025 = vld [vmem:[%s1004 + $0xa0] sm:$0xff]
      %v1026 = vld [vmem:[%s1004 + $0xa8] sm:$0xff]
      %v1027 = vld [vmem:[%s1004 + $0xb0] sm:$0xff]
      %v1028 = vld [vmem:[%s1004 + $0xb8] sm:$0xff]
      %v1029 = vld [vmem:[%s1004 + $0xc0] sm:$0xff]
      %v1030 = vld [vmem:[%s1004 + $0xc8] sm:$0xff]
      %v1031 = vld [vmem:[%s1004 + $0xd0] sm:$0xff]
      %v1032 = vld [vmem:[%s1004 + $0xd8] sm:$0xff]
      %v1033 = vld [vmem:[%s1004 + $0xe0] sm:$0xff]
      %v1034 = vld [vmem:[%s1004 + $0xe8] sm:$0xff]
      %v1035 = vld [vmem:[%s1004 + $0xf0] sm:$0xff]
      %v1036 = vld [vmem:[%s1004 + $0xf8] sm:$0xff]
      %v1037 = vld [vmem:[%s1004 + $0x100] sm:$0xff]
      %v1038 = vld [vmem:[%s1004 + $0x108] sm:$0xff]
      %v1039 = vld [vmem:[%s1004 + $0x110] sm:$0xff]
      %v1040 = vld [vmem:[%s1004 + $0x118] sm:$0xff]
      %v1041 = vld [vmem:[%s1004 + $0x120] sm:$0xff]
      %v1042 = vld [vmem:[%s1004 + $0x128] sm:$0xff]
      %v1043 = vld [vmem:[%s1004 + $0x130] sm:$0xff]
      %v1044 = vld [vmem:[%s1004 + $0x138] sm:$0xff]
      %v1045 = vld [vmem:[%s1004 + $0x140] sm:$0xff]
      %v1046 = vld [vmem:[%s1004 + $0x148] sm:$0xff]
      %v1047 = vld [vmem:[%s1004 + $0x150] sm:$0xff]
      %v1048 = vld [vmem:[%s1004 + $0x158] sm:$0xff]
      %v1049 = vld [vmem:[%s1004 + $0x160] sm:$0xff]
      %v1050 = vld [vmem:[%s1004 + $0x168] sm:$0xff]
      %v1051 = vld [vmem:[%s1004 + $0x170] sm:$0xff]
      %v1052 = vld [vmem:[%s1004 + $0x178] sm:$0xff]
      %v1053 = vld [vmem:[%s1004 + $0x180] sm:$0xff]
      %v1054 = vld [vmem:[%s1004 + $0x188] sm:$0xff]
      %v1055 = vld [vmem:[%s1004 + $0x190] sm:$0xff]
      %v1056 = vld [vmem:[%s1004 + $0x198] sm:$0xff]
      %v1057 = vld [vmem:[%s1004 + $0x1a0] sm:$0xff]
      %v1058 = vld [vmem:[%s1004 + $0x1a8] sm:$0xff]
      %v1059 = vld [vmem:[%s1004 + $0x1b0] sm:$0xff]
      %v1060 = vld [vmem:[%s1004 + $0x1b8] sm:$0xff]
      %v1061 = vld [vmem:[%s1004 + $0x1c0] sm:$0xff]
      %v1062 = vld [vmem:[%s1004 + $0x1c8] sm:$0xff]
      %v1063 = vld [vmem:[%s1004 + $0x1d0] sm:$0xff]
      %v1064 = vld [vmem:[%s1004 + $0x1d8] sm:$0xff]
      %v1065 = vld [vmem:[%s1004 + $0x1e0] sm:$0xff]
      %v1066 = vld [vmem:[%s1004 + $0x1e8] sm:$0xff]
      %v1067 = vld [vmem:[%s1004 + $0x1f0] sm:$0xff]
      %v1068 = vld [vmem:[%s1004 + $0x1f8] sm:$0xff]
      %1069 = vmatpush.msra.mxu0 %v1020
      %1070 = vmatpush.msra.mxu0 %v1019
      %1071 = vmatpush.msra.mxu0 %v1018
      %1072 = vmatpush.msra.mxu0 %v1017
      %1073 = vmatpush.msra.mxu0 %v1016
      %1074 = vmatpush.msra.mxu0 %v1015
      %1075 = vmatpush.msra.mxu0 %v1014
      %1076 = vmatpush.msra.mxu0 %v1013
      %1077 = vmatpush.msra.mxu0 %v1012
      %1078 = vmatpush.msra.mxu0 %v1011
      %1079 = vmatpush.msra.mxu0 %v1010
      %1080 = vmatpush.msra.mxu0 %v1009
      %1081 = vmatpush.msra.mxu0 %v1008
      %1082 = vmatpush.msra.mxu0 %v1007
      %1083 = vmatpush.msra.mxu0 %v1006
      %1084 = vmatpush.msra.mxu0 %v1005
      %1085 = vmatmul.f32.gmra.mxu0 %v972
      %v1086 = vpop.f32.mrf.mxu0
      %v1087 = vadd.f32 0.0, %v1086
      %1088 = vmatmul.f32.gmra.mxu0 %v976
      %v1089 = vpop.f32.mrf.mxu0
      %v1090 = vadd.f32 0.0, %v1089
      %1091 = vmatmul.f32.gmra.mxu0 %v980
      %v1092 = vpop.f32.mrf.mxu0
      %v1093 = vadd.f32 0.0, %v1092
      %1094 = vmatmul.f32.gmra.mxu0 %v984
      %v1095 = vpop.f32.mrf.mxu0
      %v1096 = vadd.f32 0.0, %v1095
      %1097 = vmatmul.f32.gmra.mxu0 %v988
      %v1098 = vpop.f32.mrf.mxu0
      %v1099 = vadd.f32 0.0, %v1098
      %1100 = vmatmul.f32.gmra.mxu0 %v992
      %v1101 = vpop.f32.mrf.mxu0
      %v1102 = vadd.f32 0.0, %v1101
      %1103 = vmatmul.f32.gmra.mxu0 %v996
      %v1104 = vpop.f32.mrf.mxu0
      %v1105 = vadd.f32 0.0, %v1104
      %1106 = vmatmul.f32.gmra.mxu0 %v1000
      %v1107 = vpop.f32.mrf.mxu0
      %v1108 = vadd.f32 0.0, %v1107
      %1109 = vdwg.mxu0
      %1110 = vmatpush.msra.mxu0 %v1036
      %1111 = vmatpush.msra.mxu0 %v1035
      %1112 = vmatpush.msra.mxu0 %v1034
      %1113 = vmatpush.msra.mxu0 %v1033
      %1114 = vmatpush.msra.mxu0 %v1032
      %1115 = vmatpush.msra.mxu0 %v1031
      %1116 = vmatpush.msra.mxu0 %v1030
      %1117 = vmatpush.msra.mxu0 %v1029
      %1118 = vmatpush.msra.mxu0 %v1028
      %1119 = vmatpush.msra.mxu0 %v1027
      %1120 = vmatpush.msra.mxu0 %v1026
      %1121 = vmatpush.msra.mxu0 %v1025
      %1122 = vmatpush.msra.mxu0 %v1024
      %1123 = vmatpush.msra.mxu0 %v1023
      %1124 = vmatpush.msra.mxu0 %v1022
      %1125 = vmatpush.msra.mxu0 %v1021
      %1126 = vmatmul.f32.gmra.mxu0 %v973
      %v1127 = vpop.f32.mrf.mxu0
      %v1128 = vadd.f32 %v1087, %v1127
      %1129 = vmatmul.f32.gmra.mxu0 %v977
      %v1130 = vpop.f32.mrf.mxu0
      %v1131 = vadd.f32 %v1090, %v1130
      %1132 = vmatmul.f32.gmra.mxu0 %v981
      %v1133 = vpop.f32.mrf.mxu0
      %v1134 = vadd.f32 %v1093, %v1133
      %1135 = vmatmul.f32.gmra.mxu0 %v985
      %v1136 = vpop.f32.mrf.mxu0
      %v1137 = vadd.f32 %v1096, %v1136
      %1138 = vmatmul.f32.gmra.mxu0 %v989
      %v1139 = vpop.f32.mrf.mxu0
      %v1140 = vadd.f32 %v1099, %v1139
      %1141 = vmatmul.f32.gmra.mxu0 %v993
      %v1142 = vpop.f32.mrf.mxu0
      %v1143 = vadd.f32 %v1102, %v1142
      %1144 = vmatmul.f32.gmra.mxu0 %v997
      %v1145 = vpop.f32.mrf.mxu0
      %v1146 = vadd.f32 %v1105, %v1145
      %1147 = vmatmul.f32.gmra.mxu0 %v1001
      %v1148 = vpop.f32.mrf.mxu0
      %v1149 = vadd.f32 %v1108, %v1148
      %1150 = vdwg.mxu0
      %1151 = vmatpush.msra.mxu0 %v1052
      %1152 = vmatpush.msra.mxu0 %v1051
      %1153 = vmatpush.msra.mxu0 %v1050
      %1154 = vmatpush.msra.mxu0 %v1049
      %1155 = vmatpush.msra.mxu0 %v1048
      %1156 = vmatpush.msra.mxu0 %v1047
      %1157 = vmatpush.msra.mxu0 %v1046
      %1158 = vmatpush.msra.mxu0 %v1045
      %1159 = vmatpush.msra.mxu0 %v1044
      %1160 = vmatpush.msra.mxu0 %v1043
      %1161 = vmatpush.msra.mxu0 %v1042
      %1162 = vmatpush.msra.mxu0 %v1041
      %1163 = vmatpush.msra.mxu0 %v1040
      %1164 = vmatpush.msra.mxu0 %v1039
      %1165 = vmatpush.msra.mxu0 %v1038
      %1166 = vmatpush.msra.mxu0 %v1037
      %1167 = vmatmul.f32.gmra.mxu0 %v974
      %v1168 = vpop.f32.mrf.mxu0
      %v1169 = vadd.f32 %v1128, %v1168
      %1170 = vmatmul.f32.gmra.mxu0 %v978
      %v1171 = vpop.f32.mrf.mxu0
      %v1172 = vadd.f32 %v1131, %v1171
      %1173 = vmatmul.f32.gmra.mxu0 %v982
      %v1174 = vpop.f32.mrf.mxu0
      %v1175 = vadd.f32 %v1134, %v1174
      %1176 = vmatmul.f32.gmra.mxu0 %v986
      %v1177 = vpop.f32.mrf.mxu0
      %v1178 = vadd.f32 %v1137, %v1177
      %1179 = vmatmul.f32.gmra.mxu0 %v990
      %v1180 = vpop.f32.mrf.mxu0
      %v1181 = vadd.f32 %v1140, %v1180
      %1182 = vmatmul.f32.gmra.mxu0 %v994
      %v1183 = vpop.f32.mrf.mxu0
      %v1184 = vadd.f32 %v1143, %v1183
      %1185 = vmatmul.f32.gmra.mxu0 %v998
      %v1186 = vpop.f32.mrf.mxu0
      %v1187 = vadd.f32 %v1146, %v1186
      %1188 = vmatmul.f32.gmra.mxu0 %v1002
      %v1189 = vpop.f32.mrf.mxu0
      %v1190 = vadd.f32 %v1149, %v1189
      %1191 = vdwg.mxu0
      %1192 = vmatpush.msra.mxu0 %v1068
      %1193 = vmatpush.msra.mxu0 %v1067
      %1194 = vmatpush.msra.mxu0 %v1066
      %1195 = vmatpush.msra.mxu0 %v1065
      %1196 = vmatpush.msra.mxu0 %v1064
      %1197 = vmatpush.msra.mxu0 %v1063
      %1198 = vmatpush.msra.mxu0 %v1062
      %1199 = vmatpush.msra.mxu0 %v1061
      %1200 = vmatpush.msra.mxu0 %v1060
      %1201 = vmatpush.msra.mxu0 %v1059
      %1202 = vmatpush.msra.mxu0 %v1058
      %1203 = vmatpush.msra.mxu0 %v1057
      %1204 = vmatpush.msra.mxu0 %v1056
      %1205 = vmatpush.msra.mxu0 %v1055
      %1206 = vmatpush.msra.mxu0 %v1054
      %1207 = vmatpush.msra.mxu0 %v1053
      %1208 = vmatmul.f32.gmra.mxu0 %v975
      %v1209 = vpop.f32.mrf.mxu0
      %v1210 = vadd.f32 %v1169, %v1209
      %1211 = vmatmul.f32.gmra.mxu0 %v979
      %v1212 = vpop.f32.mrf.mxu0
      %v1213 = vadd.f32 %v1172, %v1212
      %1214 = vmatmul.f32.gmra.mxu0 %v983
      %v1215 = vpop.f32.mrf.mxu0
      %v1216 = vadd.f32 %v1175, %v1215
      %1217 = vmatmul.f32.gmra.mxu0 %v987
      %v1218 = vpop.f32.mrf.mxu0
      %v1219 = vadd.f32 %v1178, %v1218
      %1220 = vmatmul.f32.gmra.mxu0 %v991
      %v1221 = vpop.f32.mrf.mxu0
      %v1222 = vadd.f32 %v1181, %v1221
      %1223 = vmatmul.f32.gmra.mxu0 %v995
      %v1224 = vpop.f32.mrf.mxu0
      %v1225 = vadd.f32 %v1184, %v1224
      %1226 = vmatmul.f32.gmra.mxu0 %v999
      %v1227 = vpop.f32.mrf.mxu0
      %v1228 = vadd.f32 %v1187, %v1227
      %1229 = vmatmul.f32.gmra.mxu0 %v1003
      %v1230 = vpop.f32.mrf.mxu0
      %v1231 = vadd.f32 %v1190, %v1230
      %1232 = vdwg.mxu0
      %v1233 = vadd.f32 %v948, %v1210
      %v1234 = vadd.f32 %v951, %v1213
      %v1235 = vadd.f32 %v954, %v1216
      %v1236 = vadd.f32 %v957, %v1219
      %v1237 = vadd.f32 %v960, %v1222
      %v1238 = vadd.f32 %v963, %v1225
      %v1239 = vadd.f32 %v966, %v1228
      %v1240 = vadd.f32 %v969, %v1231
      %v1241 = vld [vmem:[%s971] sm:$0xfe]
      %v1242 = vld [vmem:[%s971 + $0x8] sm:$0xfe]
      %v1243 = vld [vmem:[%s971 + $0x10] sm:$0xfe]
      %v1244 = vld [vmem:[%s971 + $0x18] sm:$0xfe]
      %v1245 = vld [vmem:[%s971 + $0x20] sm:$0x1]
      %v1246 = vld [vmem:[%s971 + $0x28] sm:$0x1]
      %v1247 = vld [vmem:[%s971 + $0x30] sm:$0x1]
      %v1248 = vld [vmem:[%s971 + $0x38] sm:$0x1]
      %v1249 = vld [vmem:[%s971 + $0x40] sm:$0xfe]
      %v1250 = vld [vmem:[%s971 + $0x48] sm:$0xfe]
      %v1251 = vld [vmem:[%s971 + $0x50] sm:$0xfe]
      %v1252 = vld [vmem:[%s971 + $0x58] sm:$0xfe]
      %v1253 = vld [vmem:[%s971 + $0x60] sm:$0x1]
      %v1254 = vld [vmem:[%s971 + $0x68] sm:$0x1]
      %v1255 = vld [vmem:[%s971 + $0x70] sm:$0x1]
      %v1256 = vld [vmem:[%s971 + $0x78] sm:$0x1]
      %v1257 = vld [vmem:[%s971 + $0x80] sm:$0xfe]
      %v1258 = vld [vmem:[%s971 + $0x88] sm:$0xfe]
      %v1259 = vld [vmem:[%s971 + $0x90] sm:$0xfe]
      %v1260 = vld [vmem:[%s971 + $0x98] sm:$0xfe]
      %v1261 = vld [vmem:[%s971 + $0xa0] sm:$0x1]
      %v1262 = vld [vmem:[%s971 + $0xa8] sm:$0x1]
      %v1263 = vld [vmem:[%s971 + $0xb0] sm:$0x1]
      %v1264 = vld [vmem:[%s971 + $0xb8] sm:$0x1]
      %v1265 = vld [vmem:[%s971 + $0xc0] sm:$0xfe]
      %v1266 = vld [vmem:[%s971 + $0xc8] sm:$0xfe]
      %v1267 = vld [vmem:[%s971 + $0xd0] sm:$0xfe]
      %v1268 = vld [vmem:[%s971 + $0xd8] sm:$0xfe]
      %v1269 = vld [vmem:[%s971 + $0xe0] sm:$0x1]
      %v1270 = vld [vmem:[%s971 + $0xe8] sm:$0x1]
      %v1271 = vld [vmem:[%s971 + $0xf0] sm:$0x1]
      %v1272 = vld [vmem:[%s971 + $0xf8] sm:$0x1]
      %v1273 = vld [vmem:[%s971 + $0x100] sm:$0xfe]
      %v1274 = vld [vmem:[%s971 + $0x108] sm:$0xfe]
      %v1275 = vld [vmem:[%s971 + $0x110] sm:$0xfe]
      %v1276 = vld [vmem:[%s971 + $0x118] sm:$0xfe]
      %v1277 = vld [vmem:[%s971 + $0x120] sm:$0x1]
      %v1278 = vld [vmem:[%s971 + $0x128] sm:$0x1]
      %v1279 = vld [vmem:[%s971 + $0x130] sm:$0x1]
      %v1280 = vld [vmem:[%s971 + $0x138] sm:$0x1]
      %v1281 = vld [vmem:[%s971 + $0x140] sm:$0xfe]
      %v1282 = vld [vmem:[%s971 + $0x148] sm:$0xfe]
      %v1283 = vld [vmem:[%s971 + $0x150] sm:$0xfe]
      %v1284 = vld [vmem:[%s971 + $0x158] sm:$0xfe]
      %v1285 = vld [vmem:[%s971 + $0x160] sm:$0x1]
      %v1286 = vld [vmem:[%s971 + $0x168] sm:$0x1]
      %v1287 = vld [vmem:[%s971 + $0x170] sm:$0x1]
      %v1288 = vld [vmem:[%s971 + $0x178] sm:$0x1]
      %v1289 = vld [vmem:[%s971 + $0x180] sm:$0xfe]
      %v1290 = vld [vmem:[%s971 + $0x188] sm:$0xfe]
      %v1291 = vld [vmem:[%s971 + $0x190] sm:$0xfe]
      %v1292 = vld [vmem:[%s971 + $0x198] sm:$0xfe]
      %v1293 = vld [vmem:[%s971 + $0x1a0] sm:$0x1]
      %v1294 = vld [vmem:[%s971 + $0x1a8] sm:$0x1]
      %v1295 = vld [vmem:[%s971 + $0x1b0] sm:$0x1]
      %v1296 = vld [vmem:[%s971 + $0x1b8] sm:$0x1]
      %v1297 = vld [vmem:[%s971 + $0x1c0] sm:$0xfe]
      %v1298 = vld [vmem:[%s971 + $0x1c8] sm:$0xfe]
      %v1299 = vld [vmem:[%s971 + $0x1d0] sm:$0xfe]
      %v1300 = vld [vmem:[%s971 + $0x1d8] sm:$0xfe]
      %v1301 = vld [vmem:[%s971 + $0x1e0] sm:$0x1]
      %v1302 = vld [vmem:[%s971 + $0x1e8] sm:$0x1]
      %v1303 = vld [vmem:[%s971 + $0x1f0] sm:$0x1]
      %v1304 = vld [vmem:[%s971 + $0x1f8] sm:$0x1]
      %v1369 = vrot.slane %v1241, 1
      %v1370 = vrot.slane %v1245, 1
      %v1371 = vsel %vm449, %v1369, %v1370
      %v1372 = vrot.slane %v1242, 1
      %v1373 = vrot.slane %v1246, 1
      %v1374 = vsel %vm449, %v1372, %v1373
      %v1375 = vrot.slane %v1243, 1
      %v1376 = vrot.slane %v1247, 1
      %v1377 = vsel %vm449, %v1375, %v1376
      %v1378 = vrot.slane %v1244, 1
      %v1379 = vrot.slane %v1248, 1
      %v1380 = vsel %vm449, %v1378, %v1379
      %v1381 = vrot.slane %v1249, 1
      %v1382 = vrot.slane %v1253, 1
      %v1383 = vsel %vm449, %v1381, %v1382
      %v1384 = vrot.slane %v1250, 1
      %v1385 = vrot.slane %v1254, 1
      %v1386 = vsel %vm449, %v1384, %v1385
      %v1387 = vrot.slane %v1251, 1
      %v1388 = vrot.slane %v1255, 1
      %v1389 = vsel %vm449, %v1387, %v1388
      %v1390 = vrot.slane %v1252, 1
      %v1391 = vrot.slane %v1256, 1
      %v1392 = vsel %vm449, %v1390, %v1391
      %v1393 = vrot.slane %v1257, 1
      %v1394 = vrot.slane %v1261, 1
      %v1395 = vsel %vm449, %v1393, %v1394
      %v1396 = vrot.slane %v1258, 1
      %v1397 = vrot.slane %v1262, 1
      %v1398 = vsel %vm449, %v1396, %v1397
      %v1399 = vrot.slane %v1259, 1
      %v1400 = vrot.slane %v1263, 1
      %v1401 = vsel %vm449, %v1399, %v1400
      %v1402 = vrot.slane %v1260, 1
      %v1403 = vrot.slane %v1264, 1
      %v1404 = vsel %vm449, %v1402, %v1403
      %v1405 = vrot.slane %v1265, 1
      %v1406 = vrot.slane %v1269, 1
      %v1407 = vsel %vm449, %v1405, %v1406
      %v1408 = vrot.slane %v1266, 1
      %v1409 = vrot.slane %v1270, 1
      %v1410 = vsel %vm449, %v1408, %v1409
      %v1411 = vrot.slane %v1267, 1
      %v1412 = vrot.slane %v1271, 1
      %v1413 = vsel %vm449, %v1411, %v1412
      %v1414 = vrot.slane %v1268, 1
      %v1415 = vrot.slane %v1272, 1
      %v1416 = vsel %vm449, %v1414, %v1415
      %v1417 = vrot.slane %v1273, 1
      %v1418 = vrot.slane %v1277, 1
      %v1419 = vsel %vm449, %v1417, %v1418
      %v1420 = vrot.slane %v1274, 1
      %v1421 = vrot.slane %v1278, 1
      %v1422 = vsel %vm449, %v1420, %v1421
      %v1423 = vrot.slane %v1275, 1
      %v1424 = vrot.slane %v1279, 1
      %v1425 = vsel %vm449, %v1423, %v1424
      %v1426 = vrot.slane %v1276, 1
      %v1427 = vrot.slane %v1280, 1
      %v1428 = vsel %vm449, %v1426, %v1427
      %v1429 = vrot.slane %v1281, 1
      %v1430 = vrot.slane %v1285, 1
      %v1431 = vsel %vm449, %v1429, %v1430
      %v1432 = vrot.slane %v1282, 1
      %v1433 = vrot.slane %v1286, 1
      %v1434 = vsel %vm449, %v1432, %v1433
      %v1435 = vrot.slane %v1283, 1
      %v1436 = vrot.slane %v1287, 1
      %v1437 = vsel %vm449, %v1435, %v1436
      %v1438 = vrot.slane %v1284, 1
      %v1439 = vrot.slane %v1288, 1
      %v1440 = vsel %vm449, %v1438, %v1439
      %v1441 = vrot.slane %v1289, 1
      %v1442 = vrot.slane %v1293, 1
      %v1443 = vsel %vm449, %v1441, %v1442
      %v1444 = vrot.slane %v1290, 1
      %v1445 = vrot.slane %v1294, 1
      %v1446 = vsel %vm449, %v1444, %v1445
      %v1447 = vrot.slane %v1291, 1
      %v1448 = vrot.slane %v1295, 1
      %v1449 = vsel %vm449, %v1447, %v1448
      %v1450 = vrot.slane %v1292, 1
      %v1451 = vrot.slane %v1296, 1
      %v1452 = vsel %vm449, %v1450, %v1451
      %v1453 = vrot.slane %v1297, 1
      %v1454 = vrot.slane %v1301, 1
      %v1455 = vsel %vm449, %v1453, %v1454
      %v1456 = vrot.slane %v1298, 1
      %v1457 = vrot.slane %v1302, 1
      %v1458 = vsel %vm449, %v1456, %v1457
      %v1459 = vrot.slane %v1299, 1
      %v1460 = vrot.slane %v1303, 1
      %v1461 = vsel %vm449, %v1459, %v1460
      %v1462 = vrot.slane %v1300, 1
      %v1463 = vrot.slane %v1304, 1
      %v1464 = vsel %vm449, %v1462, %v1463
      %s1497 = scalar_lea.vmem %s1, 1536
      %v1498 = vld [vmem:[%s1497] sm:$0xff]
      %v1499 = vld [vmem:[%s1497 + $0x8] sm:$0xff]
      %v1500 = vld [vmem:[%s1497 + $0x10] sm:$0xff]
      %v1501 = vld [vmem:[%s1497 + $0x18] sm:$0xff]
      %v1502 = vld [vmem:[%s1497 + $0x20] sm:$0xff]
      %v1503 = vld [vmem:[%s1497 + $0x28] sm:$0xff]
      %v1504 = vld [vmem:[%s1497 + $0x30] sm:$0xff]
      %v1505 = vld [vmem:[%s1497 + $0x38] sm:$0xff]
      %v1506 = vld [vmem:[%s1497 + $0x40] sm:$0xff]
      %v1507 = vld [vmem:[%s1497 + $0x48] sm:$0xff]
      %v1508 = vld [vmem:[%s1497 + $0x50] sm:$0xff]
      %v1509 = vld [vmem:[%s1497 + $0x58] sm:$0xff]
      %v1510 = vld [vmem:[%s1497 + $0x60] sm:$0xff]
      %v1511 = vld [vmem:[%s1497 + $0x68] sm:$0xff]
      %v1512 = vld [vmem:[%s1497 + $0x70] sm:$0xff]
      %v1513 = vld [vmem:[%s1497 + $0x78] sm:$0xff]
      %v1514 = vld [vmem:[%s1497 + $0x80] sm:$0xff]
      %v1515 = vld [vmem:[%s1497 + $0x88] sm:$0xff]
      %v1516 = vld [vmem:[%s1497 + $0x90] sm:$0xff]
      %v1517 = vld [vmem:[%s1497 + $0x98] sm:$0xff]
      %v1518 = vld [vmem:[%s1497 + $0xa0] sm:$0xff]
      %v1519 = vld [vmem:[%s1497 + $0xa8] sm:$0xff]
      %v1520 = vld [vmem:[%s1497 + $0xb0] sm:$0xff]
      %v1521 = vld [vmem:[%s1497 + $0xb8] sm:$0xff]
      %v1522 = vld [vmem:[%s1497 + $0xc0] sm:$0xff]
      %v1523 = vld [vmem:[%s1497 + $0xc8] sm:$0xff]
      %v1524 = vld [vmem:[%s1497 + $0xd0] sm:$0xff]
      %v1525 = vld [vmem:[%s1497 + $0xd8] sm:$0xff]
      %v1526 = vld [vmem:[%s1497 + $0xe0] sm:$0xff]
      %v1527 = vld [vmem:[%s1497 + $0xe8] sm:$0xff]
      %v1528 = vld [vmem:[%s1497 + $0xf0] sm:$0xff]
      %v1529 = vld [vmem:[%s1497 + $0xf8] sm:$0xff]
      %v1530 = vld [vmem:[%s1497 + $0x100] sm:$0xff]
      %v1531 = vld [vmem:[%s1497 + $0x108] sm:$0xff]
      %v1532 = vld [vmem:[%s1497 + $0x110] sm:$0xff]
      %v1533 = vld [vmem:[%s1497 + $0x118] sm:$0xff]
      %v1534 = vld [vmem:[%s1497 + $0x120] sm:$0xff]
      %v1535 = vld [vmem:[%s1497 + $0x128] sm:$0xff]
      %v1536 = vld [vmem:[%s1497 + $0x130] sm:$0xff]
      %v1537 = vld [vmem:[%s1497 + $0x138] sm:$0xff]
      %v1538 = vld [vmem:[%s1497 + $0x140] sm:$0xff]
      %v1539 = vld [vmem:[%s1497 + $0x148] sm:$0xff]
      %v1540 = vld [vmem:[%s1497 + $0x150] sm:$0xff]
      %v1541 = vld [vmem:[%s1497 + $0x158] sm:$0xff]
      %v1542 = vld [vmem:[%s1497 + $0x160] sm:$0xff]
      %v1543 = vld [vmem:[%s1497 + $0x168] sm:$0xff]
      %v1544 = vld [vmem:[%s1497 + $0x170] sm:$0xff]
      %v1545 = vld [vmem:[%s1497 + $0x178] sm:$0xff]
      %v1546 = vld [vmem:[%s1497 + $0x180] sm:$0xff]
      %v1547 = vld [vmem:[%s1497 + $0x188] sm:$0xff]
      %v1548 = vld [vmem:[%s1497 + $0x190] sm:$0xff]
      %v1549 = vld [vmem:[%s1497 + $0x198] sm:$0xff]
      %v1550 = vld [vmem:[%s1497 + $0x1a0] sm:$0xff]
      %v1551 = vld [vmem:[%s1497 + $0x1a8] sm:$0xff]
      %v1552 = vld [vmem:[%s1497 + $0x1b0] sm:$0xff]
      %v1553 = vld [vmem:[%s1497 + $0x1b8] sm:$0xff]
      %v1554 = vld [vmem:[%s1497 + $0x1c0] sm:$0xff]
      %v1555 = vld [vmem:[%s1497 + $0x1c8] sm:$0xff]
      %v1556 = vld [vmem:[%s1497 + $0x1d0] sm:$0xff]
      %v1557 = vld [vmem:[%s1497 + $0x1d8] sm:$0xff]
      %v1558 = vld [vmem:[%s1497 + $0x1e0] sm:$0xff]
      %v1559 = vld [vmem:[%s1497 + $0x1e8] sm:$0xff]
      %v1560 = vld [vmem:[%s1497 + $0x1f0] sm:$0xff]
      %v1561 = vld [vmem:[%s1497 + $0x1f8] sm:$0xff]
      %1562 = vmatpush.msra.mxu0 %v1513
      %1563 = vmatpush.msra.mxu0 %v1512
      %1564 = vmatpush.msra.mxu0 %v1511
      %1565 = vmatpush.msra.mxu0 %v1510
      %1566 = vmatpush.msra.mxu0 %v1509
      %1567 = vmatpush.msra.mxu0 %v1508
      %1568 = vmatpush.msra.mxu0 %v1507
      %1569 = vmatpush.msra.mxu0 %v1506
      %1570 = vmatpush.msra.mxu0 %v1505
      %1571 = vmatpush.msra.mxu0 %v1504
      %1572 = vmatpush.msra.mxu0 %v1503
      %1573 = vmatpush.msra.mxu0 %v1502
      %1574 = vmatpush.msra.mxu0 %v1501
      %1575 = vmatpush.msra.mxu0 %v1500
      %1576 = vmatpush.msra.mxu0 %v1499
      %1577 = vmatpush.msra.mxu0 %v1498
      %1578 = vmatmul.f32.gmra.mxu0 %v1371
      %v1579 = vpop.f32.mrf.mxu0
      %v1580 = vadd.f32 0.0, %v1579
      %1581 = vmatmul.f32.gmra.mxu0 %v1383
      %v1582 = vpop.f32.mrf.mxu0
      %v1583 = vadd.f32 0.0, %v1582
      %1584 = vmatmul.f32.gmra.mxu0 %v1395
      %v1585 = vpop.f32.mrf.mxu0
      %v1586 = vadd.f32 0.0, %v1585
      %1587 = vmatmul.f32.gmra.mxu0 %v1407
      %v1588 = vpop.f32.mrf.mxu0
      %v1589 = vadd.f32 0.0, %v1588
      %1590 = vmatmul.f32.gmra.mxu0 %v1419
      %v1591 = vpop.f32.mrf.mxu0
      %v1592 = vadd.f32 0.0, %v1591
      %1593 = vmatmul.f32.gmra.mxu0 %v1431
      %v1594 = vpop.f32.mrf.mxu0
      %v1595 = vadd.f32 0.0, %v1594
      %1596 = vmatmul.f32.gmra.mxu0 %v1443
      %v1597 = vpop.f32.mrf.mxu0
      %v1598 = vadd.f32 0.0, %v1597
      %1599 = vmatmul.f32.gmra.mxu0 %v1455
      %v1600 = vpop.f32.mrf.mxu0
      %v1601 = vadd.f32 0.0, %v1600
      %1602 = vdwg.mxu0
      %1603 = vmatpush.msra.mxu0 %v1529
      %1604 = vmatpush.msra.mxu0 %v1528
      %1605 = vmatpush.msra.mxu0 %v1527
      %1606 = vmatpush.msra.mxu0 %v1526
      %1607 = vmatpush.msra.mxu0 %v1525
      %1608 = vmatpush.msra.mxu0 %v1524
      %1609 = vmatpush.msra.mxu0 %v1523
      %1610 = vmatpush.msra.mxu0 %v1522
      %1611 = vmatpush.msra.mxu0 %v1521
      %1612 = vmatpush.msra.mxu0 %v1520
      %1613 = vmatpush.msra.mxu0 %v1519
      %1614 = vmatpush.msra.mxu0 %v1518
      %1615 = vmatpush.msra.mxu0 %v1517
      %1616 = vmatpush.msra.mxu0 %v1516
      %1617 = vmatpush.msra.mxu0 %v1515
      %1618 = vmatpush.msra.mxu0 %v1514
      %1619 = vmatmul.f32.gmra.mxu0 %v1374
      %v1620 = vpop.f32.mrf.mxu0
      %v1621 = vadd.f32 %v1580, %v1620
      %1622 = vmatmul.f32.gmra.mxu0 %v1386
      %v1623 = vpop.f32.mrf.mxu0
      %v1624 = vadd.f32 %v1583, %v1623
      %1625 = vmatmul.f32.gmra.mxu0 %v1398
      %v1626 = vpop.f32.mrf.mxu0
      %v1627 = vadd.f32 %v1586, %v1626
      %1628 = vmatmul.f32.gmra.mxu0 %v1410
      %v1629 = vpop.f32.mrf.mxu0
      %v1630 = vadd.f32 %v1589, %v1629
      %1631 = vmatmul.f32.gmra.mxu0 %v1422
      %v1632 = vpop.f32.mrf.mxu0
      %v1633 = vadd.f32 %v1592, %v1632
      %1634 = vmatmul.f32.gmra.mxu0 %v1434
      %v1635 = vpop.f32.mrf.mxu0
      %v1636 = vadd.f32 %v1595, %v1635
      %1637 = vmatmul.f32.gmra.mxu0 %v1446
      %v1638 = vpop.f32.mrf.mxu0
      %v1639 = vadd.f32 %v1598, %v1638
      %1640 = vmatmul.f32.gmra.mxu0 %v1458
      %v1641 = vpop.f32.mrf.mxu0
      %v1642 = vadd.f32 %v1601, %v1641
      %1643 = vdwg.mxu0
      %1644 = vmatpush.msra.mxu0 %v1545
      %1645 = vmatpush.msra.mxu0 %v1544
      %1646 = vmatpush.msra.mxu0 %v1543
      %1647 = vmatpush.msra.mxu0 %v1542
      %1648 = vmatpush.msra.mxu0 %v1541
      %1649 = vmatpush.msra.mxu0 %v1540
      %1650 = vmatpush.msra.mxu0 %v1539
      %1651 = vmatpush.msra.mxu0 %v1538
      %1652 = vmatpush.msra.mxu0 %v1537
      %1653 = vmatpush.msra.mxu0 %v1536
      %1654 = vmatpush.msra.mxu0 %v1535
      %1655 = vmatpush.msra.mxu0 %v1534
      %1656 = vmatpush.msra.mxu0 %v1533
      %1657 = vmatpush.msra.mxu0 %v1532
      %1658 = vmatpush.msra.mxu0 %v1531
      %1659 = vmatpush.msra.mxu0 %v1530
      %1660 = vmatmul.f32.gmra.mxu0 %v1377
      %v1661 = vpop.f32.mrf.mxu0
      %v1662 = vadd.f32 %v1621, %v1661
      %1663 = vmatmul.f32.gmra.mxu0 %v1389
      %v1664 = vpop.f32.mrf.mxu0
      %v1665 = vadd.f32 %v1624, %v1664
      %1666 = vmatmul.f32.gmra.mxu0 %v1401
      %v1667 = vpop.f32.mrf.mxu0
      %v1668 = vadd.f32 %v1627, %v1667
      %1669 = vmatmul.f32.gmra.mxu0 %v1413
      %v1670 = vpop.f32.mrf.mxu0
      %v1671 = vadd.f32 %v1630, %v1670
      %1672 = vmatmul.f32.gmra.mxu0 %v1425
      %v1673 = vpop.f32.mrf.mxu0
      %v1674 = vadd.f32 %v1633, %v1673
      %1675 = vmatmul.f32.gmra.mxu0 %v1437
      %v1676 = vpop.f32.mrf.mxu0
      %v1677 = vadd.f32 %v1636, %v1676
      %1678 = vmatmul.f32.gmra.mxu0 %v1449
      %v1679 = vpop.f32.mrf.mxu0
      %v1680 = vadd.f32 %v1639, %v1679
      %1681 = vmatmul.f32.gmra.mxu0 %v1461
      %v1682 = vpop.f32.mrf.mxu0
      %v1683 = vadd.f32 %v1642, %v1682
      %1684 = vdwg.mxu0
      %1685 = vmatpush.msra.mxu0 %v1561
      %1686 = vmatpush.msra.mxu0 %v1560
      %1687 = vmatpush.msra.mxu0 %v1559
      %1688 = vmatpush.msra.mxu0 %v1558
      %1689 = vmatpush.msra.mxu0 %v1557
      %1690 = vmatpush.msra.mxu0 %v1556
      %1691 = vmatpush.msra.mxu0 %v1555
      %1692 = vmatpush.msra.mxu0 %v1554
      %1693 = vmatpush.msra.mxu0 %v1553
      %1694 = vmatpush.msra.mxu0 %v1552
      %1695 = vmatpush.msra.mxu0 %v1551
      %1696 = vmatpush.msra.mxu0 %v1550
      %1697 = vmatpush.msra.mxu0 %v1549
      %1698 = vmatpush.msra.mxu0 %v1548
      %1699 = vmatpush.msra.mxu0 %v1547
      %1700 = vmatpush.msra.mxu0 %v1546
      %1701 = vmatmul.f32.gmra.mxu0 %v1380
      %v1702 = vpop.f32.mrf.mxu0
      %v1703 = vadd.f32 %v1662, %v1702
      %1704 = vmatmul.f32.gmra.mxu0 %v1392
      %v1705 = vpop.f32.mrf.mxu0
      %v1706 = vadd.f32 %v1665, %v1705
      %1707 = vmatmul.f32.gmra.mxu0 %v1404
      %v1708 = vpop.f32.mrf.mxu0
      %v1709 = vadd.f32 %v1668, %v1708
      %1710 = vmatmul.f32.gmra.mxu0 %v1416
      %v1711 = vpop.f32.mrf.mxu0
      %v1712 = vadd.f32 %v1671, %v1711
      %1713 = vmatmul.f32.gmra.mxu0 %v1428
      %v1714 = vpop.f32.mrf.mxu0
      %v1715 = vadd.f32 %v1674, %v1714
      %1716 = vmatmul.f32.gmra.mxu0 %v1440
      %v1717 = vpop.f32.mrf.mxu0
      %v1718 = vadd.f32 %v1677, %v1717
      %1719 = vmatmul.f32.gmra.mxu0 %v1452
      %v1720 = vpop.f32.mrf.mxu0
      %v1721 = vadd.f32 %v1680, %v1720
      %1722 = vmatmul.f32.gmra.mxu0 %v1464
      %v1723 = vpop.f32.mrf.mxu0
      %v1724 = vadd.f32 %v1683, %v1723
      %1725 = vdwg.mxu0
      %v1726 = vadd.f32 %v1233, %v1703
      %v1727 = vadd.f32 %v1234, %v1706
      %v1728 = vadd.f32 %v1235, %v1709
      %v1729 = vadd.f32 %v1236, %v1712
      %v1730 = vadd.f32 %v1237, %v1715
      %v1731 = vadd.f32 %v1238, %v1718
      %v1732 = vadd.f32 %v1239, %v1721
      %v1733 = vadd.f32 %v1240, %v1724
      %v1734 = vld [vmem:[%s2] sm:$0x1]
      %v1736 = vperm.slane %v1734, 0
      %v1738 = vadd.f32 %v1726, %v1736
      %v1739 = vadd.f32 %v1727, %v1736
      %v1740 = vadd.f32 %v1728, %v1736
      %v1741 = vadd.f32 %v1729, %v1736
      %v1742 = vadd.f32 %v1730, %v1736
      %v1743 = vadd.f32 %v1731, %v1736
      %v1744 = vadd.f32 %v1732, %v1736
      %v1745 = vadd.f32 %v1733, %v1736
      %vm1746 = vcmp.ge.f32.partialorder %v1738, 0.0
      %vm1747 = vcmp.ge.f32.partialorder %v1739, 0.0
      %vm1748 = vcmp.ge.f32.partialorder %v1740, 0.0
      %vm1749 = vcmp.ge.f32.partialorder %v1741, 0.0
      %vm1750 = vcmp.ge.f32.partialorder %v1742, 0.0
      %vm1751 = vcmp.ge.f32.partialorder %v1743, 0.0
      %vm1752 = vcmp.ge.f32.partialorder %v1744, 0.0
      %vm1753 = vcmp.ge.f32.partialorder %v1745, 0.0
      %v1754 = vmul.f32 %v1738, 0.01
      %v1755 = vmul.f32 %v1739, 0.01
      %v1756 = vmul.f32 %v1740, 0.01
      %v1757 = vmul.f32 %v1741, 0.01
      %v1758 = vmul.f32 %v1742, 0.01
      %v1759 = vmul.f32 %v1743, 0.01
      %v1760 = vmul.f32 %v1744, 0.01
      %v1761 = vmul.f32 %v1745, 0.01
      %v1762 = vsel %vm1746, %v1738, %v1754
      %v1763 = vsel %vm1747, %v1739, %v1755
      %v1764 = vsel %vm1748, %v1740, %v1756
      %v1765 = vsel %vm1749, %v1741, %v1757
      %v1766 = vsel %vm1750, %v1742, %v1758
      %v1767 = vsel %vm1751, %v1743, %v1759
      %v1768 = vsel %vm1752, %v1744, %v1760
      %v1769 = vsel %vm1753, %v1745, %v1761
      %v1770 = vld [vmem:[%s3] sm:$0x1]
      %v1772 = vperm.slane %v1770, 0
      %v1774 = vmul.f32 %v1762, %v1772
      %v1775 = vmul.f32 %v1763, %v1772
      %v1776 = vmul.f32 %v1764, %v1772
      %v1777 = vmul.f32 %v1765, %v1772
      %v1778 = vmul.f32 %v1766, %v1772
      %v1779 = vmul.f32 %v1767, %v1772
      %v1780 = vmul.f32 %v1768, %v1772
      %v1781 = vmul.f32 %v1769, %v1772
      %v1782 = vld [vmem:[%s4] sm:$0x1]
      %v1784 = vperm.slane %v1782, 0
      %v1786 = vadd.f32 %v1774, %v1784
      %v1787 = vadd.f32 %v1775, %v1784
      %v1788 = vadd.f32 %v1776, %v1784
      %v1789 = vadd.f32 %v1777, %v1784
      %v1790 = vadd.f32 %v1778, %v1784
      %v1791 = vadd.f32 %v1779, %v1784
      %v1792 = vadd.f32 %v1780, %v1784
      %v1793 = vadd.f32 %v1781, %v1784
      %1794 = vst [vmem:[%s224] sm:$0xff] %v1786
      %1795 = vst [vmem:[%s224 + $0x8] sm:$0xff] %v1787
      %1796 = vst [vmem:[%s224 + $0x10] sm:$0xff] %v1788
      %1797 = vst [vmem:[%s224 + $0x18] sm:$0xff] %v1789
      %1798 = vst [vmem:[%s224 + $0x20] sm:$0xff] %v1790
      %1799 = vst [vmem:[%s224 + $0x28] sm:$0xff] %v1791
      %1800 = vst [vmem:[%s224 + $0x30] sm:$0xff] %v1792
      %1801 = vst [vmem:[%s224 + $0x38] sm:$0xff] %v1793
      %p1802 = scmp.lt.s32.totalorder %s16, 1
      %s1803 = scalar_select %p1802, %s16, 1
      %s1804 = smul.addr %s1803, 8
      %s1805 = smul.addr %s1804, 8
      %s1806 = scalar_lea.vmem %s5, %s1805
      // Predicated region
      $region41: #{encoder_forward.5} parent=39 // pred_check
        %p1807 = pneg %p144
      $region42: #{encoder_forward.5} parent=39 // pred_check_branch
        %1809 = sbr.rel (%p1807) target = $region44
      $region43: #{encoder_forward.5} parent=39 // pred_region
        _
      $region44: #{encoder_forward.5} parent=39 // pred_fallthru
        _
    $region40: #{encoder_forward.5} parent=5 // pred_fallthru
      _
    %p1810 = scmp.le.s32.totalorder 2, %s11
    // Predicated region
    $region45: #{encoder_forward.5} parent=5 // pred_check
      %p1811 = pneg %p1810
    $region46: #{encoder_forward.5} parent=5 // pred_check_branch
      %1813 = sbr.rel (%p1811) target = $region48
    $region47: #{encoder_forward.5} parent=5 // pred_region
      %s1814 = ssub.s32 %s11, 2
      // Predicated region
      $region49: #{encoder_forward.5} parent=47 // pred_check
        %p1815 = pneg %p150
      $region50: #{encoder_forward.5} parent=47 // pred_check_branch
        %1817 = sbr.rel (%p1815) target = $region52
      $region51: #{encoder_forward.5} parent=47 // pred_region
        %p1818 = scmp.lt.s32.totalorder %s17, 1
        %s1819 = scalar_select %p1818, %s17, 1
        %s1820 = smul.addr %s1819, 8
        %s1821 = smul.addr %s1820, 8
        %s1822 = scalar_lea.vmem %s5, %s1821
      $region52: #{encoder_forward.5} parent=47 // pred_fallthru
        _
    $region48: #{encoder_forward.5} parent=5 // pred_fallthru
      _
  $region6: #{encoder_forward.5} parent=0 // loop_footer
    %s15 = sadd.s32 1, %s11
  $region7: #{encoder_forward.5} parent=0 // loop_footer_branch
    %10 = sbr.rel target = $region3
  $region8: #{encoder_forward.5} parent=0 // loop_exit
    _

// kernel: encoder_forward.6
$region0: #{encoder_forward.6}
  #allocation0 [shape = 'u32[]', space=smem, size = 0x4, offset = 0x4, fixed_abs, tag = 'smem constant byte address 0x4 - core index']
  #allocation1 [shape = 'u32[72,128]{1,0:T(1,128)}', space=vmem, size = 0x9000, scoped, tag = 'internal scratch']
  %s0 = inlined_call_operand.vmem [shape: f32[2,5,5,512], index: 0, kind: input, shape index: {}]
  %s1 = inlined_call_operand.vmem [shape: f32[4,512,128], index: 1, kind: input, shape index: {}]
  %s2 = inlined_call_operand.vmem [shape: f32[1,128], index: 2, kind: input, shape index: {}]
  %s3 = inlined_call_operand.vmem [shape: f32[1,128], index: 3, kind: input, shape index: {}]
  %s4 = inlined_call_operand.vmem [shape: f32[1,128], index: 4, kind: input, shape index: {}]
  %s5 = inlined_call_operand.vmem [shape: f32[2,16,128], index: 5, kind: output, shape index: {}]
  %s6 = sld [smem:[#allocation0]]
  $region53: #{encoder_forward.6} parent=0
    _
  %s8 = ssub.s32 1, %s6
  %s9 = scalar_select 0, %s8, %s6
  loop: start=0, step=1, limit=4
  $region2: #{encoder_forward.6} parent=0 // loop_pre_header
    _
  $region3: #{encoder_forward.6} parent=0 // loop_header
    %s11 = sphi 0, %s15
    %p12 = scmp.ge.s32.totalorder %s11, 4
    %s21 = sphi 0, %s23
    %s24 = sphi 0, %s21
    %s25 = sphi 0, %s24
    %s41 = sphi 0, %s25
    %s45 = sphi 0, %s45
    %s47 = sphi 0, %s45
    %s48 = sphi 0, %s47
    %s62 = sphi 0, %s48
    %s66 = sphi 0, %s66
    %s68 = sphi 0, %s66
    %s69 = sphi 0, %s68
    %s83 = sphi 0, %s69
    %s87 = sphi 0, %s87
    %s89 = sphi 0, %s87
    %s90 = sphi 0, %s89
    %s104 = sphi 0, %s90
    %s108 = sphi 0, %s108
    %s110 = sphi 0, %s108
    %s111 = sphi 0, %s110
    %s125 = sphi 0, %s111
    %s131 = sphi 0, %s133
    %s134 = sphi 0, %s131
    %s135 = sphi 0, %s134
    %s151 = sphi 0, %s135
  $region4: #{encoder_forward.6} parent=0 // loop_header_branch
    %14 = sbr.rel (%p12) target = $region8
  $region5: #{encoder_forward.6} parent=0 // loop_body
    %s16 = ssub.s32 %s11, 1
    %s17 = ssub.s32 %s11, 2
    %s18 = sadd.s32 %s11, 1
    %s19 = ssub.s32 %s11, %s18
    %p20 = scmp.eq.s32.totalorder %s19, 0
    %s22 = sadd.s32 %s21, 1
    %s23 = scalar_select %p20, %s21, %s22
    %p26 = pneg %p20
    %p27 = scmp.eq.s32.totalorder %s11, 1
    %p28 = por %p26, %p27
    %p29 = scmp.ne.s32.totalorder %s21, %s24
    %p30 = scmp.eq.s32.totalorder %s11, 0
    %p31 = por %p29, %p30
    %p32 = scmp.ne.s32.totalorder %s21, %s24
    %p33 = scmp.eq.s32.totalorder %s16, 1
    %p34 = por %p32, %p33
    %p35 = scmp.ne.s32.totalorder %s24, %s25
    %p36 = scmp.eq.s32.totalorder %s16, 0
    %p37 = por %p35, %p36
    %p38 = scmp.ne.s32.totalorder %s24, %s25
    %p39 = scmp.eq.s32.totalorder %s17, 1
    %p40 = por %p38, %p39
    %p42 = scmp.ne.s32.totalorder %s25, %s41
    %p43 = scmp.eq.s32.totalorder %s17, 0
    %p44 = por %p42, %p43
    %s46 = sadd.s32 %s45, 1
    %p49 = scmp.eq.s32.totalorder %s11, 1
    %p50 = scmp.ne.s32.totalorder %s45, %s47
    %p51 = scmp.eq.s32.totalorder %s11, 0
    %p52 = por %p50, %p51
    %p53 = scmp.ne.s32.totalorder %s45, %s47
    %p54 = scmp.eq.s32.totalorder %s16, 1
    %p55 = por %p53, %p54
    %p56 = scmp.ne.s32.totalorder %s47, %s48
    %p57 = scmp.eq.s32.totalorder %s16, 0
    %p58 = por %p56, %p57
    %p59 = scmp.ne.s32.totalorder %s47, %s48
    %p60 = scmp.eq.s32.totalorder %s17, 1
    %p61 = por %p59, %p60
    %p63 = scmp.ne.s32.totalorder %s48, %s62
    %p64 = scmp.eq.s32.totalorder %s17, 0
    %p65 = por %p63, %p64
    %s67 = sadd.s32 %s66, 1
    %p70 = scmp.eq.s32.totalorder %s11, 1
    %p71 = scmp.ne.s32.totalorder %s66, %s68
    %p72 = scmp.eq.s32.totalorder %s11, 0
    %p73 = por %p71, %p72
    %p74 = scmp.ne.s32.totalorder %s66, %s68
    %p75 = scmp.eq.s32.totalorder %s16, 1
    %p76 = por %p74, %p75
    %p77 = scmp.ne.s32.totalorder %s68, %s69
    %p78 = scmp.eq.s32.totalorder %s16, 0
    %p79 = por %p77, %p78
    %p80 = scmp.ne.s32.totalorder %s68, %s69
    %p81 = scmp.eq.s32.totalorder %s17, 1
    %p82 = por %p80, %p81
    %p84 = scmp.ne.s32.totalorder %s69, %s83
    %p85 = scmp.eq.s32.totalorder %s17, 0
    %p86 = por %p84, %p85
    %s88 = sadd.s32 %s87, 1
    %p91 = scmp.eq.s32.totalorder %s11, 1
    %p92 = scmp.ne.s32.totalorder %s87, %s89
    %p93 = scmp.eq.s32.totalorder %s11, 0
    %p94 = por %p92, %p93
    %p95 = scmp.ne.s32.totalorder %s87, %s89
    %p96 = scmp.eq.s32.totalorder %s16, 1
    %p97 = por %p95, %p96
    %p98 = scmp.ne.s32.totalorder %s89, %s90
    %p99 = scmp.eq.s32.totalorder %s16, 0
    %p100 = por %p98, %p99
    %p101 = scmp.ne.s32.totalorder %s89, %s90
    %p102 = scmp.eq.s32.totalorder %s17, 1
    %p103 = por %p101, %p102
    %p105 = scmp.ne.s32.totalorder %s90, %s104
    %p106 = scmp.eq.s32.totalorder %s17, 0
    %p107 = por %p105, %p106
    %s109 = sadd.s32 %s108, 1
    %p112 = scmp.eq.s32.totalorder %s11, 1
    %p113 = scmp.ne.s32.totalorder %s108, %s110
    %p114 = scmp.eq.s32.totalorder %s11, 0
    %p115 = por %p113, %p114
    %p116 = scmp.ne.s32.totalorder %s108, %s110
    %p117 = scmp.eq.s32.totalorder %s16, 1
    %p118 = por %p116, %p117
    %p119 = scmp.ne.s32.totalorder %s110, %s111
    %p120 = scmp.eq.s32.totalorder %s16, 0
    %p121 = por %p119, %p120
    %p122 = scmp.ne.s32.totalorder %s110, %s111
    %p123 = scmp.eq.s32.totalorder %s17, 1
    %p124 = por %p122, %p123
    %p126 = scmp.ne.s32.totalorder %s111, %s125
    %p127 = scmp.eq.s32.totalorder %s17, 0
    %p128 = por %p126, %p127
    %s129 = ssub.s32 %s11, %s18
    %p130 = scmp.eq.s32.totalorder %s129, 0
    %s132 = sadd.s32 %s131, 1
    %s133 = scalar_select %p130, %s131, %s132
    %p136 = pneg %p130
    %p137 = scmp.eq.s32.totalorder %s11, 1
    %p138 = por %p136, %p137
    %p139 = scmp.ne.s32.totalorder %s131, %s134
    %p140 = scmp.eq.s32.totalorder %s11, 0
    %p141 = por %p139, %p140
    %p142 = scmp.ne.s32.totalorder %s131, %s134
    %p143 = scmp.eq.s32.totalorder %s16, 1
    %p144 = por %p142, %p143
    %p145 = scmp.ne.s32.totalorder %s134, %s135
    %p146 = scmp.eq.s32.totalorder %s16, 0
    %p147 = por %p145, %p146
    %p148 = scmp.ne.s32.totalorder %s134, %s135
    %p149 = scmp.eq.s32.totalorder %s17, 1
    %p150 = por %p148, %p149
    %p152 = scmp.ne.s32.totalorder %s135, %s151
    %p153 = scmp.eq.s32.totalorder %s17, 0
    %p154 = por %p152, %p153
    %p155 = scmp.le.s32.totalorder 1, %s11
    %p156 = scmp.lt.s32.totalorder %s11, 3
    %p157 = pnand %p155, %p156
    %p158 = pneg %p157
    // Predicated region
    $region9: #{encoder_forward.6} parent=5 // pred_check
      _
    $region10: #{encoder_forward.6} parent=5 // pred_check_branch
      %160 = sbr.rel (%p157) target = $region12
    $region11: #{encoder_forward.6} parent=5 // pred_region
      %s161 = ssub.s32 %s11, 1
      // Predicated region
      $region13: #{encoder_forward.6} parent=11 // pred_check
        %p162 = pneg %p58
      $region14: #{encoder_forward.6} parent=11 // pred_check_branch
        %164 = sbr.rel (%p162) target = $region16
      $region15: #{encoder_forward.6} parent=11 // pred_region
        _
      $region16: #{encoder_forward.6} parent=11 // pred_fallthru
        _
      // Predicated region
      $region17: #{encoder_forward.6} parent=11 // pred_check
        %p165 = pneg %p79
      $region18: #{encoder_forward.6} parent=11 // pred_check_branch
        %167 = sbr.rel (%p165) target = $region20
      $region19: #{encoder_forward.6} parent=11 // pred_region
        _
      $region20: #{encoder_forward.6} parent=11 // pred_fallthru
        _
      // Predicated region
      $region21: #{encoder_forward.6} parent=11 // pred_check
        %p168 = pneg %p100
      $region22: #{encoder_forward.6} parent=11 // pred_check_branch
        %170 = sbr.rel (%p168) target = $region24
      $region23: #{encoder_forward.6} parent=11 // pred_region
        _
      $region24: #{encoder_forward.6} parent=11 // pred_fallthru
        _
      // Predicated region
      $region25: #{encoder_forward.6} parent=11 // pred_check
        %p171 = pneg %p121
      $region26: #{encoder_forward.6} parent=11 // pred_check_branch
        %173 = sbr.rel (%p171) target = $region28
      $region27: #{encoder_forward.6} parent=11 // pred_region
        _
      $region28: #{encoder_forward.6} parent=11 // pred_fallthru
        _
    $region12: #{encoder_forward.6} parent=5 // pred_fallthru
      _
    %p174 = scmp.lt.s32.totalorder %s11, 2
    // Predicated region
    $region29: #{encoder_forward.6} parent=5 // pred_check
      %p175 = pneg %p174
    $region30: #{encoder_forward.6} parent=5 // pred_check_branch
      %177 = sbr.rel (%p175) target = $region32
    $region31: #{encoder_forward.6} parent=5 // pred_region
      // Predicated region
      $region33: #{encoder_forward.6} parent=31 // pred_check
        %p178 = pneg %p31
      $region34: #{encoder_forward.6} parent=31 // pred_check_branch
        %180 = sbr.rel (%p178) target = $region36
      $region35: #{encoder_forward.6} parent=31 // pred_region
        %p181 = scmp.lt.s32.totalorder %s11, 1
        %s182 = scalar_select %p181, %s11, 1
        %s183 = smul.addr %s182, 20
        %s184 = smul.addr %s183, 8
        %s185 = scalar_lea.vmem %s0, %s184
      $region36: #{encoder_forward.6} parent=31 // pred_fallthru
        _
    $region32: #{encoder_forward.6} parent=5 // pred_fallthru
      _
    %p186 = scmp.le.s32.totalorder 1, %s11
    %p187 = scmp.lt.s32.totalorder %s11, 3
    %p188 = pnand %p186, %p187
    %p189 = pneg %p188
    // Predicated region
    $region37: #{encoder_forward.6} parent=5 // pred_check
      _
    $region38: #{encoder_forward.6} parent=5 // pred_check_branch
      %191 = sbr.rel (%p188) target = $region40
    $region39: #{encoder_forward.6} parent=5 // pred_region
      %s192 = ssub.s32 %s11, 1
      %p193 = scmp.lt.s32.totalorder %s16, 1
      %s194 = scalar_select %p193, %s16, 1
      %s195 = smul.addr %s194, 20
      %s196 = smul.addr %s195, 8
      %s197 = scalar_lea.vmem %s0, %s196
      %p198 = pneg %p37
      %p199 = pneg %p34
      %p200 = pneg %p58
      %p201 = pneg %p55
      %p202 = pneg %p79
      %p203 = pneg %p76
      %p204 = pneg %p100
      %p205 = pneg %p97
      %p206 = pneg %p121
      %p207 = pneg %p118
      %p208 = pneg %p147
      %p209 = pneg %p144
      %p210 = scmp.lt.s32.totalorder %s16, 1
      %s211 = scalar_select %p210, %s16, 1
      %s212 = smul.addr %s211, 2
      %s213 = smul.addr %s212, 8
      %s214 = scalar_lea.vmem %s5, %s213
      %p215 = scmp.lt.s32.totalorder %s16, 1
      %s216 = scalar_select %p215, %s16, 1
      %s217 = smul.addr %s216, 20
      %s218 = smul.addr %s217, 8
      %s219 = scalar_lea.vmem %s0, %s218
      %p220 = scmp.lt.s32.totalorder %s16, 1
      %s221 = scalar_select %p220, %s16, 1
      %s222 = smul.addr %s221, 2
      %s223 = smul.addr %s222, 8
      %s224 = scalar_lea.vmem %s5, %s223
      %v225 = vld [vmem:[%s219] sm:$0xf]
      %v226 = vld [vmem:[%s219 + $0x8] sm:$0xf]
      %v227 = vld [vmem:[%s219 + $0x10] sm:$0xf]
      %v228 = vld [vmem:[%s219 + $0x18] sm:$0xf]
      %v229 = vld [vmem:[%s219 + $0x20] sm:$0xf]
      %v230 = vld [vmem:[%s219 + $0x28] sm:$0xf]
      %v231 = vld [vmem:[%s219 + $0x30] sm:$0xf]
      %v232 = vld [vmem:[%s219 + $0x38] sm:$0xf]
      %v233 = vld [vmem:[%s219 + $0x40] sm:$0xf]
      %v234 = vld [vmem:[%s219 + $0x48] sm:$0xf]
      %v235 = vld [vmem:[%s219 + $0x50] sm:$0xf]
      %v236 = vld [vmem:[%s219 + $0x58] sm:$0xf]
      %v237 = vld [vmem:[%s219 + $0x60] sm:$0xf]
      %v238 = vld [vmem:[%s219 + $0x68] sm:$0xf]
      %v239 = vld [vmem:[%s219 + $0x70] sm:$0xf]
      %v240 = vld [vmem:[%s219 + $0x78] sm:$0xf]
      %v257 = vrot.slane %v226, 4
      %v258 = vrot.slane %v228, 4
      %v259 = vrot.slane %v230, 4
      %v260 = vrot.slane %v232, 4
      %v261 = vrot.slane %v234, 4
      %v262 = vrot.slane %v236, 4
      %v263 = vrot.slane %v238, 4
      %v264 = vrot.slane %v240, 4
      %vm265 = vcmask 1043456
      %v266 = vsel %vm265, %v225, %v257
      %v267 = vsel %vm265, %v227, %v258
      %v268 = vsel %vm265, %v229, %v259
      %v269 = vsel %vm265, %v231, %v260
      %v270 = vsel %vm265, %v233, %v261
      %v271 = vsel %vm265, %v235, %v262
      %v272 = vsel %vm265, %v237, %v263
      %v273 = vsel %vm265, %v239, %v264
      %v274 = vld [vmem:[%s1] sm:$0xff]
      %v275 = vld [vmem:[%s1 + $0x8] sm:$0xff]
      %v276 = vld [vmem:[%s1 + $0x10] sm:$0xff]
      %v277 = vld [vmem:[%s1 + $0x18] sm:$0xff]
      %v278 = vld [vmem:[%s1 + $0x20] sm:$0xff]
      %v279 = vld [vmem:[%s1 + $0x28] sm:$0xff]
      %v280 = vld [vmem:[%s1 + $0x30] sm:$0xff]
      %v281 = vld [vmem:[%s1 + $0x38] sm:$0xff]
      %v282 = vld [vmem:[%s1 + $0x40] sm:$0xff]
      %v283 = vld [vmem:[%s1 + $0x48] sm:$0xff]
      %v284 = vld [vmem:[%s1 + $0x50] sm:$0xff]
      %v285 = vld [vmem:[%s1 + $0x58] sm:$0xff]
      %v286 = vld [vmem:[%s1 + $0x60] sm:$0xff]
      %v287 = vld [vmem:[%s1 + $0x68] sm:$0xff]
      %v288 = vld [vmem:[%s1 + $0x70] sm:$0xff]
      %v289 = vld [vmem:[%s1 + $0x78] sm:$0xff]
      %v290 = vld [vmem:[%s1 + $0x80] sm:$0xff]
      %v291 = vld [vmem:[%s1 + $0x88] sm:$0xff]
      %v292 = vld [vmem:[%s1 + $0x90] sm:$0xff]
      %v293 = vld [vmem:[%s1 + $0x98] sm:$0xff]
      %v294 = vld [vmem:[%s1 + $0xa0] sm:$0xff]
      %v295 = vld [vmem:[%s1 + $0xa8] sm:$0xff]
      %v296 = vld [vmem:[%s1 + $0xb0] sm:$0xff]
      %v297 = vld [vmem:[%s1 + $0xb8] sm:$0xff]
      %v298 = vld [vmem:[%s1 + $0xc0] sm:$0xff]
      %v299 = vld [vmem:[%s1 + $0xc8] sm:$0xff]
      %v300 = vld [vmem:[%s1 + $0xd0] sm:$0xff]
      %v301 = vld [vmem:[%s1 + $0xd8] sm:$0xff]
      %v302 = vld [vmem:[%s1 + $0xe0] sm:$0xff]
      %v303 = vld [vmem:[%s1 + $0xe8] sm:$0xff]
      %v304 = vld [vmem:[%s1 + $0xf0] sm:$0xff]
      %v305 = vld [vmem:[%s1 + $0xf8] sm:$0xff]
      %v306 = vld [vmem:[%s1 + $0x100] sm:$0xff]
      %v307 = vld [vmem:[%s1 + $0x108] sm:$0xff]
      %v308 = vld [vmem:[%s1 + $0x110] sm:$0xff]
      %v309 = vld [vmem:[%s1 + $0x118] sm:$0xff]
      %v310 = vld [vmem:[%s1 + $0x120] sm:$0xff]
      %v311 = vld [vmem:[%s1 + $0x128] sm:$0xff]
      %v312 = vld [vmem:[%s1 + $0x130] sm:$0xff]
      %v313 = vld [vmem:[%s1 + $0x138] sm:$0xff]
      %v314 = vld [vmem:[%s1 + $0x140] sm:$0xff]
      %v315 = vld [vmem:[%s1 + $0x148] sm:$0xff]
      %v316 = vld [vmem:[%s1 + $0x150] sm:$0xff]
      %v317 = vld [vmem:[%s1 + $0x158] sm:$0xff]
      %v318 = vld [vmem:[%s1 + $0x160] sm:$0xff]
      %v319 = vld [vmem:[%s1 + $0x168] sm:$0xff]
      %v320 = vld [vmem:[%s1 + $0x170] sm:$0xff]
      %v321 = vld [vmem:[%s1 + $0x178] sm:$0xff]
      %v322 = vld [vmem:[%s1 + $0x180] sm:$0xff]
      %v323 = vld [vmem:[%s1 + $0x188] sm:$0xff]
      %v324 = vld [vmem:[%s1 + $0x190] sm:$0xff]
      %v325 = vld [vmem:[%s1 + $0x198] sm:$0xff]
      %v326 = vld [vmem:[%s1 + $0x1a0] sm:$0xff]
      %v327 = vld [vmem:[%s1 + $0x1a8] sm:$0xff]
      %v328 = vld [vmem:[%s1 + $0x1b0] sm:$0xff]
      %v329 = vld [vmem:[%s1 + $0x1b8] sm:$0xff]
      %v330 = vld [vmem:[%s1 + $0x1c0] sm:$0xff]
      %v331 = vld [vmem:[%s1 + $0x1c8] sm:$0xff]
      %v332 = vld [vmem:[%s1 + $0x1d0] sm:$0xff]
      %v333 = vld [vmem:[%s1 + $0x1d8] sm:$0xff]
      %v334 = vld [vmem:[%s1 + $0x1e0] sm:$0xff]
      %v335 = vld [vmem:[%s1 + $0x1e8] sm:$0xff]
      %v336 = vld [vmem:[%s1 + $0x1f0] sm:$0xff]
      %v337 = vld [vmem:[%s1 + $0x1f8] sm:$0xff]
      %v338 = vld [vmem:[%s219] sm:$0x1e]
      %v339 = vld [vmem:[%s219 + $0x8] sm:$0x1e]
      %v340 = vld [vmem:[%s219 + $0x10] sm:$0x1e]
      %v341 = vld [vmem:[%s219 + $0x18] sm:$0x1e]
      %v342 = vld [vmem:[%s219 + $0x20] sm:$0x1e]
      %v343 = vld [vmem:[%s219 + $0x28] sm:$0x1e]
      %v344 = vld [vmem:[%s219 + $0x30] sm:$0x1e]
      %v345 = vld [vmem:[%s219 + $0x38] sm:$0x1e]
      %v346 = vld [vmem:[%s219 + $0x40] sm:$0x1e]
      %v347 = vld [vmem:[%s219 + $0x48] sm:$0x1e]
      %v348 = vld [vmem:[%s219 + $0x50] sm:$0x1e]
      %v349 = vld [vmem:[%s219 + $0x58] sm:$0x1e]
      %v350 = vld [vmem:[%s219 + $0x60] sm:$0x1e]
      %v351 = vld [vmem:[%s219 + $0x68] sm:$0x1e]
      %v352 = vld [vmem:[%s219 + $0x70] sm:$0x1e]
      %v353 = vld [vmem:[%s219 + $0x78] sm:$0x1e]
      %v370 = vrot.slane %v339, 4
      %v371 = vrot.slane %v341, 4
      %v372 = vrot.slane %v343, 4
      %v373 = vrot.slane %v345, 4
      %v374 = vrot.slane %v347, 4
      %v375 = vrot.slane %v349, 4
      %v376 = vrot.slane %v351, 4
      %v377 = vrot.slane %v353, 4
      %v378 = vsel %vm265, %v338, %v370
      %v379 = vsel %vm265, %v340, %v371
      %v380 = vsel %vm265, %v370, %v338
      %v381 = vrot.slane %v380, 4
      %v382 = vsel %vm265, %v371, %v340
      %v383 = vrot.slane %v382, 4
      %v384 = vsel %vm265, %v342, %v372
      %v385 = vsel %vm265, %v344, %v373
      %v386 = vsel %vm265, %v372, %v342
      %v387 = vrot.slane %v386, 4
      %v388 = vsel %vm265, %v373, %v344
      %v389 = vrot.slane %v388, 4
      %v390 = vsel %vm265, %v346, %v374
      %v391 = vsel %vm265, %v348, %v375
      %v392 = vsel %vm265, %v374, %v346
      %v393 = vrot.slane %v392, 4
      %v394 = vsel %vm265, %v375, %v348
      %v395 = vrot.slane %v394, 4
      %v396 = vsel %vm265, %v350, %v376
      %v397 = vsel %vm265, %v352, %v377
      %v398 = vsel %vm265, %v376, %v350
      %v399 = vrot.slane %v398, 4
      %v400 = vsel %vm265, %v377, %v352
      %v401 = vrot.slane %v400, 4
      %vm402 = vcmask 1042432
      %vm403 = vcmask 1046532
      %vm404 = vmor %vm402, %vm403
      %v405 = vrot.slane %v378, 5
      %v406 = vrot.slane %v405, 4
      %v407 = vrot.slane %v381, 5
      %v408 = vsel %vm404, %v406, %v407
      %v409 = vrot.slane %v379, 5
      %v410 = vrot.slane %v409, 4
      %v411 = vrot.slane %v383, 5
      %v412 = vsel %vm404, %v410, %v411
      %v413 = vrot.slane %v384, 5
      %v414 = vrot.slane %v413, 4
      %v415 = vrot.slane %v387, 5
      %v416 = vsel %vm404, %v414, %v415
      %v417 = vrot.slane %v385, 5
      %v418 = vrot.slane %v417, 4
      %v419 = vrot.slane %v389, 5
      %v420 = vsel %vm404, %v418, %v419
      %v421 = vrot.slane %v390, 5
      %v422 = vrot.slane %v421, 4
      %v423 = vrot.slane %v393, 5
      %v424 = vsel %vm404, %v422, %v423
      %v425 = vrot.slane %v391, 5
      %v426 = vrot.slane %v425, 4
      %v427 = vrot.slane %v395, 5
      %v428 = vsel %vm404, %v426, %v427
      %v429 = vrot.slane %v396, 5
      %v430 = vrot.slane %v429, 4
      %v431 = vrot.slane %v399, 5
      %v432 = vsel %vm404, %v430, %v431
      %v433 = vrot.slane %v397, 5
      %v434 = vrot.slane %v433, 4
      %v435 = vrot.slane %v401, 5
      %v436 = vsel %vm404, %v434, %v435
      %s437 = scalar_lea.vmem %s1, 512
      %v438 = vld [vmem:[%s437] sm:$0xff]
      %v439 = vld [vmem:[%s437 + $0x8] sm:$0xff]
      %v440 = vld [vmem:[%s437 + $0x10] sm:$0xff]
      %v441 = vld [vmem:[%s437 + $0x18] sm:$0xff]
      %v442 = vld [vmem:[%s437 + $0x20] sm:$0xff]
      %v443 = vld [vmem:[%s437 + $0x28] sm:$0xff]
      %v444 = vld [vmem:[%s437 + $0x30] sm:$0xff]
      %v445 = vld [vmem:[%s437 + $0x38] sm:$0xff]
      %v446 = vld [vmem:[%s437 + $0x40] sm:$0xff]
      %v447 = vld [vmem:[%s437 + $0x48] sm:$0xff]
      %v448 = vld [vmem:[%s437 + $0x50] sm:$0xff]
      %v449 = vld [vmem:[%s437 + $0x58] sm:$0xff]
      %v450 = vld [vmem:[%s437 + $0x60] sm:$0xff]
      %v451 = vld [vmem:[%s437 + $0x68] sm:$0xff]
      %v452 = vld [vmem:[%s437 + $0x70] sm:$0xff]
      %v453 = vld [vmem:[%s437 + $0x78] sm:$0xff]
      %v454 = vld [vmem:[%s437 + $0x80] sm:$0xff]
      %v455 = vld [vmem:[%s437 + $0x88] sm:$0xff]
      %v456 = vld [vmem:[%s437 + $0x90] sm:$0xff]
      %v457 = vld [vmem:[%s437 + $0x98] sm:$0xff]
      %v458 = vld [vmem:[%s437 + $0xa0] sm:$0xff]
      %v459 = vld [vmem:[%s437 + $0xa8] sm:$0xff]
      %v460 = vld [vmem:[%s437 + $0xb0] sm:$0xff]
      %v461 = vld [vmem:[%s437 + $0xb8] sm:$0xff]
      %v462 = vld [vmem:[%s437 + $0xc0] sm:$0xff]
      %v463 = vld [vmem:[%s437 + $0xc8] sm:$0xff]
      %v464 = vld [vmem:[%s437 + $0xd0] sm:$0xff]
      %v465 = vld [vmem:[%s437 + $0xd8] sm:$0xff]
      %v466 = vld [vmem:[%s437 + $0xe0] sm:$0xff]
      %v467 = vld [vmem:[%s437 + $0xe8] sm:$0xff]
      %v468 = vld [vmem:[%s437 + $0xf0] sm:$0xff]
      %v469 = vld [vmem:[%s437 + $0xf8] sm:$0xff]
      %v470 = vld [vmem:[%s437 + $0x100] sm:$0xff]
      %v471 = vld [vmem:[%s437 + $0x108] sm:$0xff]
      %v472 = vld [vmem:[%s437 + $0x110] sm:$0xff]
      %v473 = vld [vmem:[%s437 + $0x118] sm:$0xff]
      %v474 = vld [vmem:[%s437 + $0x120] sm:$0xff]
      %v475 = vld [vmem:[%s437 + $0x128] sm:$0xff]
      %v476 = vld [vmem:[%s437 + $0x130] sm:$0xff]
      %v477 = vld [vmem:[%s437 + $0x138] sm:$0xff]
      %v478 = vld [vmem:[%s437 + $0x140] sm:$0xff]
      %v479 = vld [vmem:[%s437 + $0x148] sm:$0xff]
      %v480 = vld [vmem:[%s437 + $0x150] sm:$0xff]
      %v481 = vld [vmem:[%s437 + $0x158] sm:$0xff]
      %v482 = vld [vmem:[%s437 + $0x160] sm:$0xff]
      %v483 = vld [vmem:[%s437 + $0x168] sm:$0xff]
      %v484 = vld [vmem:[%s437 + $0x170] sm:$0xff]
      %v485 = vld [vmem:[%s437 + $0x178] sm:$0xff]
      %v486 = vld [vmem:[%s437 + $0x180] sm:$0xff]
      %v487 = vld [vmem:[%s437 + $0x188] sm:$0xff]
      %v488 = vld [vmem:[%s437 + $0x190] sm:$0xff]
      %v489 = vld [vmem:[%s437 + $0x198] sm:$0xff]
      %v490 = vld [vmem:[%s437 + $0x1a0] sm:$0xff]
      %v491 = vld [vmem:[%s437 + $0x1a8] sm:$0xff]
      %v492 = vld [vmem:[%s437 + $0x1b0] sm:$0xff]
      %v493 = vld [vmem:[%s437 + $0x1b8] sm:$0xff]
      %v494 = vld [vmem:[%s437 + $0x1c0] sm:$0xff]
      %v495 = vld [vmem:[%s437 + $0x1c8] sm:$0xff]
      %v496 = vld [vmem:[%s437 + $0x1d0] sm:$0xff]
      %v497 = vld [vmem:[%s437 + $0x1d8] sm:$0xff]
      %v498 = vld [vmem:[%s437 + $0x1e0] sm:$0xff]
      %v499 = vld [vmem:[%s437 + $0x1e8] sm:$0xff]
      %v500 = vld [vmem:[%s437 + $0x1f0] sm:$0xff]
      %v501 = vld [vmem:[%s437 + $0x1f8] sm:$0xff]
      %502 = vst [vmem:[#allocation1] ss:$2 sm:$0xff] %v408
      %s503 = scalar_lea.vmem [#allocation1], 1
      %504 = vst [vmem:[%s503] ss:$2 sm:$0xff] %v416
      %s505 = scalar_lea.vmem [#allocation1], 16
      %506 = vst [vmem:[%s505] ss:$2 sm:$0xff] %v412
      %s507 = scalar_lea.vmem [#allocation1], 17
      %508 = vst [vmem:[%s507] ss:$2 sm:$0xff] %v420
      %s509 = scalar_lea.vmem [#allocation1], 32
      %510 = vst [vmem:[%s509] ss:$2 sm:$0xff] %v424
      %s511 = scalar_lea.vmem [#allocation1], 33
      %512 = vst [vmem:[%s511] ss:$2 sm:$0xff] %v432
      %s513 = scalar_lea.vmem [#allocation1], 48
      %514 = vst [vmem:[%s513] ss:$2 sm:$0xff] %v428
      %s515 = scalar_lea.vmem [#allocation1], 49
      %516 = vst [vmem:[%s515] ss:$2 sm:$0xff] %v436
      %v517 = vld.sshfl [vmem:[#allocation1] sm:$0xff pattern:$0x75316420]
      %v518 = vld.sshfl [vmem:[#allocation1 + $0x8] sm:$0xff pattern:$0x75316420]
      %v519 = vld.sshfl [vmem:[#allocation1 + $0x10] sm:$0xff pattern:$0x75316420]
      %v520 = vld.sshfl [vmem:[#allocation1 + $0x18] sm:$0xff pattern:$0x75316420]
      %v521 = vld.sshfl [vmem:[#allocation1 + $0x20] sm:$0xff pattern:$0x75316420]
      %v522 = vld.sshfl [vmem:[#allocation1 + $0x28] sm:$0xff pattern:$0x75316420]
      %v523 = vld.sshfl [vmem:[#allocation1 + $0x30] sm:$0xff pattern:$0x75316420]
      %v524 = vld.sshfl [vmem:[#allocation1 + $0x38] sm:$0xff pattern:$0x75316420]
      %533 = vmatpush.msra.mxu0 %v453
      %534 = vmatpush.msra.mxu0 %v452
      %535 = vmatpush.msra.mxu0 %v451
      %536 = vmatpush.msra.mxu0 %v450
      %537 = vmatpush.msra.mxu0 %v449
      %538 = vmatpush.msra.mxu0 %v448
      %539 = vmatpush.msra.mxu0 %v447
      %540 = vmatpush.msra.mxu0 %v446
      %541 = vmatpush.msra.mxu0 %v445
      %542 = vmatpush.msra.mxu0 %v444
      %543 = vmatpush.msra.mxu0 %v443
      %544 = vmatpush.msra.mxu0 %v442
      %545 = vmatpush.msra.mxu0 %v441
      %546 = vmatpush.msra.mxu0 %v440
      %547 = vmatpush.msra.mxu0 %v439
      %548 = vmatpush.msra.mxu0 %v438
      %549 = vmatmul.f32.gmra.mxu0 %v517
      %v550 = vpop.f32.mrf.mxu0
      %v551 = vadd.f32 0.0, %v550
      %552 = vmatmul.f32.gmra.mxu0 %v521
      %v553 = vpop.f32.mrf.mxu0
      %v554 = vadd.f32 0.0, %v553
      %555 = vdwg.mxu0
      %556 = vmatpush.msra.mxu0 %v469
      %557 = vmatpush.msra.mxu0 %v468
      %558 = vmatpush.msra.mxu0 %v467
      %559 = vmatpush.msra.mxu0 %v466
      %560 = vmatpush.msra.mxu0 %v465
      %561 = vmatpush.msra.mxu0 %v464
      %562 = vmatpush.msra.mxu0 %v463
      %563 = vmatpush.msra.mxu0 %v462
      %564 = vmatpush.msra.mxu0 %v461
      %565 = vmatpush.msra.mxu0 %v460
      %566 = vmatpush.msra.mxu0 %v459
      %567 = vmatpush.msra.mxu0 %v458
      %568 = vmatpush.msra.mxu0 %v457
      %569 = vmatpush.msra.mxu0 %v456
      %570 = vmatpush.msra.mxu0 %v455
      %571 = vmatpush.msra.mxu0 %v454
      %572 = vmatmul.f32.gmra.mxu0 %v518
      %v573 = vpop.f32.mrf.mxu0
      %v574 = vadd.f32 %v551, %v573
      %575 = vmatmul.f32.gmra.mxu0 %v522
      %v576 = vpop.f32.mrf.mxu0
      %v577 = vadd.f32 %v554, %v576
      %578 = vdwg.mxu0
      %579 = vmatpush.msra.mxu0 %v485
      %580 = vmatpush.msra.mxu0 %v484
      %581 = vmatpush.msra.mxu0 %v483
      %582 = vmatpush.msra.mxu0 %v482
      %583 = vmatpush.msra.mxu0 %v481
      %584 = vmatpush.msra.mxu0 %v480
      %585 = vmatpush.msra.mxu0 %v479
      %586 = vmatpush.msra.mxu0 %v478
      %587 = vmatpush.msra.mxu0 %v477
      %588 = vmatpush.msra.mxu0 %v476
      %589 = vmatpush.msra.mxu0 %v475
      %590 = vmatpush.msra.mxu0 %v474
      %591 = vmatpush.msra.mxu0 %v473
      %592 = vmatpush.msra.mxu0 %v472
      %593 = vmatpush.msra.mxu0 %v471
      %594 = vmatpush.msra.mxu0 %v470
      %595 = vmatmul.f32.gmra.mxu0 %v519
      %v596 = vpop.f32.mrf.mxu0
      %v597 = vadd.f32 %v574, %v596
      %598 = vmatmul.f32.gmra.mxu0 %v523
      %v599 = vpop.f32.mrf.mxu0
      %v600 = vadd.f32 %v577, %v599
      %601 = vdwg.mxu0
      %602 = vmatpush.msra.mxu0 %v501
      %603 = vmatpush.msra.mxu0 %v500
      %604 = vmatpush.msra.mxu0 %v499
      %605 = vmatpush.msra.mxu0 %v498
      %606 = vmatpush.msra.mxu0 %v497
      %607 = vmatpush.msra.mxu0 %v496
      %608 = vmatpush.msra.mxu0 %v495
      %609 = vmatpush.msra.mxu0 %v494
      %610 = vmatpush.msra.mxu0 %v493
      %611 = vmatpush.msra.mxu0 %v492
      %612 = vmatpush.msra.mxu0 %v491
      %613 = vmatpush.msra.mxu0 %v490
      %614 = vmatpush.msra.mxu0 %v489
      %615 = vmatpush.msra.mxu0 %v488
      %616 = vmatpush.msra.mxu0 %v487
      %617 = vmatpush.msra.mxu0 %v486
      %618 = vmatmul.f32.gmra.mxu0 %v520
      %v619 = vpop.f32.mrf.mxu0
      %v620 = vadd.f32 %v597, %v619
      %621 = vmatmul.f32.gmra.mxu0 %v524
      %v622 = vpop.f32.mrf.mxu0
      %v623 = vadd.f32 %v600, %v622
      %624 = vdwg.mxu0
      %625 = vst [vmem:[#allocation1] ss:$2 sm:$0xff] %v266
      %s626 = scalar_lea.vmem [#allocation1], 1
      %627 = vst [vmem:[%s626] ss:$2 sm:$0xff] %v268
      %s628 = scalar_lea.vmem [#allocation1], 16
      %629 = vst [vmem:[%s628] ss:$2 sm:$0xff] %v267
      %s630 = scalar_lea.vmem [#allocation1], 17
      %631 = vst [vmem:[%s630] ss:$2 sm:$0xff] %v269
      %s632 = scalar_lea.vmem [#allocation1], 32
      %633 = vst [vmem:[%s632] ss:$2 sm:$0xff] %v270
      %s634 = scalar_lea.vmem [#allocation1], 33
      %635 = vst [vmem:[%s634] ss:$2 sm:$0xff] %v272
      %s636 = scalar_lea.vmem [#allocation1], 48
      %637 = vst [vmem:[%s636] ss:$2 sm:$0xff] %v271
      %s638 = scalar_lea.vmem [#allocation1], 49
      %639 = vst [vmem:[%s638] ss:$2 sm:$0xff] %v273
      %v640 = vld.sshfl [vmem:[#allocation1] sm:$0xff pattern:$0x75316420]
      %v641 = vld.sshfl [vmem:[#allocation1 + $0x8] sm:$0xff pattern:$0x75316420]
      %v642 = vld.sshfl [vmem:[#allocation1 + $0x10] sm:$0xff pattern:$0x75316420]
      %v643 = vld.sshfl [vmem:[#allocation1 + $0x18] sm:$0xff pattern:$0x75316420]
      %v644 = vld.sshfl [vmem:[#allocation1 + $0x20] sm:$0xff pattern:$0x75316420]
      %v645 = vld.sshfl [vmem:[#allocation1 + $0x28] sm:$0xff pattern:$0x75316420]
      %v646 = vld.sshfl [vmem:[#allocation1 + $0x30] sm:$0xff pattern:$0x75316420]
      %v647 = vld.sshfl [vmem:[#allocation1 + $0x38] sm:$0xff pattern:$0x75316420]
      %656 = vmatpush.msra.mxu0 %v289
      %657 = vmatpush.msra.mxu0 %v288
      %658 = vmatpush.msra.mxu0 %v287
      %659 = vmatpush.msra.mxu0 %v286
      %660 = vmatpush.msra.mxu0 %v285
      %661 = vmatpush.msra.mxu0 %v284
      %662 = vmatpush.msra.mxu0 %v283
      %663 = vmatpush.msra.mxu0 %v282
      %664 = vmatpush.msra.mxu0 %v281
      %665 = vmatpush.msra.mxu0 %v280
      %666 = vmatpush.msra.mxu0 %v279
      %667 = vmatpush.msra.mxu0 %v278
      %668 = vmatpush.msra.mxu0 %v277
      %669 = vmatpush.msra.mxu0 %v276
      %670 = vmatpush.msra.mxu0 %v275
      %671 = vmatpush.msra.mxu0 %v274
      %672 = vmatmul.f32.gmra.mxu0 %v640
      %v673 = vpop.f32.mrf.mxu0
      %v674 = vadd.f32 %v620, %v673
      %675 = vmatmul.f32.gmra.mxu0 %v644
      %v676 = vpop.f32.mrf.mxu0
      %v677 = vadd.f32 %v623, %v676
      %678 = vdwg.mxu0
      %679 = vmatpush.msra.mxu0 %v305
      %680 = vmatpush.msra.mxu0 %v304
      %681 = vmatpush.msra.mxu0 %v303
      %682 = vmatpush.msra.mxu0 %v302
      %683 = vmatpush.msra.mxu0 %v301
      %684 = vmatpush.msra.mxu0 %v300
      %685 = vmatpush.msra.mxu0 %v299
      %686 = vmatpush.msra.mxu0 %v298
      %687 = vmatpush.msra.mxu0 %v297
      %688 = vmatpush.msra.mxu0 %v296
      %689 = vmatpush.msra.mxu0 %v295
      %690 = vmatpush.msra.mxu0 %v294
      %691 = vmatpush.msra.mxu0 %v293
      %692 = vmatpush.msra.mxu0 %v292
      %693 = vmatpush.msra.mxu0 %v291
      %694 = vmatpush.msra.mxu0 %v290
      %695 = vmatmul.f32.gmra.mxu0 %v641
      %v696 = vpop.f32.mrf.mxu0
      %v697 = vadd.f32 %v674, %v696
      %698 = vmatmul.f32.gmra.mxu0 %v645
      %v699 = vpop.f32.mrf.mxu0
      %v700 = vadd.f32 %v677, %v699
      %701 = vdwg.mxu0
      %702 = vmatpush.msra.mxu0 %v321
      %703 = vmatpush.msra.mxu0 %v320
      %704 = vmatpush.msra.mxu0 %v319
      %705 = vmatpush.msra.mxu0 %v318
      %706 = vmatpush.msra.mxu0 %v317
      %707 = vmatpush.msra.mxu0 %v316
      %708 = vmatpush.msra.mxu0 %v315
      %709 = vmatpush.msra.mxu0 %v314
      %710 = vmatpush.msra.mxu0 %v313
      %711 = vmatpush.msra.mxu0 %v312
      %712 = vmatpush.msra.mxu0 %v311
      %713 = vmatpush.msra.mxu0 %v310
      %714 = vmatpush.msra.mxu0 %v309
      %715 = vmatpush.msra.mxu0 %v308
      %716 = vmatpush.msra.mxu0 %v307
      %717 = vmatpush.msra.mxu0 %v306
      %718 = vmatmul.f32.gmra.mxu0 %v642
      %v719 = vpop.f32.mrf.mxu0
      %v720 = vadd.f32 %v697, %v719
      %721 = vmatmul.f32.gmra.mxu0 %v646
      %v722 = vpop.f32.mrf.mxu0
      %v723 = vadd.f32 %v700, %v722
      %724 = vdwg.mxu0
      %725 = vmatpush.msra.mxu0 %v337
      %726 = vmatpush.msra.mxu0 %v336
      %727 = vmatpush.msra.mxu0 %v335
      %728 = vmatpush.msra.mxu0 %v334
      %729 = vmatpush.msra.mxu0 %v333
      %730 = vmatpush.msra.mxu0 %v332
      %731 = vmatpush.msra.mxu0 %v331
      %732 = vmatpush.msra.mxu0 %v330
      %733 = vmatpush.msra.mxu0 %v329
      %734 = vmatpush.msra.mxu0 %v328
      %735 = vmatpush.msra.mxu0 %v327
      %736 = vmatpush.msra.mxu0 %v326
      %737 = vmatpush.msra.mxu0 %v325
      %738 = vmatpush.msra.mxu0 %v324
      %739 = vmatpush.msra.mxu0 %v323
      %740 = vmatpush.msra.mxu0 %v322
      %741 = vmatmul.f32.gmra.mxu0 %v643
      %v742 = vpop.f32.mrf.mxu0
      %v743 = vadd.f32 %v720, %v742
      %744 = vmatmul.f32.gmra.mxu0 %v647
      %v745 = vpop.f32.mrf.mxu0
      %v746 = vadd.f32 %v723, %v745
      %747 = vdwg.mxu0
      %s748 = scalar_lea.vmem %s219, 32
      %v749 = vld [vmem:[%s748] sm:$0xf]
      %v750 = vld [vmem:[%s748 + $0x8] sm:$0xf]
      %v751 = vld [vmem:[%s748 + $0x10] sm:$0xf]
      %v752 = vld [vmem:[%s748 + $0x18] sm:$0xf]
      %v753 = vld [vmem:[%s748 + $0x20] sm:$0xf]
      %v754 = vld [vmem:[%s748 + $0x28] sm:$0xf]
      %v755 = vld [vmem:[%s748 + $0x30] sm:$0xf]
      %v756 = vld [vmem:[%s748 + $0x38] sm:$0xf]
      %v757 = vld [vmem:[%s748 + $0x40] sm:$0xf]
      %v758 = vld [vmem:[%s748 + $0x48] sm:$0xf]
      %v759 = vld [vmem:[%s748 + $0x50] sm:$0xf]
      %v760 = vld [vmem:[%s748 + $0x58] sm:$0xf]
      %v761 = vld [vmem:[%s748 + $0x60] sm:$0xf]
      %v762 = vld [vmem:[%s748 + $0x68] sm:$0xf]
      %v763 = vld [vmem:[%s748 + $0x70] sm:$0xf]
      %v764 = vld [vmem:[%s748 + $0x78] sm:$0xf]
      %v781 = vrot.slane %v750, 4
      %v782 = vrot.slane %v752, 4
      %v783 = vrot.slane %v754, 4
      %v784 = vrot.slane %v756, 4
      %v785 = vrot.slane %v758, 4
      %v786 = vrot.slane %v760, 4
      %v787 = vrot.slane %v762, 4
      %v788 = vrot.slane %v764, 4
      %v789 = vsel %vm265, %v749, %v781
      %v790 = vsel %vm265, %v751, %v782
      %v791 = vsel %vm265, %v753, %v783
      %v792 = vsel %vm265, %v755, %v784
      %v793 = vsel %vm265, %v757, %v785
      %v794 = vsel %vm265, %v759, %v786
      %v795 = vsel %vm265, %v761, %v787
      %v796 = vsel %vm265, %v763, %v788
      %s797 = scalar_lea.vmem %s1, 1024
      %v798 = vld [vmem:[%s797] sm:$0xff]
      %v799 = vld [vmem:[%s797 + $0x8] sm:$0xff]
      %v800 = vld [vmem:[%s797 + $0x10] sm:$0xff]
      %v801 = vld [vmem:[%s797 + $0x18] sm:$0xff]
      %v802 = vld [vmem:[%s797 + $0x20] sm:$0xff]
      %v803 = vld [vmem:[%s797 + $0x28] sm:$0xff]
      %v804 = vld [vmem:[%s797 + $0x30] sm:$0xff]
      %v805 = vld [vmem:[%s797 + $0x38] sm:$0xff]
      %v806 = vld [vmem:[%s797 + $0x40] sm:$0xff]
      %v807 = vld [vmem:[%s797 + $0x48] sm:$0xff]
      %v808 = vld [vmem:[%s797 + $0x50] sm:$0xff]
      %v809 = vld [vmem:[%s797 + $0x58] sm:$0xff]
      %v810 = vld [vmem:[%s797 + $0x60] sm:$0xff]
      %v811 = vld [vmem:[%s797 + $0x68] sm:$0xff]
      %v812 = vld [vmem:[%s797 + $0x70] sm:$0xff]
      %v813 = vld [vmem:[%s797 + $0x78] sm:$0xff]
      %v814 = vld [vmem:[%s797 + $0x80] sm:$0xff]
      %v815 = vld [vmem:[%s797 + $0x88] sm:$0xff]
      %v816 = vld [vmem:[%s797 + $0x90] sm:$0xff]
      %v817 = vld [vmem:[%s797 + $0x98] sm:$0xff]
      %v818 = vld [vmem:[%s797 + $0xa0] sm:$0xff]
      %v819 = vld [vmem:[%s797 + $0xa8] sm:$0xff]
      %v820 = vld [vmem:[%s797 + $0xb0] sm:$0xff]
      %v821 = vld [vmem:[%s797 + $0xb8] sm:$0xff]
      %v822 = vld [vmem:[%s797 + $0xc0] sm:$0xff]
      %v823 = vld [vmem:[%s797 + $0xc8] sm:$0xff]
      %v824 = vld [vmem:[%s797 + $0xd0] sm:$0xff]
      %v825 = vld [vmem:[%s797 + $0xd8] sm:$0xff]
      %v826 = vld [vmem:[%s797 + $0xe0] sm:$0xff]
      %v827 = vld [vmem:[%s797 + $0xe8] sm:$0xff]
      %v828 = vld [vmem:[%s797 + $0xf0] sm:$0xff]
      %v829 = vld [vmem:[%s797 + $0xf8] sm:$0xff]
      %v830 = vld [vmem:[%s797 + $0x100] sm:$0xff]
      %v831 = vld [vmem:[%s797 + $0x108] sm:$0xff]
      %v832 = vld [vmem:[%s797 + $0x110] sm:$0xff]
      %v833 = vld [vmem:[%s797 + $0x118] sm:$0xff]
      %v834 = vld [vmem:[%s797 + $0x120] sm:$0xff]
      %v835 = vld [vmem:[%s797 + $0x128] sm:$0xff]
      %v836 = vld [vmem:[%s797 + $0x130] sm:$0xff]
      %v837 = vld [vmem:[%s797 + $0x138] sm:$0xff]
      %v838 = vld [vmem:[%s797 + $0x140] sm:$0xff]
      %v839 = vld [vmem:[%s797 + $0x148] sm:$0xff]
      %v840 = vld [vmem:[%s797 + $0x150] sm:$0xff]
      %v841 = vld [vmem:[%s797 + $0x158] sm:$0xff]
      %v842 = vld [vmem:[%s797 + $0x160] sm:$0xff]
      %v843 = vld [vmem:[%s797 + $0x168] sm:$0xff]
      %v844 = vld [vmem:[%s797 + $0x170] sm:$0xff]
      %v845 = vld [vmem:[%s797 + $0x178] sm:$0xff]
      %v846 = vld [vmem:[%s797 + $0x180] sm:$0xff]
      %v847 = vld [vmem:[%s797 + $0x188] sm:$0xff]
      %v848 = vld [vmem:[%s797 + $0x190] sm:$0xff]
      %v849 = vld [vmem:[%s797 + $0x198] sm:$0xff]
      %v850 = vld [vmem:[%s797 + $0x1a0] sm:$0xff]
      %v851 = vld [vmem:[%s797 + $0x1a8] sm:$0xff]
      %v852 = vld [vmem:[%s797 + $0x1b0] sm:$0xff]
      %v853 = vld [vmem:[%s797 + $0x1b8] sm:$0xff]
      %v854 = vld [vmem:[%s797 + $0x1c0] sm:$0xff]
      %v855 = vld [vmem:[%s797 + $0x1c8] sm:$0xff]
      %v856 = vld [vmem:[%s797 + $0x1d0] sm:$0xff]
      %v857 = vld [vmem:[%s797 + $0x1d8] sm:$0xff]
      %v858 = vld [vmem:[%s797 + $0x1e0] sm:$0xff]
      %v859 = vld [vmem:[%s797 + $0x1e8] sm:$0xff]
      %v860 = vld [vmem:[%s797 + $0x1f0] sm:$0xff]
      %v861 = vld [vmem:[%s797 + $0x1f8] sm:$0xff]
      %862 = vst [vmem:[#allocation1] ss:$2 sm:$0xff] %v789
      %s863 = scalar_lea.vmem [#allocation1], 1
      %864 = vst [vmem:[%s863] ss:$2 sm:$0xff] %v791
      %s865 = scalar_lea.vmem [#allocation1], 16
      %866 = vst [vmem:[%s865] ss:$2 sm:$0xff] %v790
      %s867 = scalar_lea.vmem [#allocation1], 17
      %868 = vst [vmem:[%s867] ss:$2 sm:$0xff] %v792
      %s869 = scalar_lea.vmem [#allocation1], 32
      %870 = vst [vmem:[%s869] ss:$2 sm:$0xff] %v793
      %s871 = scalar_lea.vmem [#allocation1], 33
      %872 = vst [vmem:[%s871] ss:$2 sm:$0xff] %v795
      %s873 = scalar_lea.vmem [#allocation1], 48
      %874 = vst [vmem:[%s873] ss:$2 sm:$0xff] %v794
      %s875 = scalar_lea.vmem [#allocation1], 49
      %876 = vst [vmem:[%s875] ss:$2 sm:$0xff] %v796
      %v877 = vld.sshfl [vmem:[#allocation1] sm:$0xff pattern:$0x75316420]
      %v878 = vld.sshfl [vmem:[#allocation1 + $0x8] sm:$0xff pattern:$0x75316420]
      %v879 = vld.sshfl [vmem:[#allocation1 + $0x10] sm:$0xff pattern:$0x75316420]
      %v880 = vld.sshfl [vmem:[#allocation1 + $0x18] sm:$0xff pattern:$0x75316420]
      %v881 = vld.sshfl [vmem:[#allocation1 + $0x20] sm:$0xff pattern:$0x75316420]
      %v882 = vld.sshfl [vmem:[#allocation1 + $0x28] sm:$0xff pattern:$0x75316420]
      %v883 = vld.sshfl [vmem:[#allocation1 + $0x30] sm:$0xff pattern:$0x75316420]
      %v884 = vld.sshfl [vmem:[#allocation1 + $0x38] sm:$0xff pattern:$0x75316420]
      %893 = vmatpush.msra.mxu0 %v813
      %894 = vmatpush.msra.mxu0 %v812
      %895 = vmatpush.msra.mxu0 %v811
      %896 = vmatpush.msra.mxu0 %v810
      %897 = vmatpush.msra.mxu0 %v809
      %898 = vmatpush.msra.mxu0 %v808
      %899 = vmatpush.msra.mxu0 %v807
      %900 = vmatpush.msra.mxu0 %v806
      %901 = vmatpush.msra.mxu0 %v805
      %902 = vmatpush.msra.mxu0 %v804
      %903 = vmatpush.msra.mxu0 %v803
      %904 = vmatpush.msra.mxu0 %v802
      %905 = vmatpush.msra.mxu0 %v801
      %906 = vmatpush.msra.mxu0 %v800
      %907 = vmatpush.msra.mxu0 %v799
      %908 = vmatpush.msra.mxu0 %v798
      %909 = vmatmul.f32.gmra.mxu0 %v877
      %v910 = vpop.f32.mrf.mxu0
      %v911 = vadd.f32 0.0, %v910
      %912 = vmatmul.f32.gmra.mxu0 %v881
      %v913 = vpop.f32.mrf.mxu0
      %v914 = vadd.f32 0.0, %v913
      %915 = vdwg.mxu0
      %916 = vmatpush.msra.mxu0 %v829
      %917 = vmatpush.msra.mxu0 %v828
      %918 = vmatpush.msra.mxu0 %v827
      %919 = vmatpush.msra.mxu0 %v826
      %920 = vmatpush.msra.mxu0 %v825
      %921 = vmatpush.msra.mxu0 %v824
      %922 = vmatpush.msra.mxu0 %v823
      %923 = vmatpush.msra.mxu0 %v822
      %924 = vmatpush.msra.mxu0 %v821
      %925 = vmatpush.msra.mxu0 %v820
      %926 = vmatpush.msra.mxu0 %v819
      %927 = vmatpush.msra.mxu0 %v818
      %928 = vmatpush.msra.mxu0 %v817
      %929 = vmatpush.msra.mxu0 %v816
      %930 = vmatpush.msra.mxu0 %v815
      %931 = vmatpush.msra.mxu0 %v814
      %932 = vmatmul.f32.gmra.mxu0 %v878
      %v933 = vpop.f32.mrf.mxu0
      %v934 = vadd.f32 %v911, %v933
      %935 = vmatmul.f32.gmra.mxu0 %v882
      %v936 = vpop.f32.mrf.mxu0
      %v937 = vadd.f32 %v914, %v936
      %938 = vdwg.mxu0
      %939 = vmatpush.msra.mxu0 %v845
      %940 = vmatpush.msra.mxu0 %v844
      %941 = vmatpush.msra.mxu0 %v843
      %942 = vmatpush.msra.mxu0 %v842
      %943 = vmatpush.msra.mxu0 %v841
      %944 = vmatpush.msra.mxu0 %v840
      %945 = vmatpush.msra.mxu0 %v839
      %946 = vmatpush.msra.mxu0 %v838
      %947 = vmatpush.msra.mxu0 %v837
      %948 = vmatpush.msra.mxu0 %v836
      %949 = vmatpush.msra.mxu0 %v835
      %950 = vmatpush.msra.mxu0 %v834
      %951 = vmatpush.msra.mxu0 %v833
      %952 = vmatpush.msra.mxu0 %v832
      %953 = vmatpush.msra.mxu0 %v831
      %954 = vmatpush.msra.mxu0 %v830
      %955 = vmatmul.f32.gmra.mxu0 %v879
      %v956 = vpop.f32.mrf.mxu0
      %v957 = vadd.f32 %v934, %v956
      %958 = vmatmul.f32.gmra.mxu0 %v883
      %v959 = vpop.f32.mrf.mxu0
      %v960 = vadd.f32 %v937, %v959
      %961 = vdwg.mxu0
      %962 = vmatpush.msra.mxu0 %v861
      %963 = vmatpush.msra.mxu0 %v860
      %964 = vmatpush.msra.mxu0 %v859
      %965 = vmatpush.msra.mxu0 %v858
      %966 = vmatpush.msra.mxu0 %v857
      %967 = vmatpush.msra.mxu0 %v856
      %968 = vmatpush.msra.mxu0 %v855
      %969 = vmatpush.msra.mxu0 %v854
      %970 = vmatpush.msra.mxu0 %v853
      %971 = vmatpush.msra.mxu0 %v852
      %972 = vmatpush.msra.mxu0 %v851
      %973 = vmatpush.msra.mxu0 %v850
      %974 = vmatpush.msra.mxu0 %v849
      %975 = vmatpush.msra.mxu0 %v848
      %976 = vmatpush.msra.mxu0 %v847
      %977 = vmatpush.msra.mxu0 %v846
      %978 = vmatmul.f32.gmra.mxu0 %v880
      %v979 = vpop.f32.mrf.mxu0
      %v980 = vadd.f32 %v957, %v979
      %981 = vmatmul.f32.gmra.mxu0 %v884
      %v982 = vpop.f32.mrf.mxu0
      %v983 = vadd.f32 %v960, %v982
      %984 = vdwg.mxu0
      %v985 = vadd.f32 %v743, %v980
      %v986 = vadd.f32 %v746, %v983
      %v987 = vld [vmem:[%s748] sm:$0x1e]
      %v988 = vld [vmem:[%s748 + $0x8] sm:$0x1e]
      %v989 = vld [vmem:[%s748 + $0x10] sm:$0x1e]
      %v990 = vld [vmem:[%s748 + $0x18] sm:$0x1e]
      %v991 = vld [vmem:[%s748 + $0x20] sm:$0x1e]
      %v992 = vld [vmem:[%s748 + $0x28] sm:$0x1e]
      %v993 = vld [vmem:[%s748 + $0x30] sm:$0x1e]
      %v994 = vld [vmem:[%s748 + $0x38] sm:$0x1e]
      %v995 = vld [vmem:[%s748 + $0x40] sm:$0x1e]
      %v996 = vld [vmem:[%s748 + $0x48] sm:$0x1e]
      %v997 = vld [vmem:[%s748 + $0x50] sm:$0x1e]
      %v998 = vld [vmem:[%s748 + $0x58] sm:$0x1e]
      %v999 = vld [vmem:[%s748 + $0x60] sm:$0x1e]
      %v1000 = vld [vmem:[%s748 + $0x68] sm:$0x1e]
      %v1001 = vld [vmem:[%s748 + $0x70] sm:$0x1e]
      %v1002 = vld [vmem:[%s748 + $0x78] sm:$0x1e]
      %v1019 = vrot.slane %v988, 4
      %v1020 = vrot.slane %v990, 4
      %v1021 = vrot.slane %v992, 4
      %v1022 = vrot.slane %v994, 4
      %v1023 = vrot.slane %v996, 4
      %v1024 = vrot.slane %v998, 4
      %v1025 = vrot.slane %v1000, 4
      %v1026 = vrot.slane %v1002, 4
      %v1027 = vsel %vm265, %v987, %v1019
      %v1028 = vsel %vm265, %v989, %v1020
      %v1029 = vsel %vm265, %v1019, %v987
      %v1030 = vrot.slane %v1029, 4
      %v1031 = vsel %vm265, %v1020, %v989
      %v1032 = vrot.slane %v1031, 4
      %v1033 = vsel %vm265, %v991, %v1021
      %v1034 = vsel %vm265, %v993, %v1022
      %v1035 = vsel %vm265, %v1021, %v991
      %v1036 = vrot.slane %v1035, 4
      %v1037 = vsel %vm265, %v1022, %v993
      %v1038 = vrot.slane %v1037, 4
      %v1039 = vsel %vm265, %v995, %v1023
      %v1040 = vsel %vm265, %v997, %v1024
      %v1041 = vsel %vm265, %v1023, %v995
      %v1042 = vrot.slane %v1041, 4
      %v1043 = vsel %vm265, %v1024, %v997
      %v1044 = vrot.slane %v1043, 4
      %v1045 = vsel %vm265, %v999, %v1025
      %v1046 = vsel %vm265, %v1001, %v1026
      %v1047 = vsel %vm265, %v1025, %v999
      %v1048 = vrot.slane %v1047, 4
      %v1049 = vsel %vm265, %v1026, %v1001
      %v1050 = vrot.slane %v1049, 4
      %v1051 = vrot.slane %v1027, 5
      %v1052 = vrot.slane %v1051, 4
      %v1053 = vrot.slane %v1030, 5
      %v1054 = vsel %vm404, %v1052, %v1053
      %v1055 = vrot.slane %v1028, 5
      %v1056 = vrot.slane %v1055, 4
      %v1057 = vrot.slane %v1032, 5
      %v1058 = vsel %vm404, %v1056, %v1057
      %v1059 = vrot.slane %v1033, 5
      %v1060 = vrot.slane %v1059, 4
      %v1061 = vrot.slane %v1036, 5
      %v1062 = vsel %vm404, %v1060, %v1061
      %v1063 = vrot.slane %v1034, 5
      %v1064 = vrot.slane %v1063, 4
      %v1065 = vrot.slane %v1038, 5
      %v1066 = vsel %vm404, %v1064, %v1065
      %v1067 = vrot.slane %v1039, 5
      %v1068 = vrot.slane %v1067, 4
      %v1069 = vrot.slane %v1042, 5
      %v1070 = vsel %vm404, %v1068, %v1069
      %v1071 = vrot.slane %v1040, 5
      %v1072 = vrot.slane %v1071, 4
      %v1073 = vrot.slane %v1044, 5
      %v1074 = vsel %vm404, %v1072, %v1073
      %v1075 = vrot.slane %v1045, 5
      %v1076 = vrot.slane %v1075, 4
      %v1077 = vrot.slane %v1048, 5
      %v1078 = vsel %vm404, %v1076, %v1077
      %v1079 = vrot.slane %v1046, 5
      %v1080 = vrot.slane %v1079, 4
      %v1081 = vrot.slane %v1050, 5
      %v1082 = vsel %vm404, %v1080, %v1081
      %s1083 = scalar_lea.vmem %s1, 1536
      %v1084 = vld [vmem:[%s1083] sm:$0xff]
      %v1085 = vld [vmem:[%s1083 + $0x8] sm:$0xff]
      %v1086 = vld [vmem:[%s1083 + $0x10] sm:$0xff]
      %v1087 = vld [vmem:[%s1083 + $0x18] sm:$0xff]
      %v1088 = vld [vmem:[%s1083 + $0x20] sm:$0xff]
      %v1089 = vld [vmem:[%s1083 + $0x28] sm:$0xff]
      %v1090 = vld [vmem:[%s1083 + $0x30] sm:$0xff]
      %v1091 = vld [vmem:[%s1083 + $0x38] sm:$0xff]
      %v1092 = vld [vmem:[%s1083 + $0x40] sm:$0xff]
      %v1093 = vld [vmem:[%s1083 + $0x48] sm:$0xff]
      %v1094 = vld [vmem:[%s1083 + $0x50] sm:$0xff]
      %v1095 = vld [vmem:[%s1083 + $0x58] sm:$0xff]
      %v1096 = vld [vmem:[%s1083 + $0x60] sm:$0xff]
      %v1097 = vld [vmem:[%s1083 + $0x68] sm:$0xff]
      %v1098 = vld [vmem:[%s1083 + $0x70] sm:$0xff]
      %v1099 = vld [vmem:[%s1083 + $0x78] sm:$0xff]
      %v1100 = vld [vmem:[%s1083 + $0x80] sm:$0xff]
      %v1101 = vld [vmem:[%s1083 + $0x88] sm:$0xff]
      %v1102 = vld [vmem:[%s1083 + $0x90] sm:$0xff]
      %v1103 = vld [vmem:[%s1083 + $0x98] sm:$0xff]
      %v1104 = vld [vmem:[%s1083 + $0xa0] sm:$0xff]
      %v1105 = vld [vmem:[%s1083 + $0xa8] sm:$0xff]
      %v1106 = vld [vmem:[%s1083 + $0xb0] sm:$0xff]
      %v1107 = vld [vmem:[%s1083 + $0xb8] sm:$0xff]
      %v1108 = vld [vmem:[%s1083 + $0xc0] sm:$0xff]
      %v1109 = vld [vmem:[%s1083 + $0xc8] sm:$0xff]
      %v1110 = vld [vmem:[%s1083 + $0xd0] sm:$0xff]
      %v1111 = vld [vmem:[%s1083 + $0xd8] sm:$0xff]
      %v1112 = vld [vmem:[%s1083 + $0xe0] sm:$0xff]
      %v1113 = vld [vmem:[%s1083 + $0xe8] sm:$0xff]
      %v1114 = vld [vmem:[%s1083 + $0xf0] sm:$0xff]
      %v1115 = vld [vmem:[%s1083 + $0xf8] sm:$0xff]
      %v1116 = vld [vmem:[%s1083 + $0x100] sm:$0xff]
      %v1117 = vld [vmem:[%s1083 + $0x108] sm:$0xff]
      %v1118 = vld [vmem:[%s1083 + $0x110] sm:$0xff]
      %v1119 = vld [vmem:[%s1083 + $0x118] sm:$0xff]
      %v1120 = vld [vmem:[%s1083 + $0x120] sm:$0xff]
      %v1121 = vld [vmem:[%s1083 + $0x128] sm:$0xff]
      %v1122 = vld [vmem:[%s1083 + $0x130] sm:$0xff]
      %v1123 = vld [vmem:[%s1083 + $0x138] sm:$0xff]
      %v1124 = vld [vmem:[%s1083 + $0x140] sm:$0xff]
      %v1125 = vld [vmem:[%s1083 + $0x148] sm:$0xff]
      %v1126 = vld [vmem:[%s1083 + $0x150] sm:$0xff]
      %v1127 = vld [vmem:[%s1083 + $0x158] sm:$0xff]
      %v1128 = vld [vmem:[%s1083 + $0x160] sm:$0xff]
      %v1129 = vld [vmem:[%s1083 + $0x168] sm:$0xff]
      %v1130 = vld [vmem:[%s1083 + $0x170] sm:$0xff]
      %v1131 = vld [vmem:[%s1083 + $0x178] sm:$0xff]
      %v1132 = vld [vmem:[%s1083 + $0x180] sm:$0xff]
      %v1133 = vld [vmem:[%s1083 + $0x188] sm:$0xff]
      %v1134 = vld [vmem:[%s1083 + $0x190] sm:$0xff]
      %v1135 = vld [vmem:[%s1083 + $0x198] sm:$0xff]
      %v1136 = vld [vmem:[%s1083 + $0x1a0] sm:$0xff]
      %v1137 = vld [vmem:[%s1083 + $0x1a8] sm:$0xff]
      %v1138 = vld [vmem:[%s1083 + $0x1b0] sm:$0xff]
      %v1139 = vld [vmem:[%s1083 + $0x1b8] sm:$0xff]
      %v1140 = vld [vmem:[%s1083 + $0x1c0] sm:$0xff]
      %v1141 = vld [vmem:[%s1083 + $0x1c8] sm:$0xff]
      %v1142 = vld [vmem:[%s1083 + $0x1d0] sm:$0xff]
      %v1143 = vld [vmem:[%s1083 + $0x1d8] sm:$0xff]
      %v1144 = vld [vmem:[%s1083 + $0x1e0] sm:$0xff]
      %v1145 = vld [vmem:[%s1083 + $0x1e8] sm:$0xff]
      %v1146 = vld [vmem:[%s1083 + $0x1f0] sm:$0xff]
      %v1147 = vld [vmem:[%s1083 + $0x1f8] sm:$0xff]
      %1148 = vst [vmem:[#allocation1] ss:$2 sm:$0xff] %v1054
      %s1149 = scalar_lea.vmem [#allocation1], 1
      %1150 = vst [vmem:[%s1149] ss:$2 sm:$0xff] %v1062
      %s1151 = scalar_lea.vmem [#allocation1], 16
      %1152 = vst [vmem:[%s1151] ss:$2 sm:$0xff] %v1058
      %s1153 = scalar_lea.vmem [#allocation1], 17
      %1154 = vst [vmem:[%s1153] ss:$2 sm:$0xff] %v1066
      %s1155 = scalar_lea.vmem [#allocation1], 32
      %1156 = vst [vmem:[%s1155] ss:$2 sm:$0xff] %v1070
      %s1157 = scalar_lea.vmem [#allocation1], 33
      %1158 = vst [vmem:[%s1157] ss:$2 sm:$0xff] %v1078
      %s1159 = scalar_lea.vmem [#allocation1], 48
      %1160 = vst [vmem:[%s1159] ss:$2 sm:$0xff] %v1074
      %s1161 = scalar_lea.vmem [#allocation1], 49
      %1162 = vst [vmem:[%s1161] ss:$2 sm:$0xff] %v1082
      %v1163 = vld.sshfl [vmem:[#allocation1] sm:$0xff pattern:$0x75316420]
      %v1164 = vld.sshfl [vmem:[#allocation1 + $0x8] sm:$0xff pattern:$0x75316420]
      %v1165 = vld.sshfl [vmem:[#allocation1 + $0x10] sm:$0xff pattern:$0x75316420]
      %v1166 = vld.sshfl [vmem:[#allocation1 + $0x18] sm:$0xff pattern:$0x75316420]
      %v1167 = vld.sshfl [vmem:[#allocation1 + $0x20] sm:$0xff pattern:$0x75316420]
      %v1168 = vld.sshfl [vmem:[#allocation1 + $0x28] sm:$0xff pattern:$0x75316420]
      %v1169 = vld.sshfl [vmem:[#allocation1 + $0x30] sm:$0xff pattern:$0x75316420]
      %v1170 = vld.sshfl [vmem:[#allocation1 + $0x38] sm:$0xff pattern:$0x75316420]
      %1179 = vmatpush.msra.mxu0 %v1099
      %1180 = vmatpush.msra.mxu0 %v1098
      %1181 = vmatpush.msra.mxu0 %v1097
      %1182 = vmatpush.msra.mxu0 %v1096
      %1183 = vmatpush.msra.mxu0 %v1095
      %1184 = vmatpush.msra.mxu0 %v1094
      %1185 = vmatpush.msra.mxu0 %v1093
      %1186 = vmatpush.msra.mxu0 %v1092
      %1187 = vmatpush.msra.mxu0 %v1091
      %1188 = vmatpush.msra.mxu0 %v1090
      %1189 = vmatpush.msra.mxu0 %v1089
      %1190 = vmatpush.msra.mxu0 %v1088
      %1191 = vmatpush.msra.mxu0 %v1087
      %1192 = vmatpush.msra.mxu0 %v1086
      %1193 = vmatpush.msra.mxu0 %v1085
      %1194 = vmatpush.msra.mxu0 %v1084
      %1195 = vmatmul.f32.gmra.mxu0 %v1163
      %v1196 = vpop.f32.mrf.mxu0
      %v1197 = vadd.f32 0.0, %v1196
      %1198 = vmatmul.f32.gmra.mxu0 %v1167
      %v1199 = vpop.f32.mrf.mxu0
      %v1200 = vadd.f32 0.0, %v1199
      %1201 = vdwg.mxu0
      %1202 = vmatpush.msra.mxu0 %v1115
      %1203 = vmatpush.msra.mxu0 %v1114
      %1204 = vmatpush.msra.mxu0 %v1113
      %1205 = vmatpush.msra.mxu0 %v1112
      %1206 = vmatpush.msra.mxu0 %v1111
      %1207 = vmatpush.msra.mxu0 %v1110
      %1208 = vmatpush.msra.mxu0 %v1109
      %1209 = vmatpush.msra.mxu0 %v1108
      %1210 = vmatpush.msra.mxu0 %v1107
      %1211 = vmatpush.msra.mxu0 %v1106
      %1212 = vmatpush.msra.mxu0 %v1105
      %1213 = vmatpush.msra.mxu0 %v1104
      %1214 = vmatpush.msra.mxu0 %v1103
      %1215 = vmatpush.msra.mxu0 %v1102
      %1216 = vmatpush.msra.mxu0 %v1101
      %1217 = vmatpush.msra.mxu0 %v1100
      %1218 = vmatmul.f32.gmra.mxu0 %v1164
      %v1219 = vpop.f32.mrf.mxu0
      %v1220 = vadd.f32 %v1197, %v1219
      %1221 = vmatmul.f32.gmra.mxu0 %v1168
      %v1222 = vpop.f32.mrf.mxu0
      %v1223 = vadd.f32 %v1200, %v1222
      %1224 = vdwg.mxu0
      %1225 = vmatpush.msra.mxu0 %v1131
      %1226 = vmatpush.msra.mxu0 %v1130
      %1227 = vmatpush.msra.mxu0 %v1129
      %1228 = vmatpush.msra.mxu0 %v1128
      %1229 = vmatpush.msra.mxu0 %v1127
      %1230 = vmatpush.msra.mxu0 %v1126
      %1231 = vmatpush.msra.mxu0 %v1125
      %1232 = vmatpush.msra.mxu0 %v1124
      %1233 = vmatpush.msra.mxu0 %v1123
      %1234 = vmatpush.msra.mxu0 %v1122
      %1235 = vmatpush.msra.mxu0 %v1121
      %1236 = vmatpush.msra.mxu0 %v1120
      %1237 = vmatpush.msra.mxu0 %v1119
      %1238 = vmatpush.msra.mxu0 %v1118
      %1239 = vmatpush.msra.mxu0 %v1117
      %1240 = vmatpush.msra.mxu0 %v1116
      %1241 = vmatmul.f32.gmra.mxu0 %v1165
      %v1242 = vpop.f32.mrf.mxu0
      %v1243 = vadd.f32 %v1220, %v1242
      %1244 = vmatmul.f32.gmra.mxu0 %v1169
      %v1245 = vpop.f32.mrf.mxu0
      %v1246 = vadd.f32 %v1223, %v1245
      %1247 = vdwg.mxu0
      %1248 = vmatpush.msra.mxu0 %v1147
      %1249 = vmatpush.msra.mxu0 %v1146
      %1250 = vmatpush.msra.mxu0 %v1145
      %1251 = vmatpush.msra.mxu0 %v1144
      %1252 = vmatpush.msra.mxu0 %v1143
      %1253 = vmatpush.msra.mxu0 %v1142
      %1254 = vmatpush.msra.mxu0 %v1141
      %1255 = vmatpush.msra.mxu0 %v1140
      %1256 = vmatpush.msra.mxu0 %v1139
      %1257 = vmatpush.msra.mxu0 %v1138
      %1258 = vmatpush.msra.mxu0 %v1137
      %1259 = vmatpush.msra.mxu0 %v1136
      %1260 = vmatpush.msra.mxu0 %v1135
      %1261 = vmatpush.msra.mxu0 %v1134
      %1262 = vmatpush.msra.mxu0 %v1133
      %1263 = vmatpush.msra.mxu0 %v1132
      %1264 = vmatmul.f32.gmra.mxu0 %v1166
      %v1265 = vpop.f32.mrf.mxu0
      %v1266 = vadd.f32 %v1243, %v1265
      %1267 = vmatmul.f32.gmra.mxu0 %v1170
      %v1268 = vpop.f32.mrf.mxu0
      %v1269 = vadd.f32 %v1246, %v1268
      %1270 = vdwg.mxu0
      %v1271 = vadd.f32 %v985, %v1266
      %v1272 = vadd.f32 %v986, %v1269
      %v1273 = vld [vmem:[%s2] sm:$0x1]
      %v1275 = vperm.slane %v1273, 0
      %v1277 = vadd.f32 %v1271, %v1275
      %v1278 = vadd.f32 %v1272, %v1275
      %vm1279 = vcmp.ge.f32.partialorder %v1277, 0.0
      %vm1280 = vcmp.ge.f32.partialorder %v1278, 0.0
      %v1281 = vmul.f32 %v1277, 0.01
      %v1282 = vmul.f32 %v1278, 0.01
      %v1283 = vsel %vm1279, %v1277, %v1281
      %v1284 = vsel %vm1280, %v1278, %v1282
      %v1285 = vld [vmem:[%s3] sm:$0x1]
      %v1287 = vperm.slane %v1285, 0
      %v1289 = vmul.f32 %v1283, %v1287
      %v1290 = vmul.f32 %v1284, %v1287
      %v1291 = vld [vmem:[%s4] sm:$0x1]
      %v1293 = vperm.slane %v1291, 0
      %v1295 = vadd.f32 %v1289, %v1293
      %v1296 = vadd.f32 %v1290, %v1293
      %1297 = vst [vmem:[%s224] sm:$0xff] %v1295
      %1298 = vst [vmem:[%s224 + $0x8] sm:$0xff] %v1296
      %p1299 = scmp.lt.s32.totalorder %s16, 1
      %s1300 = scalar_select %p1299, %s16, 1
      %s1301 = smul.addr %s1300, 2
      %s1302 = smul.addr %s1301, 8
      %s1303 = scalar_lea.vmem %s5, %s1302
      // Predicated region
      $region41: #{encoder_forward.6} parent=39 // pred_check
        %p1304 = pneg %p144
      $region42: #{encoder_forward.6} parent=39 // pred_check_branch
        %1306 = sbr.rel (%p1304) target = $region44
      $region43: #{encoder_forward.6} parent=39 // pred_region
        _
      $region44: #{encoder_forward.6} parent=39 // pred_fallthru
        _
    $region40: #{encoder_forward.6} parent=5 // pred_fallthru
      _
    %p1307 = scmp.le.s32.totalorder 2, %s11
    // Predicated region
    $region45: #{encoder_forward.6} parent=5 // pred_check
      %p1308 = pneg %p1307
    $region46: #{encoder_forward.6} parent=5 // pred_check_branch
      %1310 = sbr.rel (%p1308) target = $region48
    $region47: #{encoder_forward.6} parent=5 // pred_region
      %s1311 = ssub.s32 %s11, 2
      // Predicated region
      $region49: #{encoder_forward.6} parent=47 // pred_check
        %p1312 = pneg %p150
      $region50: #{encoder_forward.6} parent=47 // pred_check_branch
        %1314 = sbr.rel (%p1312) target = $region52
      $region51: #{encoder_forward.6} parent=47 // pred_region
        %p1315 = scmp.lt.s32.totalorder %s17, 1
        %s1316 = scalar_select %p1315, %s17, 1
        %s1317 = smul.addr %s1316, 2
        %s1318 = smul.addr %s1317, 8
        %s1319 = scalar_lea.vmem %s5, %s1318
      $region52: #{encoder_forward.6} parent=47 // pred_fallthru
        _
    $region48: #{encoder_forward.6} parent=5 // pred_fallthru
      _
  $region6: #{encoder_forward.6} parent=0 // loop_footer
    %s15 = sadd.s32 1, %s11
  $region7: #{encoder_forward.6} parent=0 // loop_footer_branch
    %10 = sbr.rel target = $region3
  $region8: #{encoder_forward.6} parent=0 // loop_exit
    _

</llo_original>
